<compile_context>
chip_gen: v7x
topology: tpu7x:2x2x1
jax: 0.10.0
libtpu: 0.0.40
codegen_flags: <defaults>
</compile_context>

<pallas_src>
import numpy as np
import jax
import jax.numpy as jnp
from jax.experimental import pallas as pl
from jax.experimental.pallas import tpu as pltpu

COMPUTE_DTYPE = jnp.bfloat16   # MXU input dtype; storage / accumulation / epilogue stay f32


def _round_up(x, m):
    return (x + m - 1) // m * m


def _elu(x):
    # F.elu(alpha=1) == AdaptiveELU(0, 0); clamp the exp arg so the untaken branch of
    # the where never overflows.
    return jnp.where(x > 0.0, x, jnp.exp(jnp.minimum(x, 0.0)) - 1.0)


def _pick_images_per_step(n):
    # Stack several images along the GEMM row dim per grid step, but keep the grid at
    # >= 2 steps when possible so both TensorCores of a v7x chip get work.
    for b in (8, 4, 2):
        if n % b == 0 and n // b >= 2:
            return b
    return 1


def _full_spec(a):
    return pl.BlockSpec(a.shape, lambda n, _nd=a.ndim: (0,) * _nd)


def _make_irnet_kernel(H, W, cin, B, cd=COMPUTE_DTYPE):
    """Fused stem + Mixed_5b kernel for B images of size (H, W, cin) per grid step."""
    # ---------------------------- static geometry ----------------------------
    H1, W1 = H - 2, W - 2            # conv2d_1a out
    H2, W2 = H1 - 2, W1 - 2          # conv2d_2a / 2b / 3b out
    H3, W3 = H2 - 2, W2 - 2          # conv2d_4a / Mixed_5b out
    # flat row strides (row = h*S + w), rounded to sublane multiples so flat <-> (H,W,C)
    # reshapes are layout preserving
    SA = _round_up(W1, 8)            # im2col'd input / y1a / y2a domain
    SB = _round_up(W2 + 2, 8)        # pad-1 conv2d_2b domain (y2b / y3b / y4a / ym0)
    SC = _round_up(W3 + 2, 8)        # pad-1 Mixed_5b domain (branch2 convs / avg pool)
    SD = _round_up(W3 + 4, 8)        # pad-2 branch1 5x5 domain
    ROW_A = H1 * SA                  # per-image flat row counts in each domain
    ROW_B = (H2 + 2) * SB
    ROW_C = (H3 + 2) * SC
    ROW_D = (H3 + 4) * SD
    CIN9 = 9 * cin

    def _pad_rows(v, need):
        r, c = v.shape
        if need > r:
            v = jnp.concatenate([v, jnp.zeros((need - r, c), v.dtype)], axis=0)
        return v

    def conv_flat(src, s, k, w_ref, b_ref, rows):
        """k x k stride-1 conv on a flat (row = h*s + w) activation.

        kw taps are folded into the contraction dim: k GEMMs with K = k*Cin.  Flat rows
        whose w is outside the valid width are garbage and never consumed downstream."""
        src = _pad_rows(src.astype(cd), (k - 1) * s + (k - 1) + rows)
        acc = None
        for kh in range(k):
            base = kh * s
            lhs = jnp.concatenate(
                [src[base + kw:base + kw + rows, :] for kw in range(k)], axis=1)
            d = jnp.dot(lhs, w_ref[kh], preferred_element_type=jnp.float32)
            acc = d if acc is None else acc + d
        return _elu(acc + b_ref[...])          # folded-BN bias + ELU epilogue (f32)

    def valid4(flat, s, hblk, hv, wv):
        """flat (B*hblk*s, C) -> valid (B, hv, wv, C)."""
        c = flat.shape[-1]
        return flat.reshape(B, hblk, s, c)[:, :hv, :wv, :]

    def pad_img(v, pad, s_new):
        """(B, Hv, Wv, C) -> zero-bordered flat (B*(Hv+2*pad)*s_new, C), stride s_new."""
        b_, hv, wv, c = v.shape
        v = jnp.concatenate(
            [jnp.zeros((b_, hv, pad, c), v.dtype), v,
             jnp.zeros((b_, hv, s_new - wv - pad, c), v.dtype)], axis=2)
        zt = jnp.zeros((b_, pad, s_new, c), v.dtype)
        v = jnp.concatenate([zt, v, zt], axis=1)
        return v.reshape(b_ * (hv + 2 * pad) * s_new, c)

    def kernel(x_ref,
               w1a, b1a, w2a, b2a, w2b, b2b, w3b, b3b, w4a, b4a,
               wm0, bm0, wb1, bb1, wb2a, bb2a, wb2b, bb2b, wb3, bb3,
               inv_ref, out_ref):
        # -------------------------------- stem --------------------------------
        x = x_ref[...].reshape(B * ROW_A, CIN9)              # wrapper-side im2col, bf16
        y1a = _elu(jnp.dot(x, w1a[...], preferred_element_type=jnp.float32) + b1a[...])
        y2a = conv_flat(y1a, SA, 3, w2a, b2a, B * ROW_A)
        p2b = pad_img(valid4(y2a, SA, H1, H2, W2), 1, SB)
        y2b = conv_flat(p2b, SB, 3, w2b, b2b, B * ROW_B)
        y3b = _elu(jnp.dot(y2b.astype(cd), w3b[...],
                           preferred_element_type=jnp.float32) + b3b[...])
        y4a = conv_flat(y3b, SB, 3, w4a, b4a, B * ROW_B)

        # ------------------------------ Mixed_5b ------------------------------
        # branch0 / branch1-1x1 / branch2-1x1 fused into one 192->208 GEMM.
        ym0 = _elu(jnp.dot(y4a.astype(cd), wm0[...],
                           preferred_element_type=jnp.float32) + bm0[...])
        ym0_v = valid4(ym0, SB, H2 + 2, H3, W3)
        b0 = ym0_v[..., 0:96]

        # branch1: 5x5 conv (pad 2) on channels [96:144)
        pb1 = pad_img(ym0_v[..., 96:144], 2, SD)
        b1 = valid4(conv_flat(pb1, SD, 5, wb1, bb1, B * ROW_D), SD, H3 + 4, H3, W3)

        # branch2: 3x3 (pad 1) -> 3x3 (pad 1) on channels [144:208)
        pb2a = pad_img(ym0_v[..., 144:208], 1, SC)
        yb2a = conv_flat(pb2a, SC, 3, wb2a, bb2a, B * ROW_C)
        pb2b = pad_img(valid4(yb2a, SC, H3 + 2, H3, W3), 1, SC)
        b2 = valid4(conv_flat(pb2b, SC, 3, wb2b, bb2b, B * ROW_C), SC, H3 + 2, H3, W3)

        # branch3: AvgPool2d(3,1,1, count_include_pad=False) fused with its 1x1 conv:
        # the pool is linear, so run the 192->64 GEMM on the 3x3 window *sum* and apply
        # the per-position 1/count afterwards.
        ppool = _pad_rows(pad_img(valid4(y4a, SB, H2 + 2, H3, W3), 1, SC),
                          2 * SC + 2 + B * ROW_C)
        psum = None
        for kh in range(3):
            for kw in range(3):
                t = kh * SC + kw
                v = ppool[t:t + B * ROW_C, :]
                psum = v if psum is None else psum + v
        z = jnp.dot(psum.astype(cd), wb3[...], preferred_element_type=jnp.float32)
        b3 = _elu(valid4(z, SC, H3 + 2, H3, W3) * inv_ref[...] + bb3[...])

        # single lane-dense NHWC store, branch order matches torch.cat((x0,x1,x2,x3), 1)
        out_ref[...] = jnp.concatenate([b0, b1, b2, b3], axis=-1)

    geom = dict(H1=H1, W1=W1, H3=H3, W3=W3, SA=SA)
    return kernel, geom


# ----------------------------------------------------------------------------
# Parameter init (deterministic, synthetic), packing and forward
# ----------------------------------------------------------------------------
def init_basic_conv(key, cin, cout, k):
    k1, k2, k3, k4, k5 = jax.random.split(key, 5)
    w = jax.random.normal(k1, (k, k, cin, cout), jnp.float32) * (2.0 / (k * k * cin)) ** 0.5
    gamma = 1.0 + 0.1 * jax.random.normal(k2, (cout,), jnp.float32)
    beta = 0.1 * jax.random.normal(k3, (cout,), jnp.float32)
    mean = 0.1 * jax.random.normal(k4, (cout,), jnp.float32)
    var = jnp.abs(jax.random.normal(k5, (cout,), jnp.float32)) + 0.5
    eps = 1e-3  # BatchNorm2d(eps=0.001)
    scale = gamma / jnp.sqrt(var + eps)
    bias = beta - mean * scale
    return dict(w=w, scale=scale, bias=bias)


def init_irnet_params(key, in_channels=3):
    specs = {
        'conv2d_1a': (in_channels, 32, 3),
        'conv2d_2a': (32, 32, 3),
        'conv2d_2b': (32, 64, 3),
        'conv2d_3b': (64, 80, 1),
        'conv2d_4a': (80, 192, 3),
        'm5b_b0':   (192, 96, 1),
        'm5b_b1_0': (192, 48, 1),
        'm5b_b1_1': (48, 64, 5),
        'm5b_b2_0': (192, 64, 1),
        'm5b_b2_1': (64, 96, 3),
        'm5b_b2_2': (96, 96, 3),
        'm5b_b3_1': (192, 64, 1),
    }
    keys = jax.random.split(key, len(specs))
    return {name: init_basic_conv(k, *spec)
            for (name, spec), k in zip(specs.items(), keys)}


def pack_irnet_params(params, cd=COMPUTE_DTYPE):
    """Fold BN into the conv weights, fold the kw taps into the contraction dim
    ((k, k*Cin, Cout)), cast to the MXU dtype and fuse the three Mixed_5b 1x1 convs.
    Done once, outside the jitted forward."""
    def fold(name):
        p = params[name]
        w = p['w'] * p['scale'][None, None, None, :]
        return w, p['bias'].reshape(1, -1).astype(jnp.float32)

    def kxk(name):                       # (k, k, ci, co) -> (k, k*ci, co)
        w, b = fold(name)
        k, _, ci, co = w.shape
        return w.reshape(k, k * ci, co).astype(cd), b

    def one(name):                       # 1x1 -> (ci, co)
        w, b = fold(name)
        return w[0, 0].astype(cd), b

    w1a_, b1a = fold('conv2d_1a')        # conv2d_1a is fully im2col'd: (3*3*ci, co)
    k, _, ci, co = w1a_.shape
    w1a = w1a_.reshape(k * k * ci, co).astype(cd)
    w2a, b2a = kxk('conv2d_2a')
    w2b, b2b = kxk('conv2d_2b')
    w3b, b3b = one('conv2d_3b')
    w4a, b4a = kxk('conv2d_4a')
    wb1, bb1 = kxk('m5b_b1_1')
    wb2a, bb2a = kxk('m5b_b2_1')
    wb2b, bb2b = kxk('m5b_b2_2')
    wb3, bb3 = one('m5b_b3_1')
    # fused Mixed_5b 1x1 trio: columns = [branch0 (96) | branch1_0 (48) | branch2_0 (64)]
    parts = [one('m5b_b0'), one('m5b_b1_0'), one('m5b_b2_0')]
    wm0 = jnp.concatenate([p[0] for p in parts], axis=-1)
    bm0 = jnp.concatenate([p[1] for p in parts], axis=-1)
    return (w1a, b1a, w2a, b2a, w2b, b2b, w3b, b3b, w4a, b4a,
            wm0, bm0, wb1, bb1, wb2a, bb2a, wb2b, bb2b, wb3, bb3)


@jax.jit
def irnet_forward(x_nchw, packed):
    """x_nchw: (N, Cin, H, W) float32 -> (N, 320, H-6, W-6) float32."""
    N, cin, H, W = x_nchw.shape
    assert H >= 8 and W >= 8, "spatial dims must be >= 8"
    B = _pick_images_per_step(N)
    kernel, g = _make_irnet_kernel(H, W, cin, B)
    H1, W1, H3, W3, SA = g['H1'], g['W1'], g['H3'], g['W3'], g['SA']

    # conv2d_1a im2col in the wrapper -> a single K=9*Cin GEMM inside the kernel.
    # The row stride is padded up to the aligned SA (pad columns feed only garbage rows).
    xp = jnp.transpose(x_nchw, (0, 2, 3, 1))
    xi = jnp.concatenate(
        [xp[:, kh:kh + H1, kw:kw + W1, :] for kh in range(3) for kw in range(3)],
        axis=-1)
    xi = jnp.pad(xi, ((0, 0), (0, 0), (0, SA - W1), (0, 0)))
    xi = xi.reshape(N, H1 * SA, 9 * cin).astype(COMPUTE_DTYPE)

    # lane-dense 1/count map of the 3x3 count_include_pad=False average pool
    rc = np.array([min(i, 1) + 1 + min(H3 - 1 - i, 1) for i in range(H3)], np.float32)
    cc = np.array([min(j, 1) + 1 + min(W3 - 1 - j, 1) for j in range(W3)], np.float32)
    inv = jnp.asarray(
        np.broadcast_to((1.0 / (rc[:, None] * cc[None, :]))[:, :, None],
                        (H3, W3, 64)).copy())

    in_specs = [pl.BlockSpec((B, H1 * SA, 9 * cin), lambda n: (n, 0, 0))]
    in_specs += [_full_spec(a) for a in packed]
    in_specs += [_full_spec(inv)]

    out_nhwc = pl.pallas_call(
        kernel,
        out_shape=jax.ShapeDtypeStruct((N, H3, W3, 320), jnp.float32),
        grid=(N // B,),
        in_specs=in_specs,
        out_specs=pl.BlockSpec((B, H3, W3, 320), lambda n: (n, 0, 0, 0)),
        compiler_params=pltpu.CompilerParams(
            dimension_semantics=("parallel",),
            vmem_limit_bytes=48 * 1024 * 1024),
    )(xi, *packed, inv)
    return jnp.transpose(out_nhwc, (0, 3, 1, 2))   # back to NCHW


# ----------------------------------------------------------------------------
# Pure-JAX (XLA) reference of the same module, for a correctness cross-check
# ----------------------------------------------------------------------------
def _ref_conv_bn_elu(x, p, pad):
    y = jax.lax.conv_general_dilated(
        x, p['w'], window_strides=(1, 1),
        padding=((pad, pad), (pad, pad)),
        dimension_numbers=('NHWC', 'HWIO', 'NHWC'))
    return _elu(y * p['scale'] + p['bias'])


def _ref_avgpool3(x):
    win, strd = (1, 3, 3, 1), (1, 1, 1, 1)
    pad = ((0, 0), (1, 1), (1, 1), (0, 0))
    ssum = jax.lax.reduce_window(x, 0.0, jax.lax.add, win, strd, pad)
    cnt = jax.lax.reduce_window(jnp.ones_like(x[..., :1]), 0.0, jax.lax.add,
                                win, strd, pad)
    return ssum / cnt


@jax.jit
def irnet_reference(x_nchw, params):
    x = jnp.transpose(x_nchw, (0, 2, 3, 1))
    x = _ref_conv_bn_elu(x, params['conv2d_1a'], 0)
    x = _ref_conv_bn_elu(x, params['conv2d_2a'], 0)
    x = _ref_conv_bn_elu(x, params['conv2d_2b'], 1)
    x = _ref_conv_bn_elu(x, params['conv2d_3b'], 0)
    x = _ref_conv_bn_elu(x, params['conv2d_4a'], 0)
    b0 = _ref_conv_bn_elu(x, params['m5b_b0'], 0)
    b1 = _ref_conv_bn_elu(x, params['m5b_b1_0'], 0)
    b1 = _ref_conv_bn_elu(b1, params['m5b_b1_1'], 2)
    b2 = _ref_conv_bn_elu(x, params['m5b_b2_0'], 0)
    b2 = _ref_conv_bn_elu(b2, params['m5b_b2_1'], 1)
    b2 = _ref_conv_bn_elu(b2, params['m5b_b2_2'], 1)
    b3 = _ref_conv_bn_elu(_ref_avgpool3(x), params['m5b_b3_1'], 0)
    out = jnp.concatenate([b0, b1, b2, b3], axis=-1)
    return jnp.transpose(out, (0, 3, 1, 2))


if __name__ == "__main__":
    key = jax.random.PRNGKey(0)
    kx, kp = jax.random.split(key)
    # Small input: N=2, C=3, H=W=14 -> output (2, 320, 8, 8)
    x = jax.random.normal(kx, (2, 3, 14, 14), jnp.float32)
    params = init_irnet_params(kp, in_channels=3)
    packed = pack_irnet_params(params)

    out = jax.block_until_ready(irnet_forward(x, packed))
    assert out.shape == (2, 320, 8, 8), out.shape
    assert bool(jnp.all(jnp.isfinite(out)))

    # cross-check against the XLA reference (tolerant of bf16 MXU inputs)
    ref = jax.block_until_ready(irnet_reference(x, params))
    rel = float(jnp.linalg.norm(out - ref) / (jnp.linalg.norm(ref) + 1e-12))
    assert rel < 0.05, f"relative error vs reference too large: {rel}"
    print("KERNEL_OK")
</pallas_src>

<mosaic_0001>
module attributes {stable_mosaic.version = 11 : i64} {
  func.func @kernel(%arg0: i32, %arg1: memref<1x192x27xbf16, #tpu.memory_space<vmem>>, %arg2: memref<27x32xbf16, #tpu.memory_space<vmem>>, %arg3: memref<1x32xf32, #tpu.memory_space<vmem>>, %arg4: memref<3x96x32xbf16, #tpu.memory_space<vmem>>, %arg5: memref<1x32xf32, #tpu.memory_space<vmem>>, %arg6: memref<3x96x64xbf16, #tpu.memory_space<vmem>>, %arg7: memref<1x64xf32, #tpu.memory_space<vmem>>, %arg8: memref<64x80xbf16, #tpu.memory_space<vmem>>, %arg9: memref<1x80xf32, #tpu.memory_space<vmem>>, %arg10: memref<3x240x192xbf16, #tpu.memory_space<vmem>>, %arg11: memref<1x192xf32, #tpu.memory_space<vmem>>, %arg12: memref<192x208xbf16, #tpu.memory_space<vmem>>, %arg13: memref<1x208xf32, #tpu.memory_space<vmem>>, %arg14: memref<5x240x64xbf16, #tpu.memory_space<vmem>>, %arg15: memref<1x64xf32, #tpu.memory_space<vmem>>, %arg16: memref<3x192x96xbf16, #tpu.memory_space<vmem>>, %arg17: memref<1x96xf32, #tpu.memory_space<vmem>>, %arg18: memref<3x288x96xbf16, #tpu.memory_space<vmem>>, %arg19: memref<1x96xf32, #tpu.memory_space<vmem>>, %arg20: memref<192x64xbf16, #tpu.memory_space<vmem>>, %arg21: memref<1x64xf32, #tpu.memory_space<vmem>>, %arg22: memref<8x8x64xf32, #tpu.memory_space<vmem>>, %arg23: memref<1x8x8x320xf32, #tpu.memory_space<vmem>>) attributes {dimension_semantics = [#tpu.dimension_semantics<parallel>], iteration_bounds = array<i64: 2>, scalar_prefetch = 0 : i64, scratch_operands = 0 : i64, tpu.core_type = #tpu.core_type<tc>, window_params = [{transform_indices = @transform_0, window_bounds = array<i64: 1, 192, 27>}, {pipeline_mode = #tpu.pipeline_mode<synchronous>, transform_indices = @transform_1, window_bounds = array<i64: 27, 32>}, {pipeline_mode = #tpu.pipeline_mode<synchronous>, transform_indices = @transform_2, window_bounds = array<i64: 1, 32>}, {pipeline_mode = #tpu.pipeline_mode<synchronous>, transform_indices = @transform_3, window_bounds = array<i64: 3, 96, 32>}, {pipeline_mode = #tpu.pipeline_mode<synchronous>, transform_indices = @transform_4, window_bounds = array<i64: 1, 32>}, {pipeline_mode = #tpu.pipeline_mode<synchronous>, transform_indices = @transform_5, window_bounds = array<i64: 3, 96, 64>}, {pipeline_mode = #tpu.pipeline_mode<synchronous>, transform_indices = @transform_6, window_bounds = array<i64: 1, 64>}, {pipeline_mode = #tpu.pipeline_mode<synchronous>, transform_indices = @transform_7, window_bounds = array<i64: 64, 80>}, {pipeline_mode = #tpu.pipeline_mode<synchronous>, transform_indices = @transform_8, window_bounds = array<i64: 1, 80>}, {pipeline_mode = #tpu.pipeline_mode<synchronous>, transform_indices = @transform_9, window_bounds = array<i64: 3, 240, 192>}, {pipeline_mode = #tpu.pipeline_mode<synchronous>, transform_indices = @transform_10, window_bounds = array<i64: 1, 192>}, {pipeline_mode = #tpu.pipeline_mode<synchronous>, transform_indices = @transform_11, window_bounds = array<i64: 192, 208>}, {pipeline_mode = #tpu.pipeline_mode<synchronous>, transform_indices = @transform_12, window_bounds = array<i64: 1, 208>}, {pipeline_mode = #tpu.pipeline_mode<synchronous>, transform_indices = @transform_13, window_bounds = array<i64: 5, 240, 64>}, {pipeline_mode = #tpu.pipeline_mode<synchronous>, transform_indices = @transform_14, window_bounds = array<i64: 1, 64>}, {pipeline_mode = #tpu.pipeline_mode<synchronous>, transform_indices = @transform_15, window_bounds = array<i64: 3, 192, 96>}, {pipeline_mode = #tpu.pipeline_mode<synchronous>, transform_indices = @transform_16, window_bounds = array<i64: 1, 96>}, {pipeline_mode = #tpu.pipeline_mode<synchronous>, transform_indices = @transform_17, window_bounds = array<i64: 3, 288, 96>}, {pipeline_mode = #tpu.pipeline_mode<synchronous>, transform_indices = @transform_18, window_bounds = array<i64: 1, 96>}, {pipeline_mode = #tpu.pipeline_mode<synchronous>, transform_indices = @transform_19, window_bounds = array<i64: 192, 64>}, {pipeline_mode = #tpu.pipeline_mode<synchronous>, transform_indices = @transform_20, window_bounds = array<i64: 1, 64>}, {pipeline_mode = #tpu.pipeline_mode<synchronous>, transform_indices = @transform_21, window_bounds = array<i64: 8, 8, 64>}, {transform_indices = @transform_22, window_bounds = array<i64: 1, 8, 8, 320>}]} {
    %c0 = arith.constant 0 : index
    %c0_0 = arith.constant 0 : index
    %c0_1 = arith.constant 0 : index
    %0 = vector.load %arg1[%c0, %c0_0, %c0_1] : memref<1x192x27xbf16, #tpu.memory_space<vmem>>, vector<1x192x27xbf16>
    %1 = vector.shape_cast %0 : vector<1x192x27xbf16> to vector<192x27xbf16>
    %c0_2 = arith.constant 0 : index
    %c0_3 = arith.constant 0 : index
    %2 = vector.load %arg2[%c0_2, %c0_3] : memref<27x32xbf16, #tpu.memory_space<vmem>>, vector<27x32xbf16>
    %cst = arith.constant dense<0.000000e+00> : vector<192x32xf32>
    %3 = tpu.matmul %1, %2, %cst {dimension_numbers = #tpu.dot_dimension_numbers<[1], [0], [0], [1], [0, 0, 1, 1], [], []>} : vector<192x27xbf16>, vector<27x32xbf16>, vector<192x32xf32> -> vector<192x32xf32>
    %c0_4 = arith.constant 0 : index
    %c0_5 = arith.constant 0 : index
    %4 = vector.load %arg3[%c0_4, %c0_5] : memref<1x32xf32, #tpu.memory_space<vmem>>, vector<1x32xf32>
    %5 = vector.broadcast %4 : vector<1x32xf32> to vector<192x32xf32>
    %6 = arith.addf %3, %5 : vector<192x32xf32>
    %cst_6 = arith.constant 0.000000e+00 : f32
    %7 = vector.broadcast %cst_6 : f32 to vector<192x32xf32>
    %8 = arith.cmpf ogt, %6, %7 : vector<192x32xf32>
    %cst_7 = arith.constant 0.000000e+00 : f32
    %9 = vector.broadcast %cst_7 : f32 to vector<192x32xf32>
    %10 = arith.minimumf %6, %9 : vector<192x32xf32>
    %11 = math.exp %10 : vector<192x32xf32>
    %cst_8 = arith.constant 1.000000e+00 : f32
    %12 = vector.broadcast %cst_8 : f32 to vector<192x32xf32>
    %13 = arith.subf %11, %12 : vector<192x32xf32>
    %14 = arith.select %8, %6, %13 : vector<192x32xi1>, vector<192x32xf32>
    %15 = arith.truncf %14 : vector<192x32xf32> to vector<192x32xbf16>
    %cst_9 = arith.constant 0.000000e+00 : bf16
    %16 = vector.broadcast %cst_9 : bf16 to vector<34x32xbf16>
    %17 = tpu.concatenate %15, %16 in 0 : vector<192x32xbf16>, vector<34x32xbf16> -> vector<226x32xbf16>
    %18 = vector.extract_strided_slice %17 {offsets = [0, 0], sizes = [192, 32], strides = [1, 1]} : vector<226x32xbf16> to vector<192x32xbf16>
    %19 = vector.extract_strided_slice %17 {offsets = [1, 0], sizes = [192, 32], strides = [1, 1]} : vector<226x32xbf16> to vector<192x32xbf16>
    %20 = vector.extract_strided_slice %17 {offsets = [2, 0], sizes = [192, 32], strides = [1, 1]} : vector<226x32xbf16> to vector<192x32xbf16>
    %21 = tpu.concatenate %18, %19, %20 in 1 : vector<192x32xbf16>, vector<192x32xbf16>, vector<192x32xbf16> -> vector<192x96xbf16>
    %c0_10 = arith.constant 0 : index
    %c0_11 = arith.constant 0 : index
    %c0_12 = arith.constant 0 : index
    %22 = vector.load %arg4[%c0_10, %c0_11, %c0_12] : memref<3x96x32xbf16, #tpu.memory_space<vmem>>, vector<1x96x32xbf16>
    %23 = vector.shape_cast %22 : vector<1x96x32xbf16> to vector<96x32xbf16>
    %cst_13 = arith.constant dense<0.000000e+00> : vector<192x32xf32>
    %24 = tpu.matmul %21, %23, %cst_13 {dimension_numbers = #tpu.dot_dimension_numbers<[1], [0], [0], [1], [0, 0, 1, 1], [], []>} : vector<192x96xbf16>, vector<96x32xbf16>, vector<192x32xf32> -> vector<192x32xf32>
    %25 = vector.extract_strided_slice %17 {offsets = [16, 0], sizes = [192, 32], strides = [1, 1]} : vector<226x32xbf16> to vector<192x32xbf16>
    %26 = vector.extract_strided_slice %17 {offsets = [17, 0], sizes = [192, 32], strides = [1, 1]} : vector<226x32xbf16> to vector<192x32xbf16>
    %27 = vector.extract_strided_slice %17 {offsets = [18, 0], sizes = [192, 32], strides = [1, 1]} : vector<226x32xbf16> to vector<192x32xbf16>
    %28 = tpu.concatenate %25, %26, %27 in 1 : vector<192x32xbf16>, vector<192x32xbf16>, vector<192x32xbf16> -> vector<192x96xbf16>
    %c1 = arith.constant 1 : index
    %c0_14 = arith.constant 0 : index
    %c0_15 = arith.constant 0 : index
    %29 = vector.load %arg4[%c1, %c0_14, %c0_15] : memref<3x96x32xbf16, #tpu.memory_space<vmem>>, vector<1x96x32xbf16>
    %30 = vector.shape_cast %29 : vector<1x96x32xbf16> to vector<96x32xbf16>
    %cst_16 = arith.constant dense<0.000000e+00> : vector<192x32xf32>
    %31 = tpu.matmul %28, %30, %cst_16 {dimension_numbers = #tpu.dot_dimension_numbers<[1], [0], [0], [1], [0, 0, 1, 1], [], []>} : vector<192x96xbf16>, vector<96x32xbf16>, vector<192x32xf32> -> vector<192x32xf32>
    %32 = arith.addf %24, %31 : vector<192x32xf32>
    %33 = vector.extract_strided_slice %17 {offsets = [32, 0], sizes = [192, 32], strides = [1, 1]} : vector<226x32xbf16> to vector<192x32xbf16>
    %34 = vector.extract_strided_slice %17 {offsets = [33, 0], sizes = [192, 32], strides = [1, 1]} : vector<226x32xbf16> to vector<192x32xbf16>
    %35 = vector.extract_strided_slice %17 {offsets = [34, 0], sizes = [192, 32], strides = [1, 1]} : vector<226x32xbf16> to vector<192x32xbf16>
    %36 = tpu.concatenate %33, %34, %35 in 1 : vector<192x32xbf16>, vector<192x32xbf16>, vector<192x32xbf16> -> vector<192x96xbf16>
    %c2 = arith.constant 2 : index
    %c0_17 = arith.constant 0 : index
    %c0_18 = arith.constant 0 : index
    %37 = vector.load %arg4[%c2, %c0_17, %c0_18] : memref<3x96x32xbf16, #tpu.memory_space<vmem>>, vector<1x96x32xbf16>
    %38 = vector.shape_cast %37 : vector<1x96x32xbf16> to vector<96x32xbf16>
    %cst_19 = arith.constant dense<0.000000e+00> : vector<192x32xf32>
    %39 = tpu.matmul %36, %38, %cst_19 {dimension_numbers = #tpu.dot_dimension_numbers<[1], [0], [0], [1], [0, 0, 1, 1], [], []>} : vector<192x96xbf16>, vector<96x32xbf16>, vector<192x32xf32> -> vector<192x32xf32>
    %40 = arith.addf %32, %39 : vector<192x32xf32>
    %c0_20 = arith.constant 0 : index
    %c0_21 = arith.constant 0 : index
    %41 = vector.load %arg5[%c0_20, %c0_21] : memref<1x32xf32, #tpu.memory_space<vmem>>, vector<1x32xf32>
    %42 = vector.broadcast %41 : vector<1x32xf32> to vector<192x32xf32>
    %43 = arith.addf %40, %42 : vector<192x32xf32>
    %cst_22 = arith.constant 0.000000e+00 : f32
    %44 = vector.broadcast %cst_22 : f32 to vector<192x32xf32>
    %45 = arith.cmpf ogt, %43, %44 : vector<192x32xf32>
    %cst_23 = arith.constant 0.000000e+00 : f32
    %46 = vector.broadcast %cst_23 : f32 to vector<192x32xf32>
    %47 = arith.minimumf %43, %46 : vector<192x32xf32>
    %48 = math.exp %47 : vector<192x32xf32>
    %cst_24 = arith.constant 1.000000e+00 : f32
    %49 = vector.broadcast %cst_24 : f32 to vector<192x32xf32>
    %50 = arith.subf %48, %49 : vector<192x32xf32>
    %51 = arith.select %45, %43, %50 : vector<192x32xi1>, vector<192x32xf32>
    %52 = vector.shape_cast %51 : vector<192x32xf32> to vector<1x12x16x32xf32>
    %53 = vector.extract_strided_slice %52 {offsets = [0, 0, 0, 0], sizes = [1, 10, 10, 32], strides = [1, 1, 1, 1]} : vector<1x12x16x32xf32> to vector<1x10x10x32xf32>
    %cst_25 = arith.constant 0.000000e+00 : f32
    %54 = vector.broadcast %cst_25 : f32 to vector<1x10x1x32xf32>
    %cst_26 = arith.constant 0.000000e+00 : f32
    %55 = vector.broadcast %cst_26 : f32 to vector<1x10x5x32xf32>
    %56 = tpu.concatenate %54, %53, %55 in 2 : vector<1x10x1x32xf32>, vector<1x10x10x32xf32>, vector<1x10x5x32xf32> -> vector<1x10x16x32xf32>
    %cst_27 = arith.constant 0.000000e+00 : f32
    %57 = vector.broadcast %cst_27 : f32 to vector<1x1x16x32xf32>
    %58 = tpu.concatenate %57, %56, %57 in 1 : vector<1x1x16x32xf32>, vector<1x10x16x32xf32>, vector<1x1x16x32xf32> -> vector<1x12x16x32xf32>
    %59 = vector.shape_cast %58 : vector<1x12x16x32xf32> to vector<192x32xf32>
    %60 = arith.truncf %59 : vector<192x32xf32> to vector<192x32xbf16>
    %cst_28 = arith.constant 0.000000e+00 : bf16
    %61 = vector.broadcast %cst_28 : bf16 to vector<34x32xbf16>
    %62 = tpu.concatenate %60, %61 in 0 : vector<192x32xbf16>, vector<34x32xbf16> -> vector<226x32xbf16>
    %63 = vector.extract_strided_slice %62 {offsets = [0, 0], sizes = [192, 32], strides = [1, 1]} : vector<226x32xbf16> to vector<192x32xbf16>
    %64 = vector.extract_strided_slice %62 {offsets = [1, 0], sizes = [192, 32], strides = [1, 1]} : vector<226x32xbf16> to vector<192x32xbf16>
    %65 = vector.extract_strided_slice %62 {offsets = [2, 0], sizes = [192, 32], strides = [1, 1]} : vector<226x32xbf16> to vector<192x32xbf16>
    %66 = tpu.concatenate %63, %64, %65 in 1 : vector<192x32xbf16>, vector<192x32xbf16>, vector<192x32xbf16> -> vector<192x96xbf16>
    %c0_29 = arith.constant 0 : index
    %c0_30 = arith.constant 0 : index
    %c0_31 = arith.constant 0 : index
    %67 = vector.load %arg6[%c0_29, %c0_30, %c0_31] : memref<3x96x64xbf16, #tpu.memory_space<vmem>>, vector<1x96x64xbf16>
    %68 = vector.shape_cast %67 : vector<1x96x64xbf16> to vector<96x64xbf16>
    %cst_32 = arith.constant dense<0.000000e+00> : vector<192x64xf32>
    %69 = tpu.matmul %66, %68, %cst_32 {dimension_numbers = #tpu.dot_dimension_numbers<[1], [0], [0], [1], [0, 0, 1, 1], [], []>} : vector<192x96xbf16>, vector<96x64xbf16>, vector<192x64xf32> -> vector<192x64xf32>
    %70 = vector.extract_strided_slice %62 {offsets = [16, 0], sizes = [192, 32], strides = [1, 1]} : vector<226x32xbf16> to vector<192x32xbf16>
    %71 = vector.extract_strided_slice %62 {offsets = [17, 0], sizes = [192, 32], strides = [1, 1]} : vector<226x32xbf16> to vector<192x32xbf16>
    %72 = vector.extract_strided_slice %62 {offsets = [18, 0], sizes = [192, 32], strides = [1, 1]} : vector<226x32xbf16> to vector<192x32xbf16>
    %73 = tpu.concatenate %70, %71, %72 in 1 : vector<192x32xbf16>, vector<192x32xbf16>, vector<192x32xbf16> -> vector<192x96xbf16>
    %c1_33 = arith.constant 1 : index
    %c0_34 = arith.constant 0 : index
    %c0_35 = arith.constant 0 : index
    %74 = vector.load %arg6[%c1_33, %c0_34, %c0_35] : memref<3x96x64xbf16, #tpu.memory_space<vmem>>, vector<1x96x64xbf16>
    %75 = vector.shape_cast %74 : vector<1x96x64xbf16> to vector<96x64xbf16>
    %cst_36 = arith.constant dense<0.000000e+00> : vector<192x64xf32>
    %76 = tpu.matmul %73, %75, %cst_36 {dimension_numbers = #tpu.dot_dimension_numbers<[1], [0], [0], [1], [0, 0, 1, 1], [], []>} : vector<192x96xbf16>, vector<96x64xbf16>, vector<192x64xf32> -> vector<192x64xf32>
    %77 = arith.addf %69, %76 : vector<192x64xf32>
    %78 = vector.extract_strided_slice %62 {offsets = [32, 0], sizes = [192, 32], strides = [1, 1]} : vector<226x32xbf16> to vector<192x32xbf16>
    %79 = vector.extract_strided_slice %62 {offsets = [33, 0], sizes = [192, 32], strides = [1, 1]} : vector<226x32xbf16> to vector<192x32xbf16>
    %80 = vector.extract_strided_slice %62 {offsets = [34, 0], sizes = [192, 32], strides = [1, 1]} : vector<226x32xbf16> to vector<192x32xbf16>
    %81 = tpu.concatenate %78, %79, %80 in 1 : vector<192x32xbf16>, vector<192x32xbf16>, vector<192x32xbf16> -> vector<192x96xbf16>
    %c2_37 = arith.constant 2 : index
    %c0_38 = arith.constant 0 : index
    %c0_39 = arith.constant 0 : index
    %82 = vector.load %arg6[%c2_37, %c0_38, %c0_39] : memref<3x96x64xbf16, #tpu.memory_space<vmem>>, vector<1x96x64xbf16>
    %83 = vector.shape_cast %82 : vector<1x96x64xbf16> to vector<96x64xbf16>
    %cst_40 = arith.constant dense<0.000000e+00> : vector<192x64xf32>
    %84 = tpu.matmul %81, %83, %cst_40 {dimension_numbers = #tpu.dot_dimension_numbers<[1], [0], [0], [1], [0, 0, 1, 1], [], []>} : vector<192x96xbf16>, vector<96x64xbf16>, vector<192x64xf32> -> vector<192x64xf32>
    %85 = arith.addf %77, %84 : vector<192x64xf32>
    %c0_41 = arith.constant 0 : index
    %c0_42 = arith.constant 0 : index
    %86 = vector.load %arg7[%c0_41, %c0_42] : memref<1x64xf32, #tpu.memory_space<vmem>>, vector<1x64xf32>
    %87 = vector.broadcast %86 : vector<1x64xf32> to vector<192x64xf32>
    %88 = arith.addf %85, %87 : vector<192x64xf32>
    %cst_43 = arith.constant 0.000000e+00 : f32
    %89 = vector.broadcast %cst_43 : f32 to vector<192x64xf32>
    %90 = arith.cmpf ogt, %88, %89 : vector<192x64xf32>
    %cst_44 = arith.constant 0.000000e+00 : f32
    %91 = vector.broadcast %cst_44 : f32 to vector<192x64xf32>
    %92 = arith.minimumf %88, %91 : vector<192x64xf32>
    %93 = math.exp %92 : vector<192x64xf32>
    %cst_45 = arith.constant 1.000000e+00 : f32
    %94 = vector.broadcast %cst_45 : f32 to vector<192x64xf32>
    %95 = arith.subf %93, %94 : vector<192x64xf32>
    %96 = arith.select %90, %88, %95 : vector<192x64xi1>, vector<192x64xf32>
    %97 = arith.truncf %96 : vector<192x64xf32> to vector<192x64xbf16>
    %c0_46 = arith.constant 0 : index
    %c0_47 = arith.constant 0 : index
    %98 = vector.load %arg8[%c0_46, %c0_47] : memref<64x80xbf16, #tpu.memory_space<vmem>>, vector<64x80xbf16>
    %cst_48 = arith.constant dense<0.000000e+00> : vector<192x80xf32>
    %99 = tpu.matmul %97, %98, %cst_48 {dimension_numbers = #tpu.dot_dimension_numbers<[1], [0], [0], [1], [0, 0, 1, 1], [], []>} : vector<192x64xbf16>, vector<64x80xbf16>, vector<192x80xf32> -> vector<192x80xf32>
    %c0_49 = arith.constant 0 : index
    %c0_50 = arith.constant 0 : index
    %100 = vector.load %arg9[%c0_49, %c0_50] : memref<1x80xf32, #tpu.memory_space<vmem>>, vector<1x80xf32>
    %101 = vector.broadcast %100 : vector<1x80xf32> to vector<192x80xf32>
    %102 = arith.addf %99, %101 : vector<192x80xf32>
    %cst_51 = arith.constant 0.000000e+00 : f32
    %103 = vector.broadcast %cst_51 : f32 to vector<192x80xf32>
    %104 = arith.cmpf ogt, %102, %103 : vector<192x80xf32>
    %cst_52 = arith.constant 0.000000e+00 : f32
    %105 = vector.broadcast %cst_52 : f32 to vector<192x80xf32>
    %106 = arith.minimumf %102, %105 : vector<192x80xf32>
    %107 = math.exp %106 : vector<192x80xf32>
    %cst_53 = arith.constant 1.000000e+00 : f32
    %108 = vector.broadcast %cst_53 : f32 to vector<192x80xf32>
    %109 = arith.subf %107, %108 : vector<192x80xf32>
    %110 = arith.select %104, %102, %109 : vector<192x80xi1>, vector<192x80xf32>
    %111 = arith.truncf %110 : vector<192x80xf32> to vector<192x80xbf16>
    %cst_54 = arith.constant 0.000000e+00 : bf16
    %112 = vector.broadcast %cst_54 : bf16 to vector<34x80xbf16>
    %113 = tpu.concatenate %111, %112 in 0 : vector<192x80xbf16>, vector<34x80xbf16> -> vector<226x80xbf16>
    %114 = vector.extract_strided_slice %113 {offsets = [0, 0], sizes = [192, 80], strides = [1, 1]} : vector<226x80xbf16> to vector<192x80xbf16>
    %115 = vector.extract_strided_slice %113 {offsets = [1, 0], sizes = [192, 80], strides = [1, 1]} : vector<226x80xbf16> to vector<192x80xbf16>
    %116 = vector.extract_strided_slice %113 {offsets = [2, 0], sizes = [192, 80], strides = [1, 1]} : vector<226x80xbf16> to vector<192x80xbf16>
    %117 = tpu.concatenate %114, %115, %116 in 1 : vector<192x80xbf16>, vector<192x80xbf16>, vector<192x80xbf16> -> vector<192x240xbf16>
    %c0_55 = arith.constant 0 : index
    %c0_56 = arith.constant 0 : index
    %c0_57 = arith.constant 0 : index
    %118 = vector.load %arg10[%c0_55, %c0_56, %c0_57] : memref<3x240x192xbf16, #tpu.memory_space<vmem>>, vector<1x240x192xbf16>
    %119 = vector.shape_cast %118 : vector<1x240x192xbf16> to vector<240x192xbf16>
    %cst_58 = arith.constant dense<0.000000e+00> : vector<192x192xf32>
    %120 = tpu.matmul %117, %119, %cst_58 {dimension_numbers = #tpu.dot_dimension_numbers<[1], [0], [0], [1], [0, 0, 1, 1], [], []>} : vector<192x240xbf16>, vector<240x192xbf16>, vector<192x192xf32> -> vector<192x192xf32>
    %121 = vector.extract_strided_slice %113 {offsets = [16, 0], sizes = [192, 80], strides = [1, 1]} : vector<226x80xbf16> to vector<192x80xbf16>
    %122 = vector.extract_strided_slice %113 {offsets = [17, 0], sizes = [192, 80], strides = [1, 1]} : vector<226x80xbf16> to vector<192x80xbf16>
    %123 = vector.extract_strided_slice %113 {offsets = [18, 0], sizes = [192, 80], strides = [1, 1]} : vector<226x80xbf16> to vector<192x80xbf16>
    %124 = tpu.concatenate %121, %122, %123 in 1 : vector<192x80xbf16>, vector<192x80xbf16>, vector<192x80xbf16> -> vector<192x240xbf16>
    %c1_59 = arith.constant 1 : index
    %c0_60 = arith.constant 0 : index
    %c0_61 = arith.constant 0 : index
    %125 = vector.load %arg10[%c1_59, %c0_60, %c0_61] : memref<3x240x192xbf16, #tpu.memory_space<vmem>>, vector<1x240x192xbf16>
    %126 = vector.shape_cast %125 : vector<1x240x192xbf16> to vector<240x192xbf16>
    %cst_62 = arith.constant dense<0.000000e+00> : vector<192x192xf32>
    %127 = tpu.matmul %124, %126, %cst_62 {dimension_numbers = #tpu.dot_dimension_numbers<[1], [0], [0], [1], [0, 0, 1, 1], [], []>} : vector<192x240xbf16>, vector<240x192xbf16>, vector<192x192xf32> -> vector<192x192xf32>
    %128 = arith.addf %120, %127 : vector<192x192xf32>
    %129 = vector.extract_strided_slice %113 {offsets = [32, 0], sizes = [192, 80], strides = [1, 1]} : vector<226x80xbf16> to vector<192x80xbf16>
    %130 = vector.extract_strided_slice %113 {offsets = [33, 0], sizes = [192, 80], strides = [1, 1]} : vector<226x80xbf16> to vector<192x80xbf16>
    %131 = vector.extract_strided_slice %113 {offsets = [34, 0], sizes = [192, 80], strides = [1, 1]} : vector<226x80xbf16> to vector<192x80xbf16>
    %132 = tpu.concatenate %129, %130, %131 in 1 : vector<192x80xbf16>, vector<192x80xbf16>, vector<192x80xbf16> -> vector<192x240xbf16>
    %c2_63 = arith.constant 2 : index
    %c0_64 = arith.constant 0 : index
    %c0_65 = arith.constant 0 : index
    %133 = vector.load %arg10[%c2_63, %c0_64, %c0_65] : memref<3x240x192xbf16, #tpu.memory_space<vmem>>, vector<1x240x192xbf16>
    %134 = vector.shape_cast %133 : vector<1x240x192xbf16> to vector<240x192xbf16>
    %cst_66 = arith.constant dense<0.000000e+00> : vector<192x192xf32>
    %135 = tpu.matmul %132, %134, %cst_66 {dimension_numbers = #tpu.dot_dimension_numbers<[1], [0], [0], [1], [0, 0, 1, 1], [], []>} : vector<192x240xbf16>, vector<240x192xbf16>, vector<192x192xf32> -> vector<192x192xf32>
    %136 = arith.addf %128, %135 : vector<192x192xf32>
    %c0_67 = arith.constant 0 : index
    %c0_68 = arith.constant 0 : index
    %137 = vector.load %arg11[%c0_67, %c0_68] : memref<1x192xf32, #tpu.memory_space<vmem>>, vector<1x192xf32>
    %138 = vector.broadcast %137 : vector<1x192xf32> to vector<192x192xf32>
    %139 = arith.addf %136, %138 : vector<192x192xf32>
    %cst_69 = arith.constant 0.000000e+00 : f32
    %140 = vector.broadcast %cst_69 : f32 to vector<192x192xf32>
    %141 = arith.cmpf ogt, %139, %140 : vector<192x192xf32>
    %cst_70 = arith.constant 0.000000e+00 : f32
    %142 = vector.broadcast %cst_70 : f32 to vector<192x192xf32>
    %143 = arith.minimumf %139, %142 : vector<192x192xf32>
    %144 = math.exp %143 : vector<192x192xf32>
    %cst_71 = arith.constant 1.000000e+00 : f32
    %145 = vector.broadcast %cst_71 : f32 to vector<192x192xf32>
    %146 = arith.subf %144, %145 : vector<192x192xf32>
    %147 = arith.select %141, %139, %146 : vector<192x192xi1>, vector<192x192xf32>
    %148 = arith.truncf %147 : vector<192x192xf32> to vector<192x192xbf16>
    %c0_72 = arith.constant 0 : index
    %c0_73 = arith.constant 0 : index
    %149 = vector.load %arg12[%c0_72, %c0_73] : memref<192x208xbf16, #tpu.memory_space<vmem>>, vector<192x208xbf16>
    %cst_74 = arith.constant dense<0.000000e+00> : vector<192x208xf32>
    %150 = tpu.matmul %148, %149, %cst_74 {dimension_numbers = #tpu.dot_dimension_numbers<[1], [0], [0], [1], [0, 0, 1, 1], [], []>} : vector<192x192xbf16>, vector<192x208xbf16>, vector<192x208xf32> -> vector<192x208xf32>
    %c0_75 = arith.constant 0 : index
    %c0_76 = arith.constant 0 : index
    %151 = vector.load %arg13[%c0_75, %c0_76] : memref<1x208xf32, #tpu.memory_space<vmem>>, vector<1x208xf32>
    %152 = vector.broadcast %151 : vector<1x208xf32> to vector<192x208xf32>
    %153 = arith.addf %150, %152 : vector<192x208xf32>
    %cst_77 = arith.constant 0.000000e+00 : f32
    %154 = vector.broadcast %cst_77 : f32 to vector<192x208xf32>
    %155 = arith.cmpf ogt, %153, %154 : vector<192x208xf32>
    %cst_78 = arith.constant 0.000000e+00 : f32
    %156 = vector.broadcast %cst_78 : f32 to vector<192x208xf32>
    %157 = arith.minimumf %153, %156 : vector<192x208xf32>
    %158 = math.exp %157 : vector<192x208xf32>
    %cst_79 = arith.constant 1.000000e+00 : f32
    %159 = vector.broadcast %cst_79 : f32 to vector<192x208xf32>
    %160 = arith.subf %158, %159 : vector<192x208xf32>
    %161 = arith.select %155, %153, %160 : vector<192x208xi1>, vector<192x208xf32>
    %162 = vector.shape_cast %161 : vector<192x208xf32> to vector<1x12x16x208xf32>
    %163 = vector.extract_strided_slice %162 {offsets = [0, 0, 0, 0], sizes = [1, 8, 8, 208], strides = [1, 1, 1, 1]} : vector<1x12x16x208xf32> to vector<1x8x8x208xf32>
    %164 = vector.extract_strided_slice %163 {offsets = [0, 0, 0, 0], sizes = [1, 8, 8, 96], strides = [1, 1, 1, 1]} : vector<1x8x8x208xf32> to vector<1x8x8x96xf32>
    %165 = vector.extract_strided_slice %163 {offsets = [0, 0, 0, 96], sizes = [1, 8, 8, 48], strides = [1, 1, 1, 1]} : vector<1x8x8x208xf32> to vector<1x8x8x48xf32>
    %cst_80 = arith.constant 0.000000e+00 : f32
    %166 = vector.broadcast %cst_80 : f32 to vector<1x8x2x48xf32>
    %cst_81 = arith.constant 0.000000e+00 : f32
    %167 = vector.broadcast %cst_81 : f32 to vector<1x8x6x48xf32>
    %168 = tpu.concatenate %166, %165, %167 in 2 : vector<1x8x2x48xf32>, vector<1x8x8x48xf32>, vector<1x8x6x48xf32> -> vector<1x8x16x48xf32>
    %cst_82 = arith.constant 0.000000e+00 : f32
    %169 = vector.broadcast %cst_82 : f32 to vector<1x2x16x48xf32>
    %170 = tpu.concatenate %169, %168, %169 in 1 : vector<1x2x16x48xf32>, vector<1x8x16x48xf32>, vector<1x2x16x48xf32> -> vector<1x12x16x48xf32>
    %171 = vector.shape_cast %170 : vector<1x12x16x48xf32> to vector<192x48xf32>
    %172 = arith.truncf %171 : vector<192x48xf32> to vector<192x48xbf16>
    %cst_83 = arith.constant 0.000000e+00 : bf16
    %173 = vector.broadcast %cst_83 : bf16 to vector<68x48xbf16>
    %174 = tpu.concatenate %172, %173 in 0 : vector<192x48xbf16>, vector<68x48xbf16> -> vector<260x48xbf16>
    %175 = vector.extract_strided_slice %174 {offsets = [0, 0], sizes = [192, 48], strides = [1, 1]} : vector<260x48xbf16> to vector<192x48xbf16>
    %176 = vector.extract_strided_slice %174 {offsets = [1, 0], sizes = [192, 48], strides = [1, 1]} : vector<260x48xbf16> to vector<192x48xbf16>
    %177 = vector.extract_strided_slice %174 {offsets = [2, 0], sizes = [192, 48], strides = [1, 1]} : vector<260x48xbf16> to vector<192x48xbf16>
    %178 = vector.extract_strided_slice %174 {offsets = [3, 0], sizes = [192, 48], strides = [1, 1]} : vector<260x48xbf16> to vector<192x48xbf16>
    %179 = vector.extract_strided_slice %174 {offsets = [4, 0], sizes = [192, 48], strides = [1, 1]} : vector<260x48xbf16> to vector<192x48xbf16>
    %180 = tpu.concatenate %175, %176, %177, %178, %179 in 1 : vector<192x48xbf16>, vector<192x48xbf16>, vector<192x48xbf16>, vector<192x48xbf16>, vector<192x48xbf16> -> vector<192x240xbf16>
    %c0_84 = arith.constant 0 : index
    %c0_85 = arith.constant 0 : index
    %c0_86 = arith.constant 0 : index
    %181 = vector.load %arg14[%c0_84, %c0_85, %c0_86] : memref<5x240x64xbf16, #tpu.memory_space<vmem>>, vector<1x240x64xbf16>
    %182 = vector.shape_cast %181 : vector<1x240x64xbf16> to vector<240x64xbf16>
    %cst_87 = arith.constant dense<0.000000e+00> : vector<192x64xf32>
    %183 = tpu.matmul %180, %182, %cst_87 {dimension_numbers = #tpu.dot_dimension_numbers<[1], [0], [0], [1], [0, 0, 1, 1], [], []>} : vector<192x240xbf16>, vector<240x64xbf16>, vector<192x64xf32> -> vector<192x64xf32>
    %184 = vector.extract_strided_slice %174 {offsets = [16, 0], sizes = [192, 48], strides = [1, 1]} : vector<260x48xbf16> to vector<192x48xbf16>
    %185 = vector.extract_strided_slice %174 {offsets = [17, 0], sizes = [192, 48], strides = [1, 1]} : vector<260x48xbf16> to vector<192x48xbf16>
    %186 = vector.extract_strided_slice %174 {offsets = [18, 0], sizes = [192, 48], strides = [1, 1]} : vector<260x48xbf16> to vector<192x48xbf16>
    %187 = vector.extract_strided_slice %174 {offsets = [19, 0], sizes = [192, 48], strides = [1, 1]} : vector<260x48xbf16> to vector<192x48xbf16>
    %188 = vector.extract_strided_slice %174 {offsets = [20, 0], sizes = [192, 48], strides = [1, 1]} : vector<260x48xbf16> to vector<192x48xbf16>
    %189 = tpu.concatenate %184, %185, %186, %187, %188 in 1 : vector<192x48xbf16>, vector<192x48xbf16>, vector<192x48xbf16>, vector<192x48xbf16>, vector<192x48xbf16> -> vector<192x240xbf16>
    %c1_88 = arith.constant 1 : index
    %c0_89 = arith.constant 0 : index
    %c0_90 = arith.constant 0 : index
    %190 = vector.load %arg14[%c1_88, %c0_89, %c0_90] : memref<5x240x64xbf16, #tpu.memory_space<vmem>>, vector<1x240x64xbf16>
    %191 = vector.shape_cast %190 : vector<1x240x64xbf16> to vector<240x64xbf16>
    %cst_91 = arith.constant dense<0.000000e+00> : vector<192x64xf32>
    %192 = tpu.matmul %189, %191, %cst_91 {dimension_numbers = #tpu.dot_dimension_numbers<[1], [0], [0], [1], [0, 0, 1, 1], [], []>} : vector<192x240xbf16>, vector<240x64xbf16>, vector<192x64xf32> -> vector<192x64xf32>
    %193 = arith.addf %183, %192 : vector<192x64xf32>
    %194 = vector.extract_strided_slice %174 {offsets = [32, 0], sizes = [192, 48], strides = [1, 1]} : vector<260x48xbf16> to vector<192x48xbf16>
    %195 = vector.extract_strided_slice %174 {offsets = [33, 0], sizes = [192, 48], strides = [1, 1]} : vector<260x48xbf16> to vector<192x48xbf16>
    %196 = vector.extract_strided_slice %174 {offsets = [34, 0], sizes = [192, 48], strides = [1, 1]} : vector<260x48xbf16> to vector<192x48xbf16>
    %197 = vector.extract_strided_slice %174 {offsets = [35, 0], sizes = [192, 48], strides = [1, 1]} : vector<260x48xbf16> to vector<192x48xbf16>
    %198 = vector.extract_strided_slice %174 {offsets = [36, 0], sizes = [192, 48], strides = [1, 1]} : vector<260x48xbf16> to vector<192x48xbf16>
    %199 = tpu.concatenate %194, %195, %196, %197, %198 in 1 : vector<192x48xbf16>, vector<192x48xbf16>, vector<192x48xbf16>, vector<192x48xbf16>, vector<192x48xbf16> -> vector<192x240xbf16>
    %c2_92 = arith.constant 2 : index
    %c0_93 = arith.constant 0 : index
    %c0_94 = arith.constant 0 : index
    %200 = vector.load %arg14[%c2_92, %c0_93, %c0_94] : memref<5x240x64xbf16, #tpu.memory_space<vmem>>, vector<1x240x64xbf16>
    %201 = vector.shape_cast %200 : vector<1x240x64xbf16> to vector<240x64xbf16>
    %cst_95 = arith.constant dense<0.000000e+00> : vector<192x64xf32>
    %202 = tpu.matmul %199, %201, %cst_95 {dimension_numbers = #tpu.dot_dimension_numbers<[1], [0], [0], [1], [0, 0, 1, 1], [], []>} : vector<192x240xbf16>, vector<240x64xbf16>, vector<192x64xf32> -> vector<192x64xf32>
    %203 = arith.addf %193, %202 : vector<192x64xf32>
    %204 = vector.extract_strided_slice %174 {offsets = [48, 0], sizes = [192, 48], strides = [1, 1]} : vector<260x48xbf16> to vector<192x48xbf16>
    %205 = vector.extract_strided_slice %174 {offsets = [49, 0], sizes = [192, 48], strides = [1, 1]} : vector<260x48xbf16> to vector<192x48xbf16>
    %206 = vector.extract_strided_slice %174 {offsets = [50, 0], sizes = [192, 48], strides = [1, 1]} : vector<260x48xbf16> to vector<192x48xbf16>
    %207 = vector.extract_strided_slice %174 {offsets = [51, 0], sizes = [192, 48], strides = [1, 1]} : vector<260x48xbf16> to vector<192x48xbf16>
    %208 = vector.extract_strided_slice %174 {offsets = [52, 0], sizes = [192, 48], strides = [1, 1]} : vector<260x48xbf16> to vector<192x48xbf16>
    %209 = tpu.concatenate %204, %205, %206, %207, %208 in 1 : vector<192x48xbf16>, vector<192x48xbf16>, vector<192x48xbf16>, vector<192x48xbf16>, vector<192x48xbf16> -> vector<192x240xbf16>
    %c3 = arith.constant 3 : index
    %c0_96 = arith.constant 0 : index
    %c0_97 = arith.constant 0 : index
    %210 = vector.load %arg14[%c3, %c0_96, %c0_97] : memref<5x240x64xbf16, #tpu.memory_space<vmem>>, vector<1x240x64xbf16>
    %211 = vector.shape_cast %210 : vector<1x240x64xbf16> to vector<240x64xbf16>
    %cst_98 = arith.constant dense<0.000000e+00> : vector<192x64xf32>
    %212 = tpu.matmul %209, %211, %cst_98 {dimension_numbers = #tpu.dot_dimension_numbers<[1], [0], [0], [1], [0, 0, 1, 1], [], []>} : vector<192x240xbf16>, vector<240x64xbf16>, vector<192x64xf32> -> vector<192x64xf32>
    %213 = arith.addf %203, %212 : vector<192x64xf32>
    %214 = vector.extract_strided_slice %174 {offsets = [64, 0], sizes = [192, 48], strides = [1, 1]} : vector<260x48xbf16> to vector<192x48xbf16>
    %215 = vector.extract_strided_slice %174 {offsets = [65, 0], sizes = [192, 48], strides = [1, 1]} : vector<260x48xbf16> to vector<192x48xbf16>
    %216 = vector.extract_strided_slice %174 {offsets = [66, 0], sizes = [192, 48], strides = [1, 1]} : vector<260x48xbf16> to vector<192x48xbf16>
    %217 = vector.extract_strided_slice %174 {offsets = [67, 0], sizes = [192, 48], strides = [1, 1]} : vector<260x48xbf16> to vector<192x48xbf16>
    %218 = vector.extract_strided_slice %174 {offsets = [68, 0], sizes = [192, 48], strides = [1, 1]} : vector<260x48xbf16> to vector<192x48xbf16>
    %219 = tpu.concatenate %214, %215, %216, %217, %218 in 1 : vector<192x48xbf16>, vector<192x48xbf16>, vector<192x48xbf16>, vector<192x48xbf16>, vector<192x48xbf16> -> vector<192x240xbf16>
    %c4 = arith.constant 4 : index
    %c0_99 = arith.constant 0 : index
    %c0_100 = arith.constant 0 : index
    %220 = vector.load %arg14[%c4, %c0_99, %c0_100] : memref<5x240x64xbf16, #tpu.memory_space<vmem>>, vector<1x240x64xbf16>
    %221 = vector.shape_cast %220 : vector<1x240x64xbf16> to vector<240x64xbf16>
    %cst_101 = arith.constant dense<0.000000e+00> : vector<192x64xf32>
    %222 = tpu.matmul %219, %221, %cst_101 {dimension_numbers = #tpu.dot_dimension_numbers<[1], [0], [0], [1], [0, 0, 1, 1], [], []>} : vector<192x240xbf16>, vector<240x64xbf16>, vector<192x64xf32> -> vector<192x64xf32>
    %223 = arith.addf %213, %222 : vector<192x64xf32>
    %c0_102 = arith.constant 0 : index
    %c0_103 = arith.constant 0 : index
    %224 = vector.load %arg15[%c0_102, %c0_103] : memref<1x64xf32, #tpu.memory_space<vmem>>, vector<1x64xf32>
    %225 = vector.broadcast %224 : vector<1x64xf32> to vector<192x64xf32>
    %226 = arith.addf %223, %225 : vector<192x64xf32>
    %cst_104 = arith.constant 0.000000e+00 : f32
    %227 = vector.broadcast %cst_104 : f32 to vector<192x64xf32>
    %228 = arith.cmpf ogt, %226, %227 : vector<192x64xf32>
    %cst_105 = arith.constant 0.000000e+00 : f32
    %229 = vector.broadcast %cst_105 : f32 to vector<192x64xf32>
    %230 = arith.minimumf %226, %229 : vector<192x64xf32>
    %231 = math.exp %230 : vector<192x64xf32>
    %cst_106 = arith.constant 1.000000e+00 : f32
    %232 = vector.broadcast %cst_106 : f32 to vector<192x64xf32>
    %233 = arith.subf %231, %232 : vector<192x64xf32>
    %234 = arith.select %228, %226, %233 : vector<192x64xi1>, vector<192x64xf32>
    %235 = vector.shape_cast %234 : vector<192x64xf32> to vector<1x12x16x64xf32>
    %236 = vector.extract_strided_slice %235 {offsets = [0, 0, 0, 0], sizes = [1, 8, 8, 64], strides = [1, 1, 1, 1]} : vector<1x12x16x64xf32> to vector<1x8x8x64xf32>
    %237 = vector.extract_strided_slice %163 {offsets = [0, 0, 0, 144], sizes = [1, 8, 8, 64], strides = [1, 1, 1, 1]} : vector<1x8x8x208xf32> to vector<1x8x8x64xf32>
    %cst_107 = arith.constant 0.000000e+00 : f32
    %238 = vector.broadcast %cst_107 : f32 to vector<1x8x1x64xf32>
    %cst_108 = arith.constant 0.000000e+00 : f32
    %239 = vector.broadcast %cst_108 : f32 to vector<1x8x7x64xf32>
    %240 = tpu.concatenate %238, %237, %239 in 2 : vector<1x8x1x64xf32>, vector<1x8x8x64xf32>, vector<1x8x7x64xf32> -> vector<1x8x16x64xf32>
    %cst_109 = arith.constant 0.000000e+00 : f32
    %241 = vector.broadcast %cst_109 : f32 to vector<1x1x16x64xf32>
    %242 = tpu.concatenate %241, %240, %241 in 1 : vector<1x1x16x64xf32>, vector<1x8x16x64xf32>, vector<1x1x16x64xf32> -> vector<1x10x16x64xf32>
    %243 = vector.shape_cast %242 : vector<1x10x16x64xf32> to vector<160x64xf32>
    %244 = arith.truncf %243 : vector<160x64xf32> to vector<160x64xbf16>
    %cst_110 = arith.constant 0.000000e+00 : bf16
    %245 = vector.broadcast %cst_110 : bf16 to vector<34x64xbf16>
    %246 = tpu.concatenate %244, %245 in 0 : vector<160x64xbf16>, vector<34x64xbf16> -> vector<194x64xbf16>
    %247 = vector.extract_strided_slice %246 {offsets = [0, 0], sizes = [160, 64], strides = [1, 1]} : vector<194x64xbf16> to vector<160x64xbf16>
    %248 = vector.extract_strided_slice %246 {offsets = [1, 0], sizes = [160, 64], strides = [1, 1]} : vector<194x64xbf16> to vector<160x64xbf16>
    %249 = vector.extract_strided_slice %246 {offsets = [2, 0], sizes = [160, 64], strides = [1, 1]} : vector<194x64xbf16> to vector<160x64xbf16>
    %250 = tpu.concatenate %247, %248, %249 in 1 : vector<160x64xbf16>, vector<160x64xbf16>, vector<160x64xbf16> -> vector<160x192xbf16>
    %c0_111 = arith.constant 0 : index
    %c0_112 = arith.constant 0 : index
    %c0_113 = arith.constant 0 : index
    %251 = vector.load %arg16[%c0_111, %c0_112, %c0_113] : memref<3x192x96xbf16, #tpu.memory_space<vmem>>, vector<1x192x96xbf16>
    %252 = vector.shape_cast %251 : vector<1x192x96xbf16> to vector<192x96xbf16>
    %cst_114 = arith.constant dense<0.000000e+00> : vector<160x96xf32>
    %253 = tpu.matmul %250, %252, %cst_114 {dimension_numbers = #tpu.dot_dimension_numbers<[1], [0], [0], [1], [0, 0, 1, 1], [], []>} : vector<160x192xbf16>, vector<192x96xbf16>, vector<160x96xf32> -> vector<160x96xf32>
    %254 = vector.extract_strided_slice %246 {offsets = [16, 0], sizes = [160, 64], strides = [1, 1]} : vector<194x64xbf16> to vector<160x64xbf16>
    %255 = vector.extract_strided_slice %246 {offsets = [17, 0], sizes = [160, 64], strides = [1, 1]} : vector<194x64xbf16> to vector<160x64xbf16>
    %256 = vector.extract_strided_slice %246 {offsets = [18, 0], sizes = [160, 64], strides = [1, 1]} : vector<194x64xbf16> to vector<160x64xbf16>
    %257 = tpu.concatenate %254, %255, %256 in 1 : vector<160x64xbf16>, vector<160x64xbf16>, vector<160x64xbf16> -> vector<160x192xbf16>
    %c1_115 = arith.constant 1 : index
    %c0_116 = arith.constant 0 : index
    %c0_117 = arith.constant 0 : index
    %258 = vector.load %arg16[%c1_115, %c0_116, %c0_117] : memref<3x192x96xbf16, #tpu.memory_space<vmem>>, vector<1x192x96xbf16>
    %259 = vector.shape_cast %258 : vector<1x192x96xbf16> to vector<192x96xbf16>
    %cst_118 = arith.constant dense<0.000000e+00> : vector<160x96xf32>
    %260 = tpu.matmul %257, %259, %cst_118 {dimension_numbers = #tpu.dot_dimension_numbers<[1], [0], [0], [1], [0, 0, 1, 1], [], []>} : vector<160x192xbf16>, vector<192x96xbf16>, vector<160x96xf32> -> vector<160x96xf32>
    %261 = arith.addf %253, %260 : vector<160x96xf32>
    %262 = vector.extract_strided_slice %246 {offsets = [32, 0], sizes = [160, 64], strides = [1, 1]} : vector<194x64xbf16> to vector<160x64xbf16>
    %263 = vector.extract_strided_slice %246 {offsets = [33, 0], sizes = [160, 64], strides = [1, 1]} : vector<194x64xbf16> to vector<160x64xbf16>
    %264 = vector.extract_strided_slice %246 {offsets = [34, 0], sizes = [160, 64], strides = [1, 1]} : vector<194x64xbf16> to vector<160x64xbf16>
    %265 = tpu.concatenate %262, %263, %264 in 1 : vector<160x64xbf16>, vector<160x64xbf16>, vector<160x64xbf16> -> vector<160x192xbf16>
    %c2_119 = arith.constant 2 : index
    %c0_120 = arith.constant 0 : index
    %c0_121 = arith.constant 0 : index
    %266 = vector.load %arg16[%c2_119, %c0_120, %c0_121] : memref<3x192x96xbf16, #tpu.memory_space<vmem>>, vector<1x192x96xbf16>
    %267 = vector.shape_cast %266 : vector<1x192x96xbf16> to vector<192x96xbf16>
    %cst_122 = arith.constant dense<0.000000e+00> : vector<160x96xf32>
    %268 = tpu.matmul %265, %267, %cst_122 {dimension_numbers = #tpu.dot_dimension_numbers<[1], [0], [0], [1], [0, 0, 1, 1], [], []>} : vector<160x192xbf16>, vector<192x96xbf16>, vector<160x96xf32> -> vector<160x96xf32>
    %269 = arith.addf %261, %268 : vector<160x96xf32>
    %c0_123 = arith.constant 0 : index
    %c0_124 = arith.constant 0 : index
    %270 = vector.load %arg17[%c0_123, %c0_124] : memref<1x96xf32, #tpu.memory_space<vmem>>, vector<1x96xf32>
    %271 = vector.broadcast %270 : vector<1x96xf32> to vector<160x96xf32>
    %272 = arith.addf %269, %271 : vector<160x96xf32>
    %cst_125 = arith.constant 0.000000e+00 : f32
    %273 = vector.broadcast %cst_125 : f32 to vector<160x96xf32>
    %274 = arith.cmpf ogt, %272, %273 : vector<160x96xf32>
    %cst_126 = arith.constant 0.000000e+00 : f32
    %275 = vector.broadcast %cst_126 : f32 to vector<160x96xf32>
    %276 = arith.minimumf %272, %275 : vector<160x96xf32>
    %277 = math.exp %276 : vector<160x96xf32>
    %cst_127 = arith.constant 1.000000e+00 : f32
    %278 = vector.broadcast %cst_127 : f32 to vector<160x96xf32>
    %279 = arith.subf %277, %278 : vector<160x96xf32>
    %280 = arith.select %274, %272, %279 : vector<160x96xi1>, vector<160x96xf32>
    %281 = vector.shape_cast %280 : vector<160x96xf32> to vector<1x10x16x96xf32>
    %282 = vector.extract_strided_slice %281 {offsets = [0, 0, 0, 0], sizes = [1, 8, 8, 96], strides = [1, 1, 1, 1]} : vector<1x10x16x96xf32> to vector<1x8x8x96xf32>
    %cst_128 = arith.constant 0.000000e+00 : f32
    %283 = vector.broadcast %cst_128 : f32 to vector<1x8x1x96xf32>
    %cst_129 = arith.constant 0.000000e+00 : f32
    %284 = vector.broadcast %cst_129 : f32 to vector<1x8x7x96xf32>
    %285 = tpu.concatenate %283, %282, %284 in 2 : vector<1x8x1x96xf32>, vector<1x8x8x96xf32>, vector<1x8x7x96xf32> -> vector<1x8x16x96xf32>
    %cst_130 = arith.constant 0.000000e+00 : f32
    %286 = vector.broadcast %cst_130 : f32 to vector<1x1x16x96xf32>
    %287 = tpu.concatenate %286, %285, %286 in 1 : vector<1x1x16x96xf32>, vector<1x8x16x96xf32>, vector<1x1x16x96xf32> -> vector<1x10x16x96xf32>
    %288 = vector.shape_cast %287 : vector<1x10x16x96xf32> to vector<160x96xf32>
    %289 = arith.truncf %288 : vector<160x96xf32> to vector<160x96xbf16>
    %cst_131 = arith.constant 0.000000e+00 : bf16
    %290 = vector.broadcast %cst_131 : bf16 to vector<34x96xbf16>
    %291 = tpu.concatenate %289, %290 in 0 : vector<160x96xbf16>, vector<34x96xbf16> -> vector<194x96xbf16>
    %292 = vector.extract_strided_slice %291 {offsets = [0, 0], sizes = [160, 96], strides = [1, 1]} : vector<194x96xbf16> to vector<160x96xbf16>
    %293 = vector.extract_strided_slice %291 {offsets = [1, 0], sizes = [160, 96], strides = [1, 1]} : vector<194x96xbf16> to vector<160x96xbf16>
    %294 = vector.extract_strided_slice %291 {offsets = [2, 0], sizes = [160, 96], strides = [1, 1]} : vector<194x96xbf16> to vector<160x96xbf16>
    %295 = tpu.concatenate %292, %293, %294 in 1 : vector<160x96xbf16>, vector<160x96xbf16>, vector<160x96xbf16> -> vector<160x288xbf16>
    %c0_132 = arith.constant 0 : index
    %c0_133 = arith.constant 0 : index
    %c0_134 = arith.constant 0 : index
    %296 = vector.load %arg18[%c0_132, %c0_133, %c0_134] : memref<3x288x96xbf16, #tpu.memory_space<vmem>>, vector<1x288x96xbf16>
    %297 = vector.shape_cast %296 : vector<1x288x96xbf16> to vector<288x96xbf16>
    %cst_135 = arith.constant dense<0.000000e+00> : vector<160x96xf32>
    %298 = tpu.matmul %295, %297, %cst_135 {dimension_numbers = #tpu.dot_dimension_numbers<[1], [0], [0], [1], [0, 0, 1, 1], [], []>} : vector<160x288xbf16>, vector<288x96xbf16>, vector<160x96xf32> -> vector<160x96xf32>
    %299 = vector.extract_strided_slice %291 {offsets = [16, 0], sizes = [160, 96], strides = [1, 1]} : vector<194x96xbf16> to vector<160x96xbf16>
    %300 = vector.extract_strided_slice %291 {offsets = [17, 0], sizes = [160, 96], strides = [1, 1]} : vector<194x96xbf16> to vector<160x96xbf16>
    %301 = vector.extract_strided_slice %291 {offsets = [18, 0], sizes = [160, 96], strides = [1, 1]} : vector<194x96xbf16> to vector<160x96xbf16>
    %302 = tpu.concatenate %299, %300, %301 in 1 : vector<160x96xbf16>, vector<160x96xbf16>, vector<160x96xbf16> -> vector<160x288xbf16>
    %c1_136 = arith.constant 1 : index
    %c0_137 = arith.constant 0 : index
    %c0_138 = arith.constant 0 : index
    %303 = vector.load %arg18[%c1_136, %c0_137, %c0_138] : memref<3x288x96xbf16, #tpu.memory_space<vmem>>, vector<1x288x96xbf16>
    %304 = vector.shape_cast %303 : vector<1x288x96xbf16> to vector<288x96xbf16>
    %cst_139 = arith.constant dense<0.000000e+00> : vector<160x96xf32>
    %305 = tpu.matmul %302, %304, %cst_139 {dimension_numbers = #tpu.dot_dimension_numbers<[1], [0], [0], [1], [0, 0, 1, 1], [], []>} : vector<160x288xbf16>, vector<288x96xbf16>, vector<160x96xf32> -> vector<160x96xf32>
    %306 = arith.addf %298, %305 : vector<160x96xf32>
    %307 = vector.extract_strided_slice %291 {offsets = [32, 0], sizes = [160, 96], strides = [1, 1]} : vector<194x96xbf16> to vector<160x96xbf16>
    %308 = vector.extract_strided_slice %291 {offsets = [33, 0], sizes = [160, 96], strides = [1, 1]} : vector<194x96xbf16> to vector<160x96xbf16>
    %309 = vector.extract_strided_slice %291 {offsets = [34, 0], sizes = [160, 96], strides = [1, 1]} : vector<194x96xbf16> to vector<160x96xbf16>
    %310 = tpu.concatenate %307, %308, %309 in 1 : vector<160x96xbf16>, vector<160x96xbf16>, vector<160x96xbf16> -> vector<160x288xbf16>
    %c2_140 = arith.constant 2 : index
    %c0_141 = arith.constant 0 : index
    %c0_142 = arith.constant 0 : index
    %311 = vector.load %arg18[%c2_140, %c0_141, %c0_142] : memref<3x288x96xbf16, #tpu.memory_space<vmem>>, vector<1x288x96xbf16>
    %312 = vector.shape_cast %311 : vector<1x288x96xbf16> to vector<288x96xbf16>
    %cst_143 = arith.constant dense<0.000000e+00> : vector<160x96xf32>
    %313 = tpu.matmul %310, %312, %cst_143 {dimension_numbers = #tpu.dot_dimension_numbers<[1], [0], [0], [1], [0, 0, 1, 1], [], []>} : vector<160x288xbf16>, vector<288x96xbf16>, vector<160x96xf32> -> vector<160x96xf32>
    %314 = arith.addf %306, %313 : vector<160x96xf32>
    %c0_144 = arith.constant 0 : index
    %c0_145 = arith.constant 0 : index
    %315 = vector.load %arg19[%c0_144, %c0_145] : memref<1x96xf32, #tpu.memory_space<vmem>>, vector<1x96xf32>
    %316 = vector.broadcast %315 : vector<1x96xf32> to vector<160x96xf32>
    %317 = arith.addf %314, %316 : vector<160x96xf32>
    %cst_146 = arith.constant 0.000000e+00 : f32
    %318 = vector.broadcast %cst_146 : f32 to vector<160x96xf32>
    %319 = arith.cmpf ogt, %317, %318 : vector<160x96xf32>
    %cst_147 = arith.constant 0.000000e+00 : f32
    %320 = vector.broadcast %cst_147 : f32 to vector<160x96xf32>
    %321 = arith.minimumf %317, %320 : vector<160x96xf32>
    %322 = math.exp %321 : vector<160x96xf32>
    %cst_148 = arith.constant 1.000000e+00 : f32
    %323 = vector.broadcast %cst_148 : f32 to vector<160x96xf32>
    %324 = arith.subf %322, %323 : vector<160x96xf32>
    %325 = arith.select %319, %317, %324 : vector<160x96xi1>, vector<160x96xf32>
    %326 = vector.shape_cast %325 : vector<160x96xf32> to vector<1x10x16x96xf32>
    %327 = vector.extract_strided_slice %326 {offsets = [0, 0, 0, 0], sizes = [1, 8, 8, 96], strides = [1, 1, 1, 1]} : vector<1x10x16x96xf32> to vector<1x8x8x96xf32>
    %328 = vector.shape_cast %147 : vector<192x192xf32> to vector<1x12x16x192xf32>
    %329 = vector.extract_strided_slice %328 {offsets = [0, 0, 0, 0], sizes = [1, 8, 8, 192], strides = [1, 1, 1, 1]} : vector<1x12x16x192xf32> to vector<1x8x8x192xf32>
    %cst_149 = arith.constant 0.000000e+00 : f32
    %330 = vector.broadcast %cst_149 : f32 to vector<1x8x1x192xf32>
    %cst_150 = arith.constant 0.000000e+00 : f32
    %331 = vector.broadcast %cst_150 : f32 to vector<1x8x7x192xf32>
    %332 = tpu.concatenate %330, %329, %331 in 2 : vector<1x8x1x192xf32>, vector<1x8x8x192xf32>, vector<1x8x7x192xf32> -> vector<1x8x16x192xf32>
    %cst_151 = arith.constant 0.000000e+00 : f32
    %333 = vector.broadcast %cst_151 : f32 to vector<1x1x16x192xf32>
    %334 = tpu.concatenate %333, %332, %333 in 1 : vector<1x1x16x192xf32>, vector<1x8x16x192xf32>, vector<1x1x16x192xf32> -> vector<1x10x16x192xf32>
    %335 = vector.shape_cast %334 : vector<1x10x16x192xf32> to vector<160x192xf32>
    %cst_152 = arith.constant 0.000000e+00 : f32
    %336 = vector.broadcast %cst_152 : f32 to vector<34x192xf32>
    %337 = tpu.concatenate %335, %336 in 0 : vector<160x192xf32>, vector<34x192xf32> -> vector<194x192xf32>
    %338 = vector.extract_strided_slice %337 {offsets = [0, 0], sizes = [160, 192], strides = [1, 1]} : vector<194x192xf32> to vector<160x192xf32>
    %339 = vector.extract_strided_slice %337 {offsets = [1, 0], sizes = [160, 192], strides = [1, 1]} : vector<194x192xf32> to vector<160x192xf32>
    %340 = arith.addf %338, %339 : vector<160x192xf32>
    %341 = vector.extract_strided_slice %337 {offsets = [2, 0], sizes = [160, 192], strides = [1, 1]} : vector<194x192xf32> to vector<160x192xf32>
    %342 = arith.addf %340, %341 : vector<160x192xf32>
    %343 = vector.extract_strided_slice %337 {offsets = [16, 0], sizes = [160, 192], strides = [1, 1]} : vector<194x192xf32> to vector<160x192xf32>
    %344 = arith.addf %342, %343 : vector<160x192xf32>
    %345 = vector.extract_strided_slice %337 {offsets = [17, 0], sizes = [160, 192], strides = [1, 1]} : vector<194x192xf32> to vector<160x192xf32>
    %346 = arith.addf %344, %345 : vector<160x192xf32>
    %347 = vector.extract_strided_slice %337 {offsets = [18, 0], sizes = [160, 192], strides = [1, 1]} : vector<194x192xf32> to vector<160x192xf32>
    %348 = arith.addf %346, %347 : vector<160x192xf32>
    %349 = vector.extract_strided_slice %337 {offsets = [32, 0], sizes = [160, 192], strides = [1, 1]} : vector<194x192xf32> to vector<160x192xf32>
    %350 = arith.addf %348, %349 : vector<160x192xf32>
    %351 = vector.extract_strided_slice %337 {offsets = [33, 0], sizes = [160, 192], strides = [1, 1]} : vector<194x192xf32> to vector<160x192xf32>
    %352 = arith.addf %350, %351 : vector<160x192xf32>
    %353 = vector.extract_strided_slice %337 {offsets = [34, 0], sizes = [160, 192], strides = [1, 1]} : vector<194x192xf32> to vector<160x192xf32>
    %354 = arith.addf %352, %353 : vector<160x192xf32>
    %355 = arith.truncf %354 : vector<160x192xf32> to vector<160x192xbf16>
    %c0_153 = arith.constant 0 : index
    %c0_154 = arith.constant 0 : index
    %356 = vector.load %arg20[%c0_153, %c0_154] : memref<192x64xbf16, #tpu.memory_space<vmem>>, vector<192x64xbf16>
    %cst_155 = arith.constant dense<0.000000e+00> : vector<160x64xf32>
    %357 = tpu.matmul %355, %356, %cst_155 {dimension_numbers = #tpu.dot_dimension_numbers<[1], [0], [0], [1], [0, 0, 1, 1], [], []>} : vector<160x192xbf16>, vector<192x64xbf16>, vector<160x64xf32> -> vector<160x64xf32>
    %358 = vector.shape_cast %357 : vector<160x64xf32> to vector<1x10x16x64xf32>
    %359 = vector.extract_strided_slice %358 {offsets = [0, 0, 0, 0], sizes = [1, 8, 8, 64], strides = [1, 1, 1, 1]} : vector<1x10x16x64xf32> to vector<1x8x8x64xf32>
    %c0_156 = arith.constant 0 : index
    %c0_157 = arith.constant 0 : index
    %c0_158 = arith.constant 0 : index
    %360 = vector.load %arg22[%c0_156, %c0_157, %c0_158] : memref<8x8x64xf32, #tpu.memory_space<vmem>>, vector<8x8x64xf32>
    %361 = vector.shape_cast %360 : vector<8x8x64xf32> to vector<1x8x8x64xf32>
    %362 = arith.mulf %359, %361 : vector<1x8x8x64xf32>
    %c0_159 = arith.constant 0 : index
    %c0_160 = arith.constant 0 : index
    %363 = vector.load %arg21[%c0_159, %c0_160] : memref<1x64xf32, #tpu.memory_space<vmem>>, vector<1x64xf32>
    %364 = vector.shape_cast %363 : vector<1x64xf32> to vector<1x1x1x64xf32>
    %365 = vector.broadcast %364 : vector<1x1x1x64xf32> to vector<1x8x8x64xf32>
    %366 = arith.addf %362, %365 : vector<1x8x8x64xf32>
    %cst_161 = arith.constant 0.000000e+00 : f32
    %367 = vector.broadcast %cst_161 : f32 to vector<1x8x8x64xf32>
    %368 = arith.cmpf ogt, %366, %367 : vector<1x8x8x64xf32>
    %cst_162 = arith.constant 0.000000e+00 : f32
    %369 = vector.broadcast %cst_162 : f32 to vector<1x8x8x64xf32>
    %370 = arith.minimumf %366, %369 : vector<1x8x8x64xf32>
    %371 = math.exp %370 : vector<1x8x8x64xf32>
    %cst_163 = arith.constant 1.000000e+00 : f32
    %372 = vector.broadcast %cst_163 : f32 to vector<1x8x8x64xf32>
    %373 = arith.subf %371, %372 : vector<1x8x8x64xf32>
    %374 = arith.select %368, %366, %373 : vector<1x8x8x64xi1>, vector<1x8x8x64xf32>
    %375 = tpu.concatenate %164, %236, %327, %374 in 3 : vector<1x8x8x96xf32>, vector<1x8x8x64xf32>, vector<1x8x8x96xf32>, vector<1x8x8x64xf32> -> vector<1x8x8x320xf32>
    %c0_164 = arith.constant 0 : index
    %c0_165 = arith.constant 0 : index
    %c0_166 = arith.constant 0 : index
    %c0_167 = arith.constant 0 : index
    %376 = vector.load %arg23[%c0_164, %c0_165, %c0_166, %c0_167] : memref<1x8x8x320xf32, #tpu.memory_space<vmem>>, vector<1x8x8x320xf32>
    tpu.vector_store %arg23[%c0_164, %c0_165, %c0_166, %c0_167], %375 {strides = array<i32>} : memref<1x8x8x320xf32, #tpu.memory_space<vmem>>, vector<1x8x8x320xf32>,
    return
  }
  func.func @transform_0(%arg0: i32) -> (i32, i32, i32) {
    %c0_i32 = arith.constant 0 : i32
    %c0_i32_0 = arith.constant 0 : i32
    %c0_i32_1 = arith.constant 0 : i32
    return %arg0, %c0_i32, %c0_i32_0 : i32, i32, i32
  }
  func.func @transform_1(%arg0: i32) -> (i32, i32) {
    %c0_i32 = arith.constant 0 : i32
    %c0_i32_0 = arith.constant 0 : i32
    %c0_i32_1 = arith.constant 0 : i32
    return %c0_i32, %c0_i32_0 : i32, i32
  }
  func.func @transform_2(%arg0: i32) -> (i32, i32) {
    %c0_i32 = arith.constant 0 : i32
    %c0_i32_0 = arith.constant 0 : i32
    %c0_i32_1 = arith.constant 0 : i32
    return %c0_i32, %c0_i32_0 : i32, i32
  }
  func.func @transform_3(%arg0: i32) -> (i32, i32, i32) {
    %c0_i32 = arith.constant 0 : i32
    %c0_i32_0 = arith.constant 0 : i32
    %c0_i32_1 = arith.constant 0 : i32
    %c0_i32_2 = arith.constant 0 : i32
    return %c0_i32, %c0_i32_0, %c0_i32_1 : i32, i32, i32
  }
  func.func @transform_4(%arg0: i32) -> (i32, i32) {
    %c0_i32 = arith.constant 0 : i32
    %c0_i32_0 = arith.constant 0 : i32
    %c0_i32_1 = arith.constant 0 : i32
    return %c0_i32, %c0_i32_0 : i32, i32
  }
  func.func @transform_5(%arg0: i32) -> (i32, i32, i32) {
    %c0_i32 = arith.constant 0 : i32
    %c0_i32_0 = arith.constant 0 : i32
    %c0_i32_1 = arith.constant 0 : i32
    %c0_i32_2 = arith.constant 0 : i32
    return %c0_i32, %c0_i32_0, %c0_i32_1 : i32, i32, i32
  }
  func.func @transform_6(%arg0: i32) -> (i32, i32) {
    %c0_i32 = arith.constant 0 : i32
    %c0_i32_0 = arith.constant 0 : i32
    %c0_i32_1 = arith.constant 0 : i32
    return %c0_i32, %c0_i32_0 : i32, i32
  }
  func.func @transform_7(%arg0: i32) -> (i32, i32) {
    %c0_i32 = arith.constant 0 : i32
    %c0_i32_0 = arith.constant 0 : i32
    %c0_i32_1 = arith.constant 0 : i32
    return %c0_i32, %c0_i32_0 : i32, i32
  }
  func.func @transform_8(%arg0: i32) -> (i32, i32) {
    %c0_i32 = arith.constant 0 : i32
    %c0_i32_0 = arith.constant 0 : i32
    %c0_i32_1 = arith.constant 0 : i32
    return %c0_i32, %c0_i32_0 : i32, i32
  }
  func.func @transform_9(%arg0: i32) -> (i32, i32, i32) {
    %c0_i32 = arith.constant 0 : i32
    %c0_i32_0 = arith.constant 0 : i32
    %c0_i32_1 = arith.constant 0 : i32
    %c0_i32_2 = arith.constant 0 : i32
    return %c0_i32, %c0_i32_0, %c0_i32_1 : i32, i32, i32
  }
  func.func @transform_10(%arg0: i32) -> (i32, i32) {
    %c0_i32 = arith.constant 0 : i32
    %c0_i32_0 = arith.constant 0 : i32
    %c0_i32_1 = arith.constant 0 : i32
    return %c0_i32, %c0_i32_0 : i32, i32
  }
  func.func @transform_11(%arg0: i32) -> (i32, i32) {
    %c0_i32 = arith.constant 0 : i32
    %c0_i32_0 = arith.constant 0 : i32
    %c0_i32_1 = arith.constant 0 : i32
    return %c0_i32, %c0_i32_0 : i32, i32
  }
  func.func @transform_12(%arg0: i32) -> (i32, i32) {
    %c0_i32 = arith.constant 0 : i32
    %c0_i32_0 = arith.constant 0 : i32
    %c0_i32_1 = arith.constant 0 : i32
    return %c0_i32, %c0_i32_0 : i32, i32
  }
  func.func @transform_13(%arg0: i32) -> (i32, i32, i32) {
    %c0_i32 = arith.constant 0 : i32
    %c0_i32_0 = arith.constant 0 : i32
    %c0_i32_1 = arith.constant 0 : i32
    %c0_i32_2 = arith.constant 0 : i32
    return %c0_i32, %c0_i32_0, %c0_i32_1 : i32, i32, i32
  }
  func.func @transform_14(%arg0: i32) -> (i32, i32) {
    %c0_i32 = arith.constant 0 : i32
    %c0_i32_0 = arith.constant 0 : i32
    %c0_i32_1 = arith.constant 0 : i32
    return %c0_i32, %c0_i32_0 : i32, i32
  }
  func.func @transform_15(%arg0: i32) -> (i32, i32, i32) {
    %c0_i32 = arith.constant 0 : i32
    %c0_i32_0 = arith.constant 0 : i32
    %c0_i32_1 = arith.constant 0 : i32
    %c0_i32_2 = arith.constant 0 : i32
    return %c0_i32, %c0_i32_0, %c0_i32_1 : i32, i32, i32
  }
  func.func @transform_16(%arg0: i32) -> (i32, i32) {
    %c0_i32 = arith.constant 0 : i32
    %c0_i32_0 = arith.constant 0 : i32
    %c0_i32_1 = arith.constant 0 : i32
    return %c0_i32, %c0_i32_0 : i32, i32
  }
  func.func @transform_17(%arg0: i32) -> (i32, i32, i32) {
    %c0_i32 = arith.constant 0 : i32
    %c0_i32_0 = arith.constant 0 : i32
    %c0_i32_1 = arith.constant 0 : i32
    %c0_i32_2 = arith.constant 0 : i32
    return %c0_i32, %c0_i32_0, %c0_i32_1 : i32, i32, i32
  }
  func.func @transform_18(%arg0: i32) -> (i32, i32) {
    %c0_i32 = arith.constant 0 : i32
    %c0_i32_0 = arith.constant 0 : i32
    %c0_i32_1 = arith.constant 0 : i32
    return %c0_i32, %c0_i32_0 : i32, i32
  }
  func.func @transform_19(%arg0: i32) -> (i32, i32) {
    %c0_i32 = arith.constant 0 : i32
    %c0_i32_0 = arith.constant 0 : i32
    %c0_i32_1 = arith.constant 0 : i32
    return %c0_i32, %c0_i32_0 : i32, i32
  }
  func.func @transform_20(%arg0: i32) -> (i32, i32) {
    %c0_i32 = arith.constant 0 : i32
    %c0_i32_0 = arith.constant 0 : i32
    %c0_i32_1 = arith.constant 0 : i32
    return %c0_i32, %c0_i32_0 : i32, i32
  }
  func.func @transform_21(%arg0: i32) -> (i32, i32, i32) {
    %c0_i32 = arith.constant 0 : i32
    %c0_i32_0 = arith.constant 0 : i32
    %c0_i32_1 = arith.constant 0 : i32
    %c0_i32_2 = arith.constant 0 : i32
    return %c0_i32, %c0_i32_0, %c0_i32_1 : i32, i32, i32
  }
  func.func @transform_22(%arg0: i32) -> (i32, i32, i32, i32) {
    %c0_i32 = arith.constant 0 : i32
    %c0_i32_0 = arith.constant 0 : i32
    %c0_i32_1 = arith.constant 0 : i32
    %c0_i32_2 = arith.constant 0 : i32
    return %arg0, %c0_i32, %c0_i32_0, %c0_i32_1 : i32, i32, i32, i32
  }
}

</mosaic_0001>

<llo_original>
// kernel: irnet_forward.1
$region0: #{irnet_forward.1}
  #allocation0 [shape = 'u32[]', space=smem, size = 0x4, offset = 0x4, fixed_abs, tag = 'smem constant byte address 0x4 - core index']
  #allocation1 [shape = 'u32[144,128]{1,0:T(1,128)}', space=vmem, size = 0x12000, scoped, tag = 'internal scratch']
  %s0 = inlined_call_operand.vmem [shape: bf16[2,192,27], index: 0, kind: input, shape index: {}]
  %s1 = inlined_call_operand.vmem [shape: bf16[27,32], index: 1, kind: input, shape index: {}]
  %s2 = inlined_call_operand.vmem [shape: f32[1,32], index: 2, kind: input, shape index: {}]
  %s3 = inlined_call_operand.vmem [shape: bf16[3,96,32], index: 3, kind: input, shape index: {}]
  %s4 = inlined_call_operand.vmem [shape: f32[1,32], index: 4, kind: input, shape index: {}]
  %s5 = inlined_call_operand.vmem [shape: bf16[3,96,64], index: 5, kind: input, shape index: {}]
  %s6 = inlined_call_operand.vmem [shape: f32[1,64], index: 6, kind: input, shape index: {}]
  %s7 = inlined_call_operand.vmem [shape: bf16[64,80], index: 7, kind: input, shape index: {}]
  %s8 = inlined_call_operand.vmem [shape: f32[1,80], index: 8, kind: input, shape index: {}]
  %s9 = inlined_call_operand.vmem [shape: bf16[3,240,192], index: 9, kind: input, shape index: {}]
  %s10 = inlined_call_operand.vmem [shape: f32[1,192], index: 10, kind: input, shape index: {}]
  %s11 = inlined_call_operand.vmem [shape: bf16[192,208], index: 11, kind: input, shape index: {}]
  %s12 = inlined_call_operand.vmem [shape: f32[1,208], index: 12, kind: input, shape index: {}]
  %s13 = inlined_call_operand.vmem [shape: bf16[5,240,64], index: 13, kind: input, shape index: {}]
  %s14 = inlined_call_operand.vmem [shape: f32[1,64], index: 14, kind: input, shape index: {}]
  %s15 = inlined_call_operand.vmem [shape: bf16[3,192,96], index: 15, kind: input, shape index: {}]
  %s16 = inlined_call_operand.vmem [shape: f32[1,96], index: 16, kind: input, shape index: {}]
  %s17 = inlined_call_operand.vmem [shape: bf16[3,288,96], index: 17, kind: input, shape index: {}]
  %s18 = inlined_call_operand.vmem [shape: f32[1,96], index: 18, kind: input, shape index: {}]
  %s19 = inlined_call_operand.vmem [shape: bf16[192,64], index: 19, kind: input, shape index: {}]
  %s20 = inlined_call_operand.vmem [shape: f32[1,64], index: 20, kind: input, shape index: {}]
  %s21 = inlined_call_operand.vmem [shape: f32[8,8,64], index: 21, kind: input, shape index: {}]
  %s22 = inlined_call_operand.hbm [shape: f32[2,8,8,320], index: 22, kind: output, shape index: {}]
  %s23 = sld [smem:[#allocation0]]
  $region121: #{irnet_forward.1} parent=0
    _
  %s25 = ssub.s32 1, %s23
  %s26 = scalar_select 0, %s25, %s23
  $region1: #{irnet_forward.1} parent=0
    #allocation2 [shape = 'u8[196608]{0}', space=vmem, size = 0x30000, scoped, tag = 'output window, operand 0']
    #allocation3 [shape = 's32[2]{0}', space=sflag, size = 0x8, scoped, tag = 'scoped memory for irnet_forward.1']
    %27 = vsyncpa [#allocation3], 0
    %s28 = scalar_lea.sflag [#allocation3], 1
    %29 = vsyncpa %s28, 0
    loop: start=0, step=1, limit=4
    $region2: #{irnet_forward.1} parent=1 // loop_pre_header
      _
    $region3: #{irnet_forward.1} parent=1 // loop_header
      %s31 = sphi 0, %s35
      %p32 = scmp.ge.s32.totalorder %s31, 4
      %s41 = sphi 0, %s43
      %s44 = sphi 0, %s41
      %s45 = sphi 0, %s44
      %s61 = sphi 0, %s45
      %s65 = sphi 0, %s65
      %s67 = sphi 0, %s65
      %s68 = sphi 0, %s67
      %s82 = sphi 0, %s68
      %s86 = sphi 0, %s86
      %s88 = sphi 0, %s86
      %s89 = sphi 0, %s88
      %s103 = sphi 0, %s89
      %s107 = sphi 0, %s107
      %s109 = sphi 0, %s107
      %s110 = sphi 0, %s109
      %s124 = sphi 0, %s110
      %s128 = sphi 0, %s128
      %s130 = sphi 0, %s128
      %s131 = sphi 0, %s130
      %s145 = sphi 0, %s131
      %s149 = sphi 0, %s149
      %s151 = sphi 0, %s149
      %s152 = sphi 0, %s151
      %s166 = sphi 0, %s152
      %s170 = sphi 0, %s170
      %s172 = sphi 0, %s170
      %s173 = sphi 0, %s172
      %s187 = sphi 0, %s173
      %s191 = sphi 0, %s191
      %s193 = sphi 0, %s191
      %s194 = sphi 0, %s193
      %s208 = sphi 0, %s194
      %s212 = sphi 0, %s212
      %s214 = sphi 0, %s212
      %s215 = sphi 0, %s214
      %s229 = sphi 0, %s215
      %s233 = sphi 0, %s233
      %s235 = sphi 0, %s233
      %s236 = sphi 0, %s235
      %s250 = sphi 0, %s236
      %s254 = sphi 0, %s254
      %s256 = sphi 0, %s254
      %s257 = sphi 0, %s256
      %s271 = sphi 0, %s257
      %s275 = sphi 0, %s275
      %s277 = sphi 0, %s275
      %s278 = sphi 0, %s277
      %s292 = sphi 0, %s278
      %s296 = sphi 0, %s296
      %s298 = sphi 0, %s296
      %s299 = sphi 0, %s298
      %s313 = sphi 0, %s299
      %s317 = sphi 0, %s317
      %s319 = sphi 0, %s317
      %s320 = sphi 0, %s319
      %s334 = sphi 0, %s320
      %s338 = sphi 0, %s338
      %s340 = sphi 0, %s338
      %s341 = sphi 0, %s340
      %s355 = sphi 0, %s341
      %s359 = sphi 0, %s359
      %s361 = sphi 0, %s359
      %s362 = sphi 0, %s361
      %s376 = sphi 0, %s362
      %s380 = sphi 0, %s380
      %s382 = sphi 0, %s380
      %s383 = sphi 0, %s382
      %s397 = sphi 0, %s383
      %s401 = sphi 0, %s401
      %s403 = sphi 0, %s401
      %s404 = sphi 0, %s403
      %s418 = sphi 0, %s404
      %s422 = sphi 0, %s422
      %s424 = sphi 0, %s422
      %s425 = sphi 0, %s424
      %s439 = sphi 0, %s425
      %s443 = sphi 0, %s443
      %s445 = sphi 0, %s443
      %s446 = sphi 0, %s445
      %s460 = sphi 0, %s446
      %s464 = sphi 0, %s464
      %s466 = sphi 0, %s464
      %s467 = sphi 0, %s466
      %s481 = sphi 0, %s467
      %s485 = sphi 0, %s485
      %s487 = sphi 0, %s485
      %s488 = sphi 0, %s487
      %s502 = sphi 0, %s488
      %s508 = sphi 0, %s510
      %s511 = sphi 0, %s508
      %s512 = sphi 0, %s511
      %s528 = sphi 0, %s512
    $region4: #{irnet_forward.1} parent=1 // loop_header_branch
      %34 = sbr.rel (%p32) target = $region8
    $region5: #{irnet_forward.1} parent=1 // loop_body
      %s36 = ssub.s32 %s31, 1
      %s37 = ssub.s32 %s31, 2
      %s38 = sadd.s32 %s31, 1
      %s39 = ssub.s32 %s31, %s38
      %p40 = scmp.eq.s32.totalorder %s39, 0
      %s42 = sadd.s32 %s41, 1
      %s43 = scalar_select %p40, %s41, %s42
      %p46 = pneg %p40
      %p47 = scmp.eq.s32.totalorder %s31, 1
      %p48 = por %p46, %p47
      %p49 = scmp.ne.s32.totalorder %s41, %s44
      %p50 = scmp.eq.s32.totalorder %s31, 0
      %p51 = por %p49, %p50
      %p52 = scmp.ne.s32.totalorder %s41, %s44
      %p53 = scmp.eq.s32.totalorder %s36, 1
      %p54 = por %p52, %p53
      %p55 = scmp.ne.s32.totalorder %s44, %s45
      %p56 = scmp.eq.s32.totalorder %s36, 0
      %p57 = por %p55, %p56
      %p58 = scmp.ne.s32.totalorder %s44, %s45
      %p59 = scmp.eq.s32.totalorder %s37, 1
      %p60 = por %p58, %p59
      %p62 = scmp.ne.s32.totalorder %s45, %s61
      %p63 = scmp.eq.s32.totalorder %s37, 0
      %p64 = por %p62, %p63
      %s66 = sadd.s32 %s65, 1
      %p69 = scmp.eq.s32.totalorder %s31, 1
      %p70 = scmp.ne.s32.totalorder %s65, %s67
      %p71 = scmp.eq.s32.totalorder %s31, 0
      %p72 = por %p70, %p71
      %p73 = scmp.ne.s32.totalorder %s65, %s67
      %p74 = scmp.eq.s32.totalorder %s36, 1
      %p75 = por %p73, %p74
      %p76 = scmp.ne.s32.totalorder %s67, %s68
      %p77 = scmp.eq.s32.totalorder %s36, 0
      %p78 = por %p76, %p77
      %p79 = scmp.ne.s32.totalorder %s67, %s68
      %p80 = scmp.eq.s32.totalorder %s37, 1
      %p81 = por %p79, %p80
      %p83 = scmp.ne.s32.totalorder %s68, %s82
      %p84 = scmp.eq.s32.totalorder %s37, 0
      %p85 = por %p83, %p84
      %s87 = sadd.s32 %s86, 1
      %p90 = scmp.eq.s32.totalorder %s31, 1
      %p91 = scmp.ne.s32.totalorder %s86, %s88
      %p92 = scmp.eq.s32.totalorder %s31, 0
      %p93 = por %p91, %p92
      %p94 = scmp.ne.s32.totalorder %s86, %s88
      %p95 = scmp.eq.s32.totalorder %s36, 1
      %p96 = por %p94, %p95
      %p97 = scmp.ne.s32.totalorder %s88, %s89
      %p98 = scmp.eq.s32.totalorder %s36, 0
      %p99 = por %p97, %p98
      %p100 = scmp.ne.s32.totalorder %s88, %s89
      %p101 = scmp.eq.s32.totalorder %s37, 1
      %p102 = por %p100, %p101
      %p104 = scmp.ne.s32.totalorder %s89, %s103
      %p105 = scmp.eq.s32.totalorder %s37, 0
      %p106 = por %p104, %p105
      %s108 = sadd.s32 %s107, 1
      %p111 = scmp.eq.s32.totalorder %s31, 1
      %p112 = scmp.ne.s32.totalorder %s107, %s109
      %p113 = scmp.eq.s32.totalorder %s31, 0
      %p114 = por %p112, %p113
      %p115 = scmp.ne.s32.totalorder %s107, %s109
      %p116 = scmp.eq.s32.totalorder %s36, 1
      %p117 = por %p115, %p116
      %p118 = scmp.ne.s32.totalorder %s109, %s110
      %p119 = scmp.eq.s32.totalorder %s36, 0
      %p120 = por %p118, %p119
      %p121 = scmp.ne.s32.totalorder %s109, %s110
      %p122 = scmp.eq.s32.totalorder %s37, 1
      %p123 = por %p121, %p122
      %p125 = scmp.ne.s32.totalorder %s110, %s124
      %p126 = scmp.eq.s32.totalorder %s37, 0
      %p127 = por %p125, %p126
      %s129 = sadd.s32 %s128, 1
      %p132 = scmp.eq.s32.totalorder %s31, 1
      %p133 = scmp.ne.s32.totalorder %s128, %s130
      %p134 = scmp.eq.s32.totalorder %s31, 0
      %p135 = por %p133, %p134
      %p136 = scmp.ne.s32.totalorder %s128, %s130
      %p137 = scmp.eq.s32.totalorder %s36, 1
      %p138 = por %p136, %p137
      %p139 = scmp.ne.s32.totalorder %s130, %s131
      %p140 = scmp.eq.s32.totalorder %s36, 0
      %p141 = por %p139, %p140
      %p142 = scmp.ne.s32.totalorder %s130, %s131
      %p143 = scmp.eq.s32.totalorder %s37, 1
      %p144 = por %p142, %p143
      %p146 = scmp.ne.s32.totalorder %s131, %s145
      %p147 = scmp.eq.s32.totalorder %s37, 0
      %p148 = por %p146, %p147
      %s150 = sadd.s32 %s149, 1
      %p153 = scmp.eq.s32.totalorder %s31, 1
      %p154 = scmp.ne.s32.totalorder %s149, %s151
      %p155 = scmp.eq.s32.totalorder %s31, 0
      %p156 = por %p154, %p155
      %p157 = scmp.ne.s32.totalorder %s149, %s151
      %p158 = scmp.eq.s32.totalorder %s36, 1
      %p159 = por %p157, %p158
      %p160 = scmp.ne.s32.totalorder %s151, %s152
      %p161 = scmp.eq.s32.totalorder %s36, 0
      %p162 = por %p160, %p161
      %p163 = scmp.ne.s32.totalorder %s151, %s152
      %p164 = scmp.eq.s32.totalorder %s37, 1
      %p165 = por %p163, %p164
      %p167 = scmp.ne.s32.totalorder %s152, %s166
      %p168 = scmp.eq.s32.totalorder %s37, 0
      %p169 = por %p167, %p168
      %s171 = sadd.s32 %s170, 1
      %p174 = scmp.eq.s32.totalorder %s31, 1
      %p175 = scmp.ne.s32.totalorder %s170, %s172
      %p176 = scmp.eq.s32.totalorder %s31, 0
      %p177 = por %p175, %p176
      %p178 = scmp.ne.s32.totalorder %s170, %s172
      %p179 = scmp.eq.s32.totalorder %s36, 1
      %p180 = por %p178, %p179
      %p181 = scmp.ne.s32.totalorder %s172, %s173
      %p182 = scmp.eq.s32.totalorder %s36, 0
      %p183 = por %p181, %p182
      %p184 = scmp.ne.s32.totalorder %s172, %s173
      %p185 = scmp.eq.s32.totalorder %s37, 1
      %p186 = por %p184, %p185
      %p188 = scmp.ne.s32.totalorder %s173, %s187
      %p189 = scmp.eq.s32.totalorder %s37, 0
      %p190 = por %p188, %p189
      %s192 = sadd.s32 %s191, 1
      %p195 = scmp.eq.s32.totalorder %s31, 1
      %p196 = scmp.ne.s32.totalorder %s191, %s193
      %p197 = scmp.eq.s32.totalorder %s31, 0
      %p198 = por %p196, %p197
      %p199 = scmp.ne.s32.totalorder %s191, %s193
      %p200 = scmp.eq.s32.totalorder %s36, 1
      %p201 = por %p199, %p200
      %p202 = scmp.ne.s32.totalorder %s193, %s194
      %p203 = scmp.eq.s32.totalorder %s36, 0
      %p204 = por %p202, %p203
      %p205 = scmp.ne.s32.totalorder %s193, %s194
      %p206 = scmp.eq.s32.totalorder %s37, 1
      %p207 = por %p205, %p206
      %p209 = scmp.ne.s32.totalorder %s194, %s208
      %p210 = scmp.eq.s32.totalorder %s37, 0
      %p211 = por %p209, %p210
      %s213 = sadd.s32 %s212, 1
      %p216 = scmp.eq.s32.totalorder %s31, 1
      %p217 = scmp.ne.s32.totalorder %s212, %s214
      %p218 = scmp.eq.s32.totalorder %s31, 0
      %p219 = por %p217, %p218
      %p220 = scmp.ne.s32.totalorder %s212, %s214
      %p221 = scmp.eq.s32.totalorder %s36, 1
      %p222 = por %p220, %p221
      %p223 = scmp.ne.s32.totalorder %s214, %s215
      %p224 = scmp.eq.s32.totalorder %s36, 0
      %p225 = por %p223, %p224
      %p226 = scmp.ne.s32.totalorder %s214, %s215
      %p227 = scmp.eq.s32.totalorder %s37, 1
      %p228 = por %p226, %p227
      %p230 = scmp.ne.s32.totalorder %s215, %s229
      %p231 = scmp.eq.s32.totalorder %s37, 0
      %p232 = por %p230, %p231
      %s234 = sadd.s32 %s233, 1
      %p237 = scmp.eq.s32.totalorder %s31, 1
      %p238 = scmp.ne.s32.totalorder %s233, %s235
      %p239 = scmp.eq.s32.totalorder %s31, 0
      %p240 = por %p238, %p239
      %p241 = scmp.ne.s32.totalorder %s233, %s235
      %p242 = scmp.eq.s32.totalorder %s36, 1
      %p243 = por %p241, %p242
      %p244 = scmp.ne.s32.totalorder %s235, %s236
      %p245 = scmp.eq.s32.totalorder %s36, 0
      %p246 = por %p244, %p245
      %p247 = scmp.ne.s32.totalorder %s235, %s236
      %p248 = scmp.eq.s32.totalorder %s37, 1
      %p249 = por %p247, %p248
      %p251 = scmp.ne.s32.totalorder %s236, %s250
      %p252 = scmp.eq.s32.totalorder %s37, 0
      %p253 = por %p251, %p252
      %s255 = sadd.s32 %s254, 1
      %p258 = scmp.eq.s32.totalorder %s31, 1
      %p259 = scmp.ne.s32.totalorder %s254, %s256
      %p260 = scmp.eq.s32.totalorder %s31, 0
      %p261 = por %p259, %p260
      %p262 = scmp.ne.s32.totalorder %s254, %s256
      %p263 = scmp.eq.s32.totalorder %s36, 1
      %p264 = por %p262, %p263
      %p265 = scmp.ne.s32.totalorder %s256, %s257
      %p266 = scmp.eq.s32.totalorder %s36, 0
      %p267 = por %p265, %p266
      %p268 = scmp.ne.s32.totalorder %s256, %s257
      %p269 = scmp.eq.s32.totalorder %s37, 1
      %p270 = por %p268, %p269
      %p272 = scmp.ne.s32.totalorder %s257, %s271
      %p273 = scmp.eq.s32.totalorder %s37, 0
      %p274 = por %p272, %p273
      %s276 = sadd.s32 %s275, 1
      %p279 = scmp.eq.s32.totalorder %s31, 1
      %p280 = scmp.ne.s32.totalorder %s275, %s277
      %p281 = scmp.eq.s32.totalorder %s31, 0
      %p282 = por %p280, %p281
      %p283 = scmp.ne.s32.totalorder %s275, %s277
      %p284 = scmp.eq.s32.totalorder %s36, 1
      %p285 = por %p283, %p284
      %p286 = scmp.ne.s32.totalorder %s277, %s278
      %p287 = scmp.eq.s32.totalorder %s36, 0
      %p288 = por %p286, %p287
      %p289 = scmp.ne.s32.totalorder %s277, %s278
      %p290 = scmp.eq.s32.totalorder %s37, 1
      %p291 = por %p289, %p290
      %p293 = scmp.ne.s32.totalorder %s278, %s292
      %p294 = scmp.eq.s32.totalorder %s37, 0
      %p295 = por %p293, %p294
      %s297 = sadd.s32 %s296, 1
      %p300 = scmp.eq.s32.totalorder %s31, 1
      %p301 = scmp.ne.s32.totalorder %s296, %s298
      %p302 = scmp.eq.s32.totalorder %s31, 0
      %p303 = por %p301, %p302
      %p304 = scmp.ne.s32.totalorder %s296, %s298
      %p305 = scmp.eq.s32.totalorder %s36, 1
      %p306 = por %p304, %p305
      %p307 = scmp.ne.s32.totalorder %s298, %s299
      %p308 = scmp.eq.s32.totalorder %s36, 0
      %p309 = por %p307, %p308
      %p310 = scmp.ne.s32.totalorder %s298, %s299
      %p311 = scmp.eq.s32.totalorder %s37, 1
      %p312 = por %p310, %p311
      %p314 = scmp.ne.s32.totalorder %s299, %s313
      %p315 = scmp.eq.s32.totalorder %s37, 0
      %p316 = por %p314, %p315
      %s318 = sadd.s32 %s317, 1
      %p321 = scmp.eq.s32.totalorder %s31, 1
      %p322 = scmp.ne.s32.totalorder %s317, %s319
      %p323 = scmp.eq.s32.totalorder %s31, 0
      %p324 = por %p322, %p323
      %p325 = scmp.ne.s32.totalorder %s317, %s319
      %p326 = scmp.eq.s32.totalorder %s36, 1
      %p327 = por %p325, %p326
      %p328 = scmp.ne.s32.totalorder %s319, %s320
      %p329 = scmp.eq.s32.totalorder %s36, 0
      %p330 = por %p328, %p329
      %p331 = scmp.ne.s32.totalorder %s319, %s320
      %p332 = scmp.eq.s32.totalorder %s37, 1
      %p333 = por %p331, %p332
      %p335 = scmp.ne.s32.totalorder %s320, %s334
      %p336 = scmp.eq.s32.totalorder %s37, 0
      %p337 = por %p335, %p336
      %s339 = sadd.s32 %s338, 1
      %p342 = scmp.eq.s32.totalorder %s31, 1
      %p343 = scmp.ne.s32.totalorder %s338, %s340
      %p344 = scmp.eq.s32.totalorder %s31, 0
      %p345 = por %p343, %p344
      %p346 = scmp.ne.s32.totalorder %s338, %s340
      %p347 = scmp.eq.s32.totalorder %s36, 1
      %p348 = por %p346, %p347
      %p349 = scmp.ne.s32.totalorder %s340, %s341
      %p350 = scmp.eq.s32.totalorder %s36, 0
      %p351 = por %p349, %p350
      %p352 = scmp.ne.s32.totalorder %s340, %s341
      %p353 = scmp.eq.s32.totalorder %s37, 1
      %p354 = por %p352, %p353
      %p356 = scmp.ne.s32.totalorder %s341, %s355
      %p357 = scmp.eq.s32.totalorder %s37, 0
      %p358 = por %p356, %p357
      %s360 = sadd.s32 %s359, 1
      %p363 = scmp.eq.s32.totalorder %s31, 1
      %p364 = scmp.ne.s32.totalorder %s359, %s361
      %p365 = scmp.eq.s32.totalorder %s31, 0
      %p366 = por %p364, %p365
      %p367 = scmp.ne.s32.totalorder %s359, %s361
      %p368 = scmp.eq.s32.totalorder %s36, 1
      %p369 = por %p367, %p368
      %p370 = scmp.ne.s32.totalorder %s361, %s362
      %p371 = scmp.eq.s32.totalorder %s36, 0
      %p372 = por %p370, %p371
      %p373 = scmp.ne.s32.totalorder %s361, %s362
      %p374 = scmp.eq.s32.totalorder %s37, 1
      %p375 = por %p373, %p374
      %p377 = scmp.ne.s32.totalorder %s362, %s376
      %p378 = scmp.eq.s32.totalorder %s37, 0
      %p379 = por %p377, %p378
      %s381 = sadd.s32 %s380, 1
      %p384 = scmp.eq.s32.totalorder %s31, 1
      %p385 = scmp.ne.s32.totalorder %s380, %s382
      %p386 = scmp.eq.s32.totalorder %s31, 0
      %p387 = por %p385, %p386
      %p388 = scmp.ne.s32.totalorder %s380, %s382
      %p389 = scmp.eq.s32.totalorder %s36, 1
      %p390 = por %p388, %p389
      %p391 = scmp.ne.s32.totalorder %s382, %s383
      %p392 = scmp.eq.s32.totalorder %s36, 0
      %p393 = por %p391, %p392
      %p394 = scmp.ne.s32.totalorder %s382, %s383
      %p395 = scmp.eq.s32.totalorder %s37, 1
      %p396 = por %p394, %p395
      %p398 = scmp.ne.s32.totalorder %s383, %s397
      %p399 = scmp.eq.s32.totalorder %s37, 0
      %p400 = por %p398, %p399
      %s402 = sadd.s32 %s401, 1
      %p405 = scmp.eq.s32.totalorder %s31, 1
      %p406 = scmp.ne.s32.totalorder %s401, %s403
      %p407 = scmp.eq.s32.totalorder %s31, 0
      %p408 = por %p406, %p407
      %p409 = scmp.ne.s32.totalorder %s401, %s403
      %p410 = scmp.eq.s32.totalorder %s36, 1
      %p411 = por %p409, %p410
      %p412 = scmp.ne.s32.totalorder %s403, %s404
      %p413 = scmp.eq.s32.totalorder %s36, 0
      %p414 = por %p412, %p413
      %p415 = scmp.ne.s32.totalorder %s403, %s404
      %p416 = scmp.eq.s32.totalorder %s37, 1
      %p417 = por %p415, %p416
      %p419 = scmp.ne.s32.totalorder %s404, %s418
      %p420 = scmp.eq.s32.totalorder %s37, 0
      %p421 = por %p419, %p420
      %s423 = sadd.s32 %s422, 1
      %p426 = scmp.eq.s32.totalorder %s31, 1
      %p427 = scmp.ne.s32.totalorder %s422, %s424
      %p428 = scmp.eq.s32.totalorder %s31, 0
      %p429 = por %p427, %p428
      %p430 = scmp.ne.s32.totalorder %s422, %s424
      %p431 = scmp.eq.s32.totalorder %s36, 1
      %p432 = por %p430, %p431
      %p433 = scmp.ne.s32.totalorder %s424, %s425
      %p434 = scmp.eq.s32.totalorder %s36, 0
      %p435 = por %p433, %p434
      %p436 = scmp.ne.s32.totalorder %s424, %s425
      %p437 = scmp.eq.s32.totalorder %s37, 1
      %p438 = por %p436, %p437
      %p440 = scmp.ne.s32.totalorder %s425, %s439
      %p441 = scmp.eq.s32.totalorder %s37, 0
      %p442 = por %p440, %p441
      %s444 = sadd.s32 %s443, 1
      %p447 = scmp.eq.s32.totalorder %s31, 1
      %p448 = scmp.ne.s32.totalorder %s443, %s445
      %p449 = scmp.eq.s32.totalorder %s31, 0
      %p450 = por %p448, %p449
      %p451 = scmp.ne.s32.totalorder %s443, %s445
      %p452 = scmp.eq.s32.totalorder %s36, 1
      %p453 = por %p451, %p452
      %p454 = scmp.ne.s32.totalorder %s445, %s446
      %p455 = scmp.eq.s32.totalorder %s36, 0
      %p456 = por %p454, %p455
      %p457 = scmp.ne.s32.totalorder %s445, %s446
      %p458 = scmp.eq.s32.totalorder %s37, 1
      %p459 = por %p457, %p458
      %p461 = scmp.ne.s32.totalorder %s446, %s460
      %p462 = scmp.eq.s32.totalorder %s37, 0
      %p463 = por %p461, %p462
      %s465 = sadd.s32 %s464, 1
      %p468 = scmp.eq.s32.totalorder %s31, 1
      %p469 = scmp.ne.s32.totalorder %s464, %s466
      %p470 = scmp.eq.s32.totalorder %s31, 0
      %p471 = por %p469, %p470
      %p472 = scmp.ne.s32.totalorder %s464, %s466
      %p473 = scmp.eq.s32.totalorder %s36, 1
      %p474 = por %p472, %p473
      %p475 = scmp.ne.s32.totalorder %s466, %s467
      %p476 = scmp.eq.s32.totalorder %s36, 0
      %p477 = por %p475, %p476
      %p478 = scmp.ne.s32.totalorder %s466, %s467
      %p479 = scmp.eq.s32.totalorder %s37, 1
      %p480 = por %p478, %p479
      %p482 = scmp.ne.s32.totalorder %s467, %s481
      %p483 = scmp.eq.s32.totalorder %s37, 0
      %p484 = por %p482, %p483
      %s486 = sadd.s32 %s485, 1
      %p489 = scmp.eq.s32.totalorder %s31, 1
      %p490 = scmp.ne.s32.totalorder %s485, %s487
      %p491 = scmp.eq.s32.totalorder %s31, 0
      %p492 = por %p490, %p491
      %p493 = scmp.ne.s32.totalorder %s485, %s487
      %p494 = scmp.eq.s32.totalorder %s36, 1
      %p495 = por %p493, %p494
      %p496 = scmp.ne.s32.totalorder %s487, %s488
      %p497 = scmp.eq.s32.totalorder %s36, 0
      %p498 = por %p496, %p497
      %p499 = scmp.ne.s32.totalorder %s487, %s488
      %p500 = scmp.eq.s32.totalorder %s37, 1
      %p501 = por %p499, %p500
      %p503 = scmp.ne.s32.totalorder %s488, %s502
      %p504 = scmp.eq.s32.totalorder %s37, 0
      %p505 = por %p503, %p504
      %s506 = ssub.s32 %s31, %s38
      %p507 = scmp.eq.s32.totalorder %s506, 0
      %s509 = sadd.s32 %s508, 1
      %s510 = scalar_select %p507, %s508, %s509
      %p513 = pneg %p507
      %p514 = scmp.eq.s32.totalorder %s31, 1
      %p515 = por %p513, %p514
      %p516 = scmp.ne.s32.totalorder %s508, %s511
      %p517 = scmp.eq.s32.totalorder %s31, 0
      %p518 = por %p516, %p517
      %p519 = scmp.ne.s32.totalorder %s508, %s511
      %p520 = scmp.eq.s32.totalorder %s36, 1
      %p521 = por %p519, %p520
      %p522 = scmp.ne.s32.totalorder %s511, %s512
      %p523 = scmp.eq.s32.totalorder %s36, 0
      %p524 = por %p522, %p523
      %p525 = scmp.ne.s32.totalorder %s511, %s512
      %p526 = scmp.eq.s32.totalorder %s37, 1
      %p527 = por %p525, %p526
      %p529 = scmp.ne.s32.totalorder %s512, %s528
      %p530 = scmp.eq.s32.totalorder %s37, 0
      %p531 = por %p529, %p530
      %p532 = scmp.le.s32.totalorder 1, %s31
      %p533 = scmp.lt.s32.totalorder %s31, 3
      %p534 = pnand %p532, %p533
      %p535 = pneg %p534
      // Predicated region
      $region9: #{irnet_forward.1} parent=5 // pred_check
        _
      $region10: #{irnet_forward.1} parent=5 // pred_check_branch
        %537 = sbr.rel (%p534) target = $region12
      $region11: #{irnet_forward.1} parent=5 // pred_region
        %s538 = ssub.s32 %s31, 1
        // Predicated region
        $region13: #{irnet_forward.1} parent=11 // pred_check
          %p539 = pneg %p78
        $region14: #{irnet_forward.1} parent=11 // pred_check_branch
          %541 = sbr.rel (%p539) target = $region16
        $region15: #{irnet_forward.1} parent=11 // pred_region
          _
        $region16: #{irnet_forward.1} parent=11 // pred_fallthru
          _
        // Predicated region
        $region17: #{irnet_forward.1} parent=11 // pred_check
          %p542 = pneg %p99
        $region18: #{irnet_forward.1} parent=11 // pred_check_branch
          %544 = sbr.rel (%p542) target = $region20
        $region19: #{irnet_forward.1} parent=11 // pred_region
          _
        $region20: #{irnet_forward.1} parent=11 // pred_fallthru
          _
        // Predicated region
        $region21: #{irnet_forward.1} parent=11 // pred_check
          %p545 = pneg %p120
        $region22: #{irnet_forward.1} parent=11 // pred_check_branch
          %547 = sbr.rel (%p545) target = $region24
        $region23: #{irnet_forward.1} parent=11 // pred_region
          _
        $region24: #{irnet_forward.1} parent=11 // pred_fallthru
          _
        // Predicated region
        $region25: #{irnet_forward.1} parent=11 // pred_check
          %p548 = pneg %p141
        $region26: #{irnet_forward.1} parent=11 // pred_check_branch
          %550 = sbr.rel (%p548) target = $region28
        $region27: #{irnet_forward.1} parent=11 // pred_region
          _
        $region28: #{irnet_forward.1} parent=11 // pred_fallthru
          _
        // Predicated region
        $region29: #{irnet_forward.1} parent=11 // pred_check
          %p551 = pneg %p162
        $region30: #{irnet_forward.1} parent=11 // pred_check_branch
          %553 = sbr.rel (%p551) target = $region32
        $region31: #{irnet_forward.1} parent=11 // pred_region
          _
        $region32: #{irnet_forward.1} parent=11 // pred_fallthru
          _
        // Predicated region
        $region33: #{irnet_forward.1} parent=11 // pred_check
          %p554 = pneg %p183
        $region34: #{irnet_forward.1} parent=11 // pred_check_branch
          %556 = sbr.rel (%p554) target = $region36
        $region35: #{irnet_forward.1} parent=11 // pred_region
          _
        $region36: #{irnet_forward.1} parent=11 // pred_fallthru
          _
        // Predicated region
        $region37: #{irnet_forward.1} parent=11 // pred_check
          %p557 = pneg %p204
        $region38: #{irnet_forward.1} parent=11 // pred_check_branch
          %559 = sbr.rel (%p557) target = $region40
        $region39: #{irnet_forward.1} parent=11 // pred_region
          _
        $region40: #{irnet_forward.1} parent=11 // pred_fallthru
          _
        // Predicated region
        $region41: #{irnet_forward.1} parent=11 // pred_check
          %p560 = pneg %p225
        $region42: #{irnet_forward.1} parent=11 // pred_check_branch
          %562 = sbr.rel (%p560) target = $region44
        $region43: #{irnet_forward.1} parent=11 // pred_region
          _
        $region44: #{irnet_forward.1} parent=11 // pred_fallthru
          _
        // Predicated region
        $region45: #{irnet_forward.1} parent=11 // pred_check
          %p563 = pneg %p246
        $region46: #{irnet_forward.1} parent=11 // pred_check_branch
          %565 = sbr.rel (%p563) target = $region48
        $region47: #{irnet_forward.1} parent=11 // pred_region
          _
        $region48: #{irnet_forward.1} parent=11 // pred_fallthru
          _
        // Predicated region
        $region49: #{irnet_forward.1} parent=11 // pred_check
          %p566 = pneg %p267
        $region50: #{irnet_forward.1} parent=11 // pred_check_branch
          %568 = sbr.rel (%p566) target = $region52
        $region51: #{irnet_forward.1} parent=11 // pred_region
          _
        $region52: #{irnet_forward.1} parent=11 // pred_fallthru
          _
        // Predicated region
        $region53: #{irnet_forward.1} parent=11 // pred_check
          %p569 = pneg %p288
        $region54: #{irnet_forward.1} parent=11 // pred_check_branch
          %571 = sbr.rel (%p569) target = $region56
        $region55: #{irnet_forward.1} parent=11 // pred_region
          _
        $region56: #{irnet_forward.1} parent=11 // pred_fallthru
          _
        // Predicated region
        $region57: #{irnet_forward.1} parent=11 // pred_check
          %p572 = pneg %p309
        $region58: #{irnet_forward.1} parent=11 // pred_check_branch
          %574 = sbr.rel (%p572) target = $region60
        $region59: #{irnet_forward.1} parent=11 // pred_region
          _
        $region60: #{irnet_forward.1} parent=11 // pred_fallthru
          _
        // Predicated region
        $region61: #{irnet_forward.1} parent=11 // pred_check
          %p575 = pneg %p330
        $region62: #{irnet_forward.1} parent=11 // pred_check_branch
          %577 = sbr.rel (%p575) target = $region64
        $region63: #{irnet_forward.1} parent=11 // pred_region
          _
        $region64: #{irnet_forward.1} parent=11 // pred_fallthru
          _
        // Predicated region
        $region65: #{irnet_forward.1} parent=11 // pred_check
          %p578 = pneg %p351
        $region66: #{irnet_forward.1} parent=11 // pred_check_branch
          %580 = sbr.rel (%p578) target = $region68
        $region67: #{irnet_forward.1} parent=11 // pred_region
          _
        $region68: #{irnet_forward.1} parent=11 // pred_fallthru
          _
        // Predicated region
        $region69: #{irnet_forward.1} parent=11 // pred_check
          %p581 = pneg %p372
        $region70: #{irnet_forward.1} parent=11 // pred_check_branch
          %583 = sbr.rel (%p581) target = $region72
        $region71: #{irnet_forward.1} parent=11 // pred_region
          _
        $region72: #{irnet_forward.1} parent=11 // pred_fallthru
          _
        // Predicated region
        $region73: #{irnet_forward.1} parent=11 // pred_check
          %p584 = pneg %p393
        $region74: #{irnet_forward.1} parent=11 // pred_check_branch
          %586 = sbr.rel (%p584) target = $region76
        $region75: #{irnet_forward.1} parent=11 // pred_region
          _
        $region76: #{irnet_forward.1} parent=11 // pred_fallthru
          _
        // Predicated region
        $region77: #{irnet_forward.1} parent=11 // pred_check
          %p587 = pneg %p414
        $region78: #{irnet_forward.1} parent=11 // pred_check_branch
          %589 = sbr.rel (%p587) target = $region80
        $region79: #{irnet_forward.1} parent=11 // pred_region
          _
        $region80: #{irnet_forward.1} parent=11 // pred_fallthru
          _
        // Predicated region
        $region81: #{irnet_forward.1} parent=11 // pred_check
          %p590 = pneg %p435
        $region82: #{irnet_forward.1} parent=11 // pred_check_branch
          %592 = sbr.rel (%p590) target = $region84
        $region83: #{irnet_forward.1} parent=11 // pred_region
          _
        $region84: #{irnet_forward.1} parent=11 // pred_fallthru
          _
        // Predicated region
        $region85: #{irnet_forward.1} parent=11 // pred_check
          %p593 = pneg %p456
        $region86: #{irnet_forward.1} parent=11 // pred_check_branch
          %595 = sbr.rel (%p593) target = $region88
        $region87: #{irnet_forward.1} parent=11 // pred_region
          _
        $region88: #{irnet_forward.1} parent=11 // pred_fallthru
          _
        // Predicated region
        $region89: #{irnet_forward.1} parent=11 // pred_check
          %p596 = pneg %p477
        $region90: #{irnet_forward.1} parent=11 // pred_check_branch
          %598 = sbr.rel (%p596) target = $region92
        $region91: #{irnet_forward.1} parent=11 // pred_region
          _
        $region92: #{irnet_forward.1} parent=11 // pred_fallthru
          _
        // Predicated region
        $region93: #{irnet_forward.1} parent=11 // pred_check
          %p599 = pneg %p498
        $region94: #{irnet_forward.1} parent=11 // pred_check_branch
          %601 = sbr.rel (%p599) target = $region96
        $region95: #{irnet_forward.1} parent=11 // pred_region
          _
        $region96: #{irnet_forward.1} parent=11 // pred_fallthru
          _
      $region12: #{irnet_forward.1} parent=5 // pred_fallthru
        _
      %p602 = scmp.lt.s32.totalorder %s31, 2
      // Predicated region
      $region97: #{irnet_forward.1} parent=5 // pred_check
        %p603 = pneg %p602
      $region98: #{irnet_forward.1} parent=5 // pred_check_branch
        %605 = sbr.rel (%p603) target = $region100
      $region99: #{irnet_forward.1} parent=5 // pred_region
        // Predicated region
        $region101: #{irnet_forward.1} parent=99 // pred_check
          %p606 = pneg %p51
        $region102: #{irnet_forward.1} parent=99 // pred_check_branch
          %608 = sbr.rel (%p606) target = $region104
        $region103: #{irnet_forward.1} parent=99 // pred_region
          %p609 = scmp.lt.s32.totalorder %s31, 1
          %s610 = scalar_select %p609, %s31, 1
          %s611 = smul.addr %s610, 24
          %s612 = smul.addr %s611, 4
          %s613 = scalar_lea.vmem %s0, %s612
        $region104: #{irnet_forward.1} parent=99 // pred_fallthru
          _
      $region100: #{irnet_forward.1} parent=5 // pred_fallthru
        _
      %p614 = scmp.le.s32.totalorder 1, %s31
      %p615 = scmp.lt.s32.totalorder %s31, 3
      %p616 = pnand %p614, %p615
      %p617 = pneg %p616
      // Predicated region
      $region105: #{irnet_forward.1} parent=5 // pred_check
        _
      $region106: #{irnet_forward.1} parent=5 // pred_check_branch
        %619 = sbr.rel (%p616) target = $region108
      $region107: #{irnet_forward.1} parent=5 // pred_region
        %s620 = ssub.s32 %s31, 1
        %p621 = scmp.lt.s32.totalorder %s36, 1
        %s622 = scalar_select %p621, %s36, 1
        %s623 = smul.addr %s622, 24
        %s624 = smul.addr %s623, 4
        %s625 = scalar_lea.vmem %s0, %s624
        %p626 = pneg %p57
        %p627 = pneg %p54
        %p628 = pneg %p78
        %p629 = pneg %p75
        %p630 = pneg %p99
        %p631 = pneg %p96
        %p632 = pneg %p120
        %p633 = pneg %p117
        %p634 = pneg %p141
        %p635 = pneg %p138
        %p636 = pneg %p162
        %p637 = pneg %p159
        %p638 = pneg %p183
        %p639 = pneg %p180
        %p640 = pneg %p204
        %p641 = pneg %p201
        %p642 = pneg %p225
        %p643 = pneg %p222
        %p644 = pneg %p246
        %p645 = pneg %p243
        %p646 = pneg %p267
        %p647 = pneg %p264
        %p648 = pneg %p288
        %p649 = pneg %p285
        %p650 = pneg %p309
        %p651 = pneg %p306
        %p652 = pneg %p330
        %p653 = pneg %p327
        %p654 = pneg %p351
        %p655 = pneg %p348
        %p656 = pneg %p372
        %p657 = pneg %p369
        %p658 = pneg %p393
        %p659 = pneg %p390
        %p660 = pneg %p414
        %p661 = pneg %p411
        %p662 = pneg %p435
        %p663 = pneg %p432
        %p664 = pneg %p456
        %p665 = pneg %p453
        %p666 = pneg %p477
        %p667 = pneg %p474
        %p668 = pneg %p498
        %p669 = pneg %p495
        %p670 = pneg %p524
        %p671 = pneg %p521
        %s672 = sand.u32 %s511, 1
        %s673 = scalar_lea.sflag [#allocation3], %s672
        %s674 = sand.u32 %s511, 1
        %s675 = smul.addr %s674, 192
        %s676 = scalar_lea.vmem [#allocation2], %s675
        %p677 = scmp.lt.s32.totalorder %s36, 1
        %s678 = scalar_select %p677, %s36, 1
        %s679 = smul.addr %s678, 24
        %s680 = smul.addr %s679, 4
        %s681 = scalar_lea.vmem %s0, %s680
        %v683 = vld [vmem:[%s681] sm:$0xf]
        %v684 = vld [vmem:[%s681 + $0x4] sm:$0xf]
        %v685 = vld [vmem:[%s681 + $0x8] sm:$0xf]
        %v686 = vld [vmem:[%s681 + $0xc] sm:$0xf]
        %v687 = vld [vmem:[%s681 + $0x10] sm:$0xf]
        %v688 = vld [vmem:[%s681 + $0x14] sm:$0xf]
        %v689 = vld [vmem:[%s681 + $0x18] sm:$0xf]
        %v690 = vld [vmem:[%s681 + $0x1c] sm:$0xf]
        %v691 = vld [vmem:[%s681 + $0x20] sm:$0xf]
        %v692 = vld [vmem:[%s681 + $0x24] sm:$0xf]
        %v693 = vld [vmem:[%s681 + $0x28] sm:$0xf]
        %v694 = vld [vmem:[%s681 + $0x2c] sm:$0xf]
        %v695 = vld [vmem:[%s681 + $0x30] sm:$0xf]
        %v696 = vld [vmem:[%s681 + $0x34] sm:$0xf]
        %v697 = vld [vmem:[%s681 + $0x38] sm:$0xf]
        %v698 = vld [vmem:[%s681 + $0x3c] sm:$0xf]
        %v699 = vld [vmem:[%s681 + $0x40] sm:$0xf]
        %v700 = vld [vmem:[%s681 + $0x44] sm:$0xf]
        %v701 = vld [vmem:[%s681 + $0x48] sm:$0xf]
        %v702 = vld [vmem:[%s681 + $0x4c] sm:$0xf]
        %v703 = vld [vmem:[%s681 + $0x50] sm:$0xf]
        %v704 = vld [vmem:[%s681 + $0x54] sm:$0xf]
        %v705 = vld [vmem:[%s681 + $0x58] sm:$0xf]
        %v706 = vld [vmem:[%s681 + $0x5c] sm:$0xf]
        %v707 = vld [vmem:[%s1] sm:$0xf]
        %v708 = vld [vmem:[%s1 + $0x4] sm:$0xf]
        %v709 = vld [vmem:[%s1 + $0x8] sm:$0xf]
        %v710 = vld [vmem:[%s1 + $0xc] sm:$0x3]
        %v711 = vld [vmem:[%s2] sm:$0x1]
        %v713 = vlaneseq
        %v714 = vshrl.u32 %v713, 7
        %v715 = vsub.s32 0, %v714
        %v716 = vrot.slane %v711, %v715
        %v742 = vunpack.c.l.b16 %v683
        %v743 = vunpack.c.l.b16 %v684
        %v744 = vunpack.c.l.b16 %v685
        %v745 = vunpack.c.l.b16 %v686
        %v746 = vunpack.c.l.b16 %v687
        %v747 = vunpack.c.l.b16 %v688
        %v748 = vunpack.c.l.b16 %v689
        %v749 = vunpack.c.l.b16 %v690
        %v750 = vunpack.c.l.b16 %v691
        %v751 = vunpack.c.l.b16 %v692
        %v752 = vunpack.c.l.b16 %v693
        %v753 = vunpack.c.l.b16 %v694
        %v754 = vunpack.c.l.b16 %v695
        %v755 = vunpack.c.l.b16 %v696
        %v756 = vunpack.c.l.b16 %v697
        %v757 = vunpack.c.l.b16 %v698
        %v758 = vunpack.c.l.b16 %v699
        %v759 = vunpack.c.l.b16 %v700
        %v760 = vunpack.c.l.b16 %v701
        %v761 = vunpack.c.l.b16 %v702
        %v762 = vunpack.c.l.b16 %v703
        %v763 = vunpack.c.l.b16 %v704
        %v764 = vunpack.c.l.b16 %v705
        %v765 = vunpack.c.l.b16 %v706
        %v766 = vpack.c.b16 %v743, %v742
        %v767 = vpack.c.b16 %v745, %v744
        %v768 = vpack.c.b16 %v747, %v746
        %v769 = vpack.c.b16 %v749, %v748
        %v770 = vpack.c.b16 %v751, %v750
        %v771 = vpack.c.b16 %v753, %v752
        %v772 = vpack.c.b16 %v755, %v754
        %v773 = vpack.c.b16 %v757, %v756
        %v774 = vpack.c.b16 %v759, %v758
        %v775 = vpack.c.b16 %v761, %v760
        %v776 = vpack.c.b16 %v763, %v762
        %v777 = vpack.c.b16 %v765, %v764
        %v782 = vunpack.c.l.b16 %v707
        %v783 = vunpack.c.l.b16 %v708
        %v784 = vunpack.c.l.b16 %v709
        %v785 = vunpack.c.l.b16 %v710
        %v786 = vpack.c.b16 %v783, %v782
        %v787 = vpack.c.b16 %v785, %v784
        %vm789 = vcmask 220160
        %v791 = vsel %vm789, %v766, 0
        %v794 = vsel %vm789, %v767, 0
        %v797 = vsel %vm789, %v768, 0
        %v800 = vsel %vm789, %v769, 0
        %v803 = vsel %vm789, %v770, 0
        %v806 = vsel %vm789, %v771, 0
        %v809 = vsel %vm789, %v772, 0
        %v812 = vsel %vm789, %v773, 0
        %v815 = vsel %vm789, %v774, 0
        %v818 = vsel %vm789, %v775, 0
        %v821 = vsel %vm789, %v776, 0
        %v824 = vsel %vm789, %v777, 0
        %vm826 = vcmask 1044480
        %vm827 = vcmask 1045504
        %v828 = vsel %vm826, 4294967295, 65535
        %v829 = vsel %vm827, %v828, 0
        %v831 = vand.u32 %v787, %v829
        %833 = vmatprep.subr.bf16.mxu0 0
        %834 = vmatpush1.bf16.msra.mxu0 %v786
        %835 = vmatprep.subr.bf16.mxu0 0
        %836 = vmatpush1.bf16.msra.mxu0 %v831
        %837 = vmatprep.subr.bf16.mxu0 0
        %838 = vmatpush1.bf16.msra.mxu0 0
        %839 = vmatprep.subr.bf16.mxu0 0
        %840 = vmatpush1.bf16.msra.mxu0 0
        %841 = vmatprep.subr.bf16.mxu0 0
        %842 = vmatpush1.bf16.msra.mxu0 0
        %843 = vmatprep.subr.bf16.mxu0 0
        %844 = vmatpush1.bf16.msra.mxu0 0
        %845 = vmatprep.subr.bf16.mxu0 0
        %846 = vmatpush1.bf16.msra.mxu0 0
        %847 = vmatprep.subr.bf16.mxu0 0
        %848 = vmatpush1.bf16.msra.mxu0 0
        %849 = vmatprep.subr.bf16.mxu0 0
        %850 = vmatpush1.bf16.msra.mxu0 0
        %851 = vmatprep.subr.bf16.mxu0 0
        %852 = vmatpush1.bf16.msra.mxu0 0
        %853 = vmatprep.subr.bf16.mxu0 0
        %854 = vmatpush1.bf16.msra.mxu0 0
        %855 = vmatprep.subr.bf16.mxu0 0
        %856 = vmatpush1.bf16.msra.mxu0 0
        %857 = vmatprep.subr.bf16.mxu0 0
        %858 = vmatpush1.bf16.msra.mxu0 0
        %859 = vmatprep.subr.bf16.mxu0 0
        %860 = vmatpush1.bf16.msra.mxu0 0
        %861 = vmatprep.subr.bf16.mxu0 0
        %862 = vmatpush1.bf16.msra.mxu0 0
        %863 = vmatprep.subr.bf16.mxu0 0
        %864 = vmatpush1.bf16.msra.mxu0 0
        %865 = vmatprep.mubr.bf16.mxu0 0
        %866 = vmatmul.mubr.bf16.gmra.mrb[0].mxu0 %v791
        %v867 = vpop.f32.mrb[0].mxu0
        %v868 = vadd.f32 %v716, %v867
        %v869 = vpop.f32.mrb[0].mxu0
        %v870 = vpop.f32.mrb[0].mxu0
        %v871 = vadd.f32 %v716, %v870
        %v872 = vpop.f32.mrb[0].mxu0
        %873 = vmatprep.mubr.bf16.mxu0 0
        %874 = vmatmul.mubr.bf16.gmra.mrb[0].mxu0 %v794
        %v875 = vpop.f32.mrb[0].mxu0
        %v876 = vadd.f32 %v716, %v875
        %v877 = vpop.f32.mrb[0].mxu0
        %v878 = vpop.f32.mrb[0].mxu0
        %v879 = vadd.f32 %v716, %v878
        %v880 = vpop.f32.mrb[0].mxu0
        %881 = vmatprep.mubr.bf16.mxu0 0
        %882 = vmatmul.mubr.bf16.gmra.mrb[0].mxu0 %v797
        %v883 = vpop.f32.mrb[0].mxu0
        %v884 = vadd.f32 %v716, %v883
        %v885 = vpop.f32.mrb[0].mxu0
        %v886 = vpop.f32.mrb[0].mxu0
        %v887 = vadd.f32 %v716, %v886
        %v888 = vpop.f32.mrb[0].mxu0
        %889 = vmatprep.mubr.bf16.mxu0 0
        %890 = vmatmul.mubr.bf16.gmra.mrb[0].mxu0 %v800
        %v891 = vpop.f32.mrb[0].mxu0
        %v892 = vadd.f32 %v716, %v891
        %v893 = vpop.f32.mrb[0].mxu0
        %v894 = vpop.f32.mrb[0].mxu0
        %v895 = vadd.f32 %v716, %v894
        %v896 = vpop.f32.mrb[0].mxu0
        %897 = vmatprep.mubr.bf16.mxu0 0
        %898 = vmatmul.mubr.bf16.gmra.mrb[0].mxu0 %v803
        %v899 = vpop.f32.mrb[0].mxu0
        %v900 = vadd.f32 %v716, %v899
        %v901 = vpop.f32.mrb[0].mxu0
        %v902 = vpop.f32.mrb[0].mxu0
        %v903 = vadd.f32 %v716, %v902
        %v904 = vpop.f32.mrb[0].mxu0
        %905 = vmatprep.mubr.bf16.mxu0 0
        %906 = vmatmul.mubr.bf16.gmra.mrb[0].mxu0 %v806
        %v907 = vpop.f32.mrb[0].mxu0
        %v908 = vadd.f32 %v716, %v907
        %v909 = vpop.f32.mrb[0].mxu0
        %v910 = vpop.f32.mrb[0].mxu0
        %v911 = vadd.f32 %v716, %v910
        %v912 = vpop.f32.mrb[0].mxu0
        %913 = vmatprep.mubr.bf16.mxu0 0
        %914 = vmatmul.mubr.bf16.gmra.mrb[0].mxu0 %v809
        %v915 = vpop.f32.mrb[0].mxu0
        %v916 = vadd.f32 %v716, %v915
        %v917 = vpop.f32.mrb[0].mxu0
        %v918 = vpop.f32.mrb[0].mxu0
        %v919 = vadd.f32 %v716, %v918
        %v920 = vpop.f32.mrb[0].mxu0
        %921 = vmatprep.mubr.bf16.mxu0 0
        %922 = vmatmul.mubr.bf16.gmra.mrb[0].mxu0 %v812
        %v923 = vpop.f32.mrb[0].mxu0
        %v924 = vadd.f32 %v716, %v923
        %v925 = vpop.f32.mrb[0].mxu0
        %v926 = vpop.f32.mrb[0].mxu0
        %v927 = vadd.f32 %v716, %v926
        %v928 = vpop.f32.mrb[0].mxu0
        %929 = vmatprep.mubr.bf16.mxu0 0
        %930 = vmatmul.mubr.bf16.gmra.mrb[0].mxu0 %v815
        %v931 = vpop.f32.mrb[0].mxu0
        %v932 = vadd.f32 %v716, %v931
        %v933 = vpop.f32.mrb[0].mxu0
        %v934 = vpop.f32.mrb[0].mxu0
        %v935 = vadd.f32 %v716, %v934
        %v936 = vpop.f32.mrb[0].mxu0
        %937 = vmatprep.mubr.bf16.mxu0 0
        %938 = vmatmul.mubr.bf16.gmra.mrb[0].mxu0 %v818
        %v939 = vpop.f32.mrb[0].mxu0
        %v940 = vadd.f32 %v716, %v939
        %v941 = vpop.f32.mrb[0].mxu0
        %v942 = vpop.f32.mrb[0].mxu0
        %v943 = vadd.f32 %v716, %v942
        %v944 = vpop.f32.mrb[0].mxu0
        %945 = vmatprep.mubr.bf16.mxu0 0
        %946 = vmatmul.mubr.bf16.gmra.mrb[0].mxu0 %v821
        %v947 = vpop.f32.mrb[0].mxu0
        %v948 = vadd.f32 %v716, %v947
        %v949 = vpop.f32.mrb[0].mxu0
        %v950 = vpop.f32.mrb[0].mxu0
        %v951 = vadd.f32 %v716, %v950
        %v952 = vpop.f32.mrb[0].mxu0
        %953 = vmatprep.mubr.bf16.mxu0 0
        %954 = vmatmul.mubr.bf16.gmra.mrb[0].mxu0 %v824
        %v955 = vpop.f32.mrb[0].mxu0
        %v956 = vadd.f32 %v716, %v955
        %v957 = vpop.f32.mrb[0].mxu0
        %v958 = vpop.f32.mrb[0].mxu0
        %v959 = vadd.f32 %v716, %v958
        %v960 = vpop.f32.mrb[0].mxu0
        %961 = vdwg.mxu0
        %vm962 = vcmp.gt.f32.partialorder %v868, 0.0
        %vm963 = vcmp.gt.f32.partialorder %v871, 0.0
        %vm964 = vcmp.gt.f32.partialorder %v876, 0.0
        %vm965 = vcmp.gt.f32.partialorder %v879, 0.0
        %vm966 = vcmp.gt.f32.partialorder %v884, 0.0
        %vm967 = vcmp.gt.f32.partialorder %v887, 0.0
        %vm968 = vcmp.gt.f32.partialorder %v892, 0.0
        %vm969 = vcmp.gt.f32.partialorder %v895, 0.0
        %vm970 = vcmp.gt.f32.partialorder %v900, 0.0
        %vm971 = vcmp.gt.f32.partialorder %v903, 0.0
        %vm972 = vcmp.gt.f32.partialorder %v908, 0.0
        %vm973 = vcmp.gt.f32.partialorder %v911, 0.0
        %vm974 = vcmp.gt.f32.partialorder %v916, 0.0
        %vm975 = vcmp.gt.f32.partialorder %v919, 0.0
        %vm976 = vcmp.gt.f32.partialorder %v924, 0.0
        %vm977 = vcmp.gt.f32.partialorder %v927, 0.0
        %vm978 = vcmp.gt.f32.partialorder %v932, 0.0
        %vm979 = vcmp.gt.f32.partialorder %v935, 0.0
        %vm980 = vcmp.gt.f32.partialorder %v940, 0.0
        %vm981 = vcmp.gt.f32.partialorder %v943, 0.0
        %vm982 = vcmp.gt.f32.partialorder %v948, 0.0
        %vm983 = vcmp.gt.f32.partialorder %v951, 0.0
        %vm984 = vcmp.gt.f32.partialorder %v956, 0.0
        %vm985 = vcmp.gt.f32.partialorder %v959, 0.0
        %v986 = vmin.f32 %v868, 0.0
        %v987 = vmin.f32 %v871, 0.0
        %v988 = vmin.f32 %v876, 0.0
        %v989 = vmin.f32 %v879, 0.0
        %v990 = vmin.f32 %v884, 0.0
        %v991 = vmin.f32 %v887, 0.0
        %v992 = vmin.f32 %v892, 0.0
        %v993 = vmin.f32 %v895, 0.0
        %v994 = vmin.f32 %v900, 0.0
        %v995 = vmin.f32 %v903, 0.0
        %v996 = vmin.f32 %v908, 0.0
        %v997 = vmin.f32 %v911, 0.0
        %v998 = vmin.f32 %v916, 0.0
        %v999 = vmin.f32 %v919, 0.0
        %v1000 = vmin.f32 %v924, 0.0
        %v1001 = vmin.f32 %v927, 0.0
        %v1002 = vmin.f32 %v932, 0.0
        %v1003 = vmin.f32 %v935, 0.0
        %v1004 = vmin.f32 %v940, 0.0
        %v1005 = vmin.f32 %v943, 0.0
        %v1006 = vmin.f32 %v948, 0.0
        %v1007 = vmin.f32 %v951, 0.0
        %v1008 = vmin.f32 %v956, 0.0
        %v1009 = vmin.f32 %v959, 0.0
        %v1010 = vmul.f32 %v986, 1.442695
        %v1011 = vpow.pop %v1010
        %v1012 = vmul.f32 %v987, 1.442695
        %v1013 = vpow.pop %v1012
        %v1014 = vmul.f32 %v988, 1.442695
        %v1015 = vpow.pop %v1014
        %v1016 = vmul.f32 %v989, 1.442695
        %v1017 = vpow.pop %v1016
        %v1018 = vmul.f32 %v990, 1.442695
        %v1019 = vpow.pop %v1018
        %v1020 = vmul.f32 %v991, 1.442695
        %v1021 = vpow.pop %v1020
        %v1022 = vmul.f32 %v992, 1.442695
        %v1023 = vpow.pop %v1022
        %v1024 = vmul.f32 %v993, 1.442695
        %v1025 = vpow.pop %v1024
        %v1026 = vmul.f32 %v994, 1.442695
        %v1027 = vpow.pop %v1026
        %v1028 = vmul.f32 %v995, 1.442695
        %v1029 = vpow.pop %v1028
        %v1030 = vmul.f32 %v996, 1.442695
        %v1031 = vpow.pop %v1030
        %v1032 = vmul.f32 %v997, 1.442695
        %v1033 = vpow.pop %v1032
        %v1034 = vmul.f32 %v998, 1.442695
        %v1035 = vpow.pop %v1034
        %v1036 = vmul.f32 %v999, 1.442695
        %v1037 = vpow.pop %v1036
        %v1038 = vmul.f32 %v1000, 1.442695
        %v1039 = vpow.pop %v1038
        %v1040 = vmul.f32 %v1001, 1.442695
        %v1041 = vpow.pop %v1040
        %v1042 = vmul.f32 %v1002, 1.442695
        %v1043 = vpow.pop %v1042
        %v1044 = vmul.f32 %v1003, 1.442695
        %v1045 = vpow.pop %v1044
        %v1046 = vmul.f32 %v1004, 1.442695
        %v1047 = vpow.pop %v1046
        %v1048 = vmul.f32 %v1005, 1.442695
        %v1049 = vpow.pop %v1048
        %v1050 = vmul.f32 %v1006, 1.442695
        %v1051 = vpow.pop %v1050
        %v1052 = vmul.f32 %v1007, 1.442695
        %v1053 = vpow.pop %v1052
        %v1054 = vmul.f32 %v1008, 1.442695
        %v1055 = vpow.pop %v1054
        %v1056 = vmul.f32 %v1009, 1.442695
        %v1057 = vpow.pop %v1056
        %v1058 = vsub.f32 %v1011, 1.0
        %v1059 = vsub.f32 %v1013, 1.0
        %v1060 = vsub.f32 %v1015, 1.0
        %v1061 = vsub.f32 %v1017, 1.0
        %v1062 = vsub.f32 %v1019, 1.0
        %v1063 = vsub.f32 %v1021, 1.0
        %v1064 = vsub.f32 %v1023, 1.0
        %v1065 = vsub.f32 %v1025, 1.0
        %v1066 = vsub.f32 %v1027, 1.0
        %v1067 = vsub.f32 %v1029, 1.0
        %v1068 = vsub.f32 %v1031, 1.0
        %v1069 = vsub.f32 %v1033, 1.0
        %v1070 = vsub.f32 %v1035, 1.0
        %v1071 = vsub.f32 %v1037, 1.0
        %v1072 = vsub.f32 %v1039, 1.0
        %v1073 = vsub.f32 %v1041, 1.0
        %v1074 = vsub.f32 %v1043, 1.0
        %v1075 = vsub.f32 %v1045, 1.0
        %v1076 = vsub.f32 %v1047, 1.0
        %v1077 = vsub.f32 %v1049, 1.0
        %v1078 = vsub.f32 %v1051, 1.0
        %v1079 = vsub.f32 %v1053, 1.0
        %v1080 = vsub.f32 %v1055, 1.0
        %v1081 = vsub.f32 %v1057, 1.0
        %v1082 = vsel %vm962, %v868, %v1058
        %v1083 = vsel %vm963, %v871, %v1059
        %v1084 = vsel %vm964, %v876, %v1060
        %v1085 = vsel %vm965, %v879, %v1061
        %v1086 = vsel %vm966, %v884, %v1062
        %v1087 = vsel %vm967, %v887, %v1063
        %v1088 = vsel %vm968, %v892, %v1064
        %v1089 = vsel %vm969, %v895, %v1065
        %v1090 = vsel %vm970, %v900, %v1066
        %v1091 = vsel %vm971, %v903, %v1067
        %v1092 = vsel %vm972, %v908, %v1068
        %v1093 = vsel %vm973, %v911, %v1069
        %v1094 = vsel %vm974, %v916, %v1070
        %v1095 = vsel %vm975, %v919, %v1071
        %v1096 = vsel %vm976, %v924, %v1072
        %v1097 = vsel %vm977, %v927, %v1073
        %v1098 = vsel %vm978, %v932, %v1074
        %v1099 = vsel %vm979, %v935, %v1075
        %v1100 = vsel %vm980, %v940, %v1076
        %v1101 = vsel %vm981, %v943, %v1077
        %v1102 = vsel %vm982, %v948, %v1078
        %v1103 = vsel %vm983, %v951, %v1079
        %v1104 = vsel %vm984, %v956, %v1080
        %v1105 = vsel %vm985, %v959, %v1081
        %v1106 = vpack.c.bf16 %v1083, %v1082
        %v1107 = vpack.c.bf16 %v1085, %v1084
        %v1108 = vpack.c.bf16 %v1087, %v1086
        %v1109 = vpack.c.bf16 %v1089, %v1088
        %v1110 = vpack.c.bf16 %v1091, %v1090
        %v1111 = vpack.c.bf16 %v1093, %v1092
        %v1112 = vpack.c.bf16 %v1095, %v1094
        %v1113 = vpack.c.bf16 %v1097, %v1096
        %v1114 = vpack.c.bf16 %v1099, %v1098
        %v1115 = vpack.c.bf16 %v1101, %v1100
        %v1116 = vpack.c.bf16 %v1103, %v1102
        %v1117 = vpack.c.bf16 %v1105, %v1104
        %vm1118 = vsmask.f32 7424
        %v1120 = vshrl.u32 %v1106, 16
        %v1122 = vshll.u32 %v1106, 16
        %v1124 = vrot.slane %v1122, 1
        %v1125 = vor.u32 %v1120, %v1124
        %v1127 = vshll.u32 %v1107, 16
        %v1129 = vrot.slane %v1127, 1
        %v1130 = vsel %vm1118, %v1125, %v1129
        %v1131 = vshrl.u32 %v1107, 16
        %v1133 = vor.u32 %v1131, %v1129
        %v1135 = vshll.u32 %v1108, 16
        %v1137 = vrot.slane %v1135, 1
        %v1138 = vsel %vm1118, %v1133, %v1137
        %v1139 = vshrl.u32 %v1108, 16
        %v1141 = vor.u32 %v1139, %v1137
        %v1143 = vshll.u32 %v1109, 16
        %v1145 = vrot.slane %v1143, 1
        %v1146 = vsel %vm1118, %v1141, %v1145
        %v1147 = vshrl.u32 %v1109, 16
        %v1149 = vor.u32 %v1147, %v1145
        %v1151 = vshll.u32 %v1110, 16
        %v1153 = vrot.slane %v1151, 1
        %v1154 = vsel %vm1118, %v1149, %v1153
        %v1155 = vshrl.u32 %v1110, 16
        %v1157 = vor.u32 %v1155, %v1153
        %v1159 = vshll.u32 %v1111, 16
        %v1161 = vrot.slane %v1159, 1
        %v1162 = vsel %vm1118, %v1157, %v1161
        %v1163 = vshrl.u32 %v1111, 16
        %v1165 = vor.u32 %v1163, %v1161
        %v1167 = vshll.u32 %v1112, 16
        %v1169 = vrot.slane %v1167, 1
        %v1170 = vsel %vm1118, %v1165, %v1169
        %v1171 = vshrl.u32 %v1112, 16
        %v1173 = vor.u32 %v1171, %v1169
        %v1175 = vshll.u32 %v1113, 16
        %v1177 = vrot.slane %v1175, 1
        %v1178 = vsel %vm1118, %v1173, %v1177
        %v1179 = vshrl.u32 %v1113, 16
        %v1181 = vor.u32 %v1179, %v1177
        %v1183 = vshll.u32 %v1114, 16
        %v1185 = vrot.slane %v1183, 1
        %v1186 = vsel %vm1118, %v1181, %v1185
        %v1187 = vshrl.u32 %v1114, 16
        %v1189 = vor.u32 %v1187, %v1185
        %v1191 = vshll.u32 %v1115, 16
        %v1193 = vrot.slane %v1191, 1
        %v1194 = vsel %vm1118, %v1189, %v1193
        %v1195 = vshrl.u32 %v1115, 16
        %v1197 = vor.u32 %v1195, %v1193
        %v1199 = vshll.u32 %v1116, 16
        %v1201 = vrot.slane %v1199, 1
        %v1202 = vsel %vm1118, %v1197, %v1201
        %v1203 = vshrl.u32 %v1116, 16
        %v1205 = vor.u32 %v1203, %v1201
        %v1207 = vshll.u32 %v1117, 16
        %v1209 = vrot.slane %v1207, 1
        %v1210 = vsel %vm1118, %v1205, %v1209
        %v1211 = vshrl.u32 %v1117, 16
        %v1213 = vor.u32 %v1211, %v1209
        %v1215 = vshll.u32 0, 16
        %v1217 = vrot.slane %v1215, 1
        %v1218 = vsel %vm1118, %v1213, %v1217
        %1219 = vrot.lane.b32.xlu0 %v1130, 32
        %v1220 = vpop.permute.xlu0 %1219
        %1221 = vrot.lane.b32.xlu0 %v1138, 32
        %v1222 = vpop.permute.xlu0 %1221
        %1223 = vrot.lane.b32.xlu0 %v1146, 32
        %v1224 = vpop.permute.xlu0 %1223
        %1225 = vrot.lane.b32.xlu0 %v1154, 32
        %v1226 = vpop.permute.xlu0 %1225
        %1227 = vrot.lane.b32.xlu0 %v1162, 32
        %v1228 = vpop.permute.xlu0 %1227
        %1229 = vrot.lane.b32.xlu0 %v1170, 32
        %v1230 = vpop.permute.xlu0 %1229
        %1231 = vrot.lane.b32.xlu0 %v1178, 32
        %v1232 = vpop.permute.xlu0 %1231
        %1233 = vrot.lane.b32.xlu0 %v1186, 32
        %v1234 = vpop.permute.xlu0 %1233
        %1235 = vrot.lane.b32.xlu0 %v1194, 32
        %v1236 = vpop.permute.xlu0 %1235
        %1237 = vrot.lane.b32.xlu0 %v1202, 32
        %v1238 = vpop.permute.xlu0 %1237
        %1239 = vrot.lane.b32.xlu0 %v1210, 32
        %v1240 = vpop.permute.xlu0 %1239
        %1241 = vrot.lane.b32.xlu0 %v1218, 32
        %v1242 = vpop.permute.xlu0 %1241
        %vm1256 = vcmask 1046528
        %v1257 = vrot.slane %v1106, 1
        %v1258 = vrot.slane %v1107, 1
        %v1259 = vsel %vm1256, %v1257, %v1258
        %v1260 = vrot.slane %v1108, 1
        %v1261 = vsel %vm1256, %v1258, %v1260
        %v1262 = vrot.slane %v1109, 1
        %v1263 = vsel %vm1256, %v1260, %v1262
        %v1264 = vrot.slane %v1110, 1
        %v1265 = vsel %vm1256, %v1262, %v1264
        %v1266 = vrot.slane %v1111, 1
        %v1267 = vsel %vm1256, %v1264, %v1266
        %v1268 = vrot.slane %v1112, 1
        %v1269 = vsel %vm1256, %v1266, %v1268
        %v1270 = vrot.slane %v1113, 1
        %v1271 = vsel %vm1256, %v1268, %v1270
        %v1272 = vrot.slane %v1114, 1
        %v1273 = vsel %vm1256, %v1270, %v1272
        %v1274 = vrot.slane %v1115, 1
        %v1275 = vsel %vm1256, %v1272, %v1274
        %v1276 = vrot.slane %v1116, 1
        %v1277 = vsel %vm1256, %v1274, %v1276
        %v1278 = vrot.slane %v1117, 1
        %v1279 = vsel %vm1256, %v1276, %v1278
        %v1280 = vrot.slane 0, 1
        %v1281 = vsel %vm1256, %v1278, %v1280
        %1282 = vrot.lane.b32.xlu0 %v1259, 64
        %v1283 = vpop.permute.xlu0 %1282
        %1284 = vrot.lane.b32.xlu0 %v1261, 64
        %v1285 = vpop.permute.xlu0 %1284
        %1286 = vrot.lane.b32.xlu0 %v1263, 64
        %v1287 = vpop.permute.xlu0 %1286
        %1288 = vrot.lane.b32.xlu0 %v1265, 64
        %v1289 = vpop.permute.xlu0 %1288
        %1290 = vrot.lane.b32.xlu0 %v1267, 64
        %v1291 = vpop.permute.xlu0 %1290
        %1292 = vrot.lane.b32.xlu0 %v1269, 64
        %v1293 = vpop.permute.xlu0 %1292
        %1294 = vrot.lane.b32.xlu0 %v1271, 64
        %v1295 = vpop.permute.xlu0 %1294
        %1296 = vrot.lane.b32.xlu0 %v1273, 64
        %v1297 = vpop.permute.xlu0 %1296
        %1298 = vrot.lane.b32.xlu0 %v1275, 64
        %v1299 = vpop.permute.xlu0 %1298
        %1300 = vrot.lane.b32.xlu0 %v1277, 64
        %v1301 = vpop.permute.xlu0 %1300
        %1302 = vrot.lane.b32.xlu0 %v1279, 64
        %v1303 = vpop.permute.xlu0 %1302
        %1304 = vrot.lane.b32.xlu0 %v1281, 64
        %v1305 = vpop.permute.xlu0 %1304
        %vm1306 = vcmask 261120
        %v1308 = vsel %vm1306, %v1106, %v1220
        %v1310 = vsel %vm1306, %v1107, %v1222
        %v1312 = vsel %vm1306, %v1108, %v1224
        %v1314 = vsel %vm1306, %v1109, %v1226
        %v1316 = vsel %vm1306, %v1110, %v1228
        %v1318 = vsel %vm1306, %v1111, %v1230
        %v1320 = vsel %vm1306, %v1112, %v1232
        %v1322 = vsel %vm1306, %v1113, %v1234
        %v1324 = vsel %vm1306, %v1114, %v1236
        %v1326 = vsel %vm1306, %v1115, %v1238
        %v1328 = vsel %vm1306, %v1116, %v1240
        %v1330 = vsel %vm1306, %v1117, %v1242
        %vm1331 = vcmask 523264
        %v1333 = vsel %vm1331, %v1308, %v1283
        %v1335 = vsel %vm1331, %v1310, %v1285
        %v1337 = vsel %vm1331, %v1312, %v1287
        %v1339 = vsel %vm1331, %v1314, %v1289
        %v1341 = vsel %vm1331, %v1316, %v1291
        %v1343 = vsel %vm1331, %v1318, %v1293
        %v1345 = vsel %vm1331, %v1320, %v1295
        %v1347 = vsel %vm1331, %v1322, %v1297
        %v1349 = vsel %vm1331, %v1324, %v1299
        %v1351 = vsel %vm1331, %v1326, %v1301
        %v1353 = vsel %vm1331, %v1328, %v1303
        %v1355 = vsel %vm1331, %v1330, %v1305
        %v1356 = vld [vmem:[%s3] sm:$0xf]
        %v1357 = vld [vmem:[%s3 + $0x4] sm:$0xf]
        %v1358 = vld [vmem:[%s3 + $0x8] sm:$0xf]
        %v1359 = vld [vmem:[%s3 + $0xc] sm:$0xf]
        %v1360 = vld [vmem:[%s3 + $0x10] sm:$0xf]
        %v1361 = vld [vmem:[%s3 + $0x14] sm:$0xf]
        %v1362 = vld [vmem:[%s3 + $0x18] sm:$0xf]
        %v1363 = vld [vmem:[%s3 + $0x1c] sm:$0xf]
        %v1364 = vld [vmem:[%s3 + $0x20] sm:$0xf]
        %v1365 = vld [vmem:[%s3 + $0x24] sm:$0xf]
        %v1366 = vld [vmem:[%s3 + $0x28] sm:$0xf]
        %v1367 = vld [vmem:[%s3 + $0x2c] sm:$0xf]
        %v1368 = vshrl.u32 0, 16
        %v1370 = vor.u32 %v1368, %v1217
        %v1371 = vsel %vm1118, %v1370, %v1217
        %1372 = vrot.lane.b32.xlu0 %v1371, 32
        %v1373 = vpop.permute.xlu0 %1372
        %v1374 = vsel %vm1256, %v1280, %v1280
        %1375 = vrot.lane.b32.xlu0 %v1374, 64
        %v1376 = vpop.permute.xlu0 %1375
        %v1378 = vsel %vm1306, 0, %v1373
        %v1380 = vsel %vm1331, %v1378, %v1376
        %s1381 = scalar_lea.vmem %s3, 48
        %v1382 = vld [vmem:[%s1381] sm:$0xf]
        %v1383 = vld [vmem:[%s1381 + $0x4] sm:$0xf]
        %v1384 = vld [vmem:[%s1381 + $0x8] sm:$0xf]
        %v1385 = vld [vmem:[%s1381 + $0xc] sm:$0xf]
        %v1386 = vld [vmem:[%s1381 + $0x10] sm:$0xf]
        %v1387 = vld [vmem:[%s1381 + $0x14] sm:$0xf]
        %v1388 = vld [vmem:[%s1381 + $0x18] sm:$0xf]
        %v1389 = vld [vmem:[%s1381 + $0x1c] sm:$0xf]
        %v1390 = vld [vmem:[%s1381 + $0x20] sm:$0xf]
        %v1391 = vld [vmem:[%s1381 + $0x24] sm:$0xf]
        %v1392 = vld [vmem:[%s1381 + $0x28] sm:$0xf]
        %v1393 = vld [vmem:[%s1381 + $0x2c] sm:$0xf]
        %v1406 = vunpack.c.l.b16 %v1382
        %v1407 = vunpack.c.l.b16 %v1383
        %v1408 = vunpack.c.l.b16 %v1384
        %v1409 = vunpack.c.l.b16 %v1385
        %v1410 = vunpack.c.l.b16 %v1386
        %v1411 = vunpack.c.l.b16 %v1387
        %v1412 = vunpack.c.l.b16 %v1388
        %v1413 = vunpack.c.l.b16 %v1389
        %v1414 = vunpack.c.l.b16 %v1390
        %v1415 = vunpack.c.l.b16 %v1391
        %v1416 = vunpack.c.l.b16 %v1392
        %v1417 = vunpack.c.l.b16 %v1393
        %v1418 = vpack.c.b16 %v1407, %v1406
        %v1419 = vpack.c.b16 %v1409, %v1408
        %v1420 = vpack.c.b16 %v1411, %v1410
        %v1421 = vpack.c.b16 %v1413, %v1412
        %v1422 = vpack.c.b16 %v1415, %v1414
        %v1423 = vpack.c.b16 %v1417, %v1416
        %vm1430 = vcmask 785408
        %v1431 = vsel %vm1430, %v1335, 0
        %v1433 = vsel %vm1430, %v1337, 0
        %v1435 = vsel %vm1430, %v1339, 0
        %v1437 = vsel %vm1430, %v1341, 0
        %v1439 = vsel %vm1430, %v1343, 0
        %v1441 = vsel %vm1430, %v1345, 0
        %v1443 = vsel %vm1430, %v1347, 0
        %v1445 = vsel %vm1430, %v1349, 0
        %v1447 = vsel %vm1430, %v1351, 0
        %v1449 = vsel %vm1430, %v1353, 0
        %v1451 = vsel %vm1430, %v1355, 0
        %v1453 = vsel %vm1430, %v1380, 0
        %1455 = vmatprep.subr.bf16.mxu0 0
        %1456 = vmatpush1.bf16.msra.mxu0 %v1418
        %1457 = vmatprep.subr.bf16.mxu0 0
        %1458 = vmatpush1.bf16.msra.mxu0 %v1419
        %1459 = vmatprep.subr.bf16.mxu0 0
        %1460 = vmatpush1.bf16.msra.mxu0 %v1420
        %1461 = vmatprep.subr.bf16.mxu0 0
        %1462 = vmatpush1.bf16.msra.mxu0 %v1421
        %1463 = vmatprep.subr.bf16.mxu0 0
        %1464 = vmatpush1.bf16.msra.mxu0 %v1422
        %1465 = vmatprep.subr.bf16.mxu0 0
        %1466 = vmatpush1.bf16.msra.mxu0 %v1423
        %1467 = vmatprep.subr.bf16.mxu0 0
        %1468 = vmatpush1.bf16.msra.mxu0 0
        %1469 = vmatprep.subr.bf16.mxu0 0
        %1470 = vmatpush1.bf16.msra.mxu0 0
        %1471 = vmatprep.subr.bf16.mxu0 0
        %1472 = vmatpush1.bf16.msra.mxu0 0
        %1473 = vmatprep.subr.bf16.mxu0 0
        %1474 = vmatpush1.bf16.msra.mxu0 0
        %1475 = vmatprep.subr.bf16.mxu0 0
        %1476 = vmatpush1.bf16.msra.mxu0 0
        %1477 = vmatprep.subr.bf16.mxu0 0
        %1478 = vmatpush1.bf16.msra.mxu0 0
        %1479 = vmatprep.subr.bf16.mxu0 0
        %1480 = vmatpush1.bf16.msra.mxu0 0
        %1481 = vmatprep.subr.bf16.mxu0 0
        %1482 = vmatpush1.bf16.msra.mxu0 0
        %1483 = vmatprep.subr.bf16.mxu0 0
        %1484 = vmatpush1.bf16.msra.mxu0 0
        %1485 = vmatprep.subr.bf16.mxu0 0
        %1486 = vmatpush1.bf16.msra.mxu0 0
        %1487 = vmatprep.mubr.bf16.mxu0 0
        %1488 = vmatmul.mubr.bf16.gmra.mrb[0].mxu0 %v1431
        %v1489 = vpop.f32.mrb[0].mxu0
        %v1490 = vadd.f32 0.0, %v1489
        %v1491 = vpop.f32.mrb[0].mxu0
        %v1492 = vpop.f32.mrb[0].mxu0
        %v1493 = vadd.f32 0.0, %v1492
        %v1494 = vpop.f32.mrb[0].mxu0
        %1495 = vmatprep.mubr.bf16.mxu0 0
        %1496 = vmatmul.mubr.bf16.gmra.mrb[0].mxu0 %v1433
        %v1497 = vpop.f32.mrb[0].mxu0
        %v1498 = vadd.f32 0.0, %v1497
        %v1499 = vpop.f32.mrb[0].mxu0
        %v1500 = vpop.f32.mrb[0].mxu0
        %v1501 = vadd.f32 0.0, %v1500
        %v1502 = vpop.f32.mrb[0].mxu0
        %1503 = vmatprep.mubr.bf16.mxu0 0
        %1504 = vmatmul.mubr.bf16.gmra.mrb[0].mxu0 %v1435
        %v1505 = vpop.f32.mrb[0].mxu0
        %v1506 = vadd.f32 0.0, %v1505
        %v1507 = vpop.f32.mrb[0].mxu0
        %v1508 = vpop.f32.mrb[0].mxu0
        %v1509 = vadd.f32 0.0, %v1508
        %v1510 = vpop.f32.mrb[0].mxu0
        %1511 = vmatprep.mubr.bf16.mxu0 0
        %1512 = vmatmul.mubr.bf16.gmra.mrb[0].mxu0 %v1437
        %v1513 = vpop.f32.mrb[0].mxu0
        %v1514 = vadd.f32 0.0, %v1513
        %v1515 = vpop.f32.mrb[0].mxu0
        %v1516 = vpop.f32.mrb[0].mxu0
        %v1517 = vadd.f32 0.0, %v1516
        %v1518 = vpop.f32.mrb[0].mxu0
        %1519 = vmatprep.mubr.bf16.mxu0 0
        %1520 = vmatmul.mubr.bf16.gmra.mrb[0].mxu0 %v1439
        %v1521 = vpop.f32.mrb[0].mxu0
        %v1522 = vadd.f32 0.0, %v1521
        %v1523 = vpop.f32.mrb[0].mxu0
        %v1524 = vpop.f32.mrb[0].mxu0
        %v1525 = vadd.f32 0.0, %v1524
        %v1526 = vpop.f32.mrb[0].mxu0
        %1527 = vmatprep.mubr.bf16.mxu0 0
        %1528 = vmatmul.mubr.bf16.gmra.mrb[0].mxu0 %v1441
        %v1529 = vpop.f32.mrb[0].mxu0
        %v1530 = vadd.f32 0.0, %v1529
        %v1531 = vpop.f32.mrb[0].mxu0
        %v1532 = vpop.f32.mrb[0].mxu0
        %v1533 = vadd.f32 0.0, %v1532
        %v1534 = vpop.f32.mrb[0].mxu0
        %1535 = vmatprep.mubr.bf16.mxu0 0
        %1536 = vmatmul.mubr.bf16.gmra.mrb[0].mxu0 %v1443
        %v1537 = vpop.f32.mrb[0].mxu0
        %v1538 = vadd.f32 0.0, %v1537
        %v1539 = vpop.f32.mrb[0].mxu0
        %v1540 = vpop.f32.mrb[0].mxu0
        %v1541 = vadd.f32 0.0, %v1540
        %v1542 = vpop.f32.mrb[0].mxu0
        %1543 = vmatprep.mubr.bf16.mxu0 0
        %1544 = vmatmul.mubr.bf16.gmra.mrb[0].mxu0 %v1445
        %v1545 = vpop.f32.mrb[0].mxu0
        %v1546 = vadd.f32 0.0, %v1545
        %v1547 = vpop.f32.mrb[0].mxu0
        %v1548 = vpop.f32.mrb[0].mxu0
        %v1549 = vadd.f32 0.0, %v1548
        %v1550 = vpop.f32.mrb[0].mxu0
        %1551 = vmatprep.mubr.bf16.mxu0 0
        %1552 = vmatmul.mubr.bf16.gmra.mrb[0].mxu0 %v1447
        %v1553 = vpop.f32.mrb[0].mxu0
        %v1554 = vadd.f32 0.0, %v1553
        %v1555 = vpop.f32.mrb[0].mxu0
        %v1556 = vpop.f32.mrb[0].mxu0
        %v1557 = vadd.f32 0.0, %v1556
        %v1558 = vpop.f32.mrb[0].mxu0
        %1559 = vmatprep.mubr.bf16.mxu0 0
        %1560 = vmatmul.mubr.bf16.gmra.mrb[0].mxu0 %v1449
        %v1561 = vpop.f32.mrb[0].mxu0
        %v1562 = vadd.f32 0.0, %v1561
        %v1563 = vpop.f32.mrb[0].mxu0
        %v1564 = vpop.f32.mrb[0].mxu0
        %v1565 = vadd.f32 0.0, %v1564
        %v1566 = vpop.f32.mrb[0].mxu0
        %1567 = vmatprep.mubr.bf16.mxu0 0
        %1568 = vmatmul.mubr.bf16.gmra.mrb[0].mxu0 %v1451
        %v1569 = vpop.f32.mrb[0].mxu0
        %v1570 = vpop.f32.mrb[0].mxu0
        %v1571 = vpop.f32.mrb[0].mxu0
        %v1572 = vpop.f32.mrb[0].mxu0
        %1573 = vmatprep.mubr.bf16.mxu0 0
        %1574 = vmatmul.mubr.bf16.gmra.mrb[0].mxu0 %v1453
        %v1575 = vpop.f32.mrb[0].mxu0
        %v1576 = vpop.f32.mrb[0].mxu0
        %v1577 = vpop.f32.mrb[0].mxu0
        %v1578 = vpop.f32.mrb[0].mxu0
        %1579 = vdwg.mxu0
        %v1592 = vunpack.c.l.b16 %v1356
        %v1593 = vunpack.c.l.b16 %v1357
        %v1594 = vunpack.c.l.b16 %v1358
        %v1595 = vunpack.c.l.b16 %v1359
        %v1596 = vunpack.c.l.b16 %v1360
        %v1597 = vunpack.c.l.b16 %v1361
        %v1598 = vunpack.c.l.b16 %v1362
        %v1599 = vunpack.c.l.b16 %v1363
        %v1600 = vunpack.c.l.b16 %v1364
        %v1601 = vunpack.c.l.b16 %v1365
        %v1602 = vunpack.c.l.b16 %v1366
        %v1603 = vunpack.c.l.b16 %v1367
        %v1604 = vpack.c.b16 %v1593, %v1592
        %v1605 = vpack.c.b16 %v1595, %v1594
        %v1606 = vpack.c.b16 %v1597, %v1596
        %v1607 = vpack.c.b16 %v1599, %v1598
        %v1608 = vpack.c.b16 %v1601, %v1600
        %v1609 = vpack.c.b16 %v1603, %v1602
        %v1616 = vsel %vm1430, %v1333, 0
        %1618 = vmatprep.subr.bf16.mxu0 0
        %1619 = vmatpush1.bf16.msra.mxu0 %v1604
        %1620 = vmatprep.subr.bf16.mxu0 0
        %1621 = vmatpush1.bf16.msra.mxu0 %v1605
        %1622 = vmatprep.subr.bf16.mxu0 0
        %1623 = vmatpush1.bf16.msra.mxu0 %v1606
        %1624 = vmatprep.subr.bf16.mxu0 0
        %1625 = vmatpush1.bf16.msra.mxu0 %v1607
        %1626 = vmatprep.subr.bf16.mxu0 0
        %1627 = vmatpush1.bf16.msra.mxu0 %v1608
        %1628 = vmatprep.subr.bf16.mxu0 0
        %1629 = vmatpush1.bf16.msra.mxu0 %v1609
        %1630 = vmatprep.subr.bf16.mxu0 0
        %1631 = vmatpush1.bf16.msra.mxu0 0
        %1632 = vmatprep.subr.bf16.mxu0 0
        %1633 = vmatpush1.bf16.msra.mxu0 0
        %1634 = vmatprep.subr.bf16.mxu0 0
        %1635 = vmatpush1.bf16.msra.mxu0 0
        %1636 = vmatprep.subr.bf16.mxu0 0
        %1637 = vmatpush1.bf16.msra.mxu0 0
        %1638 = vmatprep.subr.bf16.mxu0 0
        %1639 = vmatpush1.bf16.msra.mxu0 0
        %1640 = vmatprep.subr.bf16.mxu0 0
        %1641 = vmatpush1.bf16.msra.mxu0 0
        %1642 = vmatprep.subr.bf16.mxu0 0
        %1643 = vmatpush1.bf16.msra.mxu0 0
        %1644 = vmatprep.subr.bf16.mxu0 0
        %1645 = vmatpush1.bf16.msra.mxu0 0
        %1646 = vmatprep.subr.bf16.mxu0 0
        %1647 = vmatpush1.bf16.msra.mxu0 0
        %1648 = vmatprep.subr.bf16.mxu0 0
        %1649 = vmatpush1.bf16.msra.mxu0 0
        %1650 = vmatprep.mubr.bf16.mxu0 0
        %1651 = vmatmul.mubr.bf16.gmra.mrb[0].mxu0 %v1616
        %v1652 = vpop.f32.mrb[0].mxu0
        %v1653 = vadd.f32 %v1490, %v1652
        %v1654 = vpop.f32.mrb[0].mxu0
        %v1655 = vpop.f32.mrb[0].mxu0
        %v1656 = vadd.f32 %v1493, %v1655
        %v1657 = vpop.f32.mrb[0].mxu0
        %1658 = vmatprep.mubr.bf16.mxu0 0
        %1659 = vmatmul.mubr.bf16.gmra.mrb[0].mxu0 %v1431
        %v1660 = vpop.f32.mrb[0].mxu0
        %v1661 = vadd.f32 %v1498, %v1660
        %v1662 = vpop.f32.mrb[0].mxu0
        %v1663 = vpop.f32.mrb[0].mxu0
        %v1664 = vadd.f32 %v1501, %v1663
        %v1665 = vpop.f32.mrb[0].mxu0
        %1666 = vmatprep.mubr.bf16.mxu0 0
        %1667 = vmatmul.mubr.bf16.gmra.mrb[0].mxu0 %v1433
        %v1668 = vpop.f32.mrb[0].mxu0
        %v1669 = vadd.f32 %v1506, %v1668
        %v1670 = vpop.f32.mrb[0].mxu0
        %v1671 = vpop.f32.mrb[0].mxu0
        %v1672 = vadd.f32 %v1509, %v1671
        %v1673 = vpop.f32.mrb[0].mxu0
        %1674 = vmatprep.mubr.bf16.mxu0 0
        %1675 = vmatmul.mubr.bf16.gmra.mrb[0].mxu0 %v1435
        %v1676 = vpop.f32.mrb[0].mxu0
        %v1677 = vadd.f32 %v1514, %v1676
        %v1678 = vpop.f32.mrb[0].mxu0
        %v1679 = vpop.f32.mrb[0].mxu0
        %v1680 = vadd.f32 %v1517, %v1679
        %v1681 = vpop.f32.mrb[0].mxu0
        %1682 = vmatprep.mubr.bf16.mxu0 0
        %1683 = vmatmul.mubr.bf16.gmra.mrb[0].mxu0 %v1437
        %v1684 = vpop.f32.mrb[0].mxu0
        %v1685 = vadd.f32 %v1522, %v1684
        %v1686 = vpop.f32.mrb[0].mxu0
        %v1687 = vpop.f32.mrb[0].mxu0
        %v1688 = vadd.f32 %v1525, %v1687
        %v1689 = vpop.f32.mrb[0].mxu0
        %1690 = vmatprep.mubr.bf16.mxu0 0
        %1691 = vmatmul.mubr.bf16.gmra.mrb[0].mxu0 %v1439
        %v1692 = vpop.f32.mrb[0].mxu0
        %v1693 = vadd.f32 %v1530, %v1692
        %v1694 = vpop.f32.mrb[0].mxu0
        %v1695 = vpop.f32.mrb[0].mxu0
        %v1696 = vadd.f32 %v1533, %v1695
        %v1697 = vpop.f32.mrb[0].mxu0
        %1698 = vmatprep.mubr.bf16.mxu0 0
        %1699 = vmatmul.mubr.bf16.gmra.mrb[0].mxu0 %v1441
        %v1700 = vpop.f32.mrb[0].mxu0
        %v1701 = vadd.f32 %v1538, %v1700
        %v1702 = vpop.f32.mrb[0].mxu0
        %v1703 = vpop.f32.mrb[0].mxu0
        %v1704 = vadd.f32 %v1541, %v1703
        %v1705 = vpop.f32.mrb[0].mxu0
        %1706 = vmatprep.mubr.bf16.mxu0 0
        %1707 = vmatmul.mubr.bf16.gmra.mrb[0].mxu0 %v1443
        %v1708 = vpop.f32.mrb[0].mxu0
        %v1709 = vadd.f32 %v1546, %v1708
        %v1710 = vpop.f32.mrb[0].mxu0
        %v1711 = vpop.f32.mrb[0].mxu0
        %v1712 = vadd.f32 %v1549, %v1711
        %v1713 = vpop.f32.mrb[0].mxu0
        %1714 = vmatprep.mubr.bf16.mxu0 0
        %1715 = vmatmul.mubr.bf16.gmra.mrb[0].mxu0 %v1445
        %v1716 = vpop.f32.mrb[0].mxu0
        %v1717 = vadd.f32 %v1554, %v1716
        %v1718 = vpop.f32.mrb[0].mxu0
        %v1719 = vpop.f32.mrb[0].mxu0
        %v1720 = vadd.f32 %v1557, %v1719
        %v1721 = vpop.f32.mrb[0].mxu0
        %1722 = vmatprep.mubr.bf16.mxu0 0
        %1723 = vmatmul.mubr.bf16.gmra.mrb[0].mxu0 %v1447
        %v1724 = vpop.f32.mrb[0].mxu0
        %v1725 = vadd.f32 %v1562, %v1724
        %v1726 = vpop.f32.mrb[0].mxu0
        %v1727 = vpop.f32.mrb[0].mxu0
        %v1728 = vadd.f32 %v1565, %v1727
        %v1729 = vpop.f32.mrb[0].mxu0
        %1730 = vmatprep.mubr.bf16.mxu0 0
        %1731 = vmatmul.mubr.bf16.gmra.mrb[0].mxu0 %v1449
        %v1732 = vpop.f32.mrb[0].mxu0
        %v1733 = vpop.f32.mrb[0].mxu0
        %v1734 = vpop.f32.mrb[0].mxu0
        %v1735 = vpop.f32.mrb[0].mxu0
        %1736 = vmatprep.mubr.bf16.mxu0 0
        %1737 = vmatmul.mubr.bf16.gmra.mrb[0].mxu0 %v1451
        %v1738 = vpop.f32.mrb[0].mxu0
        %v1739 = vpop.f32.mrb[0].mxu0
        %v1740 = vpop.f32.mrb[0].mxu0
        %v1741 = vpop.f32.mrb[0].mxu0
        %1742 = vdwg.mxu0
        %s1743 = scalar_lea.vmem %s3, 96
        %v1744 = vld [vmem:[%s1743] sm:$0xf]
        %v1745 = vld [vmem:[%s1743 + $0x4] sm:$0xf]
        %v1746 = vld [vmem:[%s1743 + $0x8] sm:$0xf]
        %v1747 = vld [vmem:[%s1743 + $0xc] sm:$0xf]
        %v1748 = vld [vmem:[%s1743 + $0x10] sm:$0xf]
        %v1749 = vld [vmem:[%s1743 + $0x14] sm:$0xf]
        %v1750 = vld [vmem:[%s1743 + $0x18] sm:$0xf]
        %v1751 = vld [vmem:[%s1743 + $0x1c] sm:$0xf]
        %v1752 = vld [vmem:[%s1743 + $0x20] sm:$0xf]
        %v1753 = vld [vmem:[%s1743 + $0x24] sm:$0xf]
        %v1754 = vld [vmem:[%s1743 + $0x28] sm:$0xf]
        %v1755 = vld [vmem:[%s1743 + $0x2c] sm:$0xf]
        %v1768 = vunpack.c.l.b16 %v1744
        %v1769 = vunpack.c.l.b16 %v1745
        %v1770 = vunpack.c.l.b16 %v1746
        %v1771 = vunpack.c.l.b16 %v1747
        %v1772 = vunpack.c.l.b16 %v1748
        %v1773 = vunpack.c.l.b16 %v1749
        %v1774 = vunpack.c.l.b16 %v1750
        %v1775 = vunpack.c.l.b16 %v1751
        %v1776 = vunpack.c.l.b16 %v1752
        %v1777 = vunpack.c.l.b16 %v1753
        %v1778 = vunpack.c.l.b16 %v1754
        %v1779 = vunpack.c.l.b16 %v1755
        %v1780 = vpack.c.b16 %v1769, %v1768
        %v1781 = vpack.c.b16 %v1771, %v1770
        %v1782 = vpack.c.b16 %v1773, %v1772
        %v1783 = vpack.c.b16 %v1775, %v1774
        %v1784 = vpack.c.b16 %v1777, %v1776
        %v1785 = vpack.c.b16 %v1779, %v1778
        %1792 = vmatprep.subr.bf16.mxu0 0
        %1793 = vmatpush1.bf16.msra.mxu0 %v1780
        %1794 = vmatprep.subr.bf16.mxu0 0
        %1795 = vmatpush1.bf16.msra.mxu0 %v1781
        %1796 = vmatprep.subr.bf16.mxu0 0
        %1797 = vmatpush1.bf16.msra.mxu0 %v1782
        %1798 = vmatprep.subr.bf16.mxu0 0
        %1799 = vmatpush1.bf16.msra.mxu0 %v1783
        %1800 = vmatprep.subr.bf16.mxu0 0
        %1801 = vmatpush1.bf16.msra.mxu0 %v1784
        %1802 = vmatprep.subr.bf16.mxu0 0
        %1803 = vmatpush1.bf16.msra.mxu0 %v1785
        %1804 = vmatprep.subr.bf16.mxu0 0
        %1805 = vmatpush1.bf16.msra.mxu0 0
        %1806 = vmatprep.subr.bf16.mxu0 0
        %1807 = vmatpush1.bf16.msra.mxu0 0
        %1808 = vmatprep.subr.bf16.mxu0 0
        %1809 = vmatpush1.bf16.msra.mxu0 0
        %1810 = vmatprep.subr.bf16.mxu0 0
        %1811 = vmatpush1.bf16.msra.mxu0 0
        %1812 = vmatprep.subr.bf16.mxu0 0
        %1813 = vmatpush1.bf16.msra.mxu0 0
        %1814 = vmatprep.subr.bf16.mxu0 0
        %1815 = vmatpush1.bf16.msra.mxu0 0
        %1816 = vmatprep.subr.bf16.mxu0 0
        %1817 = vmatpush1.bf16.msra.mxu0 0
        %1818 = vmatprep.subr.bf16.mxu0 0
        %1819 = vmatpush1.bf16.msra.mxu0 0
        %1820 = vmatprep.subr.bf16.mxu0 0
        %1821 = vmatpush1.bf16.msra.mxu0 0
        %1822 = vmatprep.subr.bf16.mxu0 0
        %1823 = vmatpush1.bf16.msra.mxu0 0
        %1824 = vmatprep.mubr.bf16.mxu0 0
        %1825 = vmatmul.mubr.bf16.gmra.mrb[0].mxu0 %v1433
        %v1826 = vpop.f32.mrb[0].mxu0
        %v1827 = vadd.f32 0.0, %v1826
        %v1828 = vpop.f32.mrb[0].mxu0
        %v1829 = vpop.f32.mrb[0].mxu0
        %v1830 = vadd.f32 0.0, %v1829
        %v1831 = vpop.f32.mrb[0].mxu0
        %1832 = vmatprep.mubr.bf16.mxu0 0
        %1833 = vmatmul.mubr.bf16.gmra.mrb[0].mxu0 %v1435
        %v1834 = vpop.f32.mrb[0].mxu0
        %v1835 = vadd.f32 0.0, %v1834
        %v1836 = vpop.f32.mrb[0].mxu0
        %v1837 = vpop.f32.mrb[0].mxu0
        %v1838 = vadd.f32 0.0, %v1837
        %v1839 = vpop.f32.mrb[0].mxu0
        %1840 = vmatprep.mubr.bf16.mxu0 0
        %1841 = vmatmul.mubr.bf16.gmra.mrb[0].mxu0 %v1437
        %v1842 = vpop.f32.mrb[0].mxu0
        %v1843 = vadd.f32 0.0, %v1842
        %v1844 = vpop.f32.mrb[0].mxu0
        %v1845 = vpop.f32.mrb[0].mxu0
        %v1846 = vadd.f32 0.0, %v1845
        %v1847 = vpop.f32.mrb[0].mxu0
        %1848 = vmatprep.mubr.bf16.mxu0 0
        %1849 = vmatmul.mubr.bf16.gmra.mrb[0].mxu0 %v1439
        %v1850 = vpop.f32.mrb[0].mxu0
        %v1851 = vadd.f32 0.0, %v1850
        %v1852 = vpop.f32.mrb[0].mxu0
        %v1853 = vpop.f32.mrb[0].mxu0
        %v1854 = vadd.f32 0.0, %v1853
        %v1855 = vpop.f32.mrb[0].mxu0
        %1856 = vmatprep.mubr.bf16.mxu0 0
        %1857 = vmatmul.mubr.bf16.gmra.mrb[0].mxu0 %v1441
        %v1858 = vpop.f32.mrb[0].mxu0
        %v1859 = vadd.f32 0.0, %v1858
        %v1860 = vpop.f32.mrb[0].mxu0
        %v1861 = vpop.f32.mrb[0].mxu0
        %v1862 = vadd.f32 0.0, %v1861
        %v1863 = vpop.f32.mrb[0].mxu0
        %1864 = vmatprep.mubr.bf16.mxu0 0
        %1865 = vmatmul.mubr.bf16.gmra.mrb[0].mxu0 %v1443
        %v1866 = vpop.f32.mrb[0].mxu0
        %v1867 = vadd.f32 0.0, %v1866
        %v1868 = vpop.f32.mrb[0].mxu0
        %v1869 = vpop.f32.mrb[0].mxu0
        %v1870 = vadd.f32 0.0, %v1869
        %v1871 = vpop.f32.mrb[0].mxu0
        %1872 = vmatprep.mubr.bf16.mxu0 0
        %1873 = vmatmul.mubr.bf16.gmra.mrb[0].mxu0 %v1445
        %v1874 = vpop.f32.mrb[0].mxu0
        %v1875 = vadd.f32 0.0, %v1874
        %v1876 = vpop.f32.mrb[0].mxu0
        %v1877 = vpop.f32.mrb[0].mxu0
        %v1878 = vadd.f32 0.0, %v1877
        %v1879 = vpop.f32.mrb[0].mxu0
        %1880 = vmatprep.mubr.bf16.mxu0 0
        %1881 = vmatmul.mubr.bf16.gmra.mrb[0].mxu0 %v1447
        %v1882 = vpop.f32.mrb[0].mxu0
        %v1883 = vadd.f32 0.0, %v1882
        %v1884 = vpop.f32.mrb[0].mxu0
        %v1885 = vpop.f32.mrb[0].mxu0
        %v1886 = vadd.f32 0.0, %v1885
        %v1887 = vpop.f32.mrb[0].mxu0
        %1888 = vmatprep.mubr.bf16.mxu0 0
        %1889 = vmatmul.mubr.bf16.gmra.mrb[0].mxu0 %v1449
        %v1890 = vpop.f32.mrb[0].mxu0
        %v1891 = vadd.f32 0.0, %v1890
        %v1892 = vpop.f32.mrb[0].mxu0
        %v1893 = vpop.f32.mrb[0].mxu0
        %v1894 = vadd.f32 0.0, %v1893
        %v1895 = vpop.f32.mrb[0].mxu0
        %1896 = vmatprep.mubr.bf16.mxu0 0
        %1897 = vmatmul.mubr.bf16.gmra.mrb[0].mxu0 %v1451
        %v1898 = vpop.f32.mrb[0].mxu0
        %v1899 = vadd.f32 0.0, %v1898
        %v1900 = vpop.f32.mrb[0].mxu0
        %v1901 = vpop.f32.mrb[0].mxu0
        %v1902 = vadd.f32 0.0, %v1901
        %v1903 = vpop.f32.mrb[0].mxu0
        %1904 = vmatprep.mubr.bf16.mxu0 0
        %1905 = vmatmul.mubr.bf16.gmra.mrb[0].mxu0 %v1453
        %v1906 = vpop.f32.mrb[0].mxu0
        %v1907 = vpop.f32.mrb[0].mxu0
        %v1908 = vpop.f32.mrb[0].mxu0
        %v1909 = vpop.f32.mrb[0].mxu0
        %1910 = vmatprep.mubr.bf16.mxu0 0
        %1911 = vmatmul.mubr.bf16.gmra.mrb[0].mxu0 %v1453
        %v1912 = vpop.f32.mrb[0].mxu0
        %v1913 = vpop.f32.mrb[0].mxu0
        %v1914 = vpop.f32.mrb[0].mxu0
        %v1915 = vpop.f32.mrb[0].mxu0
        %1916 = vdwg.mxu0
        %v1917 = vadd.f32 %v1653, %v1827
        %v1918 = vadd.f32 %v1656, %v1830
        %v1919 = vadd.f32 %v1661, %v1835
        %v1920 = vadd.f32 %v1664, %v1838
        %v1921 = vadd.f32 %v1669, %v1843
        %v1922 = vadd.f32 %v1672, %v1846
        %v1923 = vadd.f32 %v1677, %v1851
        %v1924 = vadd.f32 %v1680, %v1854
        %v1925 = vadd.f32 %v1685, %v1859
        %v1926 = vadd.f32 %v1688, %v1862
        %v1927 = vadd.f32 %v1693, %v1867
        %v1928 = vadd.f32 %v1696, %v1870
        %v1929 = vadd.f32 %v1701, %v1875
        %v1930 = vadd.f32 %v1704, %v1878
        %v1931 = vadd.f32 %v1709, %v1883
        %v1932 = vadd.f32 %v1712, %v1886
        %v1933 = vadd.f32 %v1717, %v1891
        %v1934 = vadd.f32 %v1720, %v1894
        %v1935 = vadd.f32 %v1725, %v1899
        %v1936 = vadd.f32 %v1728, %v1902
        %v1937 = vld [vmem:[%s4] sm:$0x1]
        %v1939 = vlaneseq
        %v1940 = vshrl.u32 %v1939, 7
        %v1941 = vsub.s32 0, %v1940
        %v1942 = vrot.slane %v1937, %v1941
        %v1944 = vadd.f32 %v1917, %v1942
        %v1945 = vadd.f32 %v1918, %v1942
        %v1946 = vadd.f32 %v1919, %v1942
        %v1947 = vadd.f32 %v1920, %v1942
        %v1948 = vadd.f32 %v1921, %v1942
        %v1949 = vadd.f32 %v1922, %v1942
        %v1950 = vadd.f32 %v1923, %v1942
        %v1951 = vadd.f32 %v1924, %v1942
        %v1952 = vadd.f32 %v1925, %v1942
        %v1953 = vadd.f32 %v1926, %v1942
        %v1954 = vadd.f32 %v1927, %v1942
        %v1955 = vadd.f32 %v1928, %v1942
        %v1956 = vadd.f32 %v1929, %v1942
        %v1957 = vadd.f32 %v1930, %v1942
        %v1958 = vadd.f32 %v1931, %v1942
        %v1959 = vadd.f32 %v1932, %v1942
        %v1960 = vadd.f32 %v1933, %v1942
        %v1961 = vadd.f32 %v1934, %v1942
        %v1962 = vadd.f32 %v1935, %v1942
        %v1963 = vadd.f32 %v1936, %v1942
        %vm1964 = vcmp.gt.f32.partialorder %v1944, 0.0
        %vm1965 = vcmp.gt.f32.partialorder %v1945, 0.0
        %vm1966 = vcmp.gt.f32.partialorder %v1946, 0.0
        %vm1967 = vcmp.gt.f32.partialorder %v1947, 0.0
        %vm1968 = vcmp.gt.f32.partialorder %v1948, 0.0
        %vm1969 = vcmp.gt.f32.partialorder %v1949, 0.0
        %vm1970 = vcmp.gt.f32.partialorder %v1950, 0.0
        %vm1971 = vcmp.gt.f32.partialorder %v1951, 0.0
        %vm1972 = vcmp.gt.f32.partialorder %v1952, 0.0
        %vm1973 = vcmp.gt.f32.partialorder %v1953, 0.0
        %vm1974 = vcmp.gt.f32.partialorder %v1954, 0.0
        %vm1975 = vcmp.gt.f32.partialorder %v1955, 0.0
        %vm1976 = vcmp.gt.f32.partialorder %v1956, 0.0
        %vm1977 = vcmp.gt.f32.partialorder %v1957, 0.0
        %vm1978 = vcmp.gt.f32.partialorder %v1958, 0.0
        %vm1979 = vcmp.gt.f32.partialorder %v1959, 0.0
        %vm1980 = vcmp.gt.f32.partialorder %v1960, 0.0
        %vm1981 = vcmp.gt.f32.partialorder %v1961, 0.0
        %vm1982 = vcmp.gt.f32.partialorder %v1962, 0.0
        %vm1983 = vcmp.gt.f32.partialorder %v1963, 0.0
        %v1984 = vmin.f32 %v1944, 0.0
        %v1985 = vmin.f32 %v1945, 0.0
        %v1986 = vmin.f32 %v1946, 0.0
        %v1987 = vmin.f32 %v1947, 0.0
        %v1988 = vmin.f32 %v1948, 0.0
        %v1989 = vmin.f32 %v1949, 0.0
        %v1990 = vmin.f32 %v1950, 0.0
        %v1991 = vmin.f32 %v1951, 0.0
        %v1992 = vmin.f32 %v1952, 0.0
        %v1993 = vmin.f32 %v1953, 0.0
        %v1994 = vmin.f32 %v1954, 0.0
        %v1995 = vmin.f32 %v1955, 0.0
        %v1996 = vmin.f32 %v1956, 0.0
        %v1997 = vmin.f32 %v1957, 0.0
        %v1998 = vmin.f32 %v1958, 0.0
        %v1999 = vmin.f32 %v1959, 0.0
        %v2000 = vmin.f32 %v1960, 0.0
        %v2001 = vmin.f32 %v1961, 0.0
        %v2002 = vmin.f32 %v1962, 0.0
        %v2003 = vmin.f32 %v1963, 0.0
        %v2004 = vmul.f32 %v1984, 1.442695
        %v2005 = vpow.pop %v2004
        %v2006 = vmul.f32 %v1985, 1.442695
        %v2007 = vpow.pop %v2006
        %v2008 = vmul.f32 %v1986, 1.442695
        %v2009 = vpow.pop %v2008
        %v2010 = vmul.f32 %v1987, 1.442695
        %v2011 = vpow.pop %v2010
        %v2012 = vmul.f32 %v1988, 1.442695
        %v2013 = vpow.pop %v2012
        %v2014 = vmul.f32 %v1989, 1.442695
        %v2015 = vpow.pop %v2014
        %v2016 = vmul.f32 %v1990, 1.442695
        %v2017 = vpow.pop %v2016
        %v2018 = vmul.f32 %v1991, 1.442695
        %v2019 = vpow.pop %v2018
        %v2020 = vmul.f32 %v1992, 1.442695
        %v2021 = vpow.pop %v2020
        %v2022 = vmul.f32 %v1993, 1.442695
        %v2023 = vpow.pop %v2022
        %v2024 = vmul.f32 %v1994, 1.442695
        %v2025 = vpow.pop %v2024
        %v2026 = vmul.f32 %v1995, 1.442695
        %v2027 = vpow.pop %v2026
        %v2028 = vmul.f32 %v1996, 1.442695
        %v2029 = vpow.pop %v2028
        %v2030 = vmul.f32 %v1997, 1.442695
        %v2031 = vpow.pop %v2030
        %v2032 = vmul.f32 %v1998, 1.442695
        %v2033 = vpow.pop %v2032
        %v2034 = vmul.f32 %v1999, 1.442695
        %v2035 = vpow.pop %v2034
        %v2036 = vmul.f32 %v2000, 1.442695
        %v2037 = vpow.pop %v2036
        %v2038 = vmul.f32 %v2001, 1.442695
        %v2039 = vpow.pop %v2038
        %v2040 = vmul.f32 %v2002, 1.442695
        %v2041 = vpow.pop %v2040
        %v2042 = vmul.f32 %v2003, 1.442695
        %v2043 = vpow.pop %v2042
        %v2044 = vsub.f32 %v2005, 1.0
        %v2045 = vsub.f32 %v2007, 1.0
        %v2046 = vsub.f32 %v2009, 1.0
        %v2047 = vsub.f32 %v2011, 1.0
        %v2048 = vsub.f32 %v2013, 1.0
        %v2049 = vsub.f32 %v2015, 1.0
        %v2050 = vsub.f32 %v2017, 1.0
        %v2051 = vsub.f32 %v2019, 1.0
        %v2052 = vsub.f32 %v2021, 1.0
        %v2053 = vsub.f32 %v2023, 1.0
        %v2054 = vsub.f32 %v2025, 1.0
        %v2055 = vsub.f32 %v2027, 1.0
        %v2056 = vsub.f32 %v2029, 1.0
        %v2057 = vsub.f32 %v2031, 1.0
        %v2058 = vsub.f32 %v2033, 1.0
        %v2059 = vsub.f32 %v2035, 1.0
        %v2060 = vsub.f32 %v2037, 1.0
        %v2061 = vsub.f32 %v2039, 1.0
        %v2062 = vsub.f32 %v2041, 1.0
        %v2063 = vsub.f32 %v2043, 1.0
        %v2064 = vsel %vm1964, %v1944, %v2044
        %v2065 = vsel %vm1965, %v1945, %v2045
        %v2066 = vsel %vm1966, %v1946, %v2046
        %v2067 = vsel %vm1967, %v1947, %v2047
        %v2068 = vsel %vm1968, %v1948, %v2048
        %v2069 = vsel %vm1969, %v1949, %v2049
        %v2070 = vsel %vm1970, %v1950, %v2050
        %v2071 = vsel %vm1971, %v1951, %v2051
        %v2072 = vsel %vm1972, %v1952, %v2052
        %v2073 = vsel %vm1973, %v1953, %v2053
        %v2074 = vsel %vm1974, %v1954, %v2054
        %v2075 = vsel %vm1975, %v1955, %v2055
        %v2076 = vsel %vm1976, %v1956, %v2056
        %v2077 = vsel %vm1977, %v1957, %v2057
        %v2078 = vsel %vm1978, %v1958, %v2058
        %v2079 = vsel %vm1979, %v1959, %v2059
        %v2080 = vsel %vm1980, %v1960, %v2060
        %v2081 = vsel %vm1981, %v1961, %v2061
        %v2082 = vsel %vm1982, %v1962, %v2062
        %v2083 = vsel %vm1983, %v1963, %v2063
        %vm2104 = vcmask 1040384
        %v2105 = vrot.slane %v2064, 7
        %v2106 = vrot.slane %v2065, 7
        %v2107 = vsel %vm2104, %v2105, %v2106
        %v2108 = vrot.slane %v2066, 7
        %v2109 = vrot.slane %v2067, 7
        %v2110 = vsel %vm2104, %v2108, %v2109
        %v2111 = vrot.slane %v2068, 7
        %v2112 = vrot.slane %v2069, 7
        %v2113 = vsel %vm2104, %v2111, %v2112
        %v2114 = vrot.slane %v2070, 7
        %v2115 = vrot.slane %v2071, 7
        %v2116 = vsel %vm2104, %v2114, %v2115
        %v2117 = vrot.slane %v2072, 7
        %v2118 = vrot.slane %v2073, 7
        %v2119 = vsel %vm2104, %v2117, %v2118
        %v2120 = vrot.slane %v2074, 7
        %v2121 = vrot.slane %v2075, 7
        %v2122 = vsel %vm2104, %v2120, %v2121
        %v2123 = vrot.slane %v2076, 7
        %v2124 = vrot.slane %v2077, 7
        %v2125 = vsel %vm2104, %v2123, %v2124
        %v2126 = vrot.slane %v2078, 7
        %v2127 = vrot.slane %v2079, 7
        %v2128 = vsel %vm2104, %v2126, %v2127
        %v2129 = vrot.slane %v2080, 7
        %v2130 = vrot.slane %v2081, 7
        %v2131 = vsel %vm2104, %v2129, %v2130
        %v2132 = vrot.slane %v2082, 7
        %v2133 = vrot.slane %v2083, 7
        %v2134 = vsel %vm2104, %v2132, %v2133
        %v2155 = vsel %vm2104, 0.0, %v2105
        %v2156 = vsel %vm2104, 0.0, %v2108
        %v2157 = vsel %vm2104, 0.0, %v2111
        %v2158 = vsel %vm2104, 0.0, %v2114
        %v2159 = vsel %vm2104, 0.0, %v2117
        %v2160 = vsel %vm2104, 0.0, %v2120
        %v2161 = vsel %vm2104, 0.0, %v2123
        %v2162 = vsel %vm2104, 0.0, %v2126
        %v2163 = vsel %vm2104, 0.0, %v2129
        %v2164 = vsel %vm2104, 0.0, %v2132
        %vm2165 = vcmask 1042432
        %v2166 = vsel %vm2165, %v2107, 0.0
        %v2167 = vsel %vm2165, %v2110, 0.0
        %v2168 = vsel %vm2165, %v2113, 0.0
        %v2169 = vsel %vm2165, %v2116, 0.0
        %v2170 = vsel %vm2165, %v2119, 0.0
        %v2171 = vsel %vm2165, %v2122, 0.0
        %v2172 = vsel %vm2165, %v2125, 0.0
        %v2173 = vsel %vm2165, %v2128, 0.0
        %v2174 = vsel %vm2165, %v2131, 0.0
        %v2175 = vsel %vm2165, %v2134, 0.0
        %v2176 = vpack.c.bf16 0.0, 0.0
        %v2177 = vpack.c.bf16 %v2166, %v2155
        %v2178 = vpack.c.bf16 %v2167, %v2156
        %v2179 = vpack.c.bf16 %v2168, %v2157
        %v2180 = vpack.c.bf16 %v2169, %v2158
        %v2181 = vpack.c.bf16 %v2170, %v2159
        %v2182 = vpack.c.bf16 %v2171, %v2160
        %v2183 = vpack.c.bf16 %v2172, %v2161
        %v2184 = vpack.c.bf16 %v2173, %v2162
        %v2185 = vpack.c.bf16 %v2174, %v2163
        %v2186 = vpack.c.bf16 %v2175, %v2164
        %v2188 = vshrl.u32 %v2176, 16
        %v2190 = vshll.u32 %v2176, 16
        %v2192 = vrot.slane %v2190, 1
        %v2193 = vor.u32 %v2188, %v2192
        %v2195 = vshll.u32 %v2177, 16
        %v2197 = vrot.slane %v2195, 1
        %v2198 = vsel %vm1118, %v2193, %v2197
        %v2199 = vshrl.u32 %v2177, 16
        %v2201 = vor.u32 %v2199, %v2197
        %v2203 = vshll.u32 %v2178, 16
        %v2205 = vrot.slane %v2203, 1
        %v2206 = vsel %vm1118, %v2201, %v2205
        %v2207 = vshrl.u32 %v2178, 16
        %v2209 = vor.u32 %v2207, %v2205
        %v2211 = vshll.u32 %v2179, 16
        %v2213 = vrot.slane %v2211, 1
        %v2214 = vsel %vm1118, %v2209, %v2213
        %v2215 = vshrl.u32 %v2179, 16
        %v2217 = vor.u32 %v2215, %v2213
        %v2219 = vshll.u32 %v2180, 16
        %v2221 = vrot.slane %v2219, 1
        %v2222 = vsel %vm1118, %v2217, %v2221
        %v2223 = vshrl.u32 %v2180, 16
        %v2225 = vor.u32 %v2223, %v2221
        %v2227 = vshll.u32 %v2181, 16
        %v2229 = vrot.slane %v2227, 1
        %v2230 = vsel %vm1118, %v2225, %v2229
        %v2231 = vshrl.u32 %v2181, 16
        %v2233 = vor.u32 %v2231, %v2229
        %v2235 = vshll.u32 %v2182, 16
        %v2237 = vrot.slane %v2235, 1
        %v2238 = vsel %vm1118, %v2233, %v2237
        %v2239 = vshrl.u32 %v2182, 16
        %v2241 = vor.u32 %v2239, %v2237
        %v2243 = vshll.u32 %v2183, 16
        %v2245 = vrot.slane %v2243, 1
        %v2246 = vsel %vm1118, %v2241, %v2245
        %v2247 = vshrl.u32 %v2183, 16
        %v2249 = vor.u32 %v2247, %v2245
        %v2251 = vshll.u32 %v2184, 16
        %v2253 = vrot.slane %v2251, 1
        %v2254 = vsel %vm1118, %v2249, %v2253
        %v2255 = vshrl.u32 %v2184, 16
        %v2257 = vor.u32 %v2255, %v2253
        %v2259 = vshll.u32 %v2185, 16
        %v2261 = vrot.slane %v2259, 1
        %v2262 = vsel %vm1118, %v2257, %v2261
        %v2263 = vshrl.u32 %v2185, 16
        %v2265 = vor.u32 %v2263, %v2261
        %v2267 = vshll.u32 %v2186, 16
        %v2269 = vrot.slane %v2267, 1
        %v2270 = vsel %vm1118, %v2265, %v2269
        %v2271 = vshrl.u32 %v2186, 16
        %v2273 = vor.u32 %v2271, %v2269
        %v2274 = vsel %vm1118, %v2273, %v2192
        %v2275 = vsel %vm1118, %v2193, %v1217
        %2276 = vrot.lane.b32.xlu0 %v2198, 32
        %v2277 = vpop.permute.xlu0 %2276
        %2278 = vrot.lane.b32.xlu0 %v2206, 32
        %v2279 = vpop.permute.xlu0 %2278
        %2280 = vrot.lane.b32.xlu0 %v2214, 32
        %v2281 = vpop.permute.xlu0 %2280
        %2282 = vrot.lane.b32.xlu0 %v2222, 32
        %v2283 = vpop.permute.xlu0 %2282
        %2284 = vrot.lane.b32.xlu0 %v2230, 32
        %v2285 = vpop.permute.xlu0 %2284
        %2286 = vrot.lane.b32.xlu0 %v2238, 32
        %v2287 = vpop.permute.xlu0 %2286
        %2288 = vrot.lane.b32.xlu0 %v2246, 32
        %v2289 = vpop.permute.xlu0 %2288
        %2290 = vrot.lane.b32.xlu0 %v2254, 32
        %v2291 = vpop.permute.xlu0 %2290
        %2292 = vrot.lane.b32.xlu0 %v2262, 32
        %v2293 = vpop.permute.xlu0 %2292
        %2294 = vrot.lane.b32.xlu0 %v2270, 32
        %v2295 = vpop.permute.xlu0 %2294
        %2296 = vrot.lane.b32.xlu0 %v2274, 32
        %v2297 = vpop.permute.xlu0 %2296
        %2298 = vrot.lane.b32.xlu0 %v2275, 32
        %v2299 = vpop.permute.xlu0 %2298
        %v2311 = vrot.slane %v2176, 1
        %v2312 = vrot.slane %v2177, 1
        %v2313 = vsel %vm1256, %v2311, %v2312
        %v2314 = vrot.slane %v2178, 1
        %v2315 = vsel %vm1256, %v2312, %v2314
        %v2316 = vrot.slane %v2179, 1
        %v2317 = vsel %vm1256, %v2314, %v2316
        %v2318 = vrot.slane %v2180, 1
        %v2319 = vsel %vm1256, %v2316, %v2318
        %v2320 = vrot.slane %v2181, 1
        %v2321 = vsel %vm1256, %v2318, %v2320
        %v2322 = vrot.slane %v2182, 1
        %v2323 = vsel %vm1256, %v2320, %v2322
        %v2324 = vrot.slane %v2183, 1
        %v2325 = vsel %vm1256, %v2322, %v2324
        %v2326 = vrot.slane %v2184, 1
        %v2327 = vsel %vm1256, %v2324, %v2326
        %v2328 = vrot.slane %v2185, 1
        %v2329 = vsel %vm1256, %v2326, %v2328
        %v2330 = vrot.slane %v2186, 1
        %v2331 = vsel %vm1256, %v2328, %v2330
        %v2332 = vsel %vm1256, %v2330, %v2311
        %v2333 = vsel %vm1256, %v2311, %v1280
        %2334 = vrot.lane.b32.xlu0 %v2313, 64
        %v2335 = vpop.permute.xlu0 %2334
        %2336 = vrot.lane.b32.xlu0 %v2315, 64
        %v2337 = vpop.permute.xlu0 %2336
        %2338 = vrot.lane.b32.xlu0 %v2317, 64
        %v2339 = vpop.permute.xlu0 %2338
        %2340 = vrot.lane.b32.xlu0 %v2319, 64
        %v2341 = vpop.permute.xlu0 %2340
        %2342 = vrot.lane.b32.xlu0 %v2321, 64
        %v2343 = vpop.permute.xlu0 %2342
        %2344 = vrot.lane.b32.xlu0 %v2323, 64
        %v2345 = vpop.permute.xlu0 %2344
        %2346 = vrot.lane.b32.xlu0 %v2325, 64
        %v2347 = vpop.permute.xlu0 %2346
        %2348 = vrot.lane.b32.xlu0 %v2327, 64
        %v2349 = vpop.permute.xlu0 %2348
        %2350 = vrot.lane.b32.xlu0 %v2329, 64
        %v2351 = vpop.permute.xlu0 %2350
        %2352 = vrot.lane.b32.xlu0 %v2331, 64
        %v2353 = vpop.permute.xlu0 %2352
        %2354 = vrot.lane.b32.xlu0 %v2332, 64
        %v2355 = vpop.permute.xlu0 %2354
        %2356 = vrot.lane.b32.xlu0 %v2333, 64
        %v2357 = vpop.permute.xlu0 %2356
        %v2359 = vsel %vm1306, %v2176, %v2277
        %v2361 = vsel %vm1306, %v2177, %v2279
        %v2363 = vsel %vm1306, %v2178, %v2281
        %v2365 = vsel %vm1306, %v2179, %v2283
        %v2367 = vsel %vm1306, %v2180, %v2285
        %v2369 = vsel %vm1306, %v2181, %v2287
        %v2371 = vsel %vm1306, %v2182, %v2289
        %v2373 = vsel %vm1306, %v2183, %v2291
        %v2375 = vsel %vm1306, %v2184, %v2293
        %v2377 = vsel %vm1306, %v2185, %v2295
        %v2379 = vsel %vm1306, %v2186, %v2297
        %v2381 = vsel %vm1306, %v2176, %v2299
        %v2383 = vsel %vm1331, %v2359, %v2335
        %v2385 = vsel %vm1331, %v2361, %v2337
        %v2387 = vsel %vm1331, %v2363, %v2339
        %v2389 = vsel %vm1331, %v2365, %v2341
        %v2391 = vsel %vm1331, %v2367, %v2343
        %v2393 = vsel %vm1331, %v2369, %v2345
        %v2395 = vsel %vm1331, %v2371, %v2347
        %v2397 = vsel %vm1331, %v2373, %v2349
        %v2399 = vsel %vm1331, %v2375, %v2351
        %v2401 = vsel %vm1331, %v2377, %v2353
        %v2403 = vsel %vm1331, %v2379, %v2355
        %v2405 = vsel %vm1331, %v2381, %v2357
        %v2406 = vld [vmem:[%s5] sm:$0xf]
        %v2407 = vld [vmem:[%s5 + $0x4] sm:$0xf]
        %v2408 = vld [vmem:[%s5 + $0x8] sm:$0xf]
        %v2409 = vld [vmem:[%s5 + $0xc] sm:$0xf]
        %v2410 = vld [vmem:[%s5 + $0x10] sm:$0xf]
        %v2411 = vld [vmem:[%s5 + $0x14] sm:$0xf]
        %v2412 = vld [vmem:[%s5 + $0x18] sm:$0xf]
        %v2413 = vld [vmem:[%s5 + $0x1c] sm:$0xf]
        %v2414 = vld [vmem:[%s5 + $0x20] sm:$0xf]
        %v2415 = vld [vmem:[%s5 + $0x24] sm:$0xf]
        %v2416 = vld [vmem:[%s5 + $0x28] sm:$0xf]
        %v2417 = vld [vmem:[%s5 + $0x2c] sm:$0xf]
        %s2418 = scalar_lea.vmem %s5, 48
        %v2419 = vld [vmem:[%s2418] sm:$0xf]
        %v2420 = vld [vmem:[%s2418 + $0x4] sm:$0xf]
        %v2421 = vld [vmem:[%s2418 + $0x8] sm:$0xf]
        %v2422 = vld [vmem:[%s2418 + $0xc] sm:$0xf]
        %v2423 = vld [vmem:[%s2418 + $0x10] sm:$0xf]
        %v2424 = vld [vmem:[%s2418 + $0x14] sm:$0xf]
        %v2425 = vld [vmem:[%s2418 + $0x18] sm:$0xf]
        %v2426 = vld [vmem:[%s2418 + $0x1c] sm:$0xf]
        %v2427 = vld [vmem:[%s2418 + $0x20] sm:$0xf]
        %v2428 = vld [vmem:[%s2418 + $0x24] sm:$0xf]
        %v2429 = vld [vmem:[%s2418 + $0x28] sm:$0xf]
        %v2430 = vld [vmem:[%s2418 + $0x2c] sm:$0xf]
        %v2443 = vunpack.c.l.b16 %v2419
        %v2444 = vunpack.c.l.b16 %v2420
        %v2445 = vunpack.c.l.b16 %v2421
        %v2446 = vunpack.c.l.b16 %v2422
        %v2447 = vunpack.c.l.b16 %v2423
        %v2448 = vunpack.c.l.b16 %v2424
        %v2449 = vunpack.c.l.b16 %v2425
        %v2450 = vunpack.c.l.b16 %v2426
        %v2451 = vunpack.c.l.b16 %v2427
        %v2452 = vunpack.c.l.b16 %v2428
        %v2453 = vunpack.c.l.b16 %v2429
        %v2454 = vunpack.c.l.b16 %v2430
        %v2455 = vpack.c.b16 %v2444, %v2443
        %v2456 = vpack.c.b16 %v2446, %v2445
        %v2457 = vpack.c.b16 %v2448, %v2447
        %v2458 = vpack.c.b16 %v2450, %v2449
        %v2459 = vpack.c.b16 %v2452, %v2451
        %v2460 = vpack.c.b16 %v2454, %v2453
        %v2467 = vsel %vm1430, %v2385, 0
        %v2469 = vsel %vm1430, %v2387, 0
        %v2471 = vsel %vm1430, %v2389, 0
        %v2473 = vsel %vm1430, %v2391, 0
        %v2475 = vsel %vm1430, %v2393, 0
        %v2477 = vsel %vm1430, %v2395, 0
        %v2479 = vsel %vm1430, %v2397, 0
        %v2481 = vsel %vm1430, %v2399, 0
        %v2483 = vsel %vm1430, %v2401, 0
        %v2485 = vsel %vm1430, %v2403, 0
        %v2487 = vsel %vm1430, %v2405, 0
        %2489 = vmatprep.subr.bf16.mxu0 0
        %2490 = vmatpush1.bf16.msra.mxu0 %v2455
        %2491 = vmatprep.subr.bf16.mxu0 0
        %2492 = vmatpush1.bf16.msra.mxu0 %v2456
        %2493 = vmatprep.subr.bf16.mxu0 0
        %2494 = vmatpush1.bf16.msra.mxu0 %v2457
        %2495 = vmatprep.subr.bf16.mxu0 0
        %2496 = vmatpush1.bf16.msra.mxu0 %v2458
        %2497 = vmatprep.subr.bf16.mxu0 0
        %2498 = vmatpush1.bf16.msra.mxu0 %v2459
        %2499 = vmatprep.subr.bf16.mxu0 0
        %2500 = vmatpush1.bf16.msra.mxu0 %v2460
        %2501 = vmatprep.subr.bf16.mxu0 0
        %2502 = vmatpush1.bf16.msra.mxu0 0
        %2503 = vmatprep.subr.bf16.mxu0 0
        %2504 = vmatpush1.bf16.msra.mxu0 0
        %2505 = vmatprep.subr.bf16.mxu0 0
        %2506 = vmatpush1.bf16.msra.mxu0 0
        %2507 = vmatprep.subr.bf16.mxu0 0
        %2508 = vmatpush1.bf16.msra.mxu0 0
        %2509 = vmatprep.subr.bf16.mxu0 0
        %2510 = vmatpush1.bf16.msra.mxu0 0
        %2511 = vmatprep.subr.bf16.mxu0 0
        %2512 = vmatpush1.bf16.msra.mxu0 0
        %2513 = vmatprep.subr.bf16.mxu0 0
        %2514 = vmatpush1.bf16.msra.mxu0 0
        %2515 = vmatprep.subr.bf16.mxu0 0
        %2516 = vmatpush1.bf16.msra.mxu0 0
        %2517 = vmatprep.subr.bf16.mxu0 0
        %2518 = vmatpush1.bf16.msra.mxu0 0
        %2519 = vmatprep.subr.bf16.mxu0 0
        %2520 = vmatpush1.bf16.msra.mxu0 0
        %2521 = vmatprep.mubr.bf16.mxu0 0
        %2522 = vmatmul.mubr.bf16.gmra.mrb[0].mxu0 %v2467
        %v2523 = vpop.f32.mrb[0].mxu0
        %v2524 = vadd.f32 0.0, %v2523
        %v2525 = vpop.f32.mrb[0].mxu0
        %v2526 = vpop.f32.mrb[0].mxu0
        %v2527 = vadd.f32 0.0, %v2526
        %v2528 = vpop.f32.mrb[0].mxu0
        %2529 = vmatprep.mubr.bf16.mxu0 0
        %2530 = vmatmul.mubr.bf16.gmra.mrb[0].mxu0 %v2469
        %v2531 = vpop.f32.mrb[0].mxu0
        %v2532 = vadd.f32 0.0, %v2531
        %v2533 = vpop.f32.mrb[0].mxu0
        %v2534 = vpop.f32.mrb[0].mxu0
        %v2535 = vadd.f32 0.0, %v2534
        %v2536 = vpop.f32.mrb[0].mxu0
        %2537 = vmatprep.mubr.bf16.mxu0 0
        %2538 = vmatmul.mubr.bf16.gmra.mrb[0].mxu0 %v2471
        %v2539 = vpop.f32.mrb[0].mxu0
        %v2540 = vadd.f32 0.0, %v2539
        %v2541 = vpop.f32.mrb[0].mxu0
        %v2542 = vpop.f32.mrb[0].mxu0
        %v2543 = vadd.f32 0.0, %v2542
        %v2544 = vpop.f32.mrb[0].mxu0
        %2545 = vmatprep.mubr.bf16.mxu0 0
        %2546 = vmatmul.mubr.bf16.gmra.mrb[0].mxu0 %v2473
        %v2547 = vpop.f32.mrb[0].mxu0
        %v2548 = vadd.f32 0.0, %v2547
        %v2549 = vpop.f32.mrb[0].mxu0
        %v2550 = vpop.f32.mrb[0].mxu0
        %v2551 = vadd.f32 0.0, %v2550
        %v2552 = vpop.f32.mrb[0].mxu0
        %2553 = vmatprep.mubr.bf16.mxu0 0
        %2554 = vmatmul.mubr.bf16.gmra.mrb[0].mxu0 %v2475
        %v2555 = vpop.f32.mrb[0].mxu0
        %v2556 = vadd.f32 0.0, %v2555
        %v2557 = vpop.f32.mrb[0].mxu0
        %v2558 = vpop.f32.mrb[0].mxu0
        %v2559 = vadd.f32 0.0, %v2558
        %v2560 = vpop.f32.mrb[0].mxu0
        %2561 = vmatprep.mubr.bf16.mxu0 0
        %2562 = vmatmul.mubr.bf16.gmra.mrb[0].mxu0 %v2477
        %v2563 = vpop.f32.mrb[0].mxu0
        %v2564 = vadd.f32 0.0, %v2563
        %v2565 = vpop.f32.mrb[0].mxu0
        %v2566 = vpop.f32.mrb[0].mxu0
        %v2567 = vadd.f32 0.0, %v2566
        %v2568 = vpop.f32.mrb[0].mxu0
        %2569 = vmatprep.mubr.bf16.mxu0 0
        %2570 = vmatmul.mubr.bf16.gmra.mrb[0].mxu0 %v2479
        %v2571 = vpop.f32.mrb[0].mxu0
        %v2572 = vadd.f32 0.0, %v2571
        %v2573 = vpop.f32.mrb[0].mxu0
        %v2574 = vpop.f32.mrb[0].mxu0
        %v2575 = vadd.f32 0.0, %v2574
        %v2576 = vpop.f32.mrb[0].mxu0
        %2577 = vmatprep.mubr.bf16.mxu0 0
        %2578 = vmatmul.mubr.bf16.gmra.mrb[0].mxu0 %v2481
        %v2579 = vpop.f32.mrb[0].mxu0
        %v2580 = vadd.f32 0.0, %v2579
        %v2581 = vpop.f32.mrb[0].mxu0
        %v2582 = vpop.f32.mrb[0].mxu0
        %v2583 = vadd.f32 0.0, %v2582
        %v2584 = vpop.f32.mrb[0].mxu0
        %2585 = vmatprep.mubr.bf16.mxu0 0
        %2586 = vmatmul.mubr.bf16.gmra.mrb[0].mxu0 %v2483
        %v2587 = vpop.f32.mrb[0].mxu0
        %v2588 = vadd.f32 0.0, %v2587
        %v2589 = vpop.f32.mrb[0].mxu0
        %v2590 = vpop.f32.mrb[0].mxu0
        %v2591 = vadd.f32 0.0, %v2590
        %v2592 = vpop.f32.mrb[0].mxu0
        %2593 = vmatprep.mubr.bf16.mxu0 0
        %2594 = vmatmul.mubr.bf16.gmra.mrb[0].mxu0 %v2485
        %v2595 = vpop.f32.mrb[0].mxu0
        %v2596 = vadd.f32 0.0, %v2595
        %v2597 = vpop.f32.mrb[0].mxu0
        %v2598 = vpop.f32.mrb[0].mxu0
        %v2599 = vadd.f32 0.0, %v2598
        %v2600 = vpop.f32.mrb[0].mxu0
        %2601 = vmatprep.mubr.bf16.mxu0 0
        %2602 = vmatmul.mubr.bf16.gmra.mrb[0].mxu0 %v2487
        %v2603 = vpop.f32.mrb[0].mxu0
        %v2604 = vadd.f32 0.0, %v2603
        %v2605 = vpop.f32.mrb[0].mxu0
        %v2606 = vpop.f32.mrb[0].mxu0
        %v2607 = vadd.f32 0.0, %v2606
        %v2608 = vpop.f32.mrb[0].mxu0
        %2609 = vmatprep.mubr.bf16.mxu0 0
        %2610 = vmatmul.mubr.bf16.gmra.mrb[0].mxu0 %v1453
        %v2611 = vpop.f32.mrb[0].mxu0
        %v2612 = vadd.f32 0.0, %v2611
        %v2613 = vpop.f32.mrb[0].mxu0
        %v2614 = vpop.f32.mrb[0].mxu0
        %v2615 = vadd.f32 0.0, %v2614
        %v2616 = vpop.f32.mrb[0].mxu0
        %2617 = vdwg.mxu0
        %v2630 = vunpack.c.l.b16 %v2406
        %v2631 = vunpack.c.l.b16 %v2407
        %v2632 = vunpack.c.l.b16 %v2408
        %v2633 = vunpack.c.l.b16 %v2409
        %v2634 = vunpack.c.l.b16 %v2410
        %v2635 = vunpack.c.l.b16 %v2411
        %v2636 = vunpack.c.l.b16 %v2412
        %v2637 = vunpack.c.l.b16 %v2413
        %v2638 = vunpack.c.l.b16 %v2414
        %v2639 = vunpack.c.l.b16 %v2415
        %v2640 = vunpack.c.l.b16 %v2416
        %v2641 = vunpack.c.l.b16 %v2417
        %v2642 = vpack.c.b16 %v2631, %v2630
        %v2643 = vpack.c.b16 %v2633, %v2632
        %v2644 = vpack.c.b16 %v2635, %v2634
        %v2645 = vpack.c.b16 %v2637, %v2636
        %v2646 = vpack.c.b16 %v2639, %v2638
        %v2647 = vpack.c.b16 %v2641, %v2640
        %v2654 = vsel %vm1430, %v2383, 0
        %2656 = vmatprep.subr.bf16.mxu0 0
        %2657 = vmatpush1.bf16.msra.mxu0 %v2642
        %2658 = vmatprep.subr.bf16.mxu0 0
        %2659 = vmatpush1.bf16.msra.mxu0 %v2643
        %2660 = vmatprep.subr.bf16.mxu0 0
        %2661 = vmatpush1.bf16.msra.mxu0 %v2644
        %2662 = vmatprep.subr.bf16.mxu0 0
        %2663 = vmatpush1.bf16.msra.mxu0 %v2645
        %2664 = vmatprep.subr.bf16.mxu0 0
        %2665 = vmatpush1.bf16.msra.mxu0 %v2646
        %2666 = vmatprep.subr.bf16.mxu0 0
        %2667 = vmatpush1.bf16.msra.mxu0 %v2647
        %2668 = vmatprep.subr.bf16.mxu0 0
        %2669 = vmatpush1.bf16.msra.mxu0 0
        %2670 = vmatprep.subr.bf16.mxu0 0
        %2671 = vmatpush1.bf16.msra.mxu0 0
        %2672 = vmatprep.subr.bf16.mxu0 0
        %2673 = vmatpush1.bf16.msra.mxu0 0
        %2674 = vmatprep.subr.bf16.mxu0 0
        %2675 = vmatpush1.bf16.msra.mxu0 0
        %2676 = vmatprep.subr.bf16.mxu0 0
        %2677 = vmatpush1.bf16.msra.mxu0 0
        %2678 = vmatprep.subr.bf16.mxu0 0
        %2679 = vmatpush1.bf16.msra.mxu0 0
        %2680 = vmatprep.subr.bf16.mxu0 0
        %2681 = vmatpush1.bf16.msra.mxu0 0
        %2682 = vmatprep.subr.bf16.mxu0 0
        %2683 = vmatpush1.bf16.msra.mxu0 0
        %2684 = vmatprep.subr.bf16.mxu0 0
        %2685 = vmatpush1.bf16.msra.mxu0 0
        %2686 = vmatprep.subr.bf16.mxu0 0
        %2687 = vmatpush1.bf16.msra.mxu0 0
        %2688 = vmatprep.mubr.bf16.mxu0 0
        %2689 = vmatmul.mubr.bf16.gmra.mrb[0].mxu0 %v2654
        %v2690 = vpop.f32.mrb[0].mxu0
        %v2691 = vadd.f32 %v2524, %v2690
        %v2692 = vpop.f32.mrb[0].mxu0
        %v2693 = vpop.f32.mrb[0].mxu0
        %v2694 = vadd.f32 %v2527, %v2693
        %v2695 = vpop.f32.mrb[0].mxu0
        %2696 = vmatprep.mubr.bf16.mxu0 0
        %2697 = vmatmul.mubr.bf16.gmra.mrb[0].mxu0 %v2467
        %v2698 = vpop.f32.mrb[0].mxu0
        %v2699 = vadd.f32 %v2532, %v2698
        %v2700 = vpop.f32.mrb[0].mxu0
        %v2701 = vpop.f32.mrb[0].mxu0
        %v2702 = vadd.f32 %v2535, %v2701
        %v2703 = vpop.f32.mrb[0].mxu0
        %2704 = vmatprep.mubr.bf16.mxu0 0
        %2705 = vmatmul.mubr.bf16.gmra.mrb[0].mxu0 %v2469
        %v2706 = vpop.f32.mrb[0].mxu0
        %v2707 = vadd.f32 %v2540, %v2706
        %v2708 = vpop.f32.mrb[0].mxu0
        %v2709 = vpop.f32.mrb[0].mxu0
        %v2710 = vadd.f32 %v2543, %v2709
        %v2711 = vpop.f32.mrb[0].mxu0
        %2712 = vmatprep.mubr.bf16.mxu0 0
        %2713 = vmatmul.mubr.bf16.gmra.mrb[0].mxu0 %v2471
        %v2714 = vpop.f32.mrb[0].mxu0
        %v2715 = vadd.f32 %v2548, %v2714
        %v2716 = vpop.f32.mrb[0].mxu0
        %v2717 = vpop.f32.mrb[0].mxu0
        %v2718 = vadd.f32 %v2551, %v2717
        %v2719 = vpop.f32.mrb[0].mxu0
        %2720 = vmatprep.mubr.bf16.mxu0 0
        %2721 = vmatmul.mubr.bf16.gmra.mrb[0].mxu0 %v2473
        %v2722 = vpop.f32.mrb[0].mxu0
        %v2723 = vadd.f32 %v2556, %v2722
        %v2724 = vpop.f32.mrb[0].mxu0
        %v2725 = vpop.f32.mrb[0].mxu0
        %v2726 = vadd.f32 %v2559, %v2725
        %v2727 = vpop.f32.mrb[0].mxu0
        %2728 = vmatprep.mubr.bf16.mxu0 0
        %2729 = vmatmul.mubr.bf16.gmra.mrb[0].mxu0 %v2475
        %v2730 = vpop.f32.mrb[0].mxu0
        %v2731 = vadd.f32 %v2564, %v2730
        %v2732 = vpop.f32.mrb[0].mxu0
        %v2733 = vpop.f32.mrb[0].mxu0
        %v2734 = vadd.f32 %v2567, %v2733
        %v2735 = vpop.f32.mrb[0].mxu0
        %2736 = vmatprep.mubr.bf16.mxu0 0
        %2737 = vmatmul.mubr.bf16.gmra.mrb[0].mxu0 %v2477
        %v2738 = vpop.f32.mrb[0].mxu0
        %v2739 = vadd.f32 %v2572, %v2738
        %v2740 = vpop.f32.mrb[0].mxu0
        %v2741 = vpop.f32.mrb[0].mxu0
        %v2742 = vadd.f32 %v2575, %v2741
        %v2743 = vpop.f32.mrb[0].mxu0
        %2744 = vmatprep.mubr.bf16.mxu0 0
        %2745 = vmatmul.mubr.bf16.gmra.mrb[0].mxu0 %v2479
        %v2746 = vpop.f32.mrb[0].mxu0
        %v2747 = vadd.f32 %v2580, %v2746
        %v2748 = vpop.f32.mrb[0].mxu0
        %v2749 = vpop.f32.mrb[0].mxu0
        %v2750 = vadd.f32 %v2583, %v2749
        %v2751 = vpop.f32.mrb[0].mxu0
        %2752 = vmatprep.mubr.bf16.mxu0 0
        %2753 = vmatmul.mubr.bf16.gmra.mrb[0].mxu0 %v2481
        %v2754 = vpop.f32.mrb[0].mxu0
        %v2755 = vadd.f32 %v2588, %v2754
        %v2756 = vpop.f32.mrb[0].mxu0
        %v2757 = vpop.f32.mrb[0].mxu0
        %v2758 = vadd.f32 %v2591, %v2757
        %v2759 = vpop.f32.mrb[0].mxu0
        %2760 = vmatprep.mubr.bf16.mxu0 0
        %2761 = vmatmul.mubr.bf16.gmra.mrb[0].mxu0 %v2483
        %v2762 = vpop.f32.mrb[0].mxu0
        %v2763 = vadd.f32 %v2596, %v2762
        %v2764 = vpop.f32.mrb[0].mxu0
        %v2765 = vpop.f32.mrb[0].mxu0
        %v2766 = vadd.f32 %v2599, %v2765
        %v2767 = vpop.f32.mrb[0].mxu0
        %2768 = vmatprep.mubr.bf16.mxu0 0
        %2769 = vmatmul.mubr.bf16.gmra.mrb[0].mxu0 %v2485
        %v2770 = vpop.f32.mrb[0].mxu0
        %v2771 = vadd.f32 %v2604, %v2770
        %v2772 = vpop.f32.mrb[0].mxu0
        %v2773 = vpop.f32.mrb[0].mxu0
        %v2774 = vadd.f32 %v2607, %v2773
        %v2775 = vpop.f32.mrb[0].mxu0
        %2776 = vmatprep.mubr.bf16.mxu0 0
        %2777 = vmatmul.mubr.bf16.gmra.mrb[0].mxu0 %v2487
        %v2778 = vpop.f32.mrb[0].mxu0
        %v2779 = vadd.f32 %v2612, %v2778
        %v2780 = vpop.f32.mrb[0].mxu0
        %v2781 = vpop.f32.mrb[0].mxu0
        %v2782 = vadd.f32 %v2615, %v2781
        %v2783 = vpop.f32.mrb[0].mxu0
        %2784 = vdwg.mxu0
        %s2785 = scalar_lea.vmem %s5, 96
        %v2786 = vld [vmem:[%s2785] sm:$0xf]
        %v2787 = vld [vmem:[%s2785 + $0x4] sm:$0xf]
        %v2788 = vld [vmem:[%s2785 + $0x8] sm:$0xf]
        %v2789 = vld [vmem:[%s2785 + $0xc] sm:$0xf]
        %v2790 = vld [vmem:[%s2785 + $0x10] sm:$0xf]
        %v2791 = vld [vmem:[%s2785 + $0x14] sm:$0xf]
        %v2792 = vld [vmem:[%s2785 + $0x18] sm:$0xf]
        %v2793 = vld [vmem:[%s2785 + $0x1c] sm:$0xf]
        %v2794 = vld [vmem:[%s2785 + $0x20] sm:$0xf]
        %v2795 = vld [vmem:[%s2785 + $0x24] sm:$0xf]
        %v2796 = vld [vmem:[%s2785 + $0x28] sm:$0xf]
        %v2797 = vld [vmem:[%s2785 + $0x2c] sm:$0xf]
        %v2810 = vunpack.c.l.b16 %v2786
        %v2811 = vunpack.c.l.b16 %v2787
        %v2812 = vunpack.c.l.b16 %v2788
        %v2813 = vunpack.c.l.b16 %v2789
        %v2814 = vunpack.c.l.b16 %v2790
        %v2815 = vunpack.c.l.b16 %v2791
        %v2816 = vunpack.c.l.b16 %v2792
        %v2817 = vunpack.c.l.b16 %v2793
        %v2818 = vunpack.c.l.b16 %v2794
        %v2819 = vunpack.c.l.b16 %v2795
        %v2820 = vunpack.c.l.b16 %v2796
        %v2821 = vunpack.c.l.b16 %v2797
        %v2822 = vpack.c.b16 %v2811, %v2810
        %v2823 = vpack.c.b16 %v2813, %v2812
        %v2824 = vpack.c.b16 %v2815, %v2814
        %v2825 = vpack.c.b16 %v2817, %v2816
        %v2826 = vpack.c.b16 %v2819, %v2818
        %v2827 = vpack.c.b16 %v2821, %v2820
        %2834 = vmatprep.subr.bf16.mxu0 0
        %2835 = vmatpush1.bf16.msra.mxu0 %v2822
        %2836 = vmatprep.subr.bf16.mxu0 0
        %2837 = vmatpush1.bf16.msra.mxu0 %v2823
        %2838 = vmatprep.subr.bf16.mxu0 0
        %2839 = vmatpush1.bf16.msra.mxu0 %v2824
        %2840 = vmatprep.subr.bf16.mxu0 0
        %2841 = vmatpush1.bf16.msra.mxu0 %v2825
        %2842 = vmatprep.subr.bf16.mxu0 0
        %2843 = vmatpush1.bf16.msra.mxu0 %v2826
        %2844 = vmatprep.subr.bf16.mxu0 0
        %2845 = vmatpush1.bf16.msra.mxu0 %v2827
        %2846 = vmatprep.subr.bf16.mxu0 0
        %2847 = vmatpush1.bf16.msra.mxu0 0
        %2848 = vmatprep.subr.bf16.mxu0 0
        %2849 = vmatpush1.bf16.msra.mxu0 0
        %2850 = vmatprep.subr.bf16.mxu0 0
        %2851 = vmatpush1.bf16.msra.mxu0 0
        %2852 = vmatprep.subr.bf16.mxu0 0
        %2853 = vmatpush1.bf16.msra.mxu0 0
        %2854 = vmatprep.subr.bf16.mxu0 0
        %2855 = vmatpush1.bf16.msra.mxu0 0
        %2856 = vmatprep.subr.bf16.mxu0 0
        %2857 = vmatpush1.bf16.msra.mxu0 0
        %2858 = vmatprep.subr.bf16.mxu0 0
        %2859 = vmatpush1.bf16.msra.mxu0 0
        %2860 = vmatprep.subr.bf16.mxu0 0
        %2861 = vmatpush1.bf16.msra.mxu0 0
        %2862 = vmatprep.subr.bf16.mxu0 0
        %2863 = vmatpush1.bf16.msra.mxu0 0
        %2864 = vmatprep.subr.bf16.mxu0 0
        %2865 = vmatpush1.bf16.msra.mxu0 0
        %2866 = vmatprep.mubr.bf16.mxu0 0
        %2867 = vmatmul.mubr.bf16.gmra.mrb[0].mxu0 %v2469
        %v2868 = vpop.f32.mrb[0].mxu0
        %v2869 = vadd.f32 0.0, %v2868
        %v2870 = vpop.f32.mrb[0].mxu0
        %v2871 = vpop.f32.mrb[0].mxu0
        %v2872 = vadd.f32 0.0, %v2871
        %v2873 = vpop.f32.mrb[0].mxu0
        %2874 = vmatprep.mubr.bf16.mxu0 0
        %2875 = vmatmul.mubr.bf16.gmra.mrb[0].mxu0 %v2471
        %v2876 = vpop.f32.mrb[0].mxu0
        %v2877 = vadd.f32 0.0, %v2876
        %v2878 = vpop.f32.mrb[0].mxu0
        %v2879 = vpop.f32.mrb[0].mxu0
        %v2880 = vadd.f32 0.0, %v2879
        %v2881 = vpop.f32.mrb[0].mxu0
        %2882 = vmatprep.mubr.bf16.mxu0 0
        %2883 = vmatmul.mubr.bf16.gmra.mrb[0].mxu0 %v2473
        %v2884 = vpop.f32.mrb[0].mxu0
        %v2885 = vadd.f32 0.0, %v2884
        %v2886 = vpop.f32.mrb[0].mxu0
        %v2887 = vpop.f32.mrb[0].mxu0
        %v2888 = vadd.f32 0.0, %v2887
        %v2889 = vpop.f32.mrb[0].mxu0
        %2890 = vmatprep.mubr.bf16.mxu0 0
        %2891 = vmatmul.mubr.bf16.gmra.mrb[0].mxu0 %v2475
        %v2892 = vpop.f32.mrb[0].mxu0
        %v2893 = vadd.f32 0.0, %v2892
        %v2894 = vpop.f32.mrb[0].mxu0
        %v2895 = vpop.f32.mrb[0].mxu0
        %v2896 = vadd.f32 0.0, %v2895
        %v2897 = vpop.f32.mrb[0].mxu0
        %2898 = vmatprep.mubr.bf16.mxu0 0
        %2899 = vmatmul.mubr.bf16.gmra.mrb[0].mxu0 %v2477
        %v2900 = vpop.f32.mrb[0].mxu0
        %v2901 = vadd.f32 0.0, %v2900
        %v2902 = vpop.f32.mrb[0].mxu0
        %v2903 = vpop.f32.mrb[0].mxu0
        %v2904 = vadd.f32 0.0, %v2903
        %v2905 = vpop.f32.mrb[0].mxu0
        %2906 = vmatprep.mubr.bf16.mxu0 0
        %2907 = vmatmul.mubr.bf16.gmra.mrb[0].mxu0 %v2479
        %v2908 = vpop.f32.mrb[0].mxu0
        %v2909 = vadd.f32 0.0, %v2908
        %v2910 = vpop.f32.mrb[0].mxu0
        %v2911 = vpop.f32.mrb[0].mxu0
        %v2912 = vadd.f32 0.0, %v2911
        %v2913 = vpop.f32.mrb[0].mxu0
        %2914 = vmatprep.mubr.bf16.mxu0 0
        %2915 = vmatmul.mubr.bf16.gmra.mrb[0].mxu0 %v2481
        %v2916 = vpop.f32.mrb[0].mxu0
        %v2917 = vadd.f32 0.0, %v2916
        %v2918 = vpop.f32.mrb[0].mxu0
        %v2919 = vpop.f32.mrb[0].mxu0
        %v2920 = vadd.f32 0.0, %v2919
        %v2921 = vpop.f32.mrb[0].mxu0
        %2922 = vmatprep.mubr.bf16.mxu0 0
        %2923 = vmatmul.mubr.bf16.gmra.mrb[0].mxu0 %v2483
        %v2924 = vpop.f32.mrb[0].mxu0
        %v2925 = vadd.f32 0.0, %v2924
        %v2926 = vpop.f32.mrb[0].mxu0
        %v2927 = vpop.f32.mrb[0].mxu0
        %v2928 = vadd.f32 0.0, %v2927
        %v2929 = vpop.f32.mrb[0].mxu0
        %2930 = vmatprep.mubr.bf16.mxu0 0
        %2931 = vmatmul.mubr.bf16.gmra.mrb[0].mxu0 %v2485
        %v2932 = vpop.f32.mrb[0].mxu0
        %v2933 = vadd.f32 0.0, %v2932
        %v2934 = vpop.f32.mrb[0].mxu0
        %v2935 = vpop.f32.mrb[0].mxu0
        %v2936 = vadd.f32 0.0, %v2935
        %v2937 = vpop.f32.mrb[0].mxu0
        %2938 = vmatprep.mubr.bf16.mxu0 0
        %2939 = vmatmul.mubr.bf16.gmra.mrb[0].mxu0 %v2487
        %v2940 = vpop.f32.mrb[0].mxu0
        %v2941 = vadd.f32 0.0, %v2940
        %v2942 = vpop.f32.mrb[0].mxu0
        %v2943 = vpop.f32.mrb[0].mxu0
        %v2944 = vadd.f32 0.0, %v2943
        %v2945 = vpop.f32.mrb[0].mxu0
        %2946 = vmatprep.mubr.bf16.mxu0 0
        %2947 = vmatmul.mubr.bf16.gmra.mrb[0].mxu0 %v1453
        %v2948 = vpop.f32.mrb[0].mxu0
        %v2949 = vadd.f32 0.0, %v2948
        %v2950 = vpop.f32.mrb[0].mxu0
        %v2951 = vpop.f32.mrb[0].mxu0
        %v2952 = vadd.f32 0.0, %v2951
        %v2953 = vpop.f32.mrb[0].mxu0
        %2954 = vmatprep.mubr.bf16.mxu0 0
        %2955 = vmatmul.mubr.bf16.gmra.mrb[0].mxu0 %v1453
        %v2956 = vpop.f32.mrb[0].mxu0
        %v2957 = vadd.f32 0.0, %v2956
        %v2958 = vpop.f32.mrb[0].mxu0
        %v2959 = vpop.f32.mrb[0].mxu0
        %v2960 = vadd.f32 0.0, %v2959
        %v2961 = vpop.f32.mrb[0].mxu0
        %2962 = vdwg.mxu0
        %v2963 = vadd.f32 %v2691, %v2869
        %v2964 = vadd.f32 %v2694, %v2872
        %v2965 = vadd.f32 %v2699, %v2877
        %v2966 = vadd.f32 %v2702, %v2880
        %v2967 = vadd.f32 %v2707, %v2885
        %v2968 = vadd.f32 %v2710, %v2888
        %v2969 = vadd.f32 %v2715, %v2893
        %v2970 = vadd.f32 %v2718, %v2896
        %v2971 = vadd.f32 %v2723, %v2901
        %v2972 = vadd.f32 %v2726, %v2904
        %v2973 = vadd.f32 %v2731, %v2909
        %v2974 = vadd.f32 %v2734, %v2912
        %v2975 = vadd.f32 %v2739, %v2917
        %v2976 = vadd.f32 %v2742, %v2920
        %v2977 = vadd.f32 %v2747, %v2925
        %v2978 = vadd.f32 %v2750, %v2928
        %v2979 = vadd.f32 %v2755, %v2933
        %v2980 = vadd.f32 %v2758, %v2936
        %v2981 = vadd.f32 %v2763, %v2941
        %v2982 = vadd.f32 %v2766, %v2944
        %v2983 = vadd.f32 %v2771, %v2949
        %v2984 = vadd.f32 %v2774, %v2952
        %v2985 = vadd.f32 %v2779, %v2957
        %v2986 = vadd.f32 %v2782, %v2960
        %v2987 = vld [vmem:[%s6] sm:$0x1]
        %v2989 = vlaneseq
        %v2990 = vshrl.u32 %v2989, 7
        %v2991 = vsub.s32 0, %v2990
        %v2992 = vrot.slane %v2987, %v2991
        %v2994 = vadd.f32 %v2963, %v2992
        %v2995 = vadd.f32 %v2964, %v2992
        %v2996 = vadd.f32 %v2965, %v2992
        %v2997 = vadd.f32 %v2966, %v2992
        %v2998 = vadd.f32 %v2967, %v2992
        %v2999 = vadd.f32 %v2968, %v2992
        %v3000 = vadd.f32 %v2969, %v2992
        %v3001 = vadd.f32 %v2970, %v2992
        %v3002 = vadd.f32 %v2971, %v2992
        %v3003 = vadd.f32 %v2972, %v2992
        %v3004 = vadd.f32 %v2973, %v2992
        %v3005 = vadd.f32 %v2974, %v2992
        %v3006 = vadd.f32 %v2975, %v2992
        %v3007 = vadd.f32 %v2976, %v2992
        %v3008 = vadd.f32 %v2977, %v2992
        %v3009 = vadd.f32 %v2978, %v2992
        %v3010 = vadd.f32 %v2979, %v2992
        %v3011 = vadd.f32 %v2980, %v2992
        %v3012 = vadd.f32 %v2981, %v2992
        %v3013 = vadd.f32 %v2982, %v2992
        %v3014 = vadd.f32 %v2983, %v2992
        %v3015 = vadd.f32 %v2984, %v2992
        %v3016 = vadd.f32 %v2985, %v2992
        %v3017 = vadd.f32 %v2986, %v2992
        %vm3018 = vcmp.gt.f32.partialorder %v2994, 0.0
        %vm3019 = vcmp.gt.f32.partialorder %v2995, 0.0
        %vm3020 = vcmp.gt.f32.partialorder %v2996, 0.0
        %vm3021 = vcmp.gt.f32.partialorder %v2997, 0.0
        %vm3022 = vcmp.gt.f32.partialorder %v2998, 0.0
        %vm3023 = vcmp.gt.f32.partialorder %v2999, 0.0
        %vm3024 = vcmp.gt.f32.partialorder %v3000, 0.0
        %vm3025 = vcmp.gt.f32.partialorder %v3001, 0.0
        %vm3026 = vcmp.gt.f32.partialorder %v3002, 0.0
        %vm3027 = vcmp.gt.f32.partialorder %v3003, 0.0
        %vm3028 = vcmp.gt.f32.partialorder %v3004, 0.0
        %vm3029 = vcmp.gt.f32.partialorder %v3005, 0.0
        %vm3030 = vcmp.gt.f32.partialorder %v3006, 0.0
        %vm3031 = vcmp.gt.f32.partialorder %v3007, 0.0
        %vm3032 = vcmp.gt.f32.partialorder %v3008, 0.0
        %vm3033 = vcmp.gt.f32.partialorder %v3009, 0.0
        %vm3034 = vcmp.gt.f32.partialorder %v3010, 0.0
        %vm3035 = vcmp.gt.f32.partialorder %v3011, 0.0
        %vm3036 = vcmp.gt.f32.partialorder %v3012, 0.0
        %vm3037 = vcmp.gt.f32.partialorder %v3013, 0.0
        %vm3038 = vcmp.gt.f32.partialorder %v3014, 0.0
        %vm3039 = vcmp.gt.f32.partialorder %v3015, 0.0
        %vm3040 = vcmp.gt.f32.partialorder %v3016, 0.0
        %vm3041 = vcmp.gt.f32.partialorder %v3017, 0.0
        %v3042 = vmin.f32 %v2994, 0.0
        %v3043 = vmin.f32 %v2995, 0.0
        %v3044 = vmin.f32 %v2996, 0.0
        %v3045 = vmin.f32 %v2997, 0.0
        %v3046 = vmin.f32 %v2998, 0.0
        %v3047 = vmin.f32 %v2999, 0.0
        %v3048 = vmin.f32 %v3000, 0.0
        %v3049 = vmin.f32 %v3001, 0.0
        %v3050 = vmin.f32 %v3002, 0.0
        %v3051 = vmin.f32 %v3003, 0.0
        %v3052 = vmin.f32 %v3004, 0.0
        %v3053 = vmin.f32 %v3005, 0.0
        %v3054 = vmin.f32 %v3006, 0.0
        %v3055 = vmin.f32 %v3007, 0.0
        %v3056 = vmin.f32 %v3008, 0.0
        %v3057 = vmin.f32 %v3009, 0.0
        %v3058 = vmin.f32 %v3010, 0.0
        %v3059 = vmin.f32 %v3011, 0.0
        %v3060 = vmin.f32 %v3012, 0.0
        %v3061 = vmin.f32 %v3013, 0.0
        %v3062 = vmin.f32 %v3014, 0.0
        %v3063 = vmin.f32 %v3015, 0.0
        %v3064 = vmin.f32 %v3016, 0.0
        %v3065 = vmin.f32 %v3017, 0.0
        %v3066 = vmul.f32 %v3042, 1.442695
        %v3067 = vpow.pop %v3066
        %v3068 = vmul.f32 %v3043, 1.442695
        %v3069 = vpow.pop %v3068
        %v3070 = vmul.f32 %v3044, 1.442695
        %v3071 = vpow.pop %v3070
        %v3072 = vmul.f32 %v3045, 1.442695
        %v3073 = vpow.pop %v3072
        %v3074 = vmul.f32 %v3046, 1.442695
        %v3075 = vpow.pop %v3074
        %v3076 = vmul.f32 %v3047, 1.442695
        %v3077 = vpow.pop %v3076
        %v3078 = vmul.f32 %v3048, 1.442695
        %v3079 = vpow.pop %v3078
        %v3080 = vmul.f32 %v3049, 1.442695
        %v3081 = vpow.pop %v3080
        %v3082 = vmul.f32 %v3050, 1.442695
        %v3083 = vpow.pop %v3082
        %v3084 = vmul.f32 %v3051, 1.442695
        %v3085 = vpow.pop %v3084
        %v3086 = vmul.f32 %v3052, 1.442695
        %v3087 = vpow.pop %v3086
        %v3088 = vmul.f32 %v3053, 1.442695
        %v3089 = vpow.pop %v3088
        %v3090 = vmul.f32 %v3054, 1.442695
        %v3091 = vpow.pop %v3090
        %v3092 = vmul.f32 %v3055, 1.442695
        %v3093 = vpow.pop %v3092
        %v3094 = vmul.f32 %v3056, 1.442695
        %v3095 = vpow.pop %v3094
        %v3096 = vmul.f32 %v3057, 1.442695
        %v3097 = vpow.pop %v3096
        %v3098 = vmul.f32 %v3058, 1.442695
        %v3099 = vpow.pop %v3098
        %v3100 = vmul.f32 %v3059, 1.442695
        %v3101 = vpow.pop %v3100
        %v3102 = vmul.f32 %v3060, 1.442695
        %v3103 = vpow.pop %v3102
        %v3104 = vmul.f32 %v3061, 1.442695
        %v3105 = vpow.pop %v3104
        %v3106 = vmul.f32 %v3062, 1.442695
        %v3107 = vpow.pop %v3106
        %v3108 = vmul.f32 %v3063, 1.442695
        %v3109 = vpow.pop %v3108
        %v3110 = vmul.f32 %v3064, 1.442695
        %v3111 = vpow.pop %v3110
        %v3112 = vmul.f32 %v3065, 1.442695
        %v3113 = vpow.pop %v3112
        %v3114 = vsub.f32 %v3067, 1.0
        %v3115 = vsub.f32 %v3069, 1.0
        %v3116 = vsub.f32 %v3071, 1.0
        %v3117 = vsub.f32 %v3073, 1.0
        %v3118 = vsub.f32 %v3075, 1.0
        %v3119 = vsub.f32 %v3077, 1.0
        %v3120 = vsub.f32 %v3079, 1.0
        %v3121 = vsub.f32 %v3081, 1.0
        %v3122 = vsub.f32 %v3083, 1.0
        %v3123 = vsub.f32 %v3085, 1.0
        %v3124 = vsub.f32 %v3087, 1.0
        %v3125 = vsub.f32 %v3089, 1.0
        %v3126 = vsub.f32 %v3091, 1.0
        %v3127 = vsub.f32 %v3093, 1.0
        %v3128 = vsub.f32 %v3095, 1.0
        %v3129 = vsub.f32 %v3097, 1.0
        %v3130 = vsub.f32 %v3099, 1.0
        %v3131 = vsub.f32 %v3101, 1.0
        %v3132 = vsub.f32 %v3103, 1.0
        %v3133 = vsub.f32 %v3105, 1.0
        %v3134 = vsub.f32 %v3107, 1.0
        %v3135 = vsub.f32 %v3109, 1.0
        %v3136 = vsub.f32 %v3111, 1.0
        %v3137 = vsub.f32 %v3113, 1.0
        %v3138 = vsel %vm3018, %v2994, %v3114
        %v3139 = vsel %vm3019, %v2995, %v3115
        %v3140 = vsel %vm3020, %v2996, %v3116
        %v3141 = vsel %vm3021, %v2997, %v3117
        %v3142 = vsel %vm3022, %v2998, %v3118
        %v3143 = vsel %vm3023, %v2999, %v3119
        %v3144 = vsel %vm3024, %v3000, %v3120
        %v3145 = vsel %vm3025, %v3001, %v3121
        %v3146 = vsel %vm3026, %v3002, %v3122
        %v3147 = vsel %vm3027, %v3003, %v3123
        %v3148 = vsel %vm3028, %v3004, %v3124
        %v3149 = vsel %vm3029, %v3005, %v3125
        %v3150 = vsel %vm3030, %v3006, %v3126
        %v3151 = vsel %vm3031, %v3007, %v3127
        %v3152 = vsel %vm3032, %v3008, %v3128
        %v3153 = vsel %vm3033, %v3009, %v3129
        %v3154 = vsel %vm3034, %v3010, %v3130
        %v3155 = vsel %vm3035, %v3011, %v3131
        %v3156 = vsel %vm3036, %v3012, %v3132
        %v3157 = vsel %vm3037, %v3013, %v3133
        %v3158 = vsel %vm3038, %v3014, %v3134
        %v3159 = vsel %vm3039, %v3015, %v3135
        %v3160 = vsel %vm3040, %v3016, %v3136
        %v3161 = vsel %vm3041, %v3017, %v3137
        %v3162 = vpack.c.bf16 %v3139, %v3138
        %v3163 = vpack.c.bf16 %v3141, %v3140
        %v3164 = vpack.c.bf16 %v3143, %v3142
        %v3165 = vpack.c.bf16 %v3145, %v3144
        %v3166 = vpack.c.bf16 %v3147, %v3146
        %v3167 = vpack.c.bf16 %v3149, %v3148
        %v3168 = vpack.c.bf16 %v3151, %v3150
        %v3169 = vpack.c.bf16 %v3153, %v3152
        %v3170 = vpack.c.bf16 %v3155, %v3154
        %v3171 = vpack.c.bf16 %v3157, %v3156
        %v3172 = vpack.c.bf16 %v3159, %v3158
        %v3173 = vpack.c.bf16 %v3161, %v3160
        %v3174 = vld [vmem:[%s7] sm:$0xf]
        %v3175 = vld [vmem:[%s7 + $0x4] sm:$0xf]
        %v3176 = vld [vmem:[%s7 + $0x8] sm:$0xf]
        %v3177 = vld [vmem:[%s7 + $0xc] sm:$0xf]
        %v3178 = vld [vmem:[%s7 + $0x10] sm:$0xf]
        %v3179 = vld [vmem:[%s7 + $0x14] sm:$0xf]
        %v3180 = vld [vmem:[%s7 + $0x18] sm:$0xf]
        %v3181 = vld [vmem:[%s7 + $0x1c] sm:$0xf]
        %v3182 = vld [vmem:[%s8] sm:$0x1]
        %v3184 = vlaneseq
        %v3185 = vshrl.u32 %v3184, 7
        %v3186 = vsub.s32 0, %v3185
        %v3187 = vrot.slane %v3182, %v3186
        %v3197 = vunpack.c.l.b16 %v3174
        %v3198 = vunpack.c.l.b16 %v3175
        %v3199 = vunpack.c.l.b16 %v3176
        %v3200 = vunpack.c.l.b16 %v3177
        %v3201 = vunpack.c.l.b16 %v3178
        %v3202 = vunpack.c.l.b16 %v3179
        %v3203 = vunpack.c.l.b16 %v3180
        %v3204 = vunpack.c.l.b16 %v3181
        %v3205 = vpack.c.b16 %v3198, %v3197
        %v3206 = vpack.c.b16 %v3200, %v3199
        %v3207 = vpack.c.b16 %v3202, %v3201
        %v3208 = vpack.c.b16 %v3204, %v3203
        %v3214 = vsel %vm1331, %v3162, 0
        %v3217 = vsel %vm1331, %v3163, 0
        %v3220 = vsel %vm1331, %v3164, 0
        %v3223 = vsel %vm1331, %v3165, 0
        %v3226 = vsel %vm1331, %v3166, 0
        %v3229 = vsel %vm1331, %v3167, 0
        %v3232 = vsel %vm1331, %v3168, 0
        %v3235 = vsel %vm1331, %v3169, 0
        %v3238 = vsel %vm1331, %v3170, 0
        %v3241 = vsel %vm1331, %v3171, 0
        %v3244 = vsel %vm1331, %v3172, 0
        %v3247 = vsel %vm1331, %v3173, 0
        %3249 = vmatprep.subr.bf16.mxu0 0
        %3250 = vmatpush1.bf16.msra.mxu0 %v3205
        %3251 = vmatprep.subr.bf16.mxu0 0
        %3252 = vmatpush1.bf16.msra.mxu0 %v3206
        %3253 = vmatprep.subr.bf16.mxu0 0
        %3254 = vmatpush1.bf16.msra.mxu0 %v3207
        %3255 = vmatprep.subr.bf16.mxu0 0
        %3256 = vmatpush1.bf16.msra.mxu0 %v3208
        %3257 = vmatprep.subr.bf16.mxu0 0
        %3258 = vmatpush1.bf16.msra.mxu0 0
        %3259 = vmatprep.subr.bf16.mxu0 0
        %3260 = vmatpush1.bf16.msra.mxu0 0
        %3261 = vmatprep.subr.bf16.mxu0 0
        %3262 = vmatpush1.bf16.msra.mxu0 0
        %3263 = vmatprep.subr.bf16.mxu0 0
        %3264 = vmatpush1.bf16.msra.mxu0 0
        %3265 = vmatprep.subr.bf16.mxu0 0
        %3266 = vmatpush1.bf16.msra.mxu0 0
        %3267 = vmatprep.subr.bf16.mxu0 0
        %3268 = vmatpush1.bf16.msra.mxu0 0
        %3269 = vmatprep.subr.bf16.mxu0 0
        %3270 = vmatpush1.bf16.msra.mxu0 0
        %3271 = vmatprep.subr.bf16.mxu0 0
        %3272 = vmatpush1.bf16.msra.mxu0 0
        %3273 = vmatprep.subr.bf16.mxu0 0
        %3274 = vmatpush1.bf16.msra.mxu0 0
        %3275 = vmatprep.subr.bf16.mxu0 0
        %3276 = vmatpush1.bf16.msra.mxu0 0
        %3277 = vmatprep.subr.bf16.mxu0 0
        %3278 = vmatpush1.bf16.msra.mxu0 0
        %3279 = vmatprep.subr.bf16.mxu0 0
        %3280 = vmatpush1.bf16.msra.mxu0 0
        %3281 = vmatprep.mubr.bf16.mxu0 0
        %3282 = vmatmul.mubr.bf16.gmra.mrb[0].mxu0 %v3214
        %v3283 = vpop.f32.mrb[0].mxu0
        %v3284 = vadd.f32 %v3187, %v3283
        %v3285 = vpop.f32.mrb[0].mxu0
        %v3286 = vpop.f32.mrb[0].mxu0
        %v3287 = vadd.f32 %v3187, %v3286
        %v3288 = vpop.f32.mrb[0].mxu0
        %3289 = vmatprep.mubr.bf16.mxu0 0
        %3290 = vmatmul.mubr.bf16.gmra.mrb[0].mxu0 %v3217
        %v3291 = vpop.f32.mrb[0].mxu0
        %v3292 = vadd.f32 %v3187, %v3291
        %v3293 = vpop.f32.mrb[0].mxu0
        %v3294 = vpop.f32.mrb[0].mxu0
        %v3295 = vadd.f32 %v3187, %v3294
        %v3296 = vpop.f32.mrb[0].mxu0
        %3297 = vmatprep.mubr.bf16.mxu0 0
        %3298 = vmatmul.mubr.bf16.gmra.mrb[0].mxu0 %v3220
        %v3299 = vpop.f32.mrb[0].mxu0
        %v3300 = vadd.f32 %v3187, %v3299
        %v3301 = vpop.f32.mrb[0].mxu0
        %v3302 = vpop.f32.mrb[0].mxu0
        %v3303 = vadd.f32 %v3187, %v3302
        %v3304 = vpop.f32.mrb[0].mxu0
        %3305 = vmatprep.mubr.bf16.mxu0 0
        %3306 = vmatmul.mubr.bf16.gmra.mrb[0].mxu0 %v3223
        %v3307 = vpop.f32.mrb[0].mxu0
        %v3308 = vadd.f32 %v3187, %v3307
        %v3309 = vpop.f32.mrb[0].mxu0
        %v3310 = vpop.f32.mrb[0].mxu0
        %v3311 = vadd.f32 %v3187, %v3310
        %v3312 = vpop.f32.mrb[0].mxu0
        %3313 = vmatprep.mubr.bf16.mxu0 0
        %3314 = vmatmul.mubr.bf16.gmra.mrb[0].mxu0 %v3226
        %v3315 = vpop.f32.mrb[0].mxu0
        %v3316 = vadd.f32 %v3187, %v3315
        %v3317 = vpop.f32.mrb[0].mxu0
        %v3318 = vpop.f32.mrb[0].mxu0
        %v3319 = vadd.f32 %v3187, %v3318
        %v3320 = vpop.f32.mrb[0].mxu0
        %3321 = vmatprep.mubr.bf16.mxu0 0
        %3322 = vmatmul.mubr.bf16.gmra.mrb[0].mxu0 %v3229
        %v3323 = vpop.f32.mrb[0].mxu0
        %v3324 = vadd.f32 %v3187, %v3323
        %v3325 = vpop.f32.mrb[0].mxu0
        %v3326 = vpop.f32.mrb[0].mxu0
        %v3327 = vadd.f32 %v3187, %v3326
        %v3328 = vpop.f32.mrb[0].mxu0
        %3329 = vmatprep.mubr.bf16.mxu0 0
        %3330 = vmatmul.mubr.bf16.gmra.mrb[0].mxu0 %v3232
        %v3331 = vpop.f32.mrb[0].mxu0
        %v3332 = vadd.f32 %v3187, %v3331
        %v3333 = vpop.f32.mrb[0].mxu0
        %v3334 = vpop.f32.mrb[0].mxu0
        %v3335 = vadd.f32 %v3187, %v3334
        %v3336 = vpop.f32.mrb[0].mxu0
        %3337 = vmatprep.mubr.bf16.mxu0 0
        %3338 = vmatmul.mubr.bf16.gmra.mrb[0].mxu0 %v3235
        %v3339 = vpop.f32.mrb[0].mxu0
        %v3340 = vadd.f32 %v3187, %v3339
        %v3341 = vpop.f32.mrb[0].mxu0
        %v3342 = vpop.f32.mrb[0].mxu0
        %v3343 = vadd.f32 %v3187, %v3342
        %v3344 = vpop.f32.mrb[0].mxu0
        %3345 = vmatprep.mubr.bf16.mxu0 0
        %3346 = vmatmul.mubr.bf16.gmra.mrb[0].mxu0 %v3238
        %v3347 = vpop.f32.mrb[0].mxu0
        %v3348 = vadd.f32 %v3187, %v3347
        %v3349 = vpop.f32.mrb[0].mxu0
        %v3350 = vpop.f32.mrb[0].mxu0
        %v3351 = vadd.f32 %v3187, %v3350
        %v3352 = vpop.f32.mrb[0].mxu0
        %3353 = vmatprep.mubr.bf16.mxu0 0
        %3354 = vmatmul.mubr.bf16.gmra.mrb[0].mxu0 %v3241
        %v3355 = vpop.f32.mrb[0].mxu0
        %v3356 = vadd.f32 %v3187, %v3355
        %v3357 = vpop.f32.mrb[0].mxu0
        %v3358 = vpop.f32.mrb[0].mxu0
        %v3359 = vadd.f32 %v3187, %v3358
        %v3360 = vpop.f32.mrb[0].mxu0
        %3361 = vmatprep.mubr.bf16.mxu0 0
        %3362 = vmatmul.mubr.bf16.gmra.mrb[0].mxu0 %v3244
        %v3363 = vpop.f32.mrb[0].mxu0
        %v3364 = vadd.f32 %v3187, %v3363
        %v3365 = vpop.f32.mrb[0].mxu0
        %v3366 = vpop.f32.mrb[0].mxu0
        %v3367 = vadd.f32 %v3187, %v3366
        %v3368 = vpop.f32.mrb[0].mxu0
        %3369 = vmatprep.mubr.bf16.mxu0 0
        %3370 = vmatmul.mubr.bf16.gmra.mrb[0].mxu0 %v3247
        %v3371 = vpop.f32.mrb[0].mxu0
        %v3372 = vadd.f32 %v3187, %v3371
        %v3373 = vpop.f32.mrb[0].mxu0
        %v3374 = vpop.f32.mrb[0].mxu0
        %v3375 = vadd.f32 %v3187, %v3374
        %v3376 = vpop.f32.mrb[0].mxu0
        %3377 = vdwg.mxu0
        %vm3378 = vcmp.gt.f32.partialorder %v3284, 0.0
        %vm3379 = vcmp.gt.f32.partialorder %v3287, 0.0
        %vm3380 = vcmp.gt.f32.partialorder %v3292, 0.0
        %vm3381 = vcmp.gt.f32.partialorder %v3295, 0.0
        %vm3382 = vcmp.gt.f32.partialorder %v3300, 0.0
        %vm3383 = vcmp.gt.f32.partialorder %v3303, 0.0
        %vm3384 = vcmp.gt.f32.partialorder %v3308, 0.0
        %vm3385 = vcmp.gt.f32.partialorder %v3311, 0.0
        %vm3386 = vcmp.gt.f32.partialorder %v3316, 0.0
        %vm3387 = vcmp.gt.f32.partialorder %v3319, 0.0
        %vm3388 = vcmp.gt.f32.partialorder %v3324, 0.0
        %vm3389 = vcmp.gt.f32.partialorder %v3327, 0.0
        %vm3390 = vcmp.gt.f32.partialorder %v3332, 0.0
        %vm3391 = vcmp.gt.f32.partialorder %v3335, 0.0
        %vm3392 = vcmp.gt.f32.partialorder %v3340, 0.0
        %vm3393 = vcmp.gt.f32.partialorder %v3343, 0.0
        %vm3394 = vcmp.gt.f32.partialorder %v3348, 0.0
        %vm3395 = vcmp.gt.f32.partialorder %v3351, 0.0
        %vm3396 = vcmp.gt.f32.partialorder %v3356, 0.0
        %vm3397 = vcmp.gt.f32.partialorder %v3359, 0.0
        %vm3398 = vcmp.gt.f32.partialorder %v3364, 0.0
        %vm3399 = vcmp.gt.f32.partialorder %v3367, 0.0
        %vm3400 = vcmp.gt.f32.partialorder %v3372, 0.0
        %vm3401 = vcmp.gt.f32.partialorder %v3375, 0.0
        %v3402 = vmin.f32 %v3284, 0.0
        %v3403 = vmin.f32 %v3287, 0.0
        %v3404 = vmin.f32 %v3292, 0.0
        %v3405 = vmin.f32 %v3295, 0.0
        %v3406 = vmin.f32 %v3300, 0.0
        %v3407 = vmin.f32 %v3303, 0.0
        %v3408 = vmin.f32 %v3308, 0.0
        %v3409 = vmin.f32 %v3311, 0.0
        %v3410 = vmin.f32 %v3316, 0.0
        %v3411 = vmin.f32 %v3319, 0.0
        %v3412 = vmin.f32 %v3324, 0.0
        %v3413 = vmin.f32 %v3327, 0.0
        %v3414 = vmin.f32 %v3332, 0.0
        %v3415 = vmin.f32 %v3335, 0.0
        %v3416 = vmin.f32 %v3340, 0.0
        %v3417 = vmin.f32 %v3343, 0.0
        %v3418 = vmin.f32 %v3348, 0.0
        %v3419 = vmin.f32 %v3351, 0.0
        %v3420 = vmin.f32 %v3356, 0.0
        %v3421 = vmin.f32 %v3359, 0.0
        %v3422 = vmin.f32 %v3364, 0.0
        %v3423 = vmin.f32 %v3367, 0.0
        %v3424 = vmin.f32 %v3372, 0.0
        %v3425 = vmin.f32 %v3375, 0.0
        %v3426 = vmul.f32 %v3402, 1.442695
        %v3427 = vpow.pop %v3426
        %v3428 = vmul.f32 %v3403, 1.442695
        %v3429 = vpow.pop %v3428
        %v3430 = vmul.f32 %v3404, 1.442695
        %v3431 = vpow.pop %v3430
        %v3432 = vmul.f32 %v3405, 1.442695
        %v3433 = vpow.pop %v3432
        %v3434 = vmul.f32 %v3406, 1.442695
        %v3435 = vpow.pop %v3434
        %v3436 = vmul.f32 %v3407, 1.442695
        %v3437 = vpow.pop %v3436
        %v3438 = vmul.f32 %v3408, 1.442695
        %v3439 = vpow.pop %v3438
        %v3440 = vmul.f32 %v3409, 1.442695
        %v3441 = vpow.pop %v3440
        %v3442 = vmul.f32 %v3410, 1.442695
        %v3443 = vpow.pop %v3442
        %v3444 = vmul.f32 %v3411, 1.442695
        %v3445 = vpow.pop %v3444
        %v3446 = vmul.f32 %v3412, 1.442695
        %v3447 = vpow.pop %v3446
        %v3448 = vmul.f32 %v3413, 1.442695
        %v3449 = vpow.pop %v3448
        %v3450 = vmul.f32 %v3414, 1.442695
        %v3451 = vpow.pop %v3450
        %v3452 = vmul.f32 %v3415, 1.442695
        %v3453 = vpow.pop %v3452
        %v3454 = vmul.f32 %v3416, 1.442695
        %v3455 = vpow.pop %v3454
        %v3456 = vmul.f32 %v3417, 1.442695
        %v3457 = vpow.pop %v3456
        %v3458 = vmul.f32 %v3418, 1.442695
        %v3459 = vpow.pop %v3458
        %v3460 = vmul.f32 %v3419, 1.442695
        %v3461 = vpow.pop %v3460
        %v3462 = vmul.f32 %v3420, 1.442695
        %v3463 = vpow.pop %v3462
        %v3464 = vmul.f32 %v3421, 1.442695
        %v3465 = vpow.pop %v3464
        %v3466 = vmul.f32 %v3422, 1.442695
        %v3467 = vpow.pop %v3466
        %v3468 = vmul.f32 %v3423, 1.442695
        %v3469 = vpow.pop %v3468
        %v3470 = vmul.f32 %v3424, 1.442695
        %v3471 = vpow.pop %v3470
        %v3472 = vmul.f32 %v3425, 1.442695
        %v3473 = vpow.pop %v3472
        %v3474 = vsub.f32 %v3427, 1.0
        %v3475 = vsub.f32 %v3429, 1.0
        %v3476 = vsub.f32 %v3431, 1.0
        %v3477 = vsub.f32 %v3433, 1.0
        %v3478 = vsub.f32 %v3435, 1.0
        %v3479 = vsub.f32 %v3437, 1.0
        %v3480 = vsub.f32 %v3439, 1.0
        %v3481 = vsub.f32 %v3441, 1.0
        %v3482 = vsub.f32 %v3443, 1.0
        %v3483 = vsub.f32 %v3445, 1.0
        %v3484 = vsub.f32 %v3447, 1.0
        %v3485 = vsub.f32 %v3449, 1.0
        %v3486 = vsub.f32 %v3451, 1.0
        %v3487 = vsub.f32 %v3453, 1.0
        %v3488 = vsub.f32 %v3455, 1.0
        %v3489 = vsub.f32 %v3457, 1.0
        %v3490 = vsub.f32 %v3459, 1.0
        %v3491 = vsub.f32 %v3461, 1.0
        %v3492 = vsub.f32 %v3463, 1.0
        %v3493 = vsub.f32 %v3465, 1.0
        %v3494 = vsub.f32 %v3467, 1.0
        %v3495 = vsub.f32 %v3469, 1.0
        %v3496 = vsub.f32 %v3471, 1.0
        %v3497 = vsub.f32 %v3473, 1.0
        %v3498 = vsel %vm3378, %v3284, %v3474
        %v3499 = vsel %vm3379, %v3287, %v3475
        %v3500 = vsel %vm3380, %v3292, %v3476
        %v3501 = vsel %vm3381, %v3295, %v3477
        %v3502 = vsel %vm3382, %v3300, %v3478
        %v3503 = vsel %vm3383, %v3303, %v3479
        %v3504 = vsel %vm3384, %v3308, %v3480
        %v3505 = vsel %vm3385, %v3311, %v3481
        %v3506 = vsel %vm3386, %v3316, %v3482
        %v3507 = vsel %vm3387, %v3319, %v3483
        %v3508 = vsel %vm3388, %v3324, %v3484
        %v3509 = vsel %vm3389, %v3327, %v3485
        %v3510 = vsel %vm3390, %v3332, %v3486
        %v3511 = vsel %vm3391, %v3335, %v3487
        %v3512 = vsel %vm3392, %v3340, %v3488
        %v3513 = vsel %vm3393, %v3343, %v3489
        %v3514 = vsel %vm3394, %v3348, %v3490
        %v3515 = vsel %vm3395, %v3351, %v3491
        %v3516 = vsel %vm3396, %v3356, %v3492
        %v3517 = vsel %vm3397, %v3359, %v3493
        %v3518 = vsel %vm3398, %v3364, %v3494
        %v3519 = vsel %vm3399, %v3367, %v3495
        %v3520 = vsel %vm3400, %v3372, %v3496
        %v3521 = vsel %vm3401, %v3375, %v3497
        %v3522 = vpack.c.bf16 %v3499, %v3498
        %v3523 = vpack.c.bf16 %v3501, %v3500
        %v3524 = vpack.c.bf16 %v3503, %v3502
        %v3525 = vpack.c.bf16 %v3505, %v3504
        %v3526 = vpack.c.bf16 %v3507, %v3506
        %v3527 = vpack.c.bf16 %v3509, %v3508
        %v3528 = vpack.c.bf16 %v3511, %v3510
        %v3529 = vpack.c.bf16 %v3513, %v3512
        %v3530 = vpack.c.bf16 %v3515, %v3514
        %v3531 = vpack.c.bf16 %v3517, %v3516
        %v3532 = vpack.c.bf16 %v3519, %v3518
        %v3533 = vpack.c.bf16 %v3521, %v3520
        %v3535 = vshrl.u32 %v3522, 16
        %v3537 = vshll.u32 %v3522, 16
        %v3539 = vrot.slane %v3537, 1
        %v3540 = vor.u32 %v3535, %v3539
        %v3542 = vshll.u32 %v3523, 16
        %v3544 = vrot.slane %v3542, 1
        %v3545 = vsel %vm1118, %v3540, %v3544
        %v3546 = vshrl.u32 %v3523, 16
        %v3548 = vor.u32 %v3546, %v3544
        %v3550 = vshll.u32 %v3524, 16
        %v3552 = vrot.slane %v3550, 1
        %v3553 = vsel %vm1118, %v3548, %v3552
        %v3554 = vshrl.u32 %v3524, 16
        %v3556 = vor.u32 %v3554, %v3552
        %v3558 = vshll.u32 %v3525, 16
        %v3560 = vrot.slane %v3558, 1
        %v3561 = vsel %vm1118, %v3556, %v3560
        %v3562 = vshrl.u32 %v3525, 16
        %v3564 = vor.u32 %v3562, %v3560
        %v3566 = vshll.u32 %v3526, 16
        %v3568 = vrot.slane %v3566, 1
        %v3569 = vsel %vm1118, %v3564, %v3568
        %v3570 = vshrl.u32 %v3526, 16
        %v3572 = vor.u32 %v3570, %v3568
        %v3574 = vshll.u32 %v3527, 16
        %v3576 = vrot.slane %v3574, 1
        %v3577 = vsel %vm1118, %v3572, %v3576
        %v3578 = vshrl.u32 %v3527, 16
        %v3580 = vor.u32 %v3578, %v3576
        %v3582 = vshll.u32 %v3528, 16
        %v3584 = vrot.slane %v3582, 1
        %v3585 = vsel %vm1118, %v3580, %v3584
        %v3586 = vshrl.u32 %v3528, 16
        %v3588 = vor.u32 %v3586, %v3584
        %v3590 = vshll.u32 %v3529, 16
        %v3592 = vrot.slane %v3590, 1
        %v3593 = vsel %vm1118, %v3588, %v3592
        %v3594 = vshrl.u32 %v3529, 16
        %v3596 = vor.u32 %v3594, %v3592
        %v3598 = vshll.u32 %v3530, 16
        %v3600 = vrot.slane %v3598, 1
        %v3601 = vsel %vm1118, %v3596, %v3600
        %v3602 = vshrl.u32 %v3530, 16
        %v3604 = vor.u32 %v3602, %v3600
        %v3606 = vshll.u32 %v3531, 16
        %v3608 = vrot.slane %v3606, 1
        %v3609 = vsel %vm1118, %v3604, %v3608
        %v3610 = vshrl.u32 %v3531, 16
        %v3612 = vor.u32 %v3610, %v3608
        %v3614 = vshll.u32 %v3532, 16
        %v3616 = vrot.slane %v3614, 1
        %v3617 = vsel %vm1118, %v3612, %v3616
        %v3618 = vshrl.u32 %v3532, 16
        %v3620 = vor.u32 %v3618, %v3616
        %v3622 = vshll.u32 %v3533, 16
        %v3624 = vrot.slane %v3622, 1
        %v3625 = vsel %vm1118, %v3620, %v3624
        %v3626 = vshrl.u32 %v3533, 16
        %v3628 = vor.u32 %v3626, %v3624
        %v3629 = vsel %vm1118, %v3628, %v1217
        %3630 = vrot.lane.b32.xlu0 %v3545, 80
        %v3631 = vpop.permute.xlu0 %3630
        %3632 = vrot.lane.b32.xlu0 %v3553, 80
        %v3633 = vpop.permute.xlu0 %3632
        %3634 = vrot.lane.b32.xlu0 %v3561, 80
        %v3635 = vpop.permute.xlu0 %3634
        %3636 = vrot.lane.b32.xlu0 %v3569, 80
        %v3637 = vpop.permute.xlu0 %3636
        %3638 = vrot.lane.b32.xlu0 %v3577, 80
        %v3639 = vpop.permute.xlu0 %3638
        %3640 = vrot.lane.b32.xlu0 %v3585, 80
        %v3641 = vpop.permute.xlu0 %3640
        %3642 = vrot.lane.b32.xlu0 %v3593, 80
        %v3643 = vpop.permute.xlu0 %3642
        %3644 = vrot.lane.b32.xlu0 %v3601, 80
        %v3645 = vpop.permute.xlu0 %3644
        %3646 = vrot.lane.b32.xlu0 %v3609, 80
        %v3647 = vpop.permute.xlu0 %3646
        %3648 = vrot.lane.b32.xlu0 %v3617, 80
        %v3649 = vpop.permute.xlu0 %3648
        %3650 = vrot.lane.b32.xlu0 %v3625, 80
        %v3651 = vpop.permute.xlu0 %3650
        %3652 = vrot.lane.b32.xlu0 %v3629, 80
        %v3653 = vpop.permute.xlu0 %3652
        %v3666 = vrot.slane %v3522, 1
        %v3667 = vrot.slane %v3523, 1
        %v3668 = vsel %vm1256, %v3666, %v3667
        %v3669 = vrot.slane %v3524, 1
        %v3670 = vsel %vm1256, %v3667, %v3669
        %v3671 = vrot.slane %v3525, 1
        %v3672 = vsel %vm1256, %v3669, %v3671
        %v3673 = vrot.slane %v3526, 1
        %v3674 = vsel %vm1256, %v3671, %v3673
        %v3675 = vrot.slane %v3527, 1
        %v3676 = vsel %vm1256, %v3673, %v3675
        %v3677 = vrot.slane %v3528, 1
        %v3678 = vsel %vm1256, %v3675, %v3677
        %v3679 = vrot.slane %v3529, 1
        %v3680 = vsel %vm1256, %v3677, %v3679
        %v3681 = vrot.slane %v3530, 1
        %v3682 = vsel %vm1256, %v3679, %v3681
        %v3683 = vrot.slane %v3531, 1
        %v3684 = vsel %vm1256, %v3681, %v3683
        %v3685 = vrot.slane %v3532, 1
        %v3686 = vsel %vm1256, %v3683, %v3685
        %v3687 = vrot.slane %v3533, 1
        %v3688 = vsel %vm1256, %v3685, %v3687
        %v3689 = vsel %vm1256, %v3687, %v1280
        %3690 = vrot.lane.b32.xlu0 %v3668, 32
        %v3691 = vpop.permute.xlu0 %3690
        %3692 = vrot.lane.b32.xlu0 %v3670, 32
        %v3693 = vpop.permute.xlu0 %3692
        %3694 = vrot.lane.b32.xlu0 %v3672, 32
        %v3695 = vpop.permute.xlu0 %3694
        %3696 = vrot.lane.b32.xlu0 %v3674, 32
        %v3697 = vpop.permute.xlu0 %3696
        %3698 = vrot.lane.b32.xlu0 %v3676, 32
        %v3699 = vpop.permute.xlu0 %3698
        %3700 = vrot.lane.b32.xlu0 %v3678, 32
        %v3701 = vpop.permute.xlu0 %3700
        %3702 = vrot.lane.b32.xlu0 %v3680, 32
        %v3703 = vpop.permute.xlu0 %3702
        %3704 = vrot.lane.b32.xlu0 %v3682, 32
        %v3705 = vpop.permute.xlu0 %3704
        %3706 = vrot.lane.b32.xlu0 %v3684, 32
        %v3707 = vpop.permute.xlu0 %3706
        %3708 = vrot.lane.b32.xlu0 %v3686, 32
        %v3709 = vpop.permute.xlu0 %3708
        %3710 = vrot.lane.b32.xlu0 %v3688, 32
        %v3711 = vpop.permute.xlu0 %3710
        %3712 = vrot.lane.b32.xlu0 %v3689, 32
        %v3713 = vpop.permute.xlu0 %3712
        %vm3714 = vcmask 654336
        %v3716 = vsel %vm3714, %v3522, %v3631
        %v3719 = vsel %vm3714, %v3523, %v3633
        %v3722 = vsel %vm3714, %v3524, %v3635
        %v3725 = vsel %vm3714, %v3525, %v3637
        %v3728 = vsel %vm3714, %v3526, %v3639
        %v3731 = vsel %vm3714, %v3527, %v3641
        %v3734 = vsel %vm3714, %v3528, %v3643
        %v3737 = vsel %vm3714, %v3529, %v3645
        %v3740 = vsel %vm3714, %v3530, %v3647
        %v3743 = vsel %vm3714, %v3531, %v3649
        %v3746 = vsel %vm3714, %v3532, %v3651
        %v3749 = vsel %vm3714, %v3533, %v3653
        %v3752 = vsel %vm1306, %v3631, %v3691
        %v3754 = vsel %vm1306, %v3633, %v3693
        %v3756 = vsel %vm1306, %v3635, %v3695
        %v3758 = vsel %vm1306, %v3637, %v3697
        %v3760 = vsel %vm1306, %v3639, %v3699
        %v3762 = vsel %vm1306, %v3641, %v3701
        %v3764 = vsel %vm1306, %v3643, %v3703
        %v3766 = vsel %vm1306, %v3645, %v3705
        %v3768 = vsel %vm1306, %v3647, %v3707
        %v3770 = vsel %vm1306, %v3649, %v3709
        %v3772 = vsel %vm1306, %v3651, %v3711
        %v3774 = vsel %vm1306, %v3653, %v3713
        %v3775 = vld [vmem:[%s9] sm:$0xff]
        %v3776 = vld [vmem:[%s9 + $0x8] sm:$0xff]
        %v3777 = vld [vmem:[%s9 + $0x10] sm:$0xff]
        %v3778 = vld [vmem:[%s9 + $0x18] sm:$0xff]
        %v3779 = vld [vmem:[%s9 + $0x20] sm:$0xff]
        %v3780 = vld [vmem:[%s9 + $0x28] sm:$0xff]
        %v3781 = vld [vmem:[%s9 + $0x30] sm:$0xff]
        %v3782 = vld [vmem:[%s9 + $0x38] sm:$0xff]
        %v3783 = vld [vmem:[%s9 + $0x40] sm:$0xff]
        %v3784 = vld [vmem:[%s9 + $0x48] sm:$0xff]
        %v3785 = vld [vmem:[%s9 + $0x50] sm:$0xff]
        %v3786 = vld [vmem:[%s9 + $0x58] sm:$0xff]
        %v3787 = vld [vmem:[%s9 + $0x60] sm:$0xff]
        %v3788 = vld [vmem:[%s9 + $0x68] sm:$0xff]
        %v3789 = vld [vmem:[%s9 + $0x70] sm:$0xff]
        %v3790 = vld [vmem:[%s9 + $0x78] sm:$0xff]
        %v3791 = vld [vmem:[%s9 + $0x80] sm:$0xff]
        %v3792 = vld [vmem:[%s9 + $0x88] sm:$0xff]
        %v3793 = vld [vmem:[%s9 + $0x90] sm:$0xff]
        %v3794 = vld [vmem:[%s9 + $0x98] sm:$0xff]
        %v3795 = vld [vmem:[%s9 + $0xa0] sm:$0xff]
        %v3796 = vld [vmem:[%s9 + $0xa8] sm:$0xff]
        %v3797 = vld [vmem:[%s9 + $0xb0] sm:$0xff]
        %v3798 = vld [vmem:[%s9 + $0xb8] sm:$0xff]
        %v3799 = vld [vmem:[%s9 + $0xc0] sm:$0xff]
        %v3800 = vld [vmem:[%s9 + $0xc8] sm:$0xff]
        %v3801 = vld [vmem:[%s9 + $0xd0] sm:$0xff]
        %v3802 = vld [vmem:[%s9 + $0xd8] sm:$0xff]
        %v3803 = vld [vmem:[%s9 + $0xe0] sm:$0xff]
        %v3804 = vld [vmem:[%s9 + $0xe8] sm:$0xff]
        %3805 = vrot.lane.b32.xlu0 %v1371, 80
        %v3806 = vpop.permute.xlu0 %3805
        %3807 = vrot.lane.b32.xlu0 %v1374, 32
        %v3808 = vpop.permute.xlu0 %3807
        %v3810 = vsel %vm3714, 0, %v3806
        %v3813 = vsel %vm1306, %v3806, %v3808
        %s3814 = scalar_lea.vmem %s9, 240
        %v3815 = vld [vmem:[%s3814] sm:$0xff]
        %v3816 = vld [vmem:[%s3814 + $0x8] sm:$0xff]
        %v3817 = vld [vmem:[%s3814 + $0x10] sm:$0xff]
        %v3818 = vld [vmem:[%s3814 + $0x18] sm:$0xff]
        %v3819 = vld [vmem:[%s3814 + $0x20] sm:$0xff]
        %v3820 = vld [vmem:[%s3814 + $0x28] sm:$0xff]
        %v3821 = vld [vmem:[%s3814 + $0x30] sm:$0xff]
        %v3822 = vld [vmem:[%s3814 + $0x38] sm:$0xff]
        %v3823 = vld [vmem:[%s3814 + $0x40] sm:$0xff]
        %v3824 = vld [vmem:[%s3814 + $0x48] sm:$0xff]
        %v3825 = vld [vmem:[%s3814 + $0x50] sm:$0xff]
        %v3826 = vld [vmem:[%s3814 + $0x58] sm:$0xff]
        %v3827 = vld [vmem:[%s3814 + $0x60] sm:$0xff]
        %v3828 = vld [vmem:[%s3814 + $0x68] sm:$0xff]
        %v3829 = vld [vmem:[%s3814 + $0x70] sm:$0xff]
        %v3830 = vld [vmem:[%s3814 + $0x78] sm:$0xff]
        %v3831 = vld [vmem:[%s3814 + $0x80] sm:$0xff]
        %v3832 = vld [vmem:[%s3814 + $0x88] sm:$0xff]
        %v3833 = vld [vmem:[%s3814 + $0x90] sm:$0xff]
        %v3834 = vld [vmem:[%s3814 + $0x98] sm:$0xff]
        %v3835 = vld [vmem:[%s3814 + $0xa0] sm:$0xff]
        %v3836 = vld [vmem:[%s3814 + $0xa8] sm:$0xff]
        %v3837 = vld [vmem:[%s3814 + $0xb0] sm:$0xff]
        %v3838 = vld [vmem:[%s3814 + $0xb8] sm:$0xff]
        %v3839 = vld [vmem:[%s3814 + $0xc0] sm:$0xff]
        %v3840 = vld [vmem:[%s3814 + $0xc8] sm:$0xff]
        %v3841 = vld [vmem:[%s3814 + $0xd0] sm:$0xff]
        %v3842 = vld [vmem:[%s3814 + $0xd8] sm:$0xff]
        %v3843 = vld [vmem:[%s3814 + $0xe0] sm:$0xff]
        %v3844 = vld [vmem:[%s3814 + $0xe8] sm:$0xff]
        %v3875 = vunpack.c.l.b16 %v3815
        %v3876 = vunpack.c.h.b16 %v3815
        %v3877 = vunpack.c.l.b16 %v3816
        %v3878 = vunpack.c.h.b16 %v3816
        %v3879 = vunpack.c.l.b16 %v3817
        %v3880 = vunpack.c.h.b16 %v3817
        %v3881 = vunpack.c.l.b16 %v3818
        %v3882 = vunpack.c.h.b16 %v3818
        %v3883 = vunpack.c.l.b16 %v3819
        %v3884 = vunpack.c.h.b16 %v3819
        %v3885 = vunpack.c.l.b16 %v3820
        %v3886 = vunpack.c.h.b16 %v3820
        %v3887 = vunpack.c.l.b16 %v3821
        %v3888 = vunpack.c.h.b16 %v3821
        %v3889 = vunpack.c.l.b16 %v3822
        %v3890 = vunpack.c.h.b16 %v3822
        %v3891 = vunpack.c.l.b16 %v3823
        %v3892 = vunpack.c.h.b16 %v3823
        %v3893 = vunpack.c.l.b16 %v3824
        %v3894 = vunpack.c.h.b16 %v3824
        %v3895 = vunpack.c.l.b16 %v3825
        %v3896 = vunpack.c.h.b16 %v3825
        %v3897 = vunpack.c.l.b16 %v3826
        %v3898 = vunpack.c.h.b16 %v3826
        %v3899 = vunpack.c.l.b16 %v3827
        %v3900 = vunpack.c.h.b16 %v3827
        %v3901 = vunpack.c.l.b16 %v3828
        %v3902 = vunpack.c.h.b16 %v3828
        %v3903 = vunpack.c.l.b16 %v3829
        %v3904 = vunpack.c.h.b16 %v3829
        %v3905 = vunpack.c.l.b16 %v3830
        %v3906 = vunpack.c.h.b16 %v3830
        %v3907 = vunpack.c.l.b16 %v3831
        %v3908 = vunpack.c.h.b16 %v3831
        %v3909 = vunpack.c.l.b16 %v3832
        %v3910 = vunpack.c.h.b16 %v3832
        %v3911 = vunpack.c.l.b16 %v3833
        %v3912 = vunpack.c.h.b16 %v3833
        %v3913 = vunpack.c.l.b16 %v3834
        %v3914 = vunpack.c.h.b16 %v3834
        %v3915 = vunpack.c.l.b16 %v3835
        %v3916 = vunpack.c.h.b16 %v3835
        %v3917 = vunpack.c.l.b16 %v3836
        %v3918 = vunpack.c.h.b16 %v3836
        %v3919 = vunpack.c.l.b16 %v3837
        %v3920 = vunpack.c.h.b16 %v3837
        %v3921 = vunpack.c.l.b16 %v3838
        %v3922 = vunpack.c.h.b16 %v3838
        %v3923 = vunpack.c.l.b16 %v3839
        %v3924 = vunpack.c.h.b16 %v3839
        %v3925 = vunpack.c.l.b16 %v3840
        %v3926 = vunpack.c.h.b16 %v3840
        %v3927 = vunpack.c.l.b16 %v3841
        %v3928 = vunpack.c.h.b16 %v3841
        %v3929 = vunpack.c.l.b16 %v3842
        %v3930 = vunpack.c.h.b16 %v3842
        %v3931 = vunpack.c.l.b16 %v3843
        %v3932 = vunpack.c.h.b16 %v3843
        %v3933 = vunpack.c.l.b16 %v3844
        %v3934 = vunpack.c.h.b16 %v3844
        %v3935 = vpack.c.b16 %v3877, %v3875
        %v3936 = vpack.c.b16 %v3878, %v3876
        %v3937 = vpack.c.b16 %v3881, %v3879
        %v3938 = vpack.c.b16 %v3882, %v3880
        %v3939 = vpack.c.b16 %v3885, %v3883
        %v3940 = vpack.c.b16 %v3886, %v3884
        %v3941 = vpack.c.b16 %v3889, %v3887
        %v3942 = vpack.c.b16 %v3890, %v3888
        %v3943 = vpack.c.b16 %v3893, %v3891
        %v3944 = vpack.c.b16 %v3894, %v3892
        %v3945 = vpack.c.b16 %v3897, %v3895
        %v3946 = vpack.c.b16 %v3898, %v3896
        %v3947 = vpack.c.b16 %v3901, %v3899
        %v3948 = vpack.c.b16 %v3902, %v3900
        %v3949 = vpack.c.b16 %v3905, %v3903
        %v3950 = vpack.c.b16 %v3906, %v3904
        %v3951 = vpack.c.b16 %v3909, %v3907
        %v3952 = vpack.c.b16 %v3910, %v3908
        %v3953 = vpack.c.b16 %v3913, %v3911
        %v3954 = vpack.c.b16 %v3914, %v3912
        %v3955 = vpack.c.b16 %v3917, %v3915
        %v3956 = vpack.c.b16 %v3918, %v3916
        %v3957 = vpack.c.b16 %v3921, %v3919
        %v3958 = vpack.c.b16 %v3922, %v3920
        %v3959 = vpack.c.b16 %v3925, %v3923
        %v3960 = vpack.c.b16 %v3926, %v3924
        %v3961 = vpack.c.b16 %v3929, %v3927
        %v3962 = vpack.c.b16 %v3930, %v3928
        %v3963 = vpack.c.b16 %v3933, %v3931
        %v3964 = vpack.c.b16 %v3934, %v3932
        %vm3995 = vcmask 916480
        %v3996 = vsel %vm3995, %v3754, 0
        %v3998 = vsel %vm3995, %v3756, 0
        %v4000 = vsel %vm3995, %v3758, 0
        %v4002 = vsel %vm3995, %v3760, 0
        %v4004 = vsel %vm3995, %v3762, 0
        %v4006 = vsel %vm3995, %v3764, 0
        %v4008 = vsel %vm3995, %v3766, 0
        %v4010 = vsel %vm3995, %v3768, 0
        %v4012 = vsel %vm3995, %v3770, 0
        %v4014 = vsel %vm3995, %v3772, 0
        %v4016 = vsel %vm3995, %v3774, 0
        %v4018 = vsel %vm3995, %v3813, 0
        %4020 = vmatprep.subr.bf16.mxu0 %v3936
        %4021 = vmatpush1.bf16.msra.mxu0 %v3935
        %4022 = vmatprep.subr.bf16.mxu0 %v3938
        %4023 = vmatpush1.bf16.msra.mxu0 %v3937
        %4024 = vmatprep.subr.bf16.mxu0 %v3940
        %4025 = vmatpush1.bf16.msra.mxu0 %v3939
        %4026 = vmatprep.subr.bf16.mxu0 %v3942
        %4027 = vmatpush1.bf16.msra.mxu0 %v3941
        %4028 = vmatprep.subr.bf16.mxu0 %v3944
        %4029 = vmatpush1.bf16.msra.mxu0 %v3943
        %4030 = vmatprep.subr.bf16.mxu0 %v3946
        %4031 = vmatpush1.bf16.msra.mxu0 %v3945
        %4032 = vmatprep.subr.bf16.mxu0 %v3948
        %4033 = vmatpush1.bf16.msra.mxu0 %v3947
        %4034 = vmatprep.subr.bf16.mxu0 %v3950
        %4035 = vmatpush1.bf16.msra.mxu0 %v3949
        %4036 = vmatprep.subr.bf16.mxu0 %v3952
        %4037 = vmatpush1.bf16.msra.mxu0 %v3951
        %4038 = vmatprep.subr.bf16.mxu0 %v3954
        %4039 = vmatpush1.bf16.msra.mxu0 %v3953
        %4040 = vmatprep.subr.bf16.mxu0 %v3956
        %4041 = vmatpush1.bf16.msra.mxu0 %v3955
        %4042 = vmatprep.subr.bf16.mxu0 %v3958
        %4043 = vmatpush1.bf16.msra.mxu0 %v3957
        %4044 = vmatprep.subr.bf16.mxu0 %v3960
        %4045 = vmatpush1.bf16.msra.mxu0 %v3959
        %4046 = vmatprep.subr.bf16.mxu0 %v3962
        %4047 = vmatpush1.bf16.msra.mxu0 %v3961
        %4048 = vmatprep.subr.bf16.mxu0 %v3964
        %4049 = vmatpush1.bf16.msra.mxu0 %v3963
        %4050 = vmatprep.subr.bf16.mxu0 0
        %4051 = vmatpush1.bf16.msra.mxu0 0
        %4052 = vmatprep.mubr.bf16.mxu0 %v3996
        %4053 = vmatmul.mubr.bf16.gmra.mrb[0].mxu0 %v3719
        %v4054 = vpop.f32.mrb[0].mxu0
        %v4055 = vadd.f32 0.0, %v4054
        %v4056 = vpop.f32.mrb[0].mxu0
        %v4057 = vadd.f32 0.0, %v4056
        %v4058 = vpop.f32.mrb[0].mxu0
        %v4059 = vadd.f32 0.0, %v4058
        %v4060 = vpop.f32.mrb[0].mxu0
        %v4061 = vadd.f32 0.0, %v4060
        %4062 = vmatprep.mubr.bf16.mxu0 %v3998
        %4063 = vmatmul.mubr.bf16.gmra.mrb[0].mxu0 %v3722
        %v4064 = vpop.f32.mrb[0].mxu0
        %v4065 = vadd.f32 0.0, %v4064
        %v4066 = vpop.f32.mrb[0].mxu0
        %v4067 = vadd.f32 0.0, %v4066
        %v4068 = vpop.f32.mrb[0].mxu0
        %v4069 = vadd.f32 0.0, %v4068
        %v4070 = vpop.f32.mrb[0].mxu0
        %v4071 = vadd.f32 0.0, %v4070
        %4072 = vmatprep.mubr.bf16.mxu0 %v4000
        %4073 = vmatmul.mubr.bf16.gmra.mrb[0].mxu0 %v3725
        %v4074 = vpop.f32.mrb[0].mxu0
        %v4075 = vadd.f32 0.0, %v4074
        %v4076 = vpop.f32.mrb[0].mxu0
        %v4077 = vadd.f32 0.0, %v4076
        %v4078 = vpop.f32.mrb[0].mxu0
        %v4079 = vadd.f32 0.0, %v4078
        %v4080 = vpop.f32.mrb[0].mxu0
        %v4081 = vadd.f32 0.0, %v4080
        %4082 = vmatprep.mubr.bf16.mxu0 %v4002
        %4083 = vmatmul.mubr.bf16.gmra.mrb[0].mxu0 %v3728
        %v4084 = vpop.f32.mrb[0].mxu0
        %v4085 = vadd.f32 0.0, %v4084
        %v4086 = vpop.f32.mrb[0].mxu0
        %v4087 = vadd.f32 0.0, %v4086
        %v4088 = vpop.f32.mrb[0].mxu0
        %v4089 = vadd.f32 0.0, %v4088
        %v4090 = vpop.f32.mrb[0].mxu0
        %v4091 = vadd.f32 0.0, %v4090
        %4092 = vmatprep.mubr.bf16.mxu0 %v4004
        %4093 = vmatmul.mubr.bf16.gmra.mrb[0].mxu0 %v3731
        %v4094 = vpop.f32.mrb[0].mxu0
        %v4095 = vadd.f32 0.0, %v4094
        %v4096 = vpop.f32.mrb[0].mxu0
        %v4097 = vadd.f32 0.0, %v4096
        %v4098 = vpop.f32.mrb[0].mxu0
        %v4099 = vadd.f32 0.0, %v4098
        %v4100 = vpop.f32.mrb[0].mxu0
        %v4101 = vadd.f32 0.0, %v4100
        %4102 = vmatprep.mubr.bf16.mxu0 %v4006
        %4103 = vmatmul.mubr.bf16.gmra.mrb[0].mxu0 %v3734
        %v4104 = vpop.f32.mrb[0].mxu0
        %v4105 = vadd.f32 0.0, %v4104
        %v4106 = vpop.f32.mrb[0].mxu0
        %v4107 = vadd.f32 0.0, %v4106
        %v4108 = vpop.f32.mrb[0].mxu0
        %v4109 = vadd.f32 0.0, %v4108
        %v4110 = vpop.f32.mrb[0].mxu0
        %v4111 = vadd.f32 0.0, %v4110
        %4112 = vmatprep.mubr.bf16.mxu0 %v4008
        %4113 = vmatmul.mubr.bf16.gmra.mrb[0].mxu0 %v3737
        %v4114 = vpop.f32.mrb[0].mxu0
        %v4115 = vadd.f32 0.0, %v4114
        %v4116 = vpop.f32.mrb[0].mxu0
        %v4117 = vadd.f32 0.0, %v4116
        %v4118 = vpop.f32.mrb[0].mxu0
        %v4119 = vadd.f32 0.0, %v4118
        %v4120 = vpop.f32.mrb[0].mxu0
        %v4121 = vadd.f32 0.0, %v4120
        %4122 = vmatprep.mubr.bf16.mxu0 %v4010
        %4123 = vmatmul.mubr.bf16.gmra.mrb[0].mxu0 %v3740
        %v4124 = vpop.f32.mrb[0].mxu0
        %v4125 = vadd.f32 0.0, %v4124
        %v4126 = vpop.f32.mrb[0].mxu0
        %v4127 = vadd.f32 0.0, %v4126
        %v4128 = vpop.f32.mrb[0].mxu0
        %v4129 = vadd.f32 0.0, %v4128
        %v4130 = vpop.f32.mrb[0].mxu0
        %v4131 = vadd.f32 0.0, %v4130
        %4132 = vmatprep.mubr.bf16.mxu0 %v4012
        %4133 = vmatmul.mubr.bf16.gmra.mrb[0].mxu0 %v3743
        %v4134 = vpop.f32.mrb[0].mxu0
        %v4135 = vadd.f32 0.0, %v4134
        %v4136 = vpop.f32.mrb[0].mxu0
        %v4137 = vadd.f32 0.0, %v4136
        %v4138 = vpop.f32.mrb[0].mxu0
        %v4139 = vadd.f32 0.0, %v4138
        %v4140 = vpop.f32.mrb[0].mxu0
        %v4141 = vadd.f32 0.0, %v4140
        %4142 = vmatprep.mubr.bf16.mxu0 %v4014
        %4143 = vmatmul.mubr.bf16.gmra.mrb[0].mxu0 %v3746
        %v4144 = vpop.f32.mrb[0].mxu0
        %v4145 = vadd.f32 0.0, %v4144
        %v4146 = vpop.f32.mrb[0].mxu0
        %v4147 = vadd.f32 0.0, %v4146
        %v4148 = vpop.f32.mrb[0].mxu0
        %v4149 = vadd.f32 0.0, %v4148
        %v4150 = vpop.f32.mrb[0].mxu0
        %v4151 = vadd.f32 0.0, %v4150
        %4152 = vmatprep.mubr.bf16.mxu0 %v4016
        %4153 = vmatmul.mubr.bf16.gmra.mrb[0].mxu0 %v3749
        %v4154 = vpop.f32.mrb[0].mxu0
        %v4155 = vadd.f32 0.0, %v4154
        %v4156 = vpop.f32.mrb[0].mxu0
        %v4157 = vadd.f32 0.0, %v4156
        %v4158 = vpop.f32.mrb[0].mxu0
        %v4159 = vadd.f32 0.0, %v4158
        %v4160 = vpop.f32.mrb[0].mxu0
        %v4161 = vadd.f32 0.0, %v4160
        %4162 = vmatprep.mubr.bf16.mxu0 %v4018
        %4163 = vmatmul.mubr.bf16.gmra.mrb[0].mxu0 %v3810
        %v4164 = vpop.f32.mrb[0].mxu0
        %v4165 = vadd.f32 0.0, %v4164
        %v4166 = vpop.f32.mrb[0].mxu0
        %v4167 = vadd.f32 0.0, %v4166
        %v4168 = vpop.f32.mrb[0].mxu0
        %v4169 = vadd.f32 0.0, %v4168
        %v4170 = vpop.f32.mrb[0].mxu0
        %v4171 = vadd.f32 0.0, %v4170
        %4172 = vdwg.mxu0
        %v4203 = vunpack.c.l.b16 %v3775
        %v4204 = vunpack.c.h.b16 %v3775
        %v4205 = vunpack.c.l.b16 %v3776
        %v4206 = vunpack.c.h.b16 %v3776
        %v4207 = vunpack.c.l.b16 %v3777
        %v4208 = vunpack.c.h.b16 %v3777
        %v4209 = vunpack.c.l.b16 %v3778
        %v4210 = vunpack.c.h.b16 %v3778
        %v4211 = vunpack.c.l.b16 %v3779
        %v4212 = vunpack.c.h.b16 %v3779
        %v4213 = vunpack.c.l.b16 %v3780
        %v4214 = vunpack.c.h.b16 %v3780
        %v4215 = vunpack.c.l.b16 %v3781
        %v4216 = vunpack.c.h.b16 %v3781
        %v4217 = vunpack.c.l.b16 %v3782
        %v4218 = vunpack.c.h.b16 %v3782
        %v4219 = vunpack.c.l.b16 %v3783
        %v4220 = vunpack.c.h.b16 %v3783
        %v4221 = vunpack.c.l.b16 %v3784
        %v4222 = vunpack.c.h.b16 %v3784
        %v4223 = vunpack.c.l.b16 %v3785
        %v4224 = vunpack.c.h.b16 %v3785
        %v4225 = vunpack.c.l.b16 %v3786
        %v4226 = vunpack.c.h.b16 %v3786
        %v4227 = vunpack.c.l.b16 %v3787
        %v4228 = vunpack.c.h.b16 %v3787
        %v4229 = vunpack.c.l.b16 %v3788
        %v4230 = vunpack.c.h.b16 %v3788
        %v4231 = vunpack.c.l.b16 %v3789
        %v4232 = vunpack.c.h.b16 %v3789
        %v4233 = vunpack.c.l.b16 %v3790
        %v4234 = vunpack.c.h.b16 %v3790
        %v4235 = vunpack.c.l.b16 %v3791
        %v4236 = vunpack.c.h.b16 %v3791
        %v4237 = vunpack.c.l.b16 %v3792
        %v4238 = vunpack.c.h.b16 %v3792
        %v4239 = vunpack.c.l.b16 %v3793
        %v4240 = vunpack.c.h.b16 %v3793
        %v4241 = vunpack.c.l.b16 %v3794
        %v4242 = vunpack.c.h.b16 %v3794
        %v4243 = vunpack.c.l.b16 %v3795
        %v4244 = vunpack.c.h.b16 %v3795
        %v4245 = vunpack.c.l.b16 %v3796
        %v4246 = vunpack.c.h.b16 %v3796
        %v4247 = vunpack.c.l.b16 %v3797
        %v4248 = vunpack.c.h.b16 %v3797
        %v4249 = vunpack.c.l.b16 %v3798
        %v4250 = vunpack.c.h.b16 %v3798
        %v4251 = vunpack.c.l.b16 %v3799
        %v4252 = vunpack.c.h.b16 %v3799
        %v4253 = vunpack.c.l.b16 %v3800
        %v4254 = vunpack.c.h.b16 %v3800
        %v4255 = vunpack.c.l.b16 %v3801
        %v4256 = vunpack.c.h.b16 %v3801
        %v4257 = vunpack.c.l.b16 %v3802
        %v4258 = vunpack.c.h.b16 %v3802
        %v4259 = vunpack.c.l.b16 %v3803
        %v4260 = vunpack.c.h.b16 %v3803
        %v4261 = vunpack.c.l.b16 %v3804
        %v4262 = vunpack.c.h.b16 %v3804
        %v4263 = vpack.c.b16 %v4205, %v4203
        %v4264 = vpack.c.b16 %v4206, %v4204
        %v4265 = vpack.c.b16 %v4209, %v4207
        %v4266 = vpack.c.b16 %v4210, %v4208
        %v4267 = vpack.c.b16 %v4213, %v4211
        %v4268 = vpack.c.b16 %v4214, %v4212
        %v4269 = vpack.c.b16 %v4217, %v4215
        %v4270 = vpack.c.b16 %v4218, %v4216
        %v4271 = vpack.c.b16 %v4221, %v4219
        %v4272 = vpack.c.b16 %v4222, %v4220
        %v4273 = vpack.c.b16 %v4225, %v4223
        %v4274 = vpack.c.b16 %v4226, %v4224
        %v4275 = vpack.c.b16 %v4229, %v4227
        %v4276 = vpack.c.b16 %v4230, %v4228
        %v4277 = vpack.c.b16 %v4233, %v4231
        %v4278 = vpack.c.b16 %v4234, %v4232
        %v4279 = vpack.c.b16 %v4237, %v4235
        %v4280 = vpack.c.b16 %v4238, %v4236
        %v4281 = vpack.c.b16 %v4241, %v4239
        %v4282 = vpack.c.b16 %v4242, %v4240
        %v4283 = vpack.c.b16 %v4245, %v4243
        %v4284 = vpack.c.b16 %v4246, %v4244
        %v4285 = vpack.c.b16 %v4249, %v4247
        %v4286 = vpack.c.b16 %v4250, %v4248
        %v4287 = vpack.c.b16 %v4253, %v4251
        %v4288 = vpack.c.b16 %v4254, %v4252
        %v4289 = vpack.c.b16 %v4257, %v4255
        %v4290 = vpack.c.b16 %v4258, %v4256
        %v4291 = vpack.c.b16 %v4261, %v4259
        %v4292 = vpack.c.b16 %v4262, %v4260
        %v4323 = vsel %vm3995, %v3752, 0
        %4325 = vmatprep.subr.bf16.mxu0 %v4264
        %4326 = vmatpush1.bf16.msra.mxu0 %v4263
        %4327 = vmatprep.subr.bf16.mxu0 %v4266
        %4328 = vmatpush1.bf16.msra.mxu0 %v4265
        %4329 = vmatprep.subr.bf16.mxu0 %v4268
        %4330 = vmatpush1.bf16.msra.mxu0 %v4267
        %4331 = vmatprep.subr.bf16.mxu0 %v4270
        %4332 = vmatpush1.bf16.msra.mxu0 %v4269
        %4333 = vmatprep.subr.bf16.mxu0 %v4272
        %4334 = vmatpush1.bf16.msra.mxu0 %v4271
        %4335 = vmatprep.subr.bf16.mxu0 %v4274
        %4336 = vmatpush1.bf16.msra.mxu0 %v4273
        %4337 = vmatprep.subr.bf16.mxu0 %v4276
        %4338 = vmatpush1.bf16.msra.mxu0 %v4275
        %4339 = vmatprep.subr.bf16.mxu0 %v4278
        %4340 = vmatpush1.bf16.msra.mxu0 %v4277
        %4341 = vmatprep.subr.bf16.mxu0 %v4280
        %4342 = vmatpush1.bf16.msra.mxu0 %v4279
        %4343 = vmatprep.subr.bf16.mxu0 %v4282
        %4344 = vmatpush1.bf16.msra.mxu0 %v4281
        %4345 = vmatprep.subr.bf16.mxu0 %v4284
        %4346 = vmatpush1.bf16.msra.mxu0 %v4283
        %4347 = vmatprep.subr.bf16.mxu0 %v4286
        %4348 = vmatpush1.bf16.msra.mxu0 %v4285
        %4349 = vmatprep.subr.bf16.mxu0 %v4288
        %4350 = vmatpush1.bf16.msra.mxu0 %v4287
        %4351 = vmatprep.subr.bf16.mxu0 %v4290
        %4352 = vmatpush1.bf16.msra.mxu0 %v4289
        %4353 = vmatprep.subr.bf16.mxu0 %v4292
        %4354 = vmatpush1.bf16.msra.mxu0 %v4291
        %4355 = vmatprep.subr.bf16.mxu0 0
        %4356 = vmatpush1.bf16.msra.mxu0 0
        %4357 = vmatprep.mubr.bf16.mxu0 %v4323
        %4358 = vmatmul.mubr.bf16.gmra.mrb[0].mxu0 %v3716
        %v4359 = vpop.f32.mrb[0].mxu0
        %v4360 = vadd.f32 %v4055, %v4359
        %v4361 = vpop.f32.mrb[0].mxu0
        %v4362 = vadd.f32 %v4057, %v4361
        %v4363 = vpop.f32.mrb[0].mxu0
        %v4364 = vadd.f32 %v4059, %v4363
        %v4365 = vpop.f32.mrb[0].mxu0
        %v4366 = vadd.f32 %v4061, %v4365
        %4367 = vmatprep.mubr.bf16.mxu0 %v3996
        %4368 = vmatmul.mubr.bf16.gmra.mrb[0].mxu0 %v3719
        %v4369 = vpop.f32.mrb[0].mxu0
        %v4370 = vadd.f32 %v4065, %v4369
        %v4371 = vpop.f32.mrb[0].mxu0
        %v4372 = vadd.f32 %v4067, %v4371
        %v4373 = vpop.f32.mrb[0].mxu0
        %v4374 = vadd.f32 %v4069, %v4373
        %v4375 = vpop.f32.mrb[0].mxu0
        %v4376 = vadd.f32 %v4071, %v4375
        %4377 = vmatprep.mubr.bf16.mxu0 %v3998
        %4378 = vmatmul.mubr.bf16.gmra.mrb[0].mxu0 %v3722
        %v4379 = vpop.f32.mrb[0].mxu0
        %v4380 = vadd.f32 %v4075, %v4379
        %v4381 = vpop.f32.mrb[0].mxu0
        %v4382 = vadd.f32 %v4077, %v4381
        %v4383 = vpop.f32.mrb[0].mxu0
        %v4384 = vadd.f32 %v4079, %v4383
        %v4385 = vpop.f32.mrb[0].mxu0
        %v4386 = vadd.f32 %v4081, %v4385
        %4387 = vmatprep.mubr.bf16.mxu0 %v4000
        %4388 = vmatmul.mubr.bf16.gmra.mrb[0].mxu0 %v3725
        %v4389 = vpop.f32.mrb[0].mxu0
        %v4390 = vadd.f32 %v4085, %v4389
        %v4391 = vpop.f32.mrb[0].mxu0
        %v4392 = vadd.f32 %v4087, %v4391
        %v4393 = vpop.f32.mrb[0].mxu0
        %v4394 = vadd.f32 %v4089, %v4393
        %v4395 = vpop.f32.mrb[0].mxu0
        %v4396 = vadd.f32 %v4091, %v4395
        %4397 = vmatprep.mubr.bf16.mxu0 %v4002
        %4398 = vmatmul.mubr.bf16.gmra.mrb[0].mxu0 %v3728
        %v4399 = vpop.f32.mrb[0].mxu0
        %v4400 = vadd.f32 %v4095, %v4399
        %v4401 = vpop.f32.mrb[0].mxu0
        %v4402 = vadd.f32 %v4097, %v4401
        %v4403 = vpop.f32.mrb[0].mxu0
        %v4404 = vadd.f32 %v4099, %v4403
        %v4405 = vpop.f32.mrb[0].mxu0
        %v4406 = vadd.f32 %v4101, %v4405
        %4407 = vmatprep.mubr.bf16.mxu0 %v4004
        %4408 = vmatmul.mubr.bf16.gmra.mrb[0].mxu0 %v3731
        %v4409 = vpop.f32.mrb[0].mxu0
        %v4410 = vadd.f32 %v4105, %v4409
        %v4411 = vpop.f32.mrb[0].mxu0
        %v4412 = vadd.f32 %v4107, %v4411
        %v4413 = vpop.f32.mrb[0].mxu0
        %v4414 = vadd.f32 %v4109, %v4413
        %v4415 = vpop.f32.mrb[0].mxu0
        %v4416 = vadd.f32 %v4111, %v4415
        %4417 = vmatprep.mubr.bf16.mxu0 %v4006
        %4418 = vmatmul.mubr.bf16.gmra.mrb[0].mxu0 %v3734
        %v4419 = vpop.f32.mrb[0].mxu0
        %v4420 = vadd.f32 %v4115, %v4419
        %v4421 = vpop.f32.mrb[0].mxu0
        %v4422 = vadd.f32 %v4117, %v4421
        %v4423 = vpop.f32.mrb[0].mxu0
        %v4424 = vadd.f32 %v4119, %v4423
        %v4425 = vpop.f32.mrb[0].mxu0
        %v4426 = vadd.f32 %v4121, %v4425
        %4427 = vmatprep.mubr.bf16.mxu0 %v4008
        %4428 = vmatmul.mubr.bf16.gmra.mrb[0].mxu0 %v3737
        %v4429 = vpop.f32.mrb[0].mxu0
        %v4430 = vadd.f32 %v4125, %v4429
        %v4431 = vpop.f32.mrb[0].mxu0
        %v4432 = vadd.f32 %v4127, %v4431
        %v4433 = vpop.f32.mrb[0].mxu0
        %v4434 = vadd.f32 %v4129, %v4433
        %v4435 = vpop.f32.mrb[0].mxu0
        %v4436 = vadd.f32 %v4131, %v4435
        %4437 = vmatprep.mubr.bf16.mxu0 %v4010
        %4438 = vmatmul.mubr.bf16.gmra.mrb[0].mxu0 %v3740
        %v4439 = vpop.f32.mrb[0].mxu0
        %v4440 = vadd.f32 %v4135, %v4439
        %v4441 = vpop.f32.mrb[0].mxu0
        %v4442 = vadd.f32 %v4137, %v4441
        %v4443 = vpop.f32.mrb[0].mxu0
        %v4444 = vadd.f32 %v4139, %v4443
        %v4445 = vpop.f32.mrb[0].mxu0
        %v4446 = vadd.f32 %v4141, %v4445
        %4447 = vmatprep.mubr.bf16.mxu0 %v4012
        %4448 = vmatmul.mubr.bf16.gmra.mrb[0].mxu0 %v3743
        %v4449 = vpop.f32.mrb[0].mxu0
        %v4450 = vadd.f32 %v4145, %v4449
        %v4451 = vpop.f32.mrb[0].mxu0
        %v4452 = vadd.f32 %v4147, %v4451
        %v4453 = vpop.f32.mrb[0].mxu0
        %v4454 = vadd.f32 %v4149, %v4453
        %v4455 = vpop.f32.mrb[0].mxu0
        %v4456 = vadd.f32 %v4151, %v4455
        %4457 = vmatprep.mubr.bf16.mxu0 %v4014
        %4458 = vmatmul.mubr.bf16.gmra.mrb[0].mxu0 %v3746
        %v4459 = vpop.f32.mrb[0].mxu0
        %v4460 = vadd.f32 %v4155, %v4459
        %v4461 = vpop.f32.mrb[0].mxu0
        %v4462 = vadd.f32 %v4157, %v4461
        %v4463 = vpop.f32.mrb[0].mxu0
        %v4464 = vadd.f32 %v4159, %v4463
        %v4465 = vpop.f32.mrb[0].mxu0
        %v4466 = vadd.f32 %v4161, %v4465
        %4467 = vmatprep.mubr.bf16.mxu0 %v4016
        %4468 = vmatmul.mubr.bf16.gmra.mrb[0].mxu0 %v3749
        %v4469 = vpop.f32.mrb[0].mxu0
        %v4470 = vadd.f32 %v4165, %v4469
        %v4471 = vpop.f32.mrb[0].mxu0
        %v4472 = vadd.f32 %v4167, %v4471
        %v4473 = vpop.f32.mrb[0].mxu0
        %v4474 = vadd.f32 %v4169, %v4473
        %v4475 = vpop.f32.mrb[0].mxu0
        %v4476 = vadd.f32 %v4171, %v4475
        %4477 = vdwg.mxu0
        %s4478 = scalar_lea.vmem %s9, 480
        %v4479 = vld [vmem:[%s4478] sm:$0xff]
        %v4480 = vld [vmem:[%s4478 + $0x8] sm:$0xff]
        %v4481 = vld [vmem:[%s4478 + $0x10] sm:$0xff]
        %v4482 = vld [vmem:[%s4478 + $0x18] sm:$0xff]
        %v4483 = vld [vmem:[%s4478 + $0x20] sm:$0xff]
        %v4484 = vld [vmem:[%s4478 + $0x28] sm:$0xff]
        %v4485 = vld [vmem:[%s4478 + $0x30] sm:$0xff]
        %v4486 = vld [vmem:[%s4478 + $0x38] sm:$0xff]
        %v4487 = vld [vmem:[%s4478 + $0x40] sm:$0xff]
        %v4488 = vld [vmem:[%s4478 + $0x48] sm:$0xff]
        %v4489 = vld [vmem:[%s4478 + $0x50] sm:$0xff]
        %v4490 = vld [vmem:[%s4478 + $0x58] sm:$0xff]
        %v4491 = vld [vmem:[%s4478 + $0x60] sm:$0xff]
        %v4492 = vld [vmem:[%s4478 + $0x68] sm:$0xff]
        %v4493 = vld [vmem:[%s4478 + $0x70] sm:$0xff]
        %v4494 = vld [vmem:[%s4478 + $0x78] sm:$0xff]
        %v4495 = vld [vmem:[%s4478 + $0x80] sm:$0xff]
        %v4496 = vld [vmem:[%s4478 + $0x88] sm:$0xff]
        %v4497 = vld [vmem:[%s4478 + $0x90] sm:$0xff]
        %v4498 = vld [vmem:[%s4478 + $0x98] sm:$0xff]
        %v4499 = vld [vmem:[%s4478 + $0xa0] sm:$0xff]
        %v4500 = vld [vmem:[%s4478 + $0xa8] sm:$0xff]
        %v4501 = vld [vmem:[%s4478 + $0xb0] sm:$0xff]
        %v4502 = vld [vmem:[%s4478 + $0xb8] sm:$0xff]
        %v4503 = vld [vmem:[%s4478 + $0xc0] sm:$0xff]
        %v4504 = vld [vmem:[%s4478 + $0xc8] sm:$0xff]
        %v4505 = vld [vmem:[%s4478 + $0xd0] sm:$0xff]
        %v4506 = vld [vmem:[%s4478 + $0xd8] sm:$0xff]
        %v4507 = vld [vmem:[%s4478 + $0xe0] sm:$0xff]
        %v4508 = vld [vmem:[%s4478 + $0xe8] sm:$0xff]
        %v4539 = vunpack.c.l.b16 %v4479
        %v4540 = vunpack.c.h.b16 %v4479
        %v4541 = vunpack.c.l.b16 %v4480
        %v4542 = vunpack.c.h.b16 %v4480
        %v4543 = vunpack.c.l.b16 %v4481
        %v4544 = vunpack.c.h.b16 %v4481
        %v4545 = vunpack.c.l.b16 %v4482
        %v4546 = vunpack.c.h.b16 %v4482
        %v4547 = vunpack.c.l.b16 %v4483
        %v4548 = vunpack.c.h.b16 %v4483
        %v4549 = vunpack.c.l.b16 %v4484
        %v4550 = vunpack.c.h.b16 %v4484
        %v4551 = vunpack.c.l.b16 %v4485
        %v4552 = vunpack.c.h.b16 %v4485
        %v4553 = vunpack.c.l.b16 %v4486
        %v4554 = vunpack.c.h.b16 %v4486
        %v4555 = vunpack.c.l.b16 %v4487
        %v4556 = vunpack.c.h.b16 %v4487
        %v4557 = vunpack.c.l.b16 %v4488
        %v4558 = vunpack.c.h.b16 %v4488
        %v4559 = vunpack.c.l.b16 %v4489
        %v4560 = vunpack.c.h.b16 %v4489
        %v4561 = vunpack.c.l.b16 %v4490
        %v4562 = vunpack.c.h.b16 %v4490
        %v4563 = vunpack.c.l.b16 %v4491
        %v4564 = vunpack.c.h.b16 %v4491
        %v4565 = vunpack.c.l.b16 %v4492
        %v4566 = vunpack.c.h.b16 %v4492
        %v4567 = vunpack.c.l.b16 %v4493
        %v4568 = vunpack.c.h.b16 %v4493
        %v4569 = vunpack.c.l.b16 %v4494
        %v4570 = vunpack.c.h.b16 %v4494
        %v4571 = vunpack.c.l.b16 %v4495
        %v4572 = vunpack.c.h.b16 %v4495
        %v4573 = vunpack.c.l.b16 %v4496
        %v4574 = vunpack.c.h.b16 %v4496
        %v4575 = vunpack.c.l.b16 %v4497
        %v4576 = vunpack.c.h.b16 %v4497
        %v4577 = vunpack.c.l.b16 %v4498
        %v4578 = vunpack.c.h.b16 %v4498
        %v4579 = vunpack.c.l.b16 %v4499
        %v4580 = vunpack.c.h.b16 %v4499
        %v4581 = vunpack.c.l.b16 %v4500
        %v4582 = vunpack.c.h.b16 %v4500
        %v4583 = vunpack.c.l.b16 %v4501
        %v4584 = vunpack.c.h.b16 %v4501
        %v4585 = vunpack.c.l.b16 %v4502
        %v4586 = vunpack.c.h.b16 %v4502
        %v4587 = vunpack.c.l.b16 %v4503
        %v4588 = vunpack.c.h.b16 %v4503
        %v4589 = vunpack.c.l.b16 %v4504
        %v4590 = vunpack.c.h.b16 %v4504
        %v4591 = vunpack.c.l.b16 %v4505
        %v4592 = vunpack.c.h.b16 %v4505
        %v4593 = vunpack.c.l.b16 %v4506
        %v4594 = vunpack.c.h.b16 %v4506
        %v4595 = vunpack.c.l.b16 %v4507
        %v4596 = vunpack.c.h.b16 %v4507
        %v4597 = vunpack.c.l.b16 %v4508
        %v4598 = vunpack.c.h.b16 %v4508
        %v4599 = vpack.c.b16 %v4541, %v4539
        %v4600 = vpack.c.b16 %v4542, %v4540
        %v4601 = vpack.c.b16 %v4545, %v4543
        %v4602 = vpack.c.b16 %v4546, %v4544
        %v4603 = vpack.c.b16 %v4549, %v4547
        %v4604 = vpack.c.b16 %v4550, %v4548
        %v4605 = vpack.c.b16 %v4553, %v4551
        %v4606 = vpack.c.b16 %v4554, %v4552
        %v4607 = vpack.c.b16 %v4557, %v4555
        %v4608 = vpack.c.b16 %v4558, %v4556
        %v4609 = vpack.c.b16 %v4561, %v4559
        %v4610 = vpack.c.b16 %v4562, %v4560
        %v4611 = vpack.c.b16 %v4565, %v4563
        %v4612 = vpack.c.b16 %v4566, %v4564
        %v4613 = vpack.c.b16 %v4569, %v4567
        %v4614 = vpack.c.b16 %v4570, %v4568
        %v4615 = vpack.c.b16 %v4573, %v4571
        %v4616 = vpack.c.b16 %v4574, %v4572
        %v4617 = vpack.c.b16 %v4577, %v4575
        %v4618 = vpack.c.b16 %v4578, %v4576
        %v4619 = vpack.c.b16 %v4581, %v4579
        %v4620 = vpack.c.b16 %v4582, %v4580
        %v4621 = vpack.c.b16 %v4585, %v4583
        %v4622 = vpack.c.b16 %v4586, %v4584
        %v4623 = vpack.c.b16 %v4589, %v4587
        %v4624 = vpack.c.b16 %v4590, %v4588
        %v4625 = vpack.c.b16 %v4593, %v4591
        %v4626 = vpack.c.b16 %v4594, %v4592
        %v4627 = vpack.c.b16 %v4597, %v4595
        %v4628 = vpack.c.b16 %v4598, %v4596
        %4659 = vmatprep.subr.bf16.mxu0 %v4600
        %4660 = vmatpush1.bf16.msra.mxu0 %v4599
        %4661 = vmatprep.subr.bf16.mxu0 %v4602
        %4662 = vmatpush1.bf16.msra.mxu0 %v4601
        %4663 = vmatprep.subr.bf16.mxu0 %v4604
        %4664 = vmatpush1.bf16.msra.mxu0 %v4603
        %4665 = vmatprep.subr.bf16.mxu0 %v4606
        %4666 = vmatpush1.bf16.msra.mxu0 %v4605
        %4667 = vmatprep.subr.bf16.mxu0 %v4608
        %4668 = vmatpush1.bf16.msra.mxu0 %v4607
        %4669 = vmatprep.subr.bf16.mxu0 %v4610
        %4670 = vmatpush1.bf16.msra.mxu0 %v4609
        %4671 = vmatprep.subr.bf16.mxu0 %v4612
        %4672 = vmatpush1.bf16.msra.mxu0 %v4611
        %4673 = vmatprep.subr.bf16.mxu0 %v4614
        %4674 = vmatpush1.bf16.msra.mxu0 %v4613
        %4675 = vmatprep.subr.bf16.mxu0 %v4616
        %4676 = vmatpush1.bf16.msra.mxu0 %v4615
        %4677 = vmatprep.subr.bf16.mxu0 %v4618
        %4678 = vmatpush1.bf16.msra.mxu0 %v4617
        %4679 = vmatprep.subr.bf16.mxu0 %v4620
        %4680 = vmatpush1.bf16.msra.mxu0 %v4619
        %4681 = vmatprep.subr.bf16.mxu0 %v4622
        %4682 = vmatpush1.bf16.msra.mxu0 %v4621
        %4683 = vmatprep.subr.bf16.mxu0 %v4624
        %4684 = vmatpush1.bf16.msra.mxu0 %v4623
        %4685 = vmatprep.subr.bf16.mxu0 %v4626
        %4686 = vmatpush1.bf16.msra.mxu0 %v4625
        %4687 = vmatprep.subr.bf16.mxu0 %v4628
        %4688 = vmatpush1.bf16.msra.mxu0 %v4627
        %4689 = vmatprep.subr.bf16.mxu0 0
        %4690 = vmatpush1.bf16.msra.mxu0 0
        %4691 = vmatprep.mubr.bf16.mxu0 %v3998
        %4692 = vmatmul.mubr.bf16.gmra.mrb[0].mxu0 %v3722
        %v4693 = vpop.f32.mrb[0].mxu0
        %v4694 = vadd.f32 0.0, %v4693
        %v4695 = vpop.f32.mrb[0].mxu0
        %v4696 = vadd.f32 0.0, %v4695
        %v4697 = vpop.f32.mrb[0].mxu0
        %v4698 = vadd.f32 0.0, %v4697
        %v4699 = vpop.f32.mrb[0].mxu0
        %v4700 = vadd.f32 0.0, %v4699
        %4701 = vmatprep.mubr.bf16.mxu0 %v4000
        %4702 = vmatmul.mubr.bf16.gmra.mrb[0].mxu0 %v3725
        %v4703 = vpop.f32.mrb[0].mxu0
        %v4704 = vadd.f32 0.0, %v4703
        %v4705 = vpop.f32.mrb[0].mxu0
        %v4706 = vadd.f32 0.0, %v4705
        %v4707 = vpop.f32.mrb[0].mxu0
        %v4708 = vadd.f32 0.0, %v4707
        %v4709 = vpop.f32.mrb[0].mxu0
        %v4710 = vadd.f32 0.0, %v4709
        %4711 = vmatprep.mubr.bf16.mxu0 %v4002
        %4712 = vmatmul.mubr.bf16.gmra.mrb[0].mxu0 %v3728
        %v4713 = vpop.f32.mrb[0].mxu0
        %v4714 = vadd.f32 0.0, %v4713
        %v4715 = vpop.f32.mrb[0].mxu0
        %v4716 = vadd.f32 0.0, %v4715
        %v4717 = vpop.f32.mrb[0].mxu0
        %v4718 = vadd.f32 0.0, %v4717
        %v4719 = vpop.f32.mrb[0].mxu0
        %v4720 = vadd.f32 0.0, %v4719
        %4721 = vmatprep.mubr.bf16.mxu0 %v4004
        %4722 = vmatmul.mubr.bf16.gmra.mrb[0].mxu0 %v3731
        %v4723 = vpop.f32.mrb[0].mxu0
        %v4724 = vadd.f32 0.0, %v4723
        %v4725 = vpop.f32.mrb[0].mxu0
        %v4726 = vadd.f32 0.0, %v4725
        %v4727 = vpop.f32.mrb[0].mxu0
        %v4728 = vadd.f32 0.0, %v4727
        %v4729 = vpop.f32.mrb[0].mxu0
        %v4730 = vadd.f32 0.0, %v4729
        %4731 = vmatprep.mubr.bf16.mxu0 %v4006
        %4732 = vmatmul.mubr.bf16.gmra.mrb[0].mxu0 %v3734
        %v4733 = vpop.f32.mrb[0].mxu0
        %v4734 = vadd.f32 0.0, %v4733
        %v4735 = vpop.f32.mrb[0].mxu0
        %v4736 = vadd.f32 0.0, %v4735
        %v4737 = vpop.f32.mrb[0].mxu0
        %v4738 = vadd.f32 0.0, %v4737
        %v4739 = vpop.f32.mrb[0].mxu0
        %v4740 = vadd.f32 0.0, %v4739
        %4741 = vmatprep.mubr.bf16.mxu0 %v4008
        %4742 = vmatmul.mubr.bf16.gmra.mrb[0].mxu0 %v3737
        %v4743 = vpop.f32.mrb[0].mxu0
        %v4744 = vadd.f32 0.0, %v4743
        %v4745 = vpop.f32.mrb[0].mxu0
        %v4746 = vadd.f32 0.0, %v4745
        %v4747 = vpop.f32.mrb[0].mxu0
        %v4748 = vadd.f32 0.0, %v4747
        %v4749 = vpop.f32.mrb[0].mxu0
        %v4750 = vadd.f32 0.0, %v4749
        %4751 = vmatprep.mubr.bf16.mxu0 %v4010
        %4752 = vmatmul.mubr.bf16.gmra.mrb[0].mxu0 %v3740
        %v4753 = vpop.f32.mrb[0].mxu0
        %v4754 = vadd.f32 0.0, %v4753
        %v4755 = vpop.f32.mrb[0].mxu0
        %v4756 = vadd.f32 0.0, %v4755
        %v4757 = vpop.f32.mrb[0].mxu0
        %v4758 = vadd.f32 0.0, %v4757
        %v4759 = vpop.f32.mrb[0].mxu0
        %v4760 = vadd.f32 0.0, %v4759
        %4761 = vmatprep.mubr.bf16.mxu0 %v4012
        %4762 = vmatmul.mubr.bf16.gmra.mrb[0].mxu0 %v3743
        %v4763 = vpop.f32.mrb[0].mxu0
        %v4764 = vadd.f32 0.0, %v4763
        %v4765 = vpop.f32.mrb[0].mxu0
        %v4766 = vadd.f32 0.0, %v4765
        %v4767 = vpop.f32.mrb[0].mxu0
        %v4768 = vadd.f32 0.0, %v4767
        %v4769 = vpop.f32.mrb[0].mxu0
        %v4770 = vadd.f32 0.0, %v4769
        %4771 = vmatprep.mubr.bf16.mxu0 %v4014
        %4772 = vmatmul.mubr.bf16.gmra.mrb[0].mxu0 %v3746
        %v4773 = vpop.f32.mrb[0].mxu0
        %v4774 = vadd.f32 0.0, %v4773
        %v4775 = vpop.f32.mrb[0].mxu0
        %v4776 = vadd.f32 0.0, %v4775
        %v4777 = vpop.f32.mrb[0].mxu0
        %v4778 = vadd.f32 0.0, %v4777
        %v4779 = vpop.f32.mrb[0].mxu0
        %v4780 = vadd.f32 0.0, %v4779
        %4781 = vmatprep.mubr.bf16.mxu0 %v4016
        %4782 = vmatmul.mubr.bf16.gmra.mrb[0].mxu0 %v3749
        %v4783 = vpop.f32.mrb[0].mxu0
        %v4784 = vadd.f32 0.0, %v4783
        %v4785 = vpop.f32.mrb[0].mxu0
        %v4786 = vadd.f32 0.0, %v4785
        %v4787 = vpop.f32.mrb[0].mxu0
        %v4788 = vadd.f32 0.0, %v4787
        %v4789 = vpop.f32.mrb[0].mxu0
        %v4790 = vadd.f32 0.0, %v4789
        %4791 = vmatprep.mubr.bf16.mxu0 %v4018
        %4792 = vmatmul.mubr.bf16.gmra.mrb[0].mxu0 %v3810
        %v4793 = vpop.f32.mrb[0].mxu0
        %v4794 = vadd.f32 0.0, %v4793
        %v4795 = vpop.f32.mrb[0].mxu0
        %v4796 = vadd.f32 0.0, %v4795
        %v4797 = vpop.f32.mrb[0].mxu0
        %v4798 = vadd.f32 0.0, %v4797
        %v4799 = vpop.f32.mrb[0].mxu0
        %v4800 = vadd.f32 0.0, %v4799
        %4801 = vmatprep.mubr.bf16.mxu0 %v4018
        %4802 = vmatmul.mubr.bf16.gmra.mrb[0].mxu0 %v3810
        %v4803 = vpop.f32.mrb[0].mxu0
        %v4804 = vadd.f32 0.0, %v4803
        %v4805 = vpop.f32.mrb[0].mxu0
        %v4806 = vadd.f32 0.0, %v4805
        %v4807 = vpop.f32.mrb[0].mxu0
        %v4808 = vadd.f32 0.0, %v4807
        %v4809 = vpop.f32.mrb[0].mxu0
        %v4810 = vadd.f32 0.0, %v4809
        %4811 = vdwg.mxu0
        %v4812 = vadd.f32 %v4360, %v4694
        %v4813 = vadd.f32 %v4362, %v4696
        %v4814 = vadd.f32 %v4364, %v4698
        %v4815 = vadd.f32 %v4366, %v4700
        %v4816 = vadd.f32 %v4370, %v4704
        %v4817 = vadd.f32 %v4372, %v4706
        %v4818 = vadd.f32 %v4374, %v4708
        %v4819 = vadd.f32 %v4376, %v4710
        %v4820 = vadd.f32 %v4380, %v4714
        %v4821 = vadd.f32 %v4382, %v4716
        %v4822 = vadd.f32 %v4384, %v4718
        %v4823 = vadd.f32 %v4386, %v4720
        %v4824 = vadd.f32 %v4390, %v4724
        %v4825 = vadd.f32 %v4392, %v4726
        %v4826 = vadd.f32 %v4394, %v4728
        %v4827 = vadd.f32 %v4396, %v4730
        %v4828 = vadd.f32 %v4400, %v4734
        %v4829 = vadd.f32 %v4402, %v4736
        %v4830 = vadd.f32 %v4404, %v4738
        %v4831 = vadd.f32 %v4406, %v4740
        %v4832 = vadd.f32 %v4410, %v4744
        %v4833 = vadd.f32 %v4412, %v4746
        %v4834 = vadd.f32 %v4414, %v4748
        %v4835 = vadd.f32 %v4416, %v4750
        %v4836 = vadd.f32 %v4420, %v4754
        %v4837 = vadd.f32 %v4422, %v4756
        %v4838 = vadd.f32 %v4424, %v4758
        %v4839 = vadd.f32 %v4426, %v4760
        %v4840 = vadd.f32 %v4430, %v4764
        %v4841 = vadd.f32 %v4432, %v4766
        %v4842 = vadd.f32 %v4434, %v4768
        %v4843 = vadd.f32 %v4436, %v4770
        %v4844 = vadd.f32 %v4440, %v4774
        %v4845 = vadd.f32 %v4442, %v4776
        %v4846 = vadd.f32 %v4444, %v4778
        %v4847 = vadd.f32 %v4446, %v4780
        %v4848 = vadd.f32 %v4450, %v4784
        %v4849 = vadd.f32 %v4452, %v4786
        %v4850 = vadd.f32 %v4454, %v4788
        %v4851 = vadd.f32 %v4456, %v4790
        %v4852 = vadd.f32 %v4460, %v4794
        %v4853 = vadd.f32 %v4462, %v4796
        %v4854 = vadd.f32 %v4464, %v4798
        %v4855 = vadd.f32 %v4466, %v4800
        %v4856 = vadd.f32 %v4470, %v4804
        %v4857 = vadd.f32 %v4472, %v4806
        %v4858 = vadd.f32 %v4474, %v4808
        %v4859 = vadd.f32 %v4476, %v4810
        %v4860 = vld [vmem:[%s10] sm:$0x3]
        %v4862 = vlaneseq
        %v4863 = vshrl.u32 %v4862, 7
        %v4864 = vsub.s32 0, %v4863
        %v4865 = vrot.slane %v4860, %v4864
        %v4866 = vlaneseq
        %v4867 = vshrl.u32 %v4866, 7
        %v4868 = vsub.s32 1, %v4867
        %v4869 = vrot.slane %v4860, %v4868
        %v4872 = vadd.f32 %v4812, %v4865
        %v4873 = vadd.f32 %v4813, %v4869
        %v4874 = vadd.f32 %v4814, %v4865
        %v4875 = vadd.f32 %v4815, %v4869
        %v4876 = vadd.f32 %v4816, %v4865
        %v4877 = vadd.f32 %v4817, %v4869
        %v4878 = vadd.f32 %v4818, %v4865
        %v4879 = vadd.f32 %v4819, %v4869
        %v4880 = vadd.f32 %v4820, %v4865
        %v4881 = vadd.f32 %v4821, %v4869
        %v4882 = vadd.f32 %v4822, %v4865
        %v4883 = vadd.f32 %v4823, %v4869
        %v4884 = vadd.f32 %v4824, %v4865
        %v4885 = vadd.f32 %v4825, %v4869
        %v4886 = vadd.f32 %v4826, %v4865
        %v4887 = vadd.f32 %v4827, %v4869
        %v4888 = vadd.f32 %v4828, %v4865
        %v4889 = vadd.f32 %v4829, %v4869
        %v4890 = vadd.f32 %v4830, %v4865
        %v4891 = vadd.f32 %v4831, %v4869
        %v4892 = vadd.f32 %v4832, %v4865
        %v4893 = vadd.f32 %v4833, %v4869
        %v4894 = vadd.f32 %v4834, %v4865
        %v4895 = vadd.f32 %v4835, %v4869
        %v4896 = vadd.f32 %v4836, %v4865
        %v4897 = vadd.f32 %v4837, %v4869
        %v4898 = vadd.f32 %v4838, %v4865
        %v4899 = vadd.f32 %v4839, %v4869
        %v4900 = vadd.f32 %v4840, %v4865
        %v4901 = vadd.f32 %v4841, %v4869
        %v4902 = vadd.f32 %v4842, %v4865
        %v4903 = vadd.f32 %v4843, %v4869
        %v4904 = vadd.f32 %v4844, %v4865
        %v4905 = vadd.f32 %v4845, %v4869
        %v4906 = vadd.f32 %v4846, %v4865
        %v4907 = vadd.f32 %v4847, %v4869
        %v4908 = vadd.f32 %v4848, %v4865
        %v4909 = vadd.f32 %v4849, %v4869
        %v4910 = vadd.f32 %v4850, %v4865
        %v4911 = vadd.f32 %v4851, %v4869
        %v4912 = vadd.f32 %v4852, %v4865
        %v4913 = vadd.f32 %v4853, %v4869
        %v4914 = vadd.f32 %v4854, %v4865
        %v4915 = vadd.f32 %v4855, %v4869
        %v4916 = vadd.f32 %v4856, %v4865
        %v4917 = vadd.f32 %v4857, %v4869
        %v4918 = vadd.f32 %v4858, %v4865
        %v4919 = vadd.f32 %v4859, %v4869
        %vm4920 = vcmp.gt.f32.partialorder %v4872, 0.0
        %vm4921 = vcmp.gt.f32.partialorder %v4873, 0.0
        %vm4922 = vcmp.gt.f32.partialorder %v4874, 0.0
        %vm4923 = vcmp.gt.f32.partialorder %v4875, 0.0
        %vm4924 = vcmp.gt.f32.partialorder %v4876, 0.0
        %vm4925 = vcmp.gt.f32.partialorder %v4877, 0.0
        %vm4926 = vcmp.gt.f32.partialorder %v4878, 0.0
        %vm4927 = vcmp.gt.f32.partialorder %v4879, 0.0
        %vm4928 = vcmp.gt.f32.partialorder %v4880, 0.0
        %vm4929 = vcmp.gt.f32.partialorder %v4881, 0.0
        %vm4930 = vcmp.gt.f32.partialorder %v4882, 0.0
        %vm4931 = vcmp.gt.f32.partialorder %v4883, 0.0
        %vm4932 = vcmp.gt.f32.partialorder %v4884, 0.0
        %vm4933 = vcmp.gt.f32.partialorder %v4885, 0.0
        %vm4934 = vcmp.gt.f32.partialorder %v4886, 0.0
        %vm4935 = vcmp.gt.f32.partialorder %v4887, 0.0
        %vm4936 = vcmp.gt.f32.partialorder %v4888, 0.0
        %vm4937 = vcmp.gt.f32.partialorder %v4889, 0.0
        %vm4938 = vcmp.gt.f32.partialorder %v4890, 0.0
        %vm4939 = vcmp.gt.f32.partialorder %v4891, 0.0
        %vm4940 = vcmp.gt.f32.partialorder %v4892, 0.0
        %vm4941 = vcmp.gt.f32.partialorder %v4893, 0.0
        %vm4942 = vcmp.gt.f32.partialorder %v4894, 0.0
        %vm4943 = vcmp.gt.f32.partialorder %v4895, 0.0
        %vm4944 = vcmp.gt.f32.partialorder %v4896, 0.0
        %vm4945 = vcmp.gt.f32.partialorder %v4897, 0.0
        %vm4946 = vcmp.gt.f32.partialorder %v4898, 0.0
        %vm4947 = vcmp.gt.f32.partialorder %v4899, 0.0
        %vm4948 = vcmp.gt.f32.partialorder %v4900, 0.0
        %vm4949 = vcmp.gt.f32.partialorder %v4901, 0.0
        %vm4950 = vcmp.gt.f32.partialorder %v4902, 0.0
        %vm4951 = vcmp.gt.f32.partialorder %v4903, 0.0
        %vm4952 = vcmp.gt.f32.partialorder %v4904, 0.0
        %vm4953 = vcmp.gt.f32.partialorder %v4905, 0.0
        %vm4954 = vcmp.gt.f32.partialorder %v4906, 0.0
        %vm4955 = vcmp.gt.f32.partialorder %v4907, 0.0
        %vm4956 = vcmp.gt.f32.partialorder %v4908, 0.0
        %vm4957 = vcmp.gt.f32.partialorder %v4909, 0.0
        %vm4958 = vcmp.gt.f32.partialorder %v4910, 0.0
        %vm4959 = vcmp.gt.f32.partialorder %v4911, 0.0
        %vm4960 = vcmp.gt.f32.partialorder %v4912, 0.0
        %vm4961 = vcmp.gt.f32.partialorder %v4913, 0.0
        %vm4962 = vcmp.gt.f32.partialorder %v4914, 0.0
        %vm4963 = vcmp.gt.f32.partialorder %v4915, 0.0
        %vm4964 = vcmp.gt.f32.partialorder %v4916, 0.0
        %vm4965 = vcmp.gt.f32.partialorder %v4917, 0.0
        %vm4966 = vcmp.gt.f32.partialorder %v4918, 0.0
        %vm4967 = vcmp.gt.f32.partialorder %v4919, 0.0
        %v4968 = vmin.f32 %v4872, 0.0
        %v4969 = vmin.f32 %v4873, 0.0
        %v4970 = vmin.f32 %v4874, 0.0
        %v4971 = vmin.f32 %v4875, 0.0
        %v4972 = vmin.f32 %v4876, 0.0
        %v4973 = vmin.f32 %v4877, 0.0
        %v4974 = vmin.f32 %v4878, 0.0
        %v4975 = vmin.f32 %v4879, 0.0
        %v4976 = vmin.f32 %v4880, 0.0
        %v4977 = vmin.f32 %v4881, 0.0
        %v4978 = vmin.f32 %v4882, 0.0
        %v4979 = vmin.f32 %v4883, 0.0
        %v4980 = vmin.f32 %v4884, 0.0
        %v4981 = vmin.f32 %v4885, 0.0
        %v4982 = vmin.f32 %v4886, 0.0
        %v4983 = vmin.f32 %v4887, 0.0
        %v4984 = vmin.f32 %v4888, 0.0
        %v4985 = vmin.f32 %v4889, 0.0
        %v4986 = vmin.f32 %v4890, 0.0
        %v4987 = vmin.f32 %v4891, 0.0
        %v4988 = vmin.f32 %v4892, 0.0
        %v4989 = vmin.f32 %v4893, 0.0
        %v4990 = vmin.f32 %v4894, 0.0
        %v4991 = vmin.f32 %v4895, 0.0
        %v4992 = vmin.f32 %v4896, 0.0
        %v4993 = vmin.f32 %v4897, 0.0
        %v4994 = vmin.f32 %v4898, 0.0
        %v4995 = vmin.f32 %v4899, 0.0
        %v4996 = vmin.f32 %v4900, 0.0
        %v4997 = vmin.f32 %v4901, 0.0
        %v4998 = vmin.f32 %v4902, 0.0
        %v4999 = vmin.f32 %v4903, 0.0
        %v5000 = vmin.f32 %v4904, 0.0
        %v5001 = vmin.f32 %v4905, 0.0
        %v5002 = vmin.f32 %v4906, 0.0
        %v5003 = vmin.f32 %v4907, 0.0
        %v5004 = vmin.f32 %v4908, 0.0
        %v5005 = vmin.f32 %v4909, 0.0
        %v5006 = vmin.f32 %v4910, 0.0
        %v5007 = vmin.f32 %v4911, 0.0
        %v5008 = vmin.f32 %v4912, 0.0
        %v5009 = vmin.f32 %v4913, 0.0
        %v5010 = vmin.f32 %v4914, 0.0
        %v5011 = vmin.f32 %v4915, 0.0
        %v5012 = vmin.f32 %v4916, 0.0
        %v5013 = vmin.f32 %v4917, 0.0
        %v5014 = vmin.f32 %v4918, 0.0
        %v5015 = vmin.f32 %v4919, 0.0
        %v5016 = vmul.f32 %v4968, 1.442695
        %v5017 = vpow.pop %v5016
        %v5018 = vmul.f32 %v4969, 1.442695
        %v5019 = vpow.pop %v5018
        %v5020 = vmul.f32 %v4970, 1.442695
        %v5021 = vpow.pop %v5020
        %v5022 = vmul.f32 %v4971, 1.442695
        %v5023 = vpow.pop %v5022
        %v5024 = vmul.f32 %v4972, 1.442695
        %v5025 = vpow.pop %v5024
        %v5026 = vmul.f32 %v4973, 1.442695
        %v5027 = vpow.pop %v5026
        %v5028 = vmul.f32 %v4974, 1.442695
        %v5029 = vpow.pop %v5028
        %v5030 = vmul.f32 %v4975, 1.442695
        %v5031 = vpow.pop %v5030
        %v5032 = vmul.f32 %v4976, 1.442695
        %v5033 = vpow.pop %v5032
        %v5034 = vmul.f32 %v4977, 1.442695
        %v5035 = vpow.pop %v5034
        %v5036 = vmul.f32 %v4978, 1.442695
        %v5037 = vpow.pop %v5036
        %v5038 = vmul.f32 %v4979, 1.442695
        %v5039 = vpow.pop %v5038
        %v5040 = vmul.f32 %v4980, 1.442695
        %v5041 = vpow.pop %v5040
        %v5042 = vmul.f32 %v4981, 1.442695
        %v5043 = vpow.pop %v5042
        %v5044 = vmul.f32 %v4982, 1.442695
        %v5045 = vpow.pop %v5044
        %v5046 = vmul.f32 %v4983, 1.442695
        %v5047 = vpow.pop %v5046
        %v5048 = vmul.f32 %v4984, 1.442695
        %v5049 = vpow.pop %v5048
        %v5050 = vmul.f32 %v4985, 1.442695
        %v5051 = vpow.pop %v5050
        %v5052 = vmul.f32 %v4986, 1.442695
        %v5053 = vpow.pop %v5052
        %v5054 = vmul.f32 %v4987, 1.442695
        %v5055 = vpow.pop %v5054
        %v5056 = vmul.f32 %v4988, 1.442695
        %v5057 = vpow.pop %v5056
        %v5058 = vmul.f32 %v4989, 1.442695
        %v5059 = vpow.pop %v5058
        %v5060 = vmul.f32 %v4990, 1.442695
        %v5061 = vpow.pop %v5060
        %v5062 = vmul.f32 %v4991, 1.442695
        %v5063 = vpow.pop %v5062
        %v5064 = vmul.f32 %v4992, 1.442695
        %v5065 = vpow.pop %v5064
        %v5066 = vmul.f32 %v4993, 1.442695
        %v5067 = vpow.pop %v5066
        %v5068 = vmul.f32 %v4994, 1.442695
        %v5069 = vpow.pop %v5068
        %v5070 = vmul.f32 %v4995, 1.442695
        %v5071 = vpow.pop %v5070
        %v5072 = vmul.f32 %v4996, 1.442695
        %v5073 = vpow.pop %v5072
        %v5074 = vmul.f32 %v4997, 1.442695
        %v5075 = vpow.pop %v5074
        %v5076 = vmul.f32 %v4998, 1.442695
        %v5077 = vpow.pop %v5076
        %v5078 = vmul.f32 %v4999, 1.442695
        %v5079 = vpow.pop %v5078
        %v5080 = vmul.f32 %v5000, 1.442695
        %v5081 = vpow.pop %v5080
        %v5082 = vmul.f32 %v5001, 1.442695
        %v5083 = vpow.pop %v5082
        %v5084 = vmul.f32 %v5002, 1.442695
        %v5085 = vpow.pop %v5084
        %v5086 = vmul.f32 %v5003, 1.442695
        %v5087 = vpow.pop %v5086
        %v5088 = vmul.f32 %v5004, 1.442695
        %v5089 = vpow.pop %v5088
        %v5090 = vmul.f32 %v5005, 1.442695
        %v5091 = vpow.pop %v5090
        %v5092 = vmul.f32 %v5006, 1.442695
        %v5093 = vpow.pop %v5092
        %v5094 = vmul.f32 %v5007, 1.442695
        %v5095 = vpow.pop %v5094
        %v5096 = vmul.f32 %v5008, 1.442695
        %v5097 = vpow.pop %v5096
        %v5098 = vmul.f32 %v5009, 1.442695
        %v5099 = vpow.pop %v5098
        %v5100 = vmul.f32 %v5010, 1.442695
        %v5101 = vpow.pop %v5100
        %v5102 = vmul.f32 %v5011, 1.442695
        %v5103 = vpow.pop %v5102
        %v5104 = vmul.f32 %v5012, 1.442695
        %v5105 = vpow.pop %v5104
        %v5106 = vmul.f32 %v5013, 1.442695
        %v5107 = vpow.pop %v5106
        %v5108 = vmul.f32 %v5014, 1.442695
        %v5109 = vpow.pop %v5108
        %v5110 = vmul.f32 %v5015, 1.442695
        %v5111 = vpow.pop %v5110
        %v5112 = vsub.f32 %v5017, 1.0
        %v5113 = vsub.f32 %v5019, 1.0
        %v5114 = vsub.f32 %v5021, 1.0
        %v5115 = vsub.f32 %v5023, 1.0
        %v5116 = vsub.f32 %v5025, 1.0
        %v5117 = vsub.f32 %v5027, 1.0
        %v5118 = vsub.f32 %v5029, 1.0
        %v5119 = vsub.f32 %v5031, 1.0
        %v5120 = vsub.f32 %v5033, 1.0
        %v5121 = vsub.f32 %v5035, 1.0
        %v5122 = vsub.f32 %v5037, 1.0
        %v5123 = vsub.f32 %v5039, 1.0
        %v5124 = vsub.f32 %v5041, 1.0
        %v5125 = vsub.f32 %v5043, 1.0
        %v5126 = vsub.f32 %v5045, 1.0
        %v5127 = vsub.f32 %v5047, 1.0
        %v5128 = vsub.f32 %v5049, 1.0
        %v5129 = vsub.f32 %v5051, 1.0
        %v5130 = vsub.f32 %v5053, 1.0
        %v5131 = vsub.f32 %v5055, 1.0
        %v5132 = vsub.f32 %v5057, 1.0
        %v5133 = vsub.f32 %v5059, 1.0
        %v5134 = vsub.f32 %v5061, 1.0
        %v5135 = vsub.f32 %v5063, 1.0
        %v5136 = vsub.f32 %v5065, 1.0
        %v5137 = vsub.f32 %v5067, 1.0
        %v5138 = vsub.f32 %v5069, 1.0
        %v5139 = vsub.f32 %v5071, 1.0
        %v5140 = vsub.f32 %v5073, 1.0
        %v5141 = vsub.f32 %v5075, 1.0
        %v5142 = vsub.f32 %v5077, 1.0
        %v5143 = vsub.f32 %v5079, 1.0
        %v5144 = vsub.f32 %v5081, 1.0
        %v5145 = vsub.f32 %v5083, 1.0
        %v5146 = vsub.f32 %v5085, 1.0
        %v5147 = vsub.f32 %v5087, 1.0
        %v5148 = vsub.f32 %v5089, 1.0
        %v5149 = vsub.f32 %v5091, 1.0
        %v5150 = vsub.f32 %v5093, 1.0
        %v5151 = vsub.f32 %v5095, 1.0
        %v5152 = vsub.f32 %v5097, 1.0
        %v5153 = vsub.f32 %v5099, 1.0
        %v5154 = vsub.f32 %v5101, 1.0
        %v5155 = vsub.f32 %v5103, 1.0
        %v5156 = vsub.f32 %v5105, 1.0
        %v5157 = vsub.f32 %v5107, 1.0
        %v5158 = vsub.f32 %v5109, 1.0
        %v5159 = vsub.f32 %v5111, 1.0
        %v5160 = vsel %vm4920, %v4872, %v5112
        %v5161 = vsel %vm4921, %v4873, %v5113
        %v5162 = vsel %vm4922, %v4874, %v5114
        %v5163 = vsel %vm4923, %v4875, %v5115
        %v5164 = vsel %vm4924, %v4876, %v5116
        %v5165 = vsel %vm4925, %v4877, %v5117
        %v5166 = vsel %vm4926, %v4878, %v5118
        %v5167 = vsel %vm4927, %v4879, %v5119
        %v5168 = vsel %vm4928, %v4880, %v5120
        %v5169 = vsel %vm4929, %v4881, %v5121
        %v5170 = vsel %vm4930, %v4882, %v5122
        %v5171 = vsel %vm4931, %v4883, %v5123
        %v5172 = vsel %vm4932, %v4884, %v5124
        %v5173 = vsel %vm4933, %v4885, %v5125
        %v5174 = vsel %vm4934, %v4886, %v5126
        %v5175 = vsel %vm4935, %v4887, %v5127
        %v5176 = vsel %vm4936, %v4888, %v5128
        %v5177 = vsel %vm4937, %v4889, %v5129
        %v5178 = vsel %vm4938, %v4890, %v5130
        %v5179 = vsel %vm4939, %v4891, %v5131
        %v5180 = vsel %vm4940, %v4892, %v5132
        %v5181 = vsel %vm4941, %v4893, %v5133
        %v5182 = vsel %vm4942, %v4894, %v5134
        %v5183 = vsel %vm4943, %v4895, %v5135
        %v5184 = vsel %vm4944, %v4896, %v5136
        %v5185 = vsel %vm4945, %v4897, %v5137
        %v5186 = vsel %vm4946, %v4898, %v5138
        %v5187 = vsel %vm4947, %v4899, %v5139
        %v5188 = vsel %vm4948, %v4900, %v5140
        %v5189 = vsel %vm4949, %v4901, %v5141
        %v5190 = vsel %vm4950, %v4902, %v5142
        %v5191 = vsel %vm4951, %v4903, %v5143
        %v5192 = vsel %vm4952, %v4904, %v5144
        %v5193 = vsel %vm4953, %v4905, %v5145
        %v5194 = vsel %vm4954, %v4906, %v5146
        %v5195 = vsel %vm4955, %v4907, %v5147
        %v5196 = vsel %vm4956, %v4908, %v5148
        %v5197 = vsel %vm4957, %v4909, %v5149
        %v5198 = vsel %vm4958, %v4910, %v5150
        %v5199 = vsel %vm4959, %v4911, %v5151
        %v5200 = vsel %vm4960, %v4912, %v5152
        %v5201 = vsel %vm4961, %v4913, %v5153
        %v5202 = vsel %vm4962, %v4914, %v5154
        %v5203 = vsel %vm4963, %v4915, %v5155
        %v5204 = vsel %vm4964, %v4916, %v5156
        %v5205 = vsel %vm4965, %v4917, %v5157
        %v5206 = vsel %vm4966, %v4918, %v5158
        %v5207 = vsel %vm4967, %v4919, %v5159
        %v5208 = vpack.c.bf16 %v5162, %v5160
        %v5209 = vpack.c.bf16 %v5163, %v5161
        %v5210 = vpack.c.bf16 %v5166, %v5164
        %v5211 = vpack.c.bf16 %v5167, %v5165
        %v5212 = vpack.c.bf16 %v5170, %v5168
        %v5213 = vpack.c.bf16 %v5171, %v5169
        %v5214 = vpack.c.bf16 %v5174, %v5172
        %v5215 = vpack.c.bf16 %v5175, %v5173
        %v5216 = vpack.c.bf16 %v5178, %v5176
        %v5217 = vpack.c.bf16 %v5179, %v5177
        %v5218 = vpack.c.bf16 %v5182, %v5180
        %v5219 = vpack.c.bf16 %v5183, %v5181
        %v5220 = vpack.c.bf16 %v5186, %v5184
        %v5221 = vpack.c.bf16 %v5187, %v5185
        %v5222 = vpack.c.bf16 %v5190, %v5188
        %v5223 = vpack.c.bf16 %v5191, %v5189
        %v5224 = vpack.c.bf16 %v5194, %v5192
        %v5225 = vpack.c.bf16 %v5195, %v5193
        %v5226 = vpack.c.bf16 %v5198, %v5196
        %v5227 = vpack.c.bf16 %v5199, %v5197
        %v5228 = vpack.c.bf16 %v5202, %v5200
        %v5229 = vpack.c.bf16 %v5203, %v5201
        %v5230 = vpack.c.bf16 %v5206, %v5204
        %v5231 = vpack.c.bf16 %v5207, %v5205
        %v5232 = vld [vmem:[%s11] sm:$0xff]
        %v5233 = vld [vmem:[%s11 + $0x8] sm:$0xff]
        %v5234 = vld [vmem:[%s11 + $0x10] sm:$0xff]
        %v5235 = vld [vmem:[%s11 + $0x18] sm:$0xff]
        %v5236 = vld [vmem:[%s11 + $0x20] sm:$0xff]
        %v5237 = vld [vmem:[%s11 + $0x28] sm:$0xff]
        %v5238 = vld [vmem:[%s11 + $0x30] sm:$0xff]
        %v5239 = vld [vmem:[%s11 + $0x38] sm:$0xff]
        %v5240 = vld [vmem:[%s11 + $0x40] sm:$0xff]
        %v5241 = vld [vmem:[%s11 + $0x48] sm:$0xff]
        %v5242 = vld [vmem:[%s11 + $0x50] sm:$0xff]
        %v5243 = vld [vmem:[%s11 + $0x58] sm:$0xff]
        %v5244 = vld [vmem:[%s11 + $0x60] sm:$0xff]
        %v5245 = vld [vmem:[%s11 + $0x68] sm:$0xff]
        %v5246 = vld [vmem:[%s11 + $0x70] sm:$0xff]
        %v5247 = vld [vmem:[%s11 + $0x78] sm:$0xff]
        %v5248 = vld [vmem:[%s11 + $0x80] sm:$0xff]
        %v5249 = vld [vmem:[%s11 + $0x88] sm:$0xff]
        %v5250 = vld [vmem:[%s11 + $0x90] sm:$0xff]
        %v5251 = vld [vmem:[%s11 + $0x98] sm:$0xff]
        %v5252 = vld [vmem:[%s11 + $0xa0] sm:$0xff]
        %v5253 = vld [vmem:[%s11 + $0xa8] sm:$0xff]
        %v5254 = vld [vmem:[%s11 + $0xb0] sm:$0xff]
        %v5255 = vld [vmem:[%s11 + $0xb8] sm:$0xff]
        %v5256 = vld [vmem:[%s12] sm:$0x3]
        %v5258 = vlaneseq
        %v5259 = vshrl.u32 %v5258, 7
        %v5260 = vsub.s32 0, %v5259
        %v5261 = vrot.slane %v5256, %v5260
        %v5262 = vlaneseq
        %v5263 = vshrl.u32 %v5262, 7
        %v5264 = vsub.s32 1, %v5263
        %v5265 = vrot.slane %v5256, %v5264
        %v5292 = vunpack.c.l.b16 %v5232
        %v5293 = vunpack.c.h.b16 %v5232
        %v5294 = vunpack.c.l.b16 %v5233
        %v5295 = vunpack.c.h.b16 %v5233
        %v5296 = vunpack.c.l.b16 %v5234
        %v5297 = vunpack.c.h.b16 %v5234
        %v5298 = vunpack.c.l.b16 %v5235
        %v5299 = vunpack.c.h.b16 %v5235
        %v5300 = vunpack.c.l.b16 %v5236
        %v5301 = vunpack.c.h.b16 %v5236
        %v5302 = vunpack.c.l.b16 %v5237
        %v5303 = vunpack.c.h.b16 %v5237
        %v5304 = vunpack.c.l.b16 %v5238
        %v5305 = vunpack.c.h.b16 %v5238
        %v5306 = vunpack.c.l.b16 %v5239
        %v5307 = vunpack.c.h.b16 %v5239
        %v5308 = vunpack.c.l.b16 %v5240
        %v5309 = vunpack.c.h.b16 %v5240
        %v5310 = vunpack.c.l.b16 %v5241
        %v5311 = vunpack.c.h.b16 %v5241
        %v5312 = vunpack.c.l.b16 %v5242
        %v5313 = vunpack.c.h.b16 %v5242
        %v5314 = vunpack.c.l.b16 %v5243
        %v5315 = vunpack.c.h.b16 %v5243
        %v5316 = vunpack.c.l.b16 %v5244
        %v5317 = vunpack.c.h.b16 %v5244
        %v5318 = vunpack.c.l.b16 %v5245
        %v5319 = vunpack.c.h.b16 %v5245
        %v5320 = vunpack.c.l.b16 %v5246
        %v5321 = vunpack.c.h.b16 %v5246
        %v5322 = vunpack.c.l.b16 %v5247
        %v5323 = vunpack.c.h.b16 %v5247
        %v5324 = vunpack.c.l.b16 %v5248
        %v5325 = vunpack.c.h.b16 %v5248
        %v5326 = vunpack.c.l.b16 %v5249
        %v5327 = vunpack.c.h.b16 %v5249
        %v5328 = vunpack.c.l.b16 %v5250
        %v5329 = vunpack.c.h.b16 %v5250
        %v5330 = vunpack.c.l.b16 %v5251
        %v5331 = vunpack.c.h.b16 %v5251
        %v5332 = vunpack.c.l.b16 %v5252
        %v5333 = vunpack.c.h.b16 %v5252
        %v5334 = vunpack.c.l.b16 %v5253
        %v5335 = vunpack.c.h.b16 %v5253
        %v5336 = vunpack.c.l.b16 %v5254
        %v5337 = vunpack.c.h.b16 %v5254
        %v5338 = vunpack.c.l.b16 %v5255
        %v5339 = vunpack.c.h.b16 %v5255
        %v5340 = vpack.c.b16 %v5294, %v5292
        %v5341 = vpack.c.b16 %v5295, %v5293
        %v5342 = vpack.c.b16 %v5298, %v5296
        %v5343 = vpack.c.b16 %v5299, %v5297
        %v5344 = vpack.c.b16 %v5302, %v5300
        %v5345 = vpack.c.b16 %v5303, %v5301
        %v5346 = vpack.c.b16 %v5306, %v5304
        %v5347 = vpack.c.b16 %v5307, %v5305
        %v5348 = vpack.c.b16 %v5310, %v5308
        %v5349 = vpack.c.b16 %v5311, %v5309
        %v5350 = vpack.c.b16 %v5314, %v5312
        %v5351 = vpack.c.b16 %v5315, %v5313
        %v5352 = vpack.c.b16 %v5318, %v5316
        %v5353 = vpack.c.b16 %v5319, %v5317
        %v5354 = vpack.c.b16 %v5322, %v5320
        %v5355 = vpack.c.b16 %v5323, %v5321
        %v5356 = vpack.c.b16 %v5326, %v5324
        %v5357 = vpack.c.b16 %v5327, %v5325
        %v5358 = vpack.c.b16 %v5330, %v5328
        %v5359 = vpack.c.b16 %v5331, %v5329
        %v5360 = vpack.c.b16 %v5334, %v5332
        %v5361 = vpack.c.b16 %v5335, %v5333
        %v5362 = vpack.c.b16 %v5338, %v5336
        %v5363 = vpack.c.b16 %v5339, %v5337
        %v5389 = vsel %vm1331, %v5209, 0
        %v5392 = vsel %vm1331, %v5211, 0
        %v5395 = vsel %vm1331, %v5213, 0
        %v5398 = vsel %vm1331, %v5215, 0
        %v5401 = vsel %vm1331, %v5217, 0
        %v5404 = vsel %vm1331, %v5219, 0
        %v5407 = vsel %vm1331, %v5221, 0
        %v5410 = vsel %vm1331, %v5223, 0
        %v5413 = vsel %vm1331, %v5225, 0
        %v5416 = vsel %vm1331, %v5227, 0
        %v5419 = vsel %vm1331, %v5229, 0
        %v5422 = vsel %vm1331, %v5231, 0
        %5424 = vmatprep.subr.bf16.mxu0 %v5341
        %5425 = vmatpush1.bf16.msra.mxu0 %v5340
        %5426 = vmatprep.subr.bf16.mxu0 %v5343
        %5427 = vmatpush1.bf16.msra.mxu0 %v5342
        %5428 = vmatprep.subr.bf16.mxu0 %v5345
        %5429 = vmatpush1.bf16.msra.mxu0 %v5344
        %5430 = vmatprep.subr.bf16.mxu0 %v5347
        %5431 = vmatpush1.bf16.msra.mxu0 %v5346
        %5432 = vmatprep.subr.bf16.mxu0 %v5349
        %5433 = vmatpush1.bf16.msra.mxu0 %v5348
        %5434 = vmatprep.subr.bf16.mxu0 %v5351
        %5435 = vmatpush1.bf16.msra.mxu0 %v5350
        %5436 = vmatprep.subr.bf16.mxu0 %v5353
        %5437 = vmatpush1.bf16.msra.mxu0 %v5352
        %5438 = vmatprep.subr.bf16.mxu0 %v5355
        %5439 = vmatpush1.bf16.msra.mxu0 %v5354
        %5440 = vmatprep.subr.bf16.mxu0 %v5357
        %5441 = vmatpush1.bf16.msra.mxu0 %v5356
        %5442 = vmatprep.subr.bf16.mxu0 %v5359
        %5443 = vmatpush1.bf16.msra.mxu0 %v5358
        %5444 = vmatprep.subr.bf16.mxu0 %v5361
        %5445 = vmatpush1.bf16.msra.mxu0 %v5360
        %5446 = vmatprep.subr.bf16.mxu0 %v5363
        %5447 = vmatpush1.bf16.msra.mxu0 %v5362
        %5448 = vmatprep.subr.bf16.mxu0 0
        %5449 = vmatpush1.bf16.msra.mxu0 0
        %5450 = vmatprep.subr.bf16.mxu0 0
        %5451 = vmatpush1.bf16.msra.mxu0 0
        %5452 = vmatprep.subr.bf16.mxu0 0
        %5453 = vmatpush1.bf16.msra.mxu0 0
        %5454 = vmatprep.subr.bf16.mxu0 0
        %5455 = vmatpush1.bf16.msra.mxu0 0
        %5456 = vmatprep.mubr.bf16.mxu0 %v5389
        %5457 = vmatmul.mubr.bf16.gmra.mrb[0].mxu0 %v5208
        %v5458 = vpop.f32.mrb[0].mxu0
        %v5459 = vadd.f32 %v5261, %v5458
        %v5460 = vpop.f32.mrb[0].mxu0
        %v5461 = vadd.f32 %v5265, %v5460
        %v5462 = vpop.f32.mrb[0].mxu0
        %v5463 = vpop.f32.mrb[0].mxu0
        %5464 = vmatprep.mubr.bf16.mxu0 %v5392
        %5465 = vmatmul.mubr.bf16.gmra.mrb[0].mxu0 %v5210
        %v5466 = vpop.f32.mrb[0].mxu0
        %v5467 = vadd.f32 %v5261, %v5466
        %v5468 = vpop.f32.mrb[0].mxu0
        %v5469 = vadd.f32 %v5265, %v5468
        %v5470 = vpop.f32.mrb[0].mxu0
        %v5471 = vpop.f32.mrb[0].mxu0
        %5472 = vmatprep.mubr.bf16.mxu0 %v5395
        %5473 = vmatmul.mubr.bf16.gmra.mrb[0].mxu0 %v5212
        %v5474 = vpop.f32.mrb[0].mxu0
        %v5475 = vadd.f32 %v5261, %v5474
        %v5476 = vpop.f32.mrb[0].mxu0
        %v5477 = vadd.f32 %v5265, %v5476
        %v5478 = vpop.f32.mrb[0].mxu0
        %v5479 = vpop.f32.mrb[0].mxu0
        %5480 = vmatprep.mubr.bf16.mxu0 %v5398
        %5481 = vmatmul.mubr.bf16.gmra.mrb[0].mxu0 %v5214
        %v5482 = vpop.f32.mrb[0].mxu0
        %v5483 = vadd.f32 %v5261, %v5482
        %v5484 = vpop.f32.mrb[0].mxu0
        %v5485 = vadd.f32 %v5265, %v5484
        %v5486 = vpop.f32.mrb[0].mxu0
        %v5487 = vpop.f32.mrb[0].mxu0
        %5488 = vmatprep.mubr.bf16.mxu0 %v5401
        %5489 = vmatmul.mubr.bf16.gmra.mrb[0].mxu0 %v5216
        %v5490 = vpop.f32.mrb[0].mxu0
        %v5491 = vadd.f32 %v5261, %v5490
        %v5492 = vpop.f32.mrb[0].mxu0
        %v5493 = vadd.f32 %v5265, %v5492
        %v5494 = vpop.f32.mrb[0].mxu0
        %v5495 = vpop.f32.mrb[0].mxu0
        %5496 = vmatprep.mubr.bf16.mxu0 %v5404
        %5497 = vmatmul.mubr.bf16.gmra.mrb[0].mxu0 %v5218
        %v5498 = vpop.f32.mrb[0].mxu0
        %v5499 = vadd.f32 %v5261, %v5498
        %v5500 = vpop.f32.mrb[0].mxu0
        %v5501 = vadd.f32 %v5265, %v5500
        %v5502 = vpop.f32.mrb[0].mxu0
        %v5503 = vpop.f32.mrb[0].mxu0
        %5504 = vmatprep.mubr.bf16.mxu0 %v5407
        %5505 = vmatmul.mubr.bf16.gmra.mrb[0].mxu0 %v5220
        %v5506 = vpop.f32.mrb[0].mxu0
        %v5507 = vadd.f32 %v5261, %v5506
        %v5508 = vpop.f32.mrb[0].mxu0
        %v5509 = vadd.f32 %v5265, %v5508
        %v5510 = vpop.f32.mrb[0].mxu0
        %v5511 = vpop.f32.mrb[0].mxu0
        %5512 = vmatprep.mubr.bf16.mxu0 %v5410
        %5513 = vmatmul.mubr.bf16.gmra.mrb[0].mxu0 %v5222
        %v5514 = vpop.f32.mrb[0].mxu0
        %v5515 = vadd.f32 %v5261, %v5514
        %v5516 = vpop.f32.mrb[0].mxu0
        %v5517 = vadd.f32 %v5265, %v5516
        %v5518 = vpop.f32.mrb[0].mxu0
        %v5519 = vpop.f32.mrb[0].mxu0
        %5520 = vmatprep.mubr.bf16.mxu0 %v5413
        %5521 = vmatmul.mubr.bf16.gmra.mrb[0].mxu0 %v5224
        %v5522 = vpop.f32.mrb[0].mxu0
        %v5523 = vpop.f32.mrb[0].mxu0
        %v5524 = vpop.f32.mrb[0].mxu0
        %v5525 = vpop.f32.mrb[0].mxu0
        %5526 = vmatprep.mubr.bf16.mxu0 %v5416
        %5527 = vmatmul.mubr.bf16.gmra.mrb[0].mxu0 %v5226
        %v5528 = vpop.f32.mrb[0].mxu0
        %v5529 = vpop.f32.mrb[0].mxu0
        %v5530 = vpop.f32.mrb[0].mxu0
        %v5531 = vpop.f32.mrb[0].mxu0
        %5532 = vmatprep.mubr.bf16.mxu0 %v5419
        %5533 = vmatmul.mubr.bf16.gmra.mrb[0].mxu0 %v5228
        %v5534 = vpop.f32.mrb[0].mxu0
        %v5535 = vpop.f32.mrb[0].mxu0
        %v5536 = vpop.f32.mrb[0].mxu0
        %v5537 = vpop.f32.mrb[0].mxu0
        %5538 = vmatprep.mubr.bf16.mxu0 %v5422
        %5539 = vmatmul.mubr.bf16.gmra.mrb[0].mxu0 %v5230
        %v5540 = vpop.f32.mrb[0].mxu0
        %v5541 = vpop.f32.mrb[0].mxu0
        %v5542 = vpop.f32.mrb[0].mxu0
        %v5543 = vpop.f32.mrb[0].mxu0
        %5544 = vdwg.mxu0
        %vm5545 = vcmp.gt.f32.partialorder %v5459, 0.0
        %vm5546 = vcmp.gt.f32.partialorder %v5461, 0.0
        %vm5547 = vcmp.gt.f32.partialorder %v5467, 0.0
        %vm5548 = vcmp.gt.f32.partialorder %v5469, 0.0
        %vm5549 = vcmp.gt.f32.partialorder %v5475, 0.0
        %vm5550 = vcmp.gt.f32.partialorder %v5477, 0.0
        %vm5551 = vcmp.gt.f32.partialorder %v5483, 0.0
        %vm5552 = vcmp.gt.f32.partialorder %v5485, 0.0
        %vm5553 = vcmp.gt.f32.partialorder %v5491, 0.0
        %vm5554 = vcmp.gt.f32.partialorder %v5493, 0.0
        %vm5555 = vcmp.gt.f32.partialorder %v5499, 0.0
        %vm5556 = vcmp.gt.f32.partialorder %v5501, 0.0
        %vm5557 = vcmp.gt.f32.partialorder %v5507, 0.0
        %vm5558 = vcmp.gt.f32.partialorder %v5509, 0.0
        %vm5559 = vcmp.gt.f32.partialorder %v5515, 0.0
        %vm5560 = vcmp.gt.f32.partialorder %v5517, 0.0
        %v5561 = vmin.f32 %v5459, 0.0
        %v5562 = vmin.f32 %v5461, 0.0
        %v5563 = vmin.f32 %v5467, 0.0
        %v5564 = vmin.f32 %v5469, 0.0
        %v5565 = vmin.f32 %v5475, 0.0
        %v5566 = vmin.f32 %v5477, 0.0
        %v5567 = vmin.f32 %v5483, 0.0
        %v5568 = vmin.f32 %v5485, 0.0
        %v5569 = vmin.f32 %v5491, 0.0
        %v5570 = vmin.f32 %v5493, 0.0
        %v5571 = vmin.f32 %v5499, 0.0
        %v5572 = vmin.f32 %v5501, 0.0
        %v5573 = vmin.f32 %v5507, 0.0
        %v5574 = vmin.f32 %v5509, 0.0
        %v5575 = vmin.f32 %v5515, 0.0
        %v5576 = vmin.f32 %v5517, 0.0
        %v5577 = vmul.f32 %v5561, 1.442695
        %v5578 = vpow.pop %v5577
        %v5579 = vmul.f32 %v5562, 1.442695
        %v5580 = vpow.pop %v5579
        %v5581 = vmul.f32 %v5563, 1.442695
        %v5582 = vpow.pop %v5581
        %v5583 = vmul.f32 %v5564, 1.442695
        %v5584 = vpow.pop %v5583
        %v5585 = vmul.f32 %v5565, 1.442695
        %v5586 = vpow.pop %v5585
        %v5587 = vmul.f32 %v5566, 1.442695
        %v5588 = vpow.pop %v5587
        %v5589 = vmul.f32 %v5567, 1.442695
        %v5590 = vpow.pop %v5589
        %v5591 = vmul.f32 %v5568, 1.442695
        %v5592 = vpow.pop %v5591
        %v5593 = vmul.f32 %v5569, 1.442695
        %v5594 = vpow.pop %v5593
        %v5595 = vmul.f32 %v5570, 1.442695
        %v5596 = vpow.pop %v5595
        %v5597 = vmul.f32 %v5571, 1.442695
        %v5598 = vpow.pop %v5597
        %v5599 = vmul.f32 %v5572, 1.442695
        %v5600 = vpow.pop %v5599
        %v5601 = vmul.f32 %v5573, 1.442695
        %v5602 = vpow.pop %v5601
        %v5603 = vmul.f32 %v5574, 1.442695
        %v5604 = vpow.pop %v5603
        %v5605 = vmul.f32 %v5575, 1.442695
        %v5606 = vpow.pop %v5605
        %v5607 = vmul.f32 %v5576, 1.442695
        %v5608 = vpow.pop %v5607
        %v5609 = vsub.f32 %v5578, 1.0
        %v5610 = vsub.f32 %v5580, 1.0
        %v5611 = vsub.f32 %v5582, 1.0
        %v5612 = vsub.f32 %v5584, 1.0
        %v5613 = vsub.f32 %v5586, 1.0
        %v5614 = vsub.f32 %v5588, 1.0
        %v5615 = vsub.f32 %v5590, 1.0
        %v5616 = vsub.f32 %v5592, 1.0
        %v5617 = vsub.f32 %v5594, 1.0
        %v5618 = vsub.f32 %v5596, 1.0
        %v5619 = vsub.f32 %v5598, 1.0
        %v5620 = vsub.f32 %v5600, 1.0
        %v5621 = vsub.f32 %v5602, 1.0
        %v5622 = vsub.f32 %v5604, 1.0
        %v5623 = vsub.f32 %v5606, 1.0
        %v5624 = vsub.f32 %v5608, 1.0
        %v5625 = vsel %vm5545, %v5459, %v5609
        %v5626 = vsel %vm5546, %v5461, %v5610
        %v5627 = vsel %vm5547, %v5467, %v5611
        %v5628 = vsel %vm5548, %v5469, %v5612
        %v5629 = vsel %vm5549, %v5475, %v5613
        %v5630 = vsel %vm5550, %v5477, %v5614
        %v5631 = vsel %vm5551, %v5483, %v5615
        %v5632 = vsel %vm5552, %v5485, %v5616
        %v5633 = vsel %vm5553, %v5491, %v5617
        %v5634 = vsel %vm5554, %v5493, %v5618
        %v5635 = vsel %vm5555, %v5499, %v5619
        %v5636 = vsel %vm5556, %v5501, %v5620
        %v5637 = vsel %vm5557, %v5507, %v5621
        %v5638 = vsel %vm5558, %v5509, %v5622
        %v5639 = vsel %vm5559, %v5515, %v5623
        %v5640 = vsel %vm5560, %v5517, %v5624
        %v5657 = vrot.slane %v5625, 6
        %v5658 = vrot.slane %v5626, 6
        %v5659 = vrot.slane %v5627, 6
        %v5660 = vrot.slane %v5628, 6
        %v5661 = vrot.slane %v5629, 6
        %v5662 = vrot.slane %v5630, 6
        %v5663 = vrot.slane %v5631, 6
        %v5664 = vrot.slane %v5632, 6
        %v5665 = vrot.slane %v5633, 6
        %v5666 = vrot.slane %v5634, 6
        %v5667 = vrot.slane %v5635, 6
        %v5668 = vrot.slane %v5636, 6
        %v5669 = vrot.slane %v5637, 6
        %v5670 = vrot.slane %v5638, 6
        %v5671 = vrot.slane %v5639, 6
        %v5672 = vrot.slane %v5640, 6
        %5673 = vrot.lane.b32.xlu0 %v5657, 32
        %v5674 = vpop.permute.xlu0 %5673
        %5675 = vrot.lane.b32.xlu0 %v5658, 32
        %v5676 = vpop.permute.xlu0 %5675
        %5677 = vrot.lane.b32.xlu0 %v5659, 32
        %v5678 = vpop.permute.xlu0 %5677
        %5679 = vrot.lane.b32.xlu0 %v5660, 32
        %v5680 = vpop.permute.xlu0 %5679
        %5681 = vrot.lane.b32.xlu0 %v5661, 32
        %v5682 = vpop.permute.xlu0 %5681
        %5683 = vrot.lane.b32.xlu0 %v5662, 32
        %v5684 = vpop.permute.xlu0 %5683
        %5685 = vrot.lane.b32.xlu0 %v5663, 32
        %v5686 = vpop.permute.xlu0 %5685
        %5687 = vrot.lane.b32.xlu0 %v5664, 32
        %v5688 = vpop.permute.xlu0 %5687
        %5689 = vrot.lane.b32.xlu0 %v5665, 32
        %v5690 = vpop.permute.xlu0 %5689
        %5691 = vrot.lane.b32.xlu0 %v5666, 32
        %v5692 = vpop.permute.xlu0 %5691
        %5693 = vrot.lane.b32.xlu0 %v5667, 32
        %v5694 = vpop.permute.xlu0 %5693
        %5695 = vrot.lane.b32.xlu0 %v5668, 32
        %v5696 = vpop.permute.xlu0 %5695
        %5697 = vrot.lane.b32.xlu0 %v5669, 32
        %v5698 = vpop.permute.xlu0 %5697
        %5699 = vrot.lane.b32.xlu0 %v5670, 32
        %v5700 = vpop.permute.xlu0 %5699
        %5701 = vrot.lane.b32.xlu0 %v5671, 32
        %v5702 = vpop.permute.xlu0 %5701
        %5703 = vrot.lane.b32.xlu0 %v5672, 32
        %v5704 = vpop.permute.xlu0 %5703
        %v5705 = vsel %vm1306, %v5674, %v5676
        %v5706 = vsel %vm1306, %v5678, %v5680
        %v5707 = vsel %vm1306, %v5682, %v5684
        %v5708 = vsel %vm1306, %v5686, %v5688
        %v5709 = vsel %vm1306, %v5690, %v5692
        %v5710 = vsel %vm1306, %v5694, %v5696
        %v5711 = vsel %vm1306, %v5698, %v5700
        %v5712 = vsel %vm1306, %v5702, %v5704
        %vm5721 = vcmask 1041408
        %v5722 = vsel %vm5721, 0.0, %v5705
        %v5723 = vsel %vm5721, 0.0, %v5706
        %v5724 = vsel %vm5721, 0.0, %v5707
        %v5725 = vsel %vm5721, 0.0, %v5708
        %v5726 = vsel %vm5721, 0.0, %v5709
        %v5727 = vsel %vm5721, 0.0, %v5710
        %v5728 = vsel %vm5721, 0.0, %v5711
        %v5729 = vsel %vm5721, 0.0, %v5712
        %v5730 = vsel %vm5721, %v5705, 0.0
        %v5731 = vsel %vm5721, %v5706, 0.0
        %v5732 = vsel %vm5721, %v5707, 0.0
        %v5733 = vsel %vm5721, %v5708, 0.0
        %v5734 = vsel %vm5721, %v5709, 0.0
        %v5735 = vsel %vm5721, %v5710, 0.0
        %v5736 = vsel %vm5721, %v5711, 0.0
        %v5737 = vsel %vm5721, %v5712, 0.0
        %v5738 = vpack.c.bf16 %v5730, %v5722
        %v5739 = vpack.c.bf16 %v5731, %v5723
        %v5740 = vpack.c.bf16 %v5732, %v5724
        %v5741 = vpack.c.bf16 %v5733, %v5725
        %v5742 = vpack.c.bf16 %v5734, %v5726
        %v5743 = vpack.c.bf16 %v5735, %v5727
        %v5744 = vpack.c.bf16 %v5736, %v5728
        %v5745 = vpack.c.bf16 %v5737, %v5729
        %v5746 = vsel %vm1118, %v2193, %v2192
        %v5748 = vshll.u32 %v5738, 16
        %v5750 = vrot.slane %v5748, 1
        %v5751 = vsel %vm1118, %v2193, %v5750
        %v5752 = vshrl.u32 %v5738, 16
        %v5754 = vor.u32 %v5752, %v5750
        %v5756 = vshll.u32 %v5739, 16
        %v5758 = vrot.slane %v5756, 1
        %v5759 = vsel %vm1118, %v5754, %v5758
        %v5760 = vshrl.u32 %v5739, 16
        %v5762 = vor.u32 %v5760, %v5758
        %v5764 = vshll.u32 %v5740, 16
        %v5766 = vrot.slane %v5764, 1
        %v5767 = vsel %vm1118, %v5762, %v5766
        %v5768 = vshrl.u32 %v5740, 16
        %v5770 = vor.u32 %v5768, %v5766
        %v5772 = vshll.u32 %v5741, 16
        %v5774 = vrot.slane %v5772, 1
        %v5775 = vsel %vm1118, %v5770, %v5774
        %v5776 = vshrl.u32 %v5741, 16
        %v5778 = vor.u32 %v5776, %v5774
        %v5780 = vshll.u32 %v5742, 16
        %v5782 = vrot.slane %v5780, 1
        %v5783 = vsel %vm1118, %v5778, %v5782
        %v5784 = vshrl.u32 %v5742, 16
        %v5786 = vor.u32 %v5784, %v5782
        %v5788 = vshll.u32 %v5743, 16
        %v5790 = vrot.slane %v5788, 1
        %v5791 = vsel %vm1118, %v5786, %v5790
        %v5792 = vshrl.u32 %v5743, 16
        %v5794 = vor.u32 %v5792, %v5790
        %v5796 = vshll.u32 %v5744, 16
        %v5798 = vrot.slane %v5796, 1
        %v5799 = vsel %vm1118, %v5794, %v5798
        %v5800 = vshrl.u32 %v5744, 16
        %v5802 = vor.u32 %v5800, %v5798
        %v5804 = vshll.u32 %v5745, 16
        %v5806 = vrot.slane %v5804, 1
        %v5807 = vsel %vm1118, %v5802, %v5806
        %v5808 = vshrl.u32 %v5745, 16
        %v5810 = vor.u32 %v5808, %v5806
        %v5811 = vsel %vm1118, %v5810, %v2192
        %5812 = vrot.lane.b32.xlu0 %v5746, 48
        %v5813 = vpop.permute.xlu0 %5812
        %5814 = vrot.lane.b32.xlu0 %v5751, 48
        %v5815 = vpop.permute.xlu0 %5814
        %5816 = vrot.lane.b32.xlu0 %v5759, 48
        %v5817 = vpop.permute.xlu0 %5816
        %5818 = vrot.lane.b32.xlu0 %v5767, 48
        %v5819 = vpop.permute.xlu0 %5818
        %5820 = vrot.lane.b32.xlu0 %v5775, 48
        %v5821 = vpop.permute.xlu0 %5820
        %5822 = vrot.lane.b32.xlu0 %v5783, 48
        %v5823 = vpop.permute.xlu0 %5822
        %5824 = vrot.lane.b32.xlu0 %v5791, 48
        %v5825 = vpop.permute.xlu0 %5824
        %5826 = vrot.lane.b32.xlu0 %v5799, 48
        %v5827 = vpop.permute.xlu0 %5826
        %5828 = vrot.lane.b32.xlu0 %v5807, 48
        %v5829 = vpop.permute.xlu0 %5828
        %5830 = vrot.lane.b32.xlu0 %v5811, 48
        %v5831 = vpop.permute.xlu0 %5830
        %5832 = vrot.lane.b32.xlu0 %v2275, 48
        %v5833 = vpop.permute.xlu0 %5832
        %v5842 = vsel %vm1256, %v2311, %v2311
        %v5843 = vrot.slane %v5738, 1
        %v5844 = vsel %vm1256, %v2311, %v5843
        %v5845 = vrot.slane %v5739, 1
        %v5846 = vsel %vm1256, %v5843, %v5845
        %v5847 = vrot.slane %v5740, 1
        %v5848 = vsel %vm1256, %v5845, %v5847
        %v5849 = vrot.slane %v5741, 1
        %v5850 = vsel %vm1256, %v5847, %v5849
        %v5851 = vrot.slane %v5742, 1
        %v5852 = vsel %vm1256, %v5849, %v5851
        %v5853 = vrot.slane %v5743, 1
        %v5854 = vsel %vm1256, %v5851, %v5853
        %v5855 = vrot.slane %v5744, 1
        %v5856 = vsel %vm1256, %v5853, %v5855
        %v5857 = vrot.slane %v5745, 1
        %v5858 = vsel %vm1256, %v5855, %v5857
        %v5859 = vsel %vm1256, %v5857, %v2311
        %5860 = vrot.lane.b32.xlu0 %v5842, 96
        %v5861 = vpop.permute.xlu0 %5860
        %5862 = vrot.lane.b32.xlu0 %v5844, 96
        %v5863 = vpop.permute.xlu0 %5862
        %5864 = vrot.lane.b32.xlu0 %v5846, 96
        %v5865 = vpop.permute.xlu0 %5864
        %5866 = vrot.lane.b32.xlu0 %v5848, 96
        %v5867 = vpop.permute.xlu0 %5866
        %5868 = vrot.lane.b32.xlu0 %v5850, 96
        %v5869 = vpop.permute.xlu0 %5868
        %5870 = vrot.lane.b32.xlu0 %v5852, 96
        %v5871 = vpop.permute.xlu0 %5870
        %5872 = vrot.lane.b32.xlu0 %v5854, 96
        %v5873 = vpop.permute.xlu0 %5872
        %5874 = vrot.lane.b32.xlu0 %v5856, 96
        %v5875 = vpop.permute.xlu0 %5874
        %5876 = vrot.lane.b32.xlu0 %v5858, 96
        %v5877 = vpop.permute.xlu0 %5876
        %5878 = vrot.lane.b32.xlu0 %v5859, 96
        %v5879 = vpop.permute.xlu0 %5878
        %5880 = vrot.lane.b32.xlu0 %v2333, 96
        %v5881 = vpop.permute.xlu0 %5880
        %vm5882 = vsmask.f32 6400
        %v5883 = vrot.slane %v2188, 1
        %v5884 = vrot.slane %v2190, 2
        %v5885 = vor.u32 %v5883, %v5884
        %v5886 = vsel %vm5882, %v5885, %v5885
        %v5887 = vrot.slane %v5752, 1
        %v5888 = vrot.slane %v5748, 2
        %v5889 = vor.u32 %v5887, %v5888
        %v5890 = vsel %vm5882, %v5885, %v5889
        %v5891 = vrot.slane %v5760, 1
        %v5892 = vrot.slane %v5756, 2
        %v5893 = vor.u32 %v5891, %v5892
        %v5894 = vsel %vm5882, %v5889, %v5893
        %v5895 = vrot.slane %v5768, 1
        %v5896 = vrot.slane %v5764, 2
        %v5897 = vor.u32 %v5895, %v5896
        %v5898 = vsel %vm5882, %v5893, %v5897
        %v5899 = vrot.slane %v5776, 1
        %v5900 = vrot.slane %v5772, 2
        %v5901 = vor.u32 %v5899, %v5900
        %v5902 = vsel %vm5882, %v5897, %v5901
        %v5903 = vrot.slane %v5784, 1
        %v5904 = vrot.slane %v5780, 2
        %v5905 = vor.u32 %v5903, %v5904
        %v5906 = vsel %vm5882, %v5901, %v5905
        %v5907 = vrot.slane %v5792, 1
        %v5908 = vrot.slane %v5788, 2
        %v5909 = vor.u32 %v5907, %v5908
        %v5910 = vsel %vm5882, %v5905, %v5909
        %v5911 = vrot.slane %v5800, 1
        %v5912 = vrot.slane %v5796, 2
        %v5913 = vor.u32 %v5911, %v5912
        %v5914 = vsel %vm5882, %v5909, %v5913
        %v5915 = vrot.slane %v5808, 1
        %v5916 = vrot.slane %v5804, 2
        %v5917 = vor.u32 %v5915, %v5916
        %v5918 = vsel %vm5882, %v5913, %v5917
        %v5919 = vsel %vm5882, %v5917, %v5885
        %v5920 = vrot.slane %v1368, 1
        %v5921 = vrot.slane %v1215, 2
        %v5922 = vor.u32 %v5920, %v5921
        %v5923 = vsel %vm5882, %v5885, %v5922
        %5924 = vrot.lane.b32.xlu0 %v5886, 16
        %v5925 = vpop.permute.xlu0 %5924
        %5926 = vrot.lane.b32.xlu0 %v5890, 16
        %v5927 = vpop.permute.xlu0 %5926
        %5928 = vrot.lane.b32.xlu0 %v5894, 16
        %v5929 = vpop.permute.xlu0 %5928
        %5930 = vrot.lane.b32.xlu0 %v5898, 16
        %v5931 = vpop.permute.xlu0 %5930
        %5932 = vrot.lane.b32.xlu0 %v5902, 16
        %v5933 = vpop.permute.xlu0 %5932
        %5934 = vrot.lane.b32.xlu0 %v5906, 16
        %v5935 = vpop.permute.xlu0 %5934
        %5936 = vrot.lane.b32.xlu0 %v5910, 16
        %v5937 = vpop.permute.xlu0 %5936
        %5938 = vrot.lane.b32.xlu0 %v5914, 16
        %v5939 = vpop.permute.xlu0 %5938
        %5940 = vrot.lane.b32.xlu0 %v5918, 16
        %v5941 = vpop.permute.xlu0 %5940
        %5942 = vrot.lane.b32.xlu0 %v5919, 16
        %v5943 = vpop.permute.xlu0 %5942
        %5944 = vrot.lane.b32.xlu0 %v5923, 16
        %v5945 = vpop.permute.xlu0 %5944
        %vm5946 = vcmask 1045504
        %v5947 = vrot.slane %v2176, 2
        %v5948 = vsel %vm5946, %v5947, %v5947
        %v5949 = vrot.slane %v5738, 2
        %v5950 = vsel %vm5946, %v5947, %v5949
        %v5951 = vrot.slane %v5739, 2
        %v5952 = vsel %vm5946, %v5949, %v5951
        %v5953 = vrot.slane %v5740, 2
        %v5954 = vsel %vm5946, %v5951, %v5953
        %v5955 = vrot.slane %v5741, 2
        %v5956 = vsel %vm5946, %v5953, %v5955
        %v5957 = vrot.slane %v5742, 2
        %v5958 = vsel %vm5946, %v5955, %v5957
        %v5959 = vrot.slane %v5743, 2
        %v5960 = vsel %vm5946, %v5957, %v5959
        %v5961 = vrot.slane %v5744, 2
        %v5962 = vsel %vm5946, %v5959, %v5961
        %v5963 = vrot.slane %v5745, 2
        %v5964 = vsel %vm5946, %v5961, %v5963
        %v5965 = vsel %vm5946, %v5963, %v5947
        %v5966 = vrot.slane 0, 2
        %v5967 = vsel %vm5946, %v5947, %v5966
        %5968 = vrot.lane.b32.xlu0 %v5948, 64
        %v5969 = vpop.permute.xlu0 %5968
        %5970 = vrot.lane.b32.xlu0 %v5950, 64
        %v5971 = vpop.permute.xlu0 %5970
        %5972 = vrot.lane.b32.xlu0 %v5952, 64
        %v5973 = vpop.permute.xlu0 %5972
        %5974 = vrot.lane.b32.xlu0 %v5954, 64
        %v5975 = vpop.permute.xlu0 %5974
        %5976 = vrot.lane.b32.xlu0 %v5956, 64
        %v5977 = vpop.permute.xlu0 %5976
        %5978 = vrot.lane.b32.xlu0 %v5958, 64
        %v5979 = vpop.permute.xlu0 %5978
        %5980 = vrot.lane.b32.xlu0 %v5960, 64
        %v5981 = vpop.permute.xlu0 %5980
        %5982 = vrot.lane.b32.xlu0 %v5962, 64
        %v5983 = vpop.permute.xlu0 %5982
        %5984 = vrot.lane.b32.xlu0 %v5964, 64
        %v5985 = vpop.permute.xlu0 %5984
        %5986 = vrot.lane.b32.xlu0 %v5965, 64
        %v5987 = vpop.permute.xlu0 %5986
        %5988 = vrot.lane.b32.xlu0 %v5967, 64
        %v5989 = vpop.permute.xlu0 %5988
        %vm5990 = vcmask 392192
        %v5992 = vsel %vm5990, %v2176, %v5813
        %v5994 = vsel %vm5990, %v2176, %v5815
        %v5996 = vsel %vm5990, %v5738, %v5817
        %v5998 = vsel %vm5990, %v5739, %v5819
        %v6000 = vsel %vm5990, %v5740, %v5821
        %v6002 = vsel %vm5990, %v5741, %v5823
        %v6004 = vsel %vm5990, %v5742, %v5825
        %v6006 = vsel %vm5990, %v5743, %v5827
        %v6008 = vsel %vm5990, %v5744, %v5829
        %v6010 = vsel %vm5990, %v5745, %v5831
        %v6012 = vsel %vm5990, %v2176, %v5833
        %v6014 = vsel %vm1430, %v5992, %v5861
        %v6017 = vsel %vm1430, %v5994, %v5863
        %v6020 = vsel %vm1430, %v5996, %v5865
        %v6023 = vsel %vm1430, %v5998, %v5867
        %v6026 = vsel %vm1430, %v6000, %v5869
        %v6029 = vsel %vm1430, %v6002, %v5871
        %v6032 = vsel %vm1430, %v6004, %v5873
        %v6035 = vsel %vm1430, %v6006, %v5875
        %v6038 = vsel %vm1430, %v6008, %v5877
        %v6041 = vsel %vm1430, %v6010, %v5879
        %v6044 = vsel %vm1430, %v6012, %v5881
        %vm6046 = vcmask 130048
        %v6048 = vsel %vm6046, %v5861, %v5925
        %v6050 = vsel %vm6046, %v5863, %v5927
        %v6052 = vsel %vm6046, %v5865, %v5929
        %v6054 = vsel %vm6046, %v5867, %v5931
        %v6056 = vsel %vm6046, %v5869, %v5933
        %v6058 = vsel %vm6046, %v5871, %v5935
        %v6060 = vsel %vm6046, %v5873, %v5937
        %v6062 = vsel %vm6046, %v5875, %v5939
        %v6064 = vsel %vm6046, %v5877, %v5941
        %v6066 = vsel %vm6046, %v5879, %v5943
        %v6068 = vsel %vm6046, %v5881, %v5945
        %v6070 = vsel %vm1331, %v6048, %v5969
        %v6072 = vsel %vm1331, %v6050, %v5971
        %v6074 = vsel %vm1331, %v6052, %v5973
        %v6076 = vsel %vm1331, %v6054, %v5975
        %v6078 = vsel %vm1331, %v6056, %v5977
        %v6080 = vsel %vm1331, %v6058, %v5979
        %v6082 = vsel %vm1331, %v6060, %v5981
        %v6084 = vsel %vm1331, %v6062, %v5983
        %v6086 = vsel %vm1331, %v6064, %v5985
        %v6088 = vsel %vm1331, %v6066, %v5987
        %v6090 = vsel %vm1331, %v6068, %v5989
        %v6091 = vld [vmem:[%s13] sm:$0xf]
        %v6092 = vld [vmem:[%s13 + $0x4] sm:$0xf]
        %v6093 = vld [vmem:[%s13 + $0x8] sm:$0xf]
        %v6094 = vld [vmem:[%s13 + $0xc] sm:$0xf]
        %v6095 = vld [vmem:[%s13 + $0x10] sm:$0xf]
        %v6096 = vld [vmem:[%s13 + $0x14] sm:$0xf]
        %v6097 = vld [vmem:[%s13 + $0x18] sm:$0xf]
        %v6098 = vld [vmem:[%s13 + $0x1c] sm:$0xf]
        %v6099 = vld [vmem:[%s13 + $0x20] sm:$0xf]
        %v6100 = vld [vmem:[%s13 + $0x24] sm:$0xf]
        %v6101 = vld [vmem:[%s13 + $0x28] sm:$0xf]
        %v6102 = vld [vmem:[%s13 + $0x2c] sm:$0xf]
        %v6103 = vld [vmem:[%s13 + $0x30] sm:$0xf]
        %v6104 = vld [vmem:[%s13 + $0x34] sm:$0xf]
        %v6105 = vld [vmem:[%s13 + $0x38] sm:$0xf]
        %v6106 = vld [vmem:[%s13 + $0x3c] sm:$0xf]
        %v6107 = vld [vmem:[%s13 + $0x40] sm:$0xf]
        %v6108 = vld [vmem:[%s13 + $0x44] sm:$0xf]
        %v6109 = vld [vmem:[%s13 + $0x48] sm:$0xf]
        %v6110 = vld [vmem:[%s13 + $0x4c] sm:$0xf]
        %v6111 = vld [vmem:[%s13 + $0x50] sm:$0xf]
        %v6112 = vld [vmem:[%s13 + $0x54] sm:$0xf]
        %v6113 = vld [vmem:[%s13 + $0x58] sm:$0xf]
        %v6114 = vld [vmem:[%s13 + $0x5c] sm:$0xf]
        %v6115 = vld [vmem:[%s13 + $0x60] sm:$0xf]
        %v6116 = vld [vmem:[%s13 + $0x64] sm:$0xf]
        %v6117 = vld [vmem:[%s13 + $0x68] sm:$0xf]
        %v6118 = vld [vmem:[%s13 + $0x6c] sm:$0xf]
        %v6119 = vld [vmem:[%s13 + $0x70] sm:$0xf]
        %v6120 = vld [vmem:[%s13 + $0x74] sm:$0xf]
        %6121 = vrot.lane.b32.xlu0 %v1371, 48
        %v6122 = vpop.permute.xlu0 %6121
        %6123 = vrot.lane.b32.xlu0 %v1374, 96
        %v6124 = vpop.permute.xlu0 %6123
        %v6125 = vsel %vm5882, %v5922, %v5922
        %6126 = vrot.lane.b32.xlu0 %v6125, 16
        %v6127 = vpop.permute.xlu0 %6126
        %v6128 = vsel %vm5946, %v5966, %v5966
        %6129 = vrot.lane.b32.xlu0 %v6128, 64
        %v6130 = vpop.permute.xlu0 %6129
        %v6132 = vsel %vm5990, 0, %v6122
        %v6134 = vsel %vm1430, %v6132, %v6124
        %v6137 = vsel %vm6046, %v6124, %v6127
        %v6139 = vsel %vm1331, %v6137, %v6130
        %s6140 = scalar_lea.vmem %s13, 120
        %v6141 = vld [vmem:[%s6140] sm:$0xf]
        %v6142 = vld [vmem:[%s6140 + $0x4] sm:$0xf]
        %v6143 = vld [vmem:[%s6140 + $0x8] sm:$0xf]
        %v6144 = vld [vmem:[%s6140 + $0xc] sm:$0xf]
        %v6145 = vld [vmem:[%s6140 + $0x10] sm:$0xf]
        %v6146 = vld [vmem:[%s6140 + $0x14] sm:$0xf]
        %v6147 = vld [vmem:[%s6140 + $0x18] sm:$0xf]
        %v6148 = vld [vmem:[%s6140 + $0x1c] sm:$0xf]
        %v6149 = vld [vmem:[%s6140 + $0x20] sm:$0xf]
        %v6150 = vld [vmem:[%s6140 + $0x24] sm:$0xf]
        %v6151 = vld [vmem:[%s6140 + $0x28] sm:$0xf]
        %v6152 = vld [vmem:[%s6140 + $0x2c] sm:$0xf]
        %v6153 = vld [vmem:[%s6140 + $0x30] sm:$0xf]
        %v6154 = vld [vmem:[%s6140 + $0x34] sm:$0xf]
        %v6155 = vld [vmem:[%s6140 + $0x38] sm:$0xf]
        %v6156 = vld [vmem:[%s6140 + $0x3c] sm:$0xf]
        %v6157 = vld [vmem:[%s6140 + $0x40] sm:$0xf]
        %v6158 = vld [vmem:[%s6140 + $0x44] sm:$0xf]
        %v6159 = vld [vmem:[%s6140 + $0x48] sm:$0xf]
        %v6160 = vld [vmem:[%s6140 + $0x4c] sm:$0xf]
        %v6161 = vld [vmem:[%s6140 + $0x50] sm:$0xf]
        %v6162 = vld [vmem:[%s6140 + $0x54] sm:$0xf]
        %v6163 = vld [vmem:[%s6140 + $0x58] sm:$0xf]
        %v6164 = vld [vmem:[%s6140 + $0x5c] sm:$0xf]
        %v6165 = vld [vmem:[%s6140 + $0x60] sm:$0xf]
        %v6166 = vld [vmem:[%s6140 + $0x64] sm:$0xf]
        %v6167 = vld [vmem:[%s6140 + $0x68] sm:$0xf]
        %v6168 = vld [vmem:[%s6140 + $0x6c] sm:$0xf]
        %v6169 = vld [vmem:[%s6140 + $0x70] sm:$0xf]
        %v6170 = vld [vmem:[%s6140 + $0x74] sm:$0xf]
        %v6201 = vunpack.c.l.b16 %v6141
        %v6202 = vunpack.c.l.b16 %v6142
        %v6203 = vunpack.c.l.b16 %v6143
        %v6204 = vunpack.c.l.b16 %v6144
        %v6205 = vunpack.c.l.b16 %v6145
        %v6206 = vunpack.c.l.b16 %v6146
        %v6207 = vunpack.c.l.b16 %v6147
        %v6208 = vunpack.c.l.b16 %v6148
        %v6209 = vunpack.c.l.b16 %v6149
        %v6210 = vunpack.c.l.b16 %v6150
        %v6211 = vunpack.c.l.b16 %v6151
        %v6212 = vunpack.c.l.b16 %v6152
        %v6213 = vunpack.c.l.b16 %v6153
        %v6214 = vunpack.c.l.b16 %v6154
        %v6215 = vunpack.c.l.b16 %v6155
        %v6216 = vunpack.c.l.b16 %v6156
        %v6217 = vunpack.c.l.b16 %v6157
        %v6218 = vunpack.c.l.b16 %v6158
        %v6219 = vunpack.c.l.b16 %v6159
        %v6220 = vunpack.c.l.b16 %v6160
        %v6221 = vunpack.c.l.b16 %v6161
        %v6222 = vunpack.c.l.b16 %v6162
        %v6223 = vunpack.c.l.b16 %v6163
        %v6224 = vunpack.c.l.b16 %v6164
        %v6225 = vunpack.c.l.b16 %v6165
        %v6226 = vunpack.c.l.b16 %v6166
        %v6227 = vunpack.c.l.b16 %v6167
        %v6228 = vunpack.c.l.b16 %v6168
        %v6229 = vunpack.c.l.b16 %v6169
        %v6230 = vunpack.c.l.b16 %v6170
        %v6231 = vpack.c.b16 %v6202, %v6201
        %v6232 = vpack.c.b16 %v6204, %v6203
        %v6233 = vpack.c.b16 %v6206, %v6205
        %v6234 = vpack.c.b16 %v6208, %v6207
        %v6235 = vpack.c.b16 %v6210, %v6209
        %v6236 = vpack.c.b16 %v6212, %v6211
        %v6237 = vpack.c.b16 %v6214, %v6213
        %v6238 = vpack.c.b16 %v6216, %v6215
        %v6239 = vpack.c.b16 %v6218, %v6217
        %v6240 = vpack.c.b16 %v6220, %v6219
        %v6241 = vpack.c.b16 %v6222, %v6221
        %v6242 = vpack.c.b16 %v6224, %v6223
        %v6243 = vpack.c.b16 %v6226, %v6225
        %v6244 = vpack.c.b16 %v6228, %v6227
        %v6245 = vpack.c.b16 %v6230, %v6229
        %v6261 = vsel %vm3995, %v6072, 0
        %v6263 = vsel %vm3995, %v6074, 0
        %v6265 = vsel %vm3995, %v6076, 0
        %v6267 = vsel %vm3995, %v6078, 0
        %v6269 = vsel %vm3995, %v6080, 0
        %v6271 = vsel %vm3995, %v6082, 0
        %v6273 = vsel %vm3995, %v6084, 0
        %v6275 = vsel %vm3995, %v6086, 0
        %v6277 = vsel %vm3995, %v6088, 0
        %v6279 = vsel %vm3995, %v6070, 0
        %v6281 = vsel %vm3995, %v6090, 0
        %v6283 = vsel %vm3995, %v6139, 0
        %6285 = vmatprep.subr.bf16.mxu0 0
        %6286 = vmatpush1.bf16.msra.mxu0 %v6231
        %6287 = vmatprep.subr.bf16.mxu0 0
        %6288 = vmatpush1.bf16.msra.mxu0 %v6232
        %6289 = vmatprep.subr.bf16.mxu0 0
        %6290 = vmatpush1.bf16.msra.mxu0 %v6233
        %6291 = vmatprep.subr.bf16.mxu0 0
        %6292 = vmatpush1.bf16.msra.mxu0 %v6234
        %6293 = vmatprep.subr.bf16.mxu0 0
        %6294 = vmatpush1.bf16.msra.mxu0 %v6235
        %6295 = vmatprep.subr.bf16.mxu0 0
        %6296 = vmatpush1.bf16.msra.mxu0 %v6236
        %6297 = vmatprep.subr.bf16.mxu0 0
        %6298 = vmatpush1.bf16.msra.mxu0 %v6237
        %6299 = vmatprep.subr.bf16.mxu0 0
        %6300 = vmatpush1.bf16.msra.mxu0 %v6238
        %6301 = vmatprep.subr.bf16.mxu0 0
        %6302 = vmatpush1.bf16.msra.mxu0 %v6239
        %6303 = vmatprep.subr.bf16.mxu0 0
        %6304 = vmatpush1.bf16.msra.mxu0 %v6240
        %6305 = vmatprep.subr.bf16.mxu0 0
        %6306 = vmatpush1.bf16.msra.mxu0 %v6241
        %6307 = vmatprep.subr.bf16.mxu0 0
        %6308 = vmatpush1.bf16.msra.mxu0 %v6242
        %6309 = vmatprep.subr.bf16.mxu0 0
        %6310 = vmatpush1.bf16.msra.mxu0 %v6243
        %6311 = vmatprep.subr.bf16.mxu0 0
        %6312 = vmatpush1.bf16.msra.mxu0 %v6244
        %6313 = vmatprep.subr.bf16.mxu0 0
        %6314 = vmatpush1.bf16.msra.mxu0 %v6245
        %6315 = vmatprep.subr.bf16.mxu0 0
        %6316 = vmatpush1.bf16.msra.mxu0 0
        %6317 = vmatprep.mubr.bf16.mxu0 %v6261
        %6318 = vmatmul.mubr.bf16.gmra.mrb[0].mxu0 %v6017
        %v6319 = vpop.f32.mrb[0].mxu0
        %v6320 = vadd.f32 0.0, %v6319
        %v6321 = vpop.f32.mrb[0].mxu0
        %v6322 = vpop.f32.mrb[0].mxu0
        %v6323 = vpop.f32.mrb[0].mxu0
        %6324 = vmatprep.mubr.bf16.mxu0 %v6263
        %6325 = vmatmul.mubr.bf16.gmra.mrb[0].mxu0 %v6020
        %v6326 = vpop.f32.mrb[0].mxu0
        %v6327 = vadd.f32 0.0, %v6326
        %v6328 = vpop.f32.mrb[0].mxu0
        %v6329 = vpop.f32.mrb[0].mxu0
        %v6330 = vpop.f32.mrb[0].mxu0
        %6331 = vmatprep.mubr.bf16.mxu0 %v6265
        %6332 = vmatmul.mubr.bf16.gmra.mrb[0].mxu0 %v6023
        %v6333 = vpop.f32.mrb[0].mxu0
        %v6334 = vadd.f32 0.0, %v6333
        %v6335 = vpop.f32.mrb[0].mxu0
        %v6336 = vpop.f32.mrb[0].mxu0
        %v6337 = vpop.f32.mrb[0].mxu0
        %6338 = vmatprep.mubr.bf16.mxu0 %v6267
        %6339 = vmatmul.mubr.bf16.gmra.mrb[0].mxu0 %v6026
        %v6340 = vpop.f32.mrb[0].mxu0
        %v6341 = vadd.f32 0.0, %v6340
        %v6342 = vpop.f32.mrb[0].mxu0
        %v6343 = vpop.f32.mrb[0].mxu0
        %v6344 = vpop.f32.mrb[0].mxu0
        %6345 = vmatprep.mubr.bf16.mxu0 %v6269
        %6346 = vmatmul.mubr.bf16.gmra.mrb[0].mxu0 %v6029
        %v6347 = vpop.f32.mrb[0].mxu0
        %v6348 = vadd.f32 0.0, %v6347
        %v6349 = vpop.f32.mrb[0].mxu0
        %v6350 = vpop.f32.mrb[0].mxu0
        %v6351 = vpop.f32.mrb[0].mxu0
        %6352 = vmatprep.mubr.bf16.mxu0 %v6271
        %6353 = vmatmul.mubr.bf16.gmra.mrb[0].mxu0 %v6032
        %v6354 = vpop.f32.mrb[0].mxu0
        %v6355 = vadd.f32 0.0, %v6354
        %v6356 = vpop.f32.mrb[0].mxu0
        %v6357 = vpop.f32.mrb[0].mxu0
        %v6358 = vpop.f32.mrb[0].mxu0
        %6359 = vmatprep.mubr.bf16.mxu0 %v6273
        %6360 = vmatmul.mubr.bf16.gmra.mrb[0].mxu0 %v6035
        %v6361 = vpop.f32.mrb[0].mxu0
        %v6362 = vadd.f32 0.0, %v6361
        %v6363 = vpop.f32.mrb[0].mxu0
        %v6364 = vpop.f32.mrb[0].mxu0
        %v6365 = vpop.f32.mrb[0].mxu0
        %6366 = vmatprep.mubr.bf16.mxu0 %v6275
        %6367 = vmatmul.mubr.bf16.gmra.mrb[0].mxu0 %v6038
        %v6368 = vpop.f32.mrb[0].mxu0
        %v6369 = vadd.f32 0.0, %v6368
        %v6370 = vpop.f32.mrb[0].mxu0
        %v6371 = vpop.f32.mrb[0].mxu0
        %v6372 = vpop.f32.mrb[0].mxu0
        %6373 = vmatprep.mubr.bf16.mxu0 %v6277
        %6374 = vmatmul.mubr.bf16.gmra.mrb[0].mxu0 %v6041
        %v6375 = vpop.f32.mrb[0].mxu0
        %v6376 = vpop.f32.mrb[0].mxu0
        %v6377 = vpop.f32.mrb[0].mxu0
        %v6378 = vpop.f32.mrb[0].mxu0
        %6379 = vmatprep.mubr.bf16.mxu0 %v6279
        %6380 = vmatmul.mubr.bf16.gmra.mrb[0].mxu0 %v6014
        %v6381 = vpop.f32.mrb[0].mxu0
        %v6382 = vpop.f32.mrb[0].mxu0
        %v6383 = vpop.f32.mrb[0].mxu0
        %v6384 = vpop.f32.mrb[0].mxu0
        %6385 = vmatprep.mubr.bf16.mxu0 %v6281
        %6386 = vmatmul.mubr.bf16.gmra.mrb[0].mxu0 %v6044
        %v6387 = vpop.f32.mrb[0].mxu0
        %v6388 = vpop.f32.mrb[0].mxu0
        %v6389 = vpop.f32.mrb[0].mxu0
        %v6390 = vpop.f32.mrb[0].mxu0
        %6391 = vmatprep.mubr.bf16.mxu0 %v6283
        %6392 = vmatmul.mubr.bf16.gmra.mrb[0].mxu0 %v6134
        %v6393 = vpop.f32.mrb[0].mxu0
        %v6394 = vpop.f32.mrb[0].mxu0
        %v6395 = vpop.f32.mrb[0].mxu0
        %v6396 = vpop.f32.mrb[0].mxu0
        %6397 = vdwg.mxu0
        %v6428 = vunpack.c.l.b16 %v6091
        %v6429 = vunpack.c.l.b16 %v6092
        %v6430 = vunpack.c.l.b16 %v6093
        %v6431 = vunpack.c.l.b16 %v6094
        %v6432 = vunpack.c.l.b16 %v6095
        %v6433 = vunpack.c.l.b16 %v6096
        %v6434 = vunpack.c.l.b16 %v6097
        %v6435 = vunpack.c.l.b16 %v6098
        %v6436 = vunpack.c.l.b16 %v6099
        %v6437 = vunpack.c.l.b16 %v6100
        %v6438 = vunpack.c.l.b16 %v6101
        %v6439 = vunpack.c.l.b16 %v6102
        %v6440 = vunpack.c.l.b16 %v6103
        %v6441 = vunpack.c.l.b16 %v6104
        %v6442 = vunpack.c.l.b16 %v6105
        %v6443 = vunpack.c.l.b16 %v6106
        %v6444 = vunpack.c.l.b16 %v6107
        %v6445 = vunpack.c.l.b16 %v6108
        %v6446 = vunpack.c.l.b16 %v6109
        %v6447 = vunpack.c.l.b16 %v6110
        %v6448 = vunpack.c.l.b16 %v6111
        %v6449 = vunpack.c.l.b16 %v6112
        %v6450 = vunpack.c.l.b16 %v6113
        %v6451 = vunpack.c.l.b16 %v6114
        %v6452 = vunpack.c.l.b16 %v6115
        %v6453 = vunpack.c.l.b16 %v6116
        %v6454 = vunpack.c.l.b16 %v6117
        %v6455 = vunpack.c.l.b16 %v6118
        %v6456 = vunpack.c.l.b16 %v6119
        %v6457 = vunpack.c.l.b16 %v6120
        %v6458 = vpack.c.b16 %v6429, %v6428
        %v6459 = vpack.c.b16 %v6431, %v6430
        %v6460 = vpack.c.b16 %v6433, %v6432
        %v6461 = vpack.c.b16 %v6435, %v6434
        %v6462 = vpack.c.b16 %v6437, %v6436
        %v6463 = vpack.c.b16 %v6439, %v6438
        %v6464 = vpack.c.b16 %v6441, %v6440
        %v6465 = vpack.c.b16 %v6443, %v6442
        %v6466 = vpack.c.b16 %v6445, %v6444
        %v6467 = vpack.c.b16 %v6447, %v6446
        %v6468 = vpack.c.b16 %v6449, %v6448
        %v6469 = vpack.c.b16 %v6451, %v6450
        %v6470 = vpack.c.b16 %v6453, %v6452
        %v6471 = vpack.c.b16 %v6455, %v6454
        %v6472 = vpack.c.b16 %v6457, %v6456
        %6488 = vmatprep.subr.bf16.mxu0 0
        %6489 = vmatpush1.bf16.msra.mxu0 %v6458
        %6490 = vmatprep.subr.bf16.mxu0 0
        %6491 = vmatpush1.bf16.msra.mxu0 %v6459
        %6492 = vmatprep.subr.bf16.mxu0 0
        %6493 = vmatpush1.bf16.msra.mxu0 %v6460
        %6494 = vmatprep.subr.bf16.mxu0 0
        %6495 = vmatpush1.bf16.msra.mxu0 %v6461
        %6496 = vmatprep.subr.bf16.mxu0 0
        %6497 = vmatpush1.bf16.msra.mxu0 %v6462
        %6498 = vmatprep.subr.bf16.mxu0 0
        %6499 = vmatpush1.bf16.msra.mxu0 %v6463
        %6500 = vmatprep.subr.bf16.mxu0 0
        %6501 = vmatpush1.bf16.msra.mxu0 %v6464
        %6502 = vmatprep.subr.bf16.mxu0 0
        %6503 = vmatpush1.bf16.msra.mxu0 %v6465
        %6504 = vmatprep.subr.bf16.mxu0 0
        %6505 = vmatpush1.bf16.msra.mxu0 %v6466
        %6506 = vmatprep.subr.bf16.mxu0 0
        %6507 = vmatpush1.bf16.msra.mxu0 %v6467
        %6508 = vmatprep.subr.bf16.mxu0 0
        %6509 = vmatpush1.bf16.msra.mxu0 %v6468
        %6510 = vmatprep.subr.bf16.mxu0 0
        %6511 = vmatpush1.bf16.msra.mxu0 %v6469
        %6512 = vmatprep.subr.bf16.mxu0 0
        %6513 = vmatpush1.bf16.msra.mxu0 %v6470
        %6514 = vmatprep.subr.bf16.mxu0 0
        %6515 = vmatpush1.bf16.msra.mxu0 %v6471
        %6516 = vmatprep.subr.bf16.mxu0 0
        %6517 = vmatpush1.bf16.msra.mxu0 %v6472
        %6518 = vmatprep.subr.bf16.mxu0 0
        %6519 = vmatpush1.bf16.msra.mxu0 0
        %6520 = vmatprep.mubr.bf16.mxu0 %v6279
        %6521 = vmatmul.mubr.bf16.gmra.mrb[0].mxu0 %v6014
        %v6522 = vpop.f32.mrb[0].mxu0
        %v6523 = vadd.f32 %v6320, %v6522
        %v6524 = vpop.f32.mrb[0].mxu0
        %v6525 = vpop.f32.mrb[0].mxu0
        %v6526 = vpop.f32.mrb[0].mxu0
        %6527 = vmatprep.mubr.bf16.mxu0 %v6261
        %6528 = vmatmul.mubr.bf16.gmra.mrb[0].mxu0 %v6017
        %v6529 = vpop.f32.mrb[0].mxu0
        %v6530 = vadd.f32 %v6327, %v6529
        %v6531 = vpop.f32.mrb[0].mxu0
        %v6532 = vpop.f32.mrb[0].mxu0
        %v6533 = vpop.f32.mrb[0].mxu0
        %6534 = vmatprep.mubr.bf16.mxu0 %v6263
        %6535 = vmatmul.mubr.bf16.gmra.mrb[0].mxu0 %v6020
        %v6536 = vpop.f32.mrb[0].mxu0
        %v6537 = vadd.f32 %v6334, %v6536
        %v6538 = vpop.f32.mrb[0].mxu0
        %v6539 = vpop.f32.mrb[0].mxu0
        %v6540 = vpop.f32.mrb[0].mxu0
        %6541 = vmatprep.mubr.bf16.mxu0 %v6265
        %6542 = vmatmul.mubr.bf16.gmra.mrb[0].mxu0 %v6023
        %v6543 = vpop.f32.mrb[0].mxu0
        %v6544 = vadd.f32 %v6341, %v6543
        %v6545 = vpop.f32.mrb[0].mxu0
        %v6546 = vpop.f32.mrb[0].mxu0
        %v6547 = vpop.f32.mrb[0].mxu0
        %6548 = vmatprep.mubr.bf16.mxu0 %v6267
        %6549 = vmatmul.mubr.bf16.gmra.mrb[0].mxu0 %v6026
        %v6550 = vpop.f32.mrb[0].mxu0
        %v6551 = vadd.f32 %v6348, %v6550
        %v6552 = vpop.f32.mrb[0].mxu0
        %v6553 = vpop.f32.mrb[0].mxu0
        %v6554 = vpop.f32.mrb[0].mxu0
        %6555 = vmatprep.mubr.bf16.mxu0 %v6269
        %6556 = vmatmul.mubr.bf16.gmra.mrb[0].mxu0 %v6029
        %v6557 = vpop.f32.mrb[0].mxu0
        %v6558 = vadd.f32 %v6355, %v6557
        %v6559 = vpop.f32.mrb[0].mxu0
        %v6560 = vpop.f32.mrb[0].mxu0
        %v6561 = vpop.f32.mrb[0].mxu0
        %6562 = vmatprep.mubr.bf16.mxu0 %v6271
        %6563 = vmatmul.mubr.bf16.gmra.mrb[0].mxu0 %v6032
        %v6564 = vpop.f32.mrb[0].mxu0
        %v6565 = vadd.f32 %v6362, %v6564
        %v6566 = vpop.f32.mrb[0].mxu0
        %v6567 = vpop.f32.mrb[0].mxu0
        %v6568 = vpop.f32.mrb[0].mxu0
        %6569 = vmatprep.mubr.bf16.mxu0 %v6273
        %6570 = vmatmul.mubr.bf16.gmra.mrb[0].mxu0 %v6035
        %v6571 = vpop.f32.mrb[0].mxu0
        %v6572 = vadd.f32 %v6369, %v6571
        %v6573 = vpop.f32.mrb[0].mxu0
        %v6574 = vpop.f32.mrb[0].mxu0
        %v6575 = vpop.f32.mrb[0].mxu0
        %6576 = vmatprep.mubr.bf16.mxu0 %v6275
        %6577 = vmatmul.mubr.bf16.gmra.mrb[0].mxu0 %v6038
        %v6578 = vpop.f32.mrb[0].mxu0
        %v6579 = vpop.f32.mrb[0].mxu0
        %v6580 = vpop.f32.mrb[0].mxu0
        %v6581 = vpop.f32.mrb[0].mxu0
        %6582 = vmatprep.mubr.bf16.mxu0 %v6277
        %6583 = vmatmul.mubr.bf16.gmra.mrb[0].mxu0 %v6041
        %v6584 = vpop.f32.mrb[0].mxu0
        %v6585 = vpop.f32.mrb[0].mxu0
        %v6586 = vpop.f32.mrb[0].mxu0
        %v6587 = vpop.f32.mrb[0].mxu0
        %6588 = vmatprep.mubr.bf16.mxu0 %v6279
        %6589 = vmatmul.mubr.bf16.gmra.mrb[0].mxu0 %v6014
        %v6590 = vpop.f32.mrb[0].mxu0
        %v6591 = vpop.f32.mrb[0].mxu0
        %v6592 = vpop.f32.mrb[0].mxu0
        %v6593 = vpop.f32.mrb[0].mxu0
        %6594 = vmatprep.mubr.bf16.mxu0 %v6281
        %6595 = vmatmul.mubr.bf16.gmra.mrb[0].mxu0 %v6044
        %v6596 = vpop.f32.mrb[0].mxu0
        %v6597 = vpop.f32.mrb[0].mxu0
        %v6598 = vpop.f32.mrb[0].mxu0
        %v6599 = vpop.f32.mrb[0].mxu0
        %6600 = vdwg.mxu0
        %s6601 = scalar_lea.vmem %s13, 240
        %v6602 = vld [vmem:[%s6601] sm:$0xf]
        %v6603 = vld [vmem:[%s6601 + $0x4] sm:$0xf]
        %v6604 = vld [vmem:[%s6601 + $0x8] sm:$0xf]
        %v6605 = vld [vmem:[%s6601 + $0xc] sm:$0xf]
        %v6606 = vld [vmem:[%s6601 + $0x10] sm:$0xf]
        %v6607 = vld [vmem:[%s6601 + $0x14] sm:$0xf]
        %v6608 = vld [vmem:[%s6601 + $0x18] sm:$0xf]
        %v6609 = vld [vmem:[%s6601 + $0x1c] sm:$0xf]
        %v6610 = vld [vmem:[%s6601 + $0x20] sm:$0xf]
        %v6611 = vld [vmem:[%s6601 + $0x24] sm:$0xf]
        %v6612 = vld [vmem:[%s6601 + $0x28] sm:$0xf]
        %v6613 = vld [vmem:[%s6601 + $0x2c] sm:$0xf]
        %v6614 = vld [vmem:[%s6601 + $0x30] sm:$0xf]
        %v6615 = vld [vmem:[%s6601 + $0x34] sm:$0xf]
        %v6616 = vld [vmem:[%s6601 + $0x38] sm:$0xf]
        %v6617 = vld [vmem:[%s6601 + $0x3c] sm:$0xf]
        %v6618 = vld [vmem:[%s6601 + $0x40] sm:$0xf]
        %v6619 = vld [vmem:[%s6601 + $0x44] sm:$0xf]
        %v6620 = vld [vmem:[%s6601 + $0x48] sm:$0xf]
        %v6621 = vld [vmem:[%s6601 + $0x4c] sm:$0xf]
        %v6622 = vld [vmem:[%s6601 + $0x50] sm:$0xf]
        %v6623 = vld [vmem:[%s6601 + $0x54] sm:$0xf]
        %v6624 = vld [vmem:[%s6601 + $0x58] sm:$0xf]
        %v6625 = vld [vmem:[%s6601 + $0x5c] sm:$0xf]
        %v6626 = vld [vmem:[%s6601 + $0x60] sm:$0xf]
        %v6627 = vld [vmem:[%s6601 + $0x64] sm:$0xf]
        %v6628 = vld [vmem:[%s6601 + $0x68] sm:$0xf]
        %v6629 = vld [vmem:[%s6601 + $0x6c] sm:$0xf]
        %v6630 = vld [vmem:[%s6601 + $0x70] sm:$0xf]
        %v6631 = vld [vmem:[%s6601 + $0x74] sm:$0xf]
        %v6662 = vunpack.c.l.b16 %v6602
        %v6663 = vunpack.c.l.b16 %v6603
        %v6664 = vunpack.c.l.b16 %v6604
        %v6665 = vunpack.c.l.b16 %v6605
        %v6666 = vunpack.c.l.b16 %v6606
        %v6667 = vunpack.c.l.b16 %v6607
        %v6668 = vunpack.c.l.b16 %v6608
        %v6669 = vunpack.c.l.b16 %v6609
        %v6670 = vunpack.c.l.b16 %v6610
        %v6671 = vunpack.c.l.b16 %v6611
        %v6672 = vunpack.c.l.b16 %v6612
        %v6673 = vunpack.c.l.b16 %v6613
        %v6674 = vunpack.c.l.b16 %v6614
        %v6675 = vunpack.c.l.b16 %v6615
        %v6676 = vunpack.c.l.b16 %v6616
        %v6677 = vunpack.c.l.b16 %v6617
        %v6678 = vunpack.c.l.b16 %v6618
        %v6679 = vunpack.c.l.b16 %v6619
        %v6680 = vunpack.c.l.b16 %v6620
        %v6681 = vunpack.c.l.b16 %v6621
        %v6682 = vunpack.c.l.b16 %v6622
        %v6683 = vunpack.c.l.b16 %v6623
        %v6684 = vunpack.c.l.b16 %v6624
        %v6685 = vunpack.c.l.b16 %v6625
        %v6686 = vunpack.c.l.b16 %v6626
        %v6687 = vunpack.c.l.b16 %v6627
        %v6688 = vunpack.c.l.b16 %v6628
        %v6689 = vunpack.c.l.b16 %v6629
        %v6690 = vunpack.c.l.b16 %v6630
        %v6691 = vunpack.c.l.b16 %v6631
        %v6692 = vpack.c.b16 %v6663, %v6662
        %v6693 = vpack.c.b16 %v6665, %v6664
        %v6694 = vpack.c.b16 %v6667, %v6666
        %v6695 = vpack.c.b16 %v6669, %v6668
        %v6696 = vpack.c.b16 %v6671, %v6670
        %v6697 = vpack.c.b16 %v6673, %v6672
        %v6698 = vpack.c.b16 %v6675, %v6674
        %v6699 = vpack.c.b16 %v6677, %v6676
        %v6700 = vpack.c.b16 %v6679, %v6678
        %v6701 = vpack.c.b16 %v6681, %v6680
        %v6702 = vpack.c.b16 %v6683, %v6682
        %v6703 = vpack.c.b16 %v6685, %v6684
        %v6704 = vpack.c.b16 %v6687, %v6686
        %v6705 = vpack.c.b16 %v6689, %v6688
        %v6706 = vpack.c.b16 %v6691, %v6690
        %6722 = vmatprep.subr.bf16.mxu0 0
        %6723 = vmatpush1.bf16.msra.mxu0 %v6692
        %6724 = vmatprep.subr.bf16.mxu0 0
        %6725 = vmatpush1.bf16.msra.mxu0 %v6693
        %6726 = vmatprep.subr.bf16.mxu0 0
        %6727 = vmatpush1.bf16.msra.mxu0 %v6694
        %6728 = vmatprep.subr.bf16.mxu0 0
        %6729 = vmatpush1.bf16.msra.mxu0 %v6695
        %6730 = vmatprep.subr.bf16.mxu0 0
        %6731 = vmatpush1.bf16.msra.mxu0 %v6696
        %6732 = vmatprep.subr.bf16.mxu0 0
        %6733 = vmatpush1.bf16.msra.mxu0 %v6697
        %6734 = vmatprep.subr.bf16.mxu0 0
        %6735 = vmatpush1.bf16.msra.mxu0 %v6698
        %6736 = vmatprep.subr.bf16.mxu0 0
        %6737 = vmatpush1.bf16.msra.mxu0 %v6699
        %6738 = vmatprep.subr.bf16.mxu0 0
        %6739 = vmatpush1.bf16.msra.mxu0 %v6700
        %6740 = vmatprep.subr.bf16.mxu0 0
        %6741 = vmatpush1.bf16.msra.mxu0 %v6701
        %6742 = vmatprep.subr.bf16.mxu0 0
        %6743 = vmatpush1.bf16.msra.mxu0 %v6702
        %6744 = vmatprep.subr.bf16.mxu0 0
        %6745 = vmatpush1.bf16.msra.mxu0 %v6703
        %6746 = vmatprep.subr.bf16.mxu0 0
        %6747 = vmatpush1.bf16.msra.mxu0 %v6704
        %6748 = vmatprep.subr.bf16.mxu0 0
        %6749 = vmatpush1.bf16.msra.mxu0 %v6705
        %6750 = vmatprep.subr.bf16.mxu0 0
        %6751 = vmatpush1.bf16.msra.mxu0 %v6706
        %6752 = vmatprep.subr.bf16.mxu0 0
        %6753 = vmatpush1.bf16.msra.mxu0 0
        %6754 = vmatprep.mubr.bf16.mxu0 %v6263
        %6755 = vmatmul.mubr.bf16.gmra.mrb[0].mxu0 %v6020
        %v6756 = vpop.f32.mrb[0].mxu0
        %v6757 = vadd.f32 0.0, %v6756
        %v6758 = vpop.f32.mrb[0].mxu0
        %v6759 = vpop.f32.mrb[0].mxu0
        %v6760 = vpop.f32.mrb[0].mxu0
        %6761 = vmatprep.mubr.bf16.mxu0 %v6265
        %6762 = vmatmul.mubr.bf16.gmra.mrb[0].mxu0 %v6023
        %v6763 = vpop.f32.mrb[0].mxu0
        %v6764 = vadd.f32 0.0, %v6763
        %v6765 = vpop.f32.mrb[0].mxu0
        %v6766 = vpop.f32.mrb[0].mxu0
        %v6767 = vpop.f32.mrb[0].mxu0
        %6768 = vmatprep.mubr.bf16.mxu0 %v6267
        %6769 = vmatmul.mubr.bf16.gmra.mrb[0].mxu0 %v6026
        %v6770 = vpop.f32.mrb[0].mxu0
        %v6771 = vadd.f32 0.0, %v6770
        %v6772 = vpop.f32.mrb[0].mxu0
        %v6773 = vpop.f32.mrb[0].mxu0
        %v6774 = vpop.f32.mrb[0].mxu0
        %6775 = vmatprep.mubr.bf16.mxu0 %v6269
        %6776 = vmatmul.mubr.bf16.gmra.mrb[0].mxu0 %v6029
        %v6777 = vpop.f32.mrb[0].mxu0
        %v6778 = vadd.f32 0.0, %v6777
        %v6779 = vpop.f32.mrb[0].mxu0
        %v6780 = vpop.f32.mrb[0].mxu0
        %v6781 = vpop.f32.mrb[0].mxu0
        %6782 = vmatprep.mubr.bf16.mxu0 %v6271
        %6783 = vmatmul.mubr.bf16.gmra.mrb[0].mxu0 %v6032
        %v6784 = vpop.f32.mrb[0].mxu0
        %v6785 = vadd.f32 0.0, %v6784
        %v6786 = vpop.f32.mrb[0].mxu0
        %v6787 = vpop.f32.mrb[0].mxu0
        %v6788 = vpop.f32.mrb[0].mxu0
        %6789 = vmatprep.mubr.bf16.mxu0 %v6273
        %6790 = vmatmul.mubr.bf16.gmra.mrb[0].mxu0 %v6035
        %v6791 = vpop.f32.mrb[0].mxu0
        %v6792 = vadd.f32 0.0, %v6791
        %v6793 = vpop.f32.mrb[0].mxu0
        %v6794 = vpop.f32.mrb[0].mxu0
        %v6795 = vpop.f32.mrb[0].mxu0
        %6796 = vmatprep.mubr.bf16.mxu0 %v6275
        %6797 = vmatmul.mubr.bf16.gmra.mrb[0].mxu0 %v6038
        %v6798 = vpop.f32.mrb[0].mxu0
        %v6799 = vadd.f32 0.0, %v6798
        %v6800 = vpop.f32.mrb[0].mxu0
        %v6801 = vpop.f32.mrb[0].mxu0
        %v6802 = vpop.f32.mrb[0].mxu0
        %6803 = vmatprep.mubr.bf16.mxu0 %v6277
        %6804 = vmatmul.mubr.bf16.gmra.mrb[0].mxu0 %v6041
        %v6805 = vpop.f32.mrb[0].mxu0
        %v6806 = vadd.f32 0.0, %v6805
        %v6807 = vpop.f32.mrb[0].mxu0
        %v6808 = vpop.f32.mrb[0].mxu0
        %v6809 = vpop.f32.mrb[0].mxu0
        %6810 = vmatprep.mubr.bf16.mxu0 %v6279
        %6811 = vmatmul.mubr.bf16.gmra.mrb[0].mxu0 %v6014
        %v6812 = vpop.f32.mrb[0].mxu0
        %v6813 = vpop.f32.mrb[0].mxu0
        %v6814 = vpop.f32.mrb[0].mxu0
        %v6815 = vpop.f32.mrb[0].mxu0
        %6816 = vmatprep.mubr.bf16.mxu0 %v6281
        %6817 = vmatmul.mubr.bf16.gmra.mrb[0].mxu0 %v6044
        %v6818 = vpop.f32.mrb[0].mxu0
        %v6819 = vpop.f32.mrb[0].mxu0
        %v6820 = vpop.f32.mrb[0].mxu0
        %v6821 = vpop.f32.mrb[0].mxu0
        %6822 = vmatprep.mubr.bf16.mxu0 %v6283
        %6823 = vmatmul.mubr.bf16.gmra.mrb[0].mxu0 %v6134
        %v6824 = vpop.f32.mrb[0].mxu0
        %v6825 = vpop.f32.mrb[0].mxu0
        %v6826 = vpop.f32.mrb[0].mxu0
        %v6827 = vpop.f32.mrb[0].mxu0
        %6828 = vmatprep.mubr.bf16.mxu0 %v6283
        %6829 = vmatmul.mubr.bf16.gmra.mrb[0].mxu0 %v6134
        %v6830 = vpop.f32.mrb[0].mxu0
        %v6831 = vpop.f32.mrb[0].mxu0
        %v6832 = vpop.f32.mrb[0].mxu0
        %v6833 = vpop.f32.mrb[0].mxu0
        %6834 = vdwg.mxu0
        %v6835 = vadd.f32 %v6523, %v6757
        %v6836 = vadd.f32 %v6530, %v6764
        %v6837 = vadd.f32 %v6537, %v6771
        %v6838 = vadd.f32 %v6544, %v6778
        %v6839 = vadd.f32 %v6551, %v6785
        %v6840 = vadd.f32 %v6558, %v6792
        %v6841 = vadd.f32 %v6565, %v6799
        %v6842 = vadd.f32 %v6572, %v6806
        %s6843 = scalar_lea.vmem %s13, 360
        %v6844 = vld [vmem:[%s6843] sm:$0xf]
        %v6845 = vld [vmem:[%s6843 + $0x4] sm:$0xf]
        %v6846 = vld [vmem:[%s6843 + $0x8] sm:$0xf]
        %v6847 = vld [vmem:[%s6843 + $0xc] sm:$0xf]
        %v6848 = vld [vmem:[%s6843 + $0x10] sm:$0xf]
        %v6849 = vld [vmem:[%s6843 + $0x14] sm:$0xf]
        %v6850 = vld [vmem:[%s6843 + $0x18] sm:$0xf]
        %v6851 = vld [vmem:[%s6843 + $0x1c] sm:$0xf]
        %v6852 = vld [vmem:[%s6843 + $0x20] sm:$0xf]
        %v6853 = vld [vmem:[%s6843 + $0x24] sm:$0xf]
        %v6854 = vld [vmem:[%s6843 + $0x28] sm:$0xf]
        %v6855 = vld [vmem:[%s6843 + $0x2c] sm:$0xf]
        %v6856 = vld [vmem:[%s6843 + $0x30] sm:$0xf]
        %v6857 = vld [vmem:[%s6843 + $0x34] sm:$0xf]
        %v6858 = vld [vmem:[%s6843 + $0x38] sm:$0xf]
        %v6859 = vld [vmem:[%s6843 + $0x3c] sm:$0xf]
        %v6860 = vld [vmem:[%s6843 + $0x40] sm:$0xf]
        %v6861 = vld [vmem:[%s6843 + $0x44] sm:$0xf]
        %v6862 = vld [vmem:[%s6843 + $0x48] sm:$0xf]
        %v6863 = vld [vmem:[%s6843 + $0x4c] sm:$0xf]
        %v6864 = vld [vmem:[%s6843 + $0x50] sm:$0xf]
        %v6865 = vld [vmem:[%s6843 + $0x54] sm:$0xf]
        %v6866 = vld [vmem:[%s6843 + $0x58] sm:$0xf]
        %v6867 = vld [vmem:[%s6843 + $0x5c] sm:$0xf]
        %v6868 = vld [vmem:[%s6843 + $0x60] sm:$0xf]
        %v6869 = vld [vmem:[%s6843 + $0x64] sm:$0xf]
        %v6870 = vld [vmem:[%s6843 + $0x68] sm:$0xf]
        %v6871 = vld [vmem:[%s6843 + $0x6c] sm:$0xf]
        %v6872 = vld [vmem:[%s6843 + $0x70] sm:$0xf]
        %v6873 = vld [vmem:[%s6843 + $0x74] sm:$0xf]
        %v6904 = vunpack.c.l.b16 %v6844
        %v6905 = vunpack.c.l.b16 %v6845
        %v6906 = vunpack.c.l.b16 %v6846
        %v6907 = vunpack.c.l.b16 %v6847
        %v6908 = vunpack.c.l.b16 %v6848
        %v6909 = vunpack.c.l.b16 %v6849
        %v6910 = vunpack.c.l.b16 %v6850
        %v6911 = vunpack.c.l.b16 %v6851
        %v6912 = vunpack.c.l.b16 %v6852
        %v6913 = vunpack.c.l.b16 %v6853
        %v6914 = vunpack.c.l.b16 %v6854
        %v6915 = vunpack.c.l.b16 %v6855
        %v6916 = vunpack.c.l.b16 %v6856
        %v6917 = vunpack.c.l.b16 %v6857
        %v6918 = vunpack.c.l.b16 %v6858
        %v6919 = vunpack.c.l.b16 %v6859
        %v6920 = vunpack.c.l.b16 %v6860
        %v6921 = vunpack.c.l.b16 %v6861
        %v6922 = vunpack.c.l.b16 %v6862
        %v6923 = vunpack.c.l.b16 %v6863
        %v6924 = vunpack.c.l.b16 %v6864
        %v6925 = vunpack.c.l.b16 %v6865
        %v6926 = vunpack.c.l.b16 %v6866
        %v6927 = vunpack.c.l.b16 %v6867
        %v6928 = vunpack.c.l.b16 %v6868
        %v6929 = vunpack.c.l.b16 %v6869
        %v6930 = vunpack.c.l.b16 %v6870
        %v6931 = vunpack.c.l.b16 %v6871
        %v6932 = vunpack.c.l.b16 %v6872
        %v6933 = vunpack.c.l.b16 %v6873
        %v6934 = vpack.c.b16 %v6905, %v6904
        %v6935 = vpack.c.b16 %v6907, %v6906
        %v6936 = vpack.c.b16 %v6909, %v6908
        %v6937 = vpack.c.b16 %v6911, %v6910
        %v6938 = vpack.c.b16 %v6913, %v6912
        %v6939 = vpack.c.b16 %v6915, %v6914
        %v6940 = vpack.c.b16 %v6917, %v6916
        %v6941 = vpack.c.b16 %v6919, %v6918
        %v6942 = vpack.c.b16 %v6921, %v6920
        %v6943 = vpack.c.b16 %v6923, %v6922
        %v6944 = vpack.c.b16 %v6925, %v6924
        %v6945 = vpack.c.b16 %v6927, %v6926
        %v6946 = vpack.c.b16 %v6929, %v6928
        %v6947 = vpack.c.b16 %v6931, %v6930
        %v6948 = vpack.c.b16 %v6933, %v6932
        %6964 = vmatprep.subr.bf16.mxu0 0
        %6965 = vmatpush1.bf16.msra.mxu0 %v6934
        %6966 = vmatprep.subr.bf16.mxu0 0
        %6967 = vmatpush1.bf16.msra.mxu0 %v6935
        %6968 = vmatprep.subr.bf16.mxu0 0
        %6969 = vmatpush1.bf16.msra.mxu0 %v6936
        %6970 = vmatprep.subr.bf16.mxu0 0
        %6971 = vmatpush1.bf16.msra.mxu0 %v6937
        %6972 = vmatprep.subr.bf16.mxu0 0
        %6973 = vmatpush1.bf16.msra.mxu0 %v6938
        %6974 = vmatprep.subr.bf16.mxu0 0
        %6975 = vmatpush1.bf16.msra.mxu0 %v6939
        %6976 = vmatprep.subr.bf16.mxu0 0
        %6977 = vmatpush1.bf16.msra.mxu0 %v6940
        %6978 = vmatprep.subr.bf16.mxu0 0
        %6979 = vmatpush1.bf16.msra.mxu0 %v6941
        %6980 = vmatprep.subr.bf16.mxu0 0
        %6981 = vmatpush1.bf16.msra.mxu0 %v6942
        %6982 = vmatprep.subr.bf16.mxu0 0
        %6983 = vmatpush1.bf16.msra.mxu0 %v6943
        %6984 = vmatprep.subr.bf16.mxu0 0
        %6985 = vmatpush1.bf16.msra.mxu0 %v6944
        %6986 = vmatprep.subr.bf16.mxu0 0
        %6987 = vmatpush1.bf16.msra.mxu0 %v6945
        %6988 = vmatprep.subr.bf16.mxu0 0
        %6989 = vmatpush1.bf16.msra.mxu0 %v6946
        %6990 = vmatprep.subr.bf16.mxu0 0
        %6991 = vmatpush1.bf16.msra.mxu0 %v6947
        %6992 = vmatprep.subr.bf16.mxu0 0
        %6993 = vmatpush1.bf16.msra.mxu0 %v6948
        %6994 = vmatprep.subr.bf16.mxu0 0
        %6995 = vmatpush1.bf16.msra.mxu0 0
        %6996 = vmatprep.mubr.bf16.mxu0 %v6265
        %6997 = vmatmul.mubr.bf16.gmra.mrb[0].mxu0 %v6023
        %v6998 = vpop.f32.mrb[0].mxu0
        %v6999 = vadd.f32 0.0, %v6998
        %v7000 = vpop.f32.mrb[0].mxu0
        %v7001 = vpop.f32.mrb[0].mxu0
        %v7002 = vpop.f32.mrb[0].mxu0
        %7003 = vmatprep.mubr.bf16.mxu0 %v6267
        %7004 = vmatmul.mubr.bf16.gmra.mrb[0].mxu0 %v6026
        %v7005 = vpop.f32.mrb[0].mxu0
        %v7006 = vadd.f32 0.0, %v7005
        %v7007 = vpop.f32.mrb[0].mxu0
        %v7008 = vpop.f32.mrb[0].mxu0
        %v7009 = vpop.f32.mrb[0].mxu0
        %7010 = vmatprep.mubr.bf16.mxu0 %v6269
        %7011 = vmatmul.mubr.bf16.gmra.mrb[0].mxu0 %v6029
        %v7012 = vpop.f32.mrb[0].mxu0
        %v7013 = vadd.f32 0.0, %v7012
        %v7014 = vpop.f32.mrb[0].mxu0
        %v7015 = vpop.f32.mrb[0].mxu0
        %v7016 = vpop.f32.mrb[0].mxu0
        %7017 = vmatprep.mubr.bf16.mxu0 %v6271
        %7018 = vmatmul.mubr.bf16.gmra.mrb[0].mxu0 %v6032
        %v7019 = vpop.f32.mrb[0].mxu0
        %v7020 = vadd.f32 0.0, %v7019
        %v7021 = vpop.f32.mrb[0].mxu0
        %v7022 = vpop.f32.mrb[0].mxu0
        %v7023 = vpop.f32.mrb[0].mxu0
        %7024 = vmatprep.mubr.bf16.mxu0 %v6273
        %7025 = vmatmul.mubr.bf16.gmra.mrb[0].mxu0 %v6035
        %v7026 = vpop.f32.mrb[0].mxu0
        %v7027 = vadd.f32 0.0, %v7026
        %v7028 = vpop.f32.mrb[0].mxu0
        %v7029 = vpop.f32.mrb[0].mxu0
        %v7030 = vpop.f32.mrb[0].mxu0
        %7031 = vmatprep.mubr.bf16.mxu0 %v6275
        %7032 = vmatmul.mubr.bf16.gmra.mrb[0].mxu0 %v6038
        %v7033 = vpop.f32.mrb[0].mxu0
        %v7034 = vadd.f32 0.0, %v7033
        %v7035 = vpop.f32.mrb[0].mxu0
        %v7036 = vpop.f32.mrb[0].mxu0
        %v7037 = vpop.f32.mrb[0].mxu0
        %7038 = vmatprep.mubr.bf16.mxu0 %v6277
        %7039 = vmatmul.mubr.bf16.gmra.mrb[0].mxu0 %v6041
        %v7040 = vpop.f32.mrb[0].mxu0
        %v7041 = vadd.f32 0.0, %v7040
        %v7042 = vpop.f32.mrb[0].mxu0
        %v7043 = vpop.f32.mrb[0].mxu0
        %v7044 = vpop.f32.mrb[0].mxu0
        %7045 = vmatprep.mubr.bf16.mxu0 %v6279
        %7046 = vmatmul.mubr.bf16.gmra.mrb[0].mxu0 %v6014
        %v7047 = vpop.f32.mrb[0].mxu0
        %v7048 = vadd.f32 0.0, %v7047
        %v7049 = vpop.f32.mrb[0].mxu0
        %v7050 = vpop.f32.mrb[0].mxu0
        %v7051 = vpop.f32.mrb[0].mxu0
        %7052 = vmatprep.mubr.bf16.mxu0 %v6281
        %7053 = vmatmul.mubr.bf16.gmra.mrb[0].mxu0 %v6044
        %v7054 = vpop.f32.mrb[0].mxu0
        %v7055 = vpop.f32.mrb[0].mxu0
        %v7056 = vpop.f32.mrb[0].mxu0
        %v7057 = vpop.f32.mrb[0].mxu0
        %7058 = vmatprep.mubr.bf16.mxu0 %v6283
        %7059 = vmatmul.mubr.bf16.gmra.mrb[0].mxu0 %v6134
        %v7060 = vpop.f32.mrb[0].mxu0
        %v7061 = vpop.f32.mrb[0].mxu0
        %v7062 = vpop.f32.mrb[0].mxu0
        %v7063 = vpop.f32.mrb[0].mxu0
        %7064 = vmatprep.mubr.bf16.mxu0 %v6283
        %7065 = vmatmul.mubr.bf16.gmra.mrb[0].mxu0 %v6134
        %v7066 = vpop.f32.mrb[0].mxu0
        %v7067 = vpop.f32.mrb[0].mxu0
        %v7068 = vpop.f32.mrb[0].mxu0
        %v7069 = vpop.f32.mrb[0].mxu0
        %7070 = vmatprep.mubr.bf16.mxu0 %v6283
        %7071 = vmatmul.mubr.bf16.gmra.mrb[0].mxu0 %v6134
        %v7072 = vpop.f32.mrb[0].mxu0
        %v7073 = vpop.f32.mrb[0].mxu0
        %v7074 = vpop.f32.mrb[0].mxu0
        %v7075 = vpop.f32.mrb[0].mxu0
        %7076 = vdwg.mxu0
        %v7077 = vadd.f32 %v6835, %v6999
        %v7078 = vadd.f32 %v6836, %v7006
        %v7079 = vadd.f32 %v6837, %v7013
        %v7080 = vadd.f32 %v6838, %v7020
        %v7081 = vadd.f32 %v6839, %v7027
        %v7082 = vadd.f32 %v6840, %v7034
        %v7083 = vadd.f32 %v6841, %v7041
        %v7084 = vadd.f32 %v6842, %v7048
        %s7085 = scalar_lea.vmem %s13, 480
        %v7086 = vld [vmem:[%s7085] sm:$0xf]
        %v7087 = vld [vmem:[%s7085 + $0x4] sm:$0xf]
        %v7088 = vld [vmem:[%s7085 + $0x8] sm:$0xf]
        %v7089 = vld [vmem:[%s7085 + $0xc] sm:$0xf]
        %v7090 = vld [vmem:[%s7085 + $0x10] sm:$0xf]
        %v7091 = vld [vmem:[%s7085 + $0x14] sm:$0xf]
        %v7092 = vld [vmem:[%s7085 + $0x18] sm:$0xf]
        %v7093 = vld [vmem:[%s7085 + $0x1c] sm:$0xf]
        %v7094 = vld [vmem:[%s7085 + $0x20] sm:$0xf]
        %v7095 = vld [vmem:[%s7085 + $0x24] sm:$0xf]
        %v7096 = vld [vmem:[%s7085 + $0x28] sm:$0xf]
        %v7097 = vld [vmem:[%s7085 + $0x2c] sm:$0xf]
        %v7098 = vld [vmem:[%s7085 + $0x30] sm:$0xf]
        %v7099 = vld [vmem:[%s7085 + $0x34] sm:$0xf]
        %v7100 = vld [vmem:[%s7085 + $0x38] sm:$0xf]
        %v7101 = vld [vmem:[%s7085 + $0x3c] sm:$0xf]
        %v7102 = vld [vmem:[%s7085 + $0x40] sm:$0xf]
        %v7103 = vld [vmem:[%s7085 + $0x44] sm:$0xf]
        %v7104 = vld [vmem:[%s7085 + $0x48] sm:$0xf]
        %v7105 = vld [vmem:[%s7085 + $0x4c] sm:$0xf]
        %v7106 = vld [vmem:[%s7085 + $0x50] sm:$0xf]
        %v7107 = vld [vmem:[%s7085 + $0x54] sm:$0xf]
        %v7108 = vld [vmem:[%s7085 + $0x58] sm:$0xf]
        %v7109 = vld [vmem:[%s7085 + $0x5c] sm:$0xf]
        %v7110 = vld [vmem:[%s7085 + $0x60] sm:$0xf]
        %v7111 = vld [vmem:[%s7085 + $0x64] sm:$0xf]
        %v7112 = vld [vmem:[%s7085 + $0x68] sm:$0xf]
        %v7113 = vld [vmem:[%s7085 + $0x6c] sm:$0xf]
        %v7114 = vld [vmem:[%s7085 + $0x70] sm:$0xf]
        %v7115 = vld [vmem:[%s7085 + $0x74] sm:$0xf]
        %v7146 = vunpack.c.l.b16 %v7086
        %v7147 = vunpack.c.l.b16 %v7087
        %v7148 = vunpack.c.l.b16 %v7088
        %v7149 = vunpack.c.l.b16 %v7089
        %v7150 = vunpack.c.l.b16 %v7090
        %v7151 = vunpack.c.l.b16 %v7091
        %v7152 = vunpack.c.l.b16 %v7092
        %v7153 = vunpack.c.l.b16 %v7093
        %v7154 = vunpack.c.l.b16 %v7094
        %v7155 = vunpack.c.l.b16 %v7095
        %v7156 = vunpack.c.l.b16 %v7096
        %v7157 = vunpack.c.l.b16 %v7097
        %v7158 = vunpack.c.l.b16 %v7098
        %v7159 = vunpack.c.l.b16 %v7099
        %v7160 = vunpack.c.l.b16 %v7100
        %v7161 = vunpack.c.l.b16 %v7101
        %v7162 = vunpack.c.l.b16 %v7102
        %v7163 = vunpack.c.l.b16 %v7103
        %v7164 = vunpack.c.l.b16 %v7104
        %v7165 = vunpack.c.l.b16 %v7105
        %v7166 = vunpack.c.l.b16 %v7106
        %v7167 = vunpack.c.l.b16 %v7107
        %v7168 = vunpack.c.l.b16 %v7108
        %v7169 = vunpack.c.l.b16 %v7109
        %v7170 = vunpack.c.l.b16 %v7110
        %v7171 = vunpack.c.l.b16 %v7111
        %v7172 = vunpack.c.l.b16 %v7112
        %v7173 = vunpack.c.l.b16 %v7113
        %v7174 = vunpack.c.l.b16 %v7114
        %v7175 = vunpack.c.l.b16 %v7115
        %v7176 = vpack.c.b16 %v7147, %v7146
        %v7177 = vpack.c.b16 %v7149, %v7148
        %v7178 = vpack.c.b16 %v7151, %v7150
        %v7179 = vpack.c.b16 %v7153, %v7152
        %v7180 = vpack.c.b16 %v7155, %v7154
        %v7181 = vpack.c.b16 %v7157, %v7156
        %v7182 = vpack.c.b16 %v7159, %v7158
        %v7183 = vpack.c.b16 %v7161, %v7160
        %v7184 = vpack.c.b16 %v7163, %v7162
        %v7185 = vpack.c.b16 %v7165, %v7164
        %v7186 = vpack.c.b16 %v7167, %v7166
        %v7187 = vpack.c.b16 %v7169, %v7168
        %v7188 = vpack.c.b16 %v7171, %v7170
        %v7189 = vpack.c.b16 %v7173, %v7172
        %v7190 = vpack.c.b16 %v7175, %v7174
        %7206 = vmatprep.subr.bf16.mxu0 0
        %7207 = vmatpush1.bf16.msra.mxu0 %v7176
        %7208 = vmatprep.subr.bf16.mxu0 0
        %7209 = vmatpush1.bf16.msra.mxu0 %v7177
        %7210 = vmatprep.subr.bf16.mxu0 0
        %7211 = vmatpush1.bf16.msra.mxu0 %v7178
        %7212 = vmatprep.subr.bf16.mxu0 0
        %7213 = vmatpush1.bf16.msra.mxu0 %v7179
        %7214 = vmatprep.subr.bf16.mxu0 0
        %7215 = vmatpush1.bf16.msra.mxu0 %v7180
        %7216 = vmatprep.subr.bf16.mxu0 0
        %7217 = vmatpush1.bf16.msra.mxu0 %v7181
        %7218 = vmatprep.subr.bf16.mxu0 0
        %7219 = vmatpush1.bf16.msra.mxu0 %v7182
        %7220 = vmatprep.subr.bf16.mxu0 0
        %7221 = vmatpush1.bf16.msra.mxu0 %v7183
        %7222 = vmatprep.subr.bf16.mxu0 0
        %7223 = vmatpush1.bf16.msra.mxu0 %v7184
        %7224 = vmatprep.subr.bf16.mxu0 0
        %7225 = vmatpush1.bf16.msra.mxu0 %v7185
        %7226 = vmatprep.subr.bf16.mxu0 0
        %7227 = vmatpush1.bf16.msra.mxu0 %v7186
        %7228 = vmatprep.subr.bf16.mxu0 0
        %7229 = vmatpush1.bf16.msra.mxu0 %v7187
        %7230 = vmatprep.subr.bf16.mxu0 0
        %7231 = vmatpush1.bf16.msra.mxu0 %v7188
        %7232 = vmatprep.subr.bf16.mxu0 0
        %7233 = vmatpush1.bf16.msra.mxu0 %v7189
        %7234 = vmatprep.subr.bf16.mxu0 0
        %7235 = vmatpush1.bf16.msra.mxu0 %v7190
        %7236 = vmatprep.subr.bf16.mxu0 0
        %7237 = vmatpush1.bf16.msra.mxu0 0
        %7238 = vmatprep.mubr.bf16.mxu0 %v6267
        %7239 = vmatmul.mubr.bf16.gmra.mrb[0].mxu0 %v6026
        %v7240 = vpop.f32.mrb[0].mxu0
        %v7241 = vadd.f32 0.0, %v7240
        %v7242 = vpop.f32.mrb[0].mxu0
        %v7243 = vpop.f32.mrb[0].mxu0
        %v7244 = vpop.f32.mrb[0].mxu0
        %7245 = vmatprep.mubr.bf16.mxu0 %v6269
        %7246 = vmatmul.mubr.bf16.gmra.mrb[0].mxu0 %v6029
        %v7247 = vpop.f32.mrb[0].mxu0
        %v7248 = vadd.f32 0.0, %v7247
        %v7249 = vpop.f32.mrb[0].mxu0
        %v7250 = vpop.f32.mrb[0].mxu0
        %v7251 = vpop.f32.mrb[0].mxu0
        %7252 = vmatprep.mubr.bf16.mxu0 %v6271
        %7253 = vmatmul.mubr.bf16.gmra.mrb[0].mxu0 %v6032
        %v7254 = vpop.f32.mrb[0].mxu0
        %v7255 = vadd.f32 0.0, %v7254
        %v7256 = vpop.f32.mrb[0].mxu0
        %v7257 = vpop.f32.mrb[0].mxu0
        %v7258 = vpop.f32.mrb[0].mxu0
        %7259 = vmatprep.mubr.bf16.mxu0 %v6273
        %7260 = vmatmul.mubr.bf16.gmra.mrb[0].mxu0 %v6035
        %v7261 = vpop.f32.mrb[0].mxu0
        %v7262 = vadd.f32 0.0, %v7261
        %v7263 = vpop.f32.mrb[0].mxu0
        %v7264 = vpop.f32.mrb[0].mxu0
        %v7265 = vpop.f32.mrb[0].mxu0
        %7266 = vmatprep.mubr.bf16.mxu0 %v6275
        %7267 = vmatmul.mubr.bf16.gmra.mrb[0].mxu0 %v6038
        %v7268 = vpop.f32.mrb[0].mxu0
        %v7269 = vadd.f32 0.0, %v7268
        %v7270 = vpop.f32.mrb[0].mxu0
        %v7271 = vpop.f32.mrb[0].mxu0
        %v7272 = vpop.f32.mrb[0].mxu0
        %7273 = vmatprep.mubr.bf16.mxu0 %v6277
        %7274 = vmatmul.mubr.bf16.gmra.mrb[0].mxu0 %v6041
        %v7275 = vpop.f32.mrb[0].mxu0
        %v7276 = vadd.f32 0.0, %v7275
        %v7277 = vpop.f32.mrb[0].mxu0
        %v7278 = vpop.f32.mrb[0].mxu0
        %v7279 = vpop.f32.mrb[0].mxu0
        %7280 = vmatprep.mubr.bf16.mxu0 %v6279
        %7281 = vmatmul.mubr.bf16.gmra.mrb[0].mxu0 %v6014
        %v7282 = vpop.f32.mrb[0].mxu0
        %v7283 = vadd.f32 0.0, %v7282
        %v7284 = vpop.f32.mrb[0].mxu0
        %v7285 = vpop.f32.mrb[0].mxu0
        %v7286 = vpop.f32.mrb[0].mxu0
        %7287 = vmatprep.mubr.bf16.mxu0 %v6281
        %7288 = vmatmul.mubr.bf16.gmra.mrb[0].mxu0 %v6044
        %v7289 = vpop.f32.mrb[0].mxu0
        %v7290 = vadd.f32 0.0, %v7289
        %v7291 = vpop.f32.mrb[0].mxu0
        %v7292 = vpop.f32.mrb[0].mxu0
        %v7293 = vpop.f32.mrb[0].mxu0
        %7294 = vmatprep.mubr.bf16.mxu0 %v6283
        %7295 = vmatmul.mubr.bf16.gmra.mrb[0].mxu0 %v6134
        %v7296 = vpop.f32.mrb[0].mxu0
        %v7297 = vpop.f32.mrb[0].mxu0
        %v7298 = vpop.f32.mrb[0].mxu0
        %v7299 = vpop.f32.mrb[0].mxu0
        %7300 = vmatprep.mubr.bf16.mxu0 %v6283
        %7301 = vmatmul.mubr.bf16.gmra.mrb[0].mxu0 %v6134
        %v7302 = vpop.f32.mrb[0].mxu0
        %v7303 = vpop.f32.mrb[0].mxu0
        %v7304 = vpop.f32.mrb[0].mxu0
        %v7305 = vpop.f32.mrb[0].mxu0
        %7306 = vmatprep.mubr.bf16.mxu0 %v6283
        %7307 = vmatmul.mubr.bf16.gmra.mrb[0].mxu0 %v6134
        %v7308 = vpop.f32.mrb[0].mxu0
        %v7309 = vpop.f32.mrb[0].mxu0
        %v7310 = vpop.f32.mrb[0].mxu0
        %v7311 = vpop.f32.mrb[0].mxu0
        %7312 = vmatprep.mubr.bf16.mxu0 %v6283
        %7313 = vmatmul.mubr.bf16.gmra.mrb[0].mxu0 %v6134
        %v7314 = vpop.f32.mrb[0].mxu0
        %v7315 = vpop.f32.mrb[0].mxu0
        %v7316 = vpop.f32.mrb[0].mxu0
        %v7317 = vpop.f32.mrb[0].mxu0
        %7318 = vdwg.mxu0
        %v7319 = vadd.f32 %v7077, %v7241
        %v7320 = vadd.f32 %v7078, %v7248
        %v7321 = vadd.f32 %v7079, %v7255
        %v7322 = vadd.f32 %v7080, %v7262
        %v7323 = vadd.f32 %v7081, %v7269
        %v7324 = vadd.f32 %v7082, %v7276
        %v7325 = vadd.f32 %v7083, %v7283
        %v7326 = vadd.f32 %v7084, %v7290
        %v7327 = vld [vmem:[%s14] sm:$0x1]
        %v7329 = vlaneseq
        %v7330 = vshrl.u32 %v7329, 7
        %v7331 = vsub.s32 0, %v7330
        %v7332 = vrot.slane %v7327, %v7331
        %v7334 = vadd.f32 %v7319, %v7332
        %v7335 = vadd.f32 %v7320, %v7332
        %v7336 = vadd.f32 %v7321, %v7332
        %v7337 = vadd.f32 %v7322, %v7332
        %v7338 = vadd.f32 %v7323, %v7332
        %v7339 = vadd.f32 %v7324, %v7332
        %v7340 = vadd.f32 %v7325, %v7332
        %v7341 = vadd.f32 %v7326, %v7332
        %vm7342 = vcmp.gt.f32.partialorder %v7334, 0.0
        %vm7343 = vcmp.gt.f32.partialorder %v7335, 0.0
        %vm7344 = vcmp.gt.f32.partialorder %v7336, 0.0
        %vm7345 = vcmp.gt.f32.partialorder %v7337, 0.0
        %vm7346 = vcmp.gt.f32.partialorder %v7338, 0.0
        %vm7347 = vcmp.gt.f32.partialorder %v7339, 0.0
        %vm7348 = vcmp.gt.f32.partialorder %v7340, 0.0
        %vm7349 = vcmp.gt.f32.partialorder %v7341, 0.0
        %v7350 = vmin.f32 %v7334, 0.0
        %v7351 = vmin.f32 %v7335, 0.0
        %v7352 = vmin.f32 %v7336, 0.0
        %v7353 = vmin.f32 %v7337, 0.0
        %v7354 = vmin.f32 %v7338, 0.0
        %v7355 = vmin.f32 %v7339, 0.0
        %v7356 = vmin.f32 %v7340, 0.0
        %v7357 = vmin.f32 %v7341, 0.0
        %v7358 = vmul.f32 %v7350, 1.442695
        %v7359 = vpow.pop %v7358
        %v7360 = vmul.f32 %v7351, 1.442695
        %v7361 = vpow.pop %v7360
        %v7362 = vmul.f32 %v7352, 1.442695
        %v7363 = vpow.pop %v7362
        %v7364 = vmul.f32 %v7353, 1.442695
        %v7365 = vpow.pop %v7364
        %v7366 = vmul.f32 %v7354, 1.442695
        %v7367 = vpow.pop %v7366
        %v7368 = vmul.f32 %v7355, 1.442695
        %v7369 = vpow.pop %v7368
        %v7370 = vmul.f32 %v7356, 1.442695
        %v7371 = vpow.pop %v7370
        %v7372 = vmul.f32 %v7357, 1.442695
        %v7373 = vpow.pop %v7372
        %v7374 = vsub.f32 %v7359, 1.0
        %v7375 = vsub.f32 %v7361, 1.0
        %v7376 = vsub.f32 %v7363, 1.0
        %v7377 = vsub.f32 %v7365, 1.0
        %v7378 = vsub.f32 %v7367, 1.0
        %v7379 = vsub.f32 %v7369, 1.0
        %v7380 = vsub.f32 %v7371, 1.0
        %v7381 = vsub.f32 %v7373, 1.0
        %v7382 = vsel %vm7342, %v7334, %v7374
        %v7383 = vsel %vm7343, %v7335, %v7375
        %v7384 = vsel %vm7344, %v7336, %v7376
        %v7385 = vsel %vm7345, %v7337, %v7377
        %v7386 = vsel %vm7346, %v7338, %v7378
        %v7387 = vsel %vm7347, %v7339, %v7379
        %v7388 = vsel %vm7348, %v7340, %v7380
        %v7389 = vsel %vm7349, %v7341, %v7381
        %v7390 = vrot.slane %v5626, 7
        %v7391 = vrot.slane %v5628, 7
        %v7392 = vrot.slane %v5630, 7
        %v7393 = vrot.slane %v5632, 7
        %v7394 = vrot.slane %v5634, 7
        %v7395 = vrot.slane %v5636, 7
        %v7396 = vrot.slane %v5638, 7
        %v7397 = vrot.slane %v5640, 7
        %7398 = vrot.lane.b32.xlu0 %v7390, 112
        %v7399 = vpop.permute.xlu0 %7398
        %7400 = vrot.lane.b32.xlu0 %v7391, 112
        %v7401 = vpop.permute.xlu0 %7400
        %7402 = vrot.lane.b32.xlu0 %v7392, 112
        %v7403 = vpop.permute.xlu0 %7402
        %7404 = vrot.lane.b32.xlu0 %v7393, 112
        %v7405 = vpop.permute.xlu0 %7404
        %7406 = vrot.lane.b32.xlu0 %v7394, 112
        %v7407 = vpop.permute.xlu0 %7406
        %7408 = vrot.lane.b32.xlu0 %v7395, 112
        %v7409 = vpop.permute.xlu0 %7408
        %7410 = vrot.lane.b32.xlu0 %v7396, 112
        %v7411 = vpop.permute.xlu0 %7410
        %7412 = vrot.lane.b32.xlu0 %v7397, 112
        %v7413 = vpop.permute.xlu0 %7412
        %v7422 = vsel %vm2104, 0.0, %v7399
        %v7423 = vsel %vm2104, 0.0, %v7401
        %v7424 = vsel %vm2104, 0.0, %v7403
        %v7425 = vsel %vm2104, 0.0, %v7405
        %v7426 = vsel %vm2104, 0.0, %v7407
        %v7427 = vsel %vm2104, 0.0, %v7409
        %v7428 = vsel %vm2104, 0.0, %v7411
        %v7429 = vsel %vm2104, 0.0, %v7413
        %v7430 = vsel %vm2104, %v7399, 0.0
        %v7431 = vsel %vm2104, %v7401, 0.0
        %v7432 = vsel %vm2104, %v7403, 0.0
        %v7433 = vsel %vm2104, %v7405, 0.0
        %v7434 = vsel %vm2104, %v7407, 0.0
        %v7435 = vsel %vm2104, %v7409, 0.0
        %v7436 = vsel %vm2104, %v7411, 0.0
        %v7437 = vsel %vm2104, %v7413, 0.0
        %v7438 = vpack.c.bf16 %v7430, %v7422
        %v7439 = vpack.c.bf16 %v7431, %v7423
        %v7440 = vpack.c.bf16 %v7432, %v7424
        %v7441 = vpack.c.bf16 %v7433, %v7425
        %v7442 = vpack.c.bf16 %v7434, %v7426
        %v7443 = vpack.c.bf16 %v7435, %v7427
        %v7444 = vpack.c.bf16 %v7436, %v7428
        %v7445 = vpack.c.bf16 %v7437, %v7429
        %v7447 = vshll.u32 %v7438, 16
        %v7449 = vrot.slane %v7447, 1
        %v7450 = vsel %vm1118, %v2193, %v7449
        %v7451 = vshrl.u32 %v7438, 16
        %v7453 = vor.u32 %v7451, %v7449
        %v7455 = vshll.u32 %v7439, 16
        %v7457 = vrot.slane %v7455, 1
        %v7458 = vsel %vm1118, %v7453, %v7457
        %v7459 = vshrl.u32 %v7439, 16
        %v7461 = vor.u32 %v7459, %v7457
        %v7463 = vshll.u32 %v7440, 16
        %v7465 = vrot.slane %v7463, 1
        %v7466 = vsel %vm1118, %v7461, %v7465
        %v7467 = vshrl.u32 %v7440, 16
        %v7469 = vor.u32 %v7467, %v7465
        %v7471 = vshll.u32 %v7441, 16
        %v7473 = vrot.slane %v7471, 1
        %v7474 = vsel %vm1118, %v7469, %v7473
        %v7475 = vshrl.u32 %v7441, 16
        %v7477 = vor.u32 %v7475, %v7473
        %v7479 = vshll.u32 %v7442, 16
        %v7481 = vrot.slane %v7479, 1
        %v7482 = vsel %vm1118, %v7477, %v7481
        %v7483 = vshrl.u32 %v7442, 16
        %v7485 = vor.u32 %v7483, %v7481
        %v7487 = vshll.u32 %v7443, 16
        %v7489 = vrot.slane %v7487, 1
        %v7490 = vsel %vm1118, %v7485, %v7489
        %v7491 = vshrl.u32 %v7443, 16
        %v7493 = vor.u32 %v7491, %v7489
        %v7495 = vshll.u32 %v7444, 16
        %v7497 = vrot.slane %v7495, 1
        %v7498 = vsel %vm1118, %v7493, %v7497
        %v7499 = vshrl.u32 %v7444, 16
        %v7501 = vor.u32 %v7499, %v7497
        %v7503 = vshll.u32 %v7445, 16
        %v7505 = vrot.slane %v7503, 1
        %v7506 = vsel %vm1118, %v7501, %v7505
        %v7507 = vshrl.u32 %v7445, 16
        %v7509 = vor.u32 %v7507, %v7505
        %v7510 = vsel %vm1118, %v7509, %v2192
        %7511 = vrot.lane.b32.xlu0 %v7450, 64
        %v7512 = vpop.permute.xlu0 %7511
        %7513 = vrot.lane.b32.xlu0 %v7458, 64
        %v7514 = vpop.permute.xlu0 %7513
        %7515 = vrot.lane.b32.xlu0 %v7466, 64
        %v7516 = vpop.permute.xlu0 %7515
        %7517 = vrot.lane.b32.xlu0 %v7474, 64
        %v7518 = vpop.permute.xlu0 %7517
        %7519 = vrot.lane.b32.xlu0 %v7482, 64
        %v7520 = vpop.permute.xlu0 %7519
        %7521 = vrot.lane.b32.xlu0 %v7490, 64
        %v7522 = vpop.permute.xlu0 %7521
        %7523 = vrot.lane.b32.xlu0 %v7498, 64
        %v7524 = vpop.permute.xlu0 %7523
        %7525 = vrot.lane.b32.xlu0 %v7506, 64
        %v7526 = vpop.permute.xlu0 %7525
        %7527 = vrot.lane.b32.xlu0 %v7510, 64
        %v7528 = vpop.permute.xlu0 %7527
        %7529 = vrot.lane.b32.xlu0 %v2275, 64
        %v7530 = vpop.permute.xlu0 %7529
        %v7539 = vrot.slane %v7438, 1
        %v7540 = vsel %vm1256, %v2311, %v7539
        %v7541 = vrot.slane %v7439, 1
        %v7542 = vsel %vm1256, %v7539, %v7541
        %v7543 = vrot.slane %v7440, 1
        %v7544 = vsel %vm1256, %v7541, %v7543
        %v7545 = vrot.slane %v7441, 1
        %v7546 = vsel %vm1256, %v7543, %v7545
        %v7547 = vrot.slane %v7442, 1
        %v7548 = vsel %vm1256, %v7545, %v7547
        %v7549 = vrot.slane %v7443, 1
        %v7550 = vsel %vm1256, %v7547, %v7549
        %v7551 = vrot.slane %v7444, 1
        %v7552 = vsel %vm1256, %v7549, %v7551
        %v7553 = vrot.slane %v7445, 1
        %v7554 = vsel %vm1256, %v7551, %v7553
        %v7555 = vsel %vm1256, %v7553, %v2311
        %v7557 = vsel %vm1331, %v2176, %v7512
        %v7560 = vsel %vm1331, %v7438, %v7514
        %v7563 = vsel %vm1331, %v7439, %v7516
        %v7566 = vsel %vm1331, %v7440, %v7518
        %v7569 = vsel %vm1331, %v7441, %v7520
        %v7572 = vsel %vm1331, %v7442, %v7522
        %v7575 = vsel %vm1331, %v7443, %v7524
        %v7578 = vsel %vm1331, %v7444, %v7526
        %v7581 = vsel %vm1331, %v7445, %v7528
        %v7584 = vsel %vm1331, %v2176, %v7530
        %v7586 = vld [vmem:[%s15] sm:$0xf]
        %v7587 = vld [vmem:[%s15 + $0x4] sm:$0xf]
        %v7588 = vld [vmem:[%s15 + $0x8] sm:$0xf]
        %v7589 = vld [vmem:[%s15 + $0xc] sm:$0xf]
        %v7590 = vld [vmem:[%s15 + $0x10] sm:$0xf]
        %v7591 = vld [vmem:[%s15 + $0x14] sm:$0xf]
        %v7592 = vld [vmem:[%s15 + $0x18] sm:$0xf]
        %v7593 = vld [vmem:[%s15 + $0x1c] sm:$0xf]
        %v7594 = vld [vmem:[%s15 + $0x20] sm:$0xf]
        %v7595 = vld [vmem:[%s15 + $0x24] sm:$0xf]
        %v7596 = vld [vmem:[%s15 + $0x28] sm:$0xf]
        %v7597 = vld [vmem:[%s15 + $0x2c] sm:$0xf]
        %v7598 = vld [vmem:[%s15 + $0x30] sm:$0xf]
        %v7599 = vld [vmem:[%s15 + $0x34] sm:$0xf]
        %v7600 = vld [vmem:[%s15 + $0x38] sm:$0xf]
        %v7601 = vld [vmem:[%s15 + $0x3c] sm:$0xf]
        %v7602 = vld [vmem:[%s15 + $0x40] sm:$0xf]
        %v7603 = vld [vmem:[%s15 + $0x44] sm:$0xf]
        %v7604 = vld [vmem:[%s15 + $0x48] sm:$0xf]
        %v7605 = vld [vmem:[%s15 + $0x4c] sm:$0xf]
        %v7606 = vld [vmem:[%s15 + $0x50] sm:$0xf]
        %v7607 = vld [vmem:[%s15 + $0x54] sm:$0xf]
        %v7608 = vld [vmem:[%s15 + $0x58] sm:$0xf]
        %v7609 = vld [vmem:[%s15 + $0x5c] sm:$0xf]
        %7610 = vrot.lane.b32.xlu0 %v1371, 64
        %v7611 = vpop.permute.xlu0 %7610
        %v7613 = vsel %vm1331, 0, %v7611
        %s7615 = scalar_lea.vmem %s15, 96
        %v7616 = vld [vmem:[%s7615] sm:$0xf]
        %v7617 = vld [vmem:[%s7615 + $0x4] sm:$0xf]
        %v7618 = vld [vmem:[%s7615 + $0x8] sm:$0xf]
        %v7619 = vld [vmem:[%s7615 + $0xc] sm:$0xf]
        %v7620 = vld [vmem:[%s7615 + $0x10] sm:$0xf]
        %v7621 = vld [vmem:[%s7615 + $0x14] sm:$0xf]
        %v7622 = vld [vmem:[%s7615 + $0x18] sm:$0xf]
        %v7623 = vld [vmem:[%s7615 + $0x1c] sm:$0xf]
        %v7624 = vld [vmem:[%s7615 + $0x20] sm:$0xf]
        %v7625 = vld [vmem:[%s7615 + $0x24] sm:$0xf]
        %v7626 = vld [vmem:[%s7615 + $0x28] sm:$0xf]
        %v7627 = vld [vmem:[%s7615 + $0x2c] sm:$0xf]
        %v7628 = vld [vmem:[%s7615 + $0x30] sm:$0xf]
        %v7629 = vld [vmem:[%s7615 + $0x34] sm:$0xf]
        %v7630 = vld [vmem:[%s7615 + $0x38] sm:$0xf]
        %v7631 = vld [vmem:[%s7615 + $0x3c] sm:$0xf]
        %v7632 = vld [vmem:[%s7615 + $0x40] sm:$0xf]
        %v7633 = vld [vmem:[%s7615 + $0x44] sm:$0xf]
        %v7634 = vld [vmem:[%s7615 + $0x48] sm:$0xf]
        %v7635 = vld [vmem:[%s7615 + $0x4c] sm:$0xf]
        %v7636 = vld [vmem:[%s7615 + $0x50] sm:$0xf]
        %v7637 = vld [vmem:[%s7615 + $0x54] sm:$0xf]
        %v7638 = vld [vmem:[%s7615 + $0x58] sm:$0xf]
        %v7639 = vld [vmem:[%s7615 + $0x5c] sm:$0xf]
        %v7664 = vunpack.c.l.b16 %v7616
        %v7665 = vunpack.c.l.b16 %v7617
        %v7666 = vunpack.c.l.b16 %v7618
        %v7667 = vunpack.c.l.b16 %v7619
        %v7668 = vunpack.c.l.b16 %v7620
        %v7669 = vunpack.c.l.b16 %v7621
        %v7670 = vunpack.c.l.b16 %v7622
        %v7671 = vunpack.c.l.b16 %v7623
        %v7672 = vunpack.c.l.b16 %v7624
        %v7673 = vunpack.c.l.b16 %v7625
        %v7674 = vunpack.c.l.b16 %v7626
        %v7675 = vunpack.c.l.b16 %v7627
        %v7676 = vunpack.c.l.b16 %v7628
        %v7677 = vunpack.c.l.b16 %v7629
        %v7678 = vunpack.c.l.b16 %v7630
        %v7679 = vunpack.c.l.b16 %v7631
        %v7680 = vunpack.c.l.b16 %v7632
        %v7681 = vunpack.c.l.b16 %v7633
        %v7682 = vunpack.c.l.b16 %v7634
        %v7683 = vunpack.c.l.b16 %v7635
        %v7684 = vunpack.c.l.b16 %v7636
        %v7685 = vunpack.c.l.b16 %v7637
        %v7686 = vunpack.c.l.b16 %v7638
        %v7687 = vunpack.c.l.b16 %v7639
        %v7688 = vpack.c.b16 %v7665, %v7664
        %v7689 = vpack.c.b16 %v7667, %v7666
        %v7690 = vpack.c.b16 %v7669, %v7668
        %v7691 = vpack.c.b16 %v7671, %v7670
        %v7692 = vpack.c.b16 %v7673, %v7672
        %v7693 = vpack.c.b16 %v7675, %v7674
        %v7694 = vpack.c.b16 %v7677, %v7676
        %v7695 = vpack.c.b16 %v7679, %v7678
        %v7696 = vpack.c.b16 %v7681, %v7680
        %v7697 = vpack.c.b16 %v7683, %v7682
        %v7698 = vpack.c.b16 %v7685, %v7684
        %v7699 = vpack.c.b16 %v7687, %v7686
        %v7713 = vsel %vm1331, %v7542, 0
        %v7716 = vsel %vm1331, %v7544, 0
        %v7719 = vsel %vm1331, %v7546, 0
        %v7722 = vsel %vm1331, %v7548, 0
        %v7725 = vsel %vm1331, %v7550, 0
        %v7728 = vsel %vm1331, %v7552, 0
        %v7731 = vsel %vm1331, %v7554, 0
        %v7734 = vsel %vm1331, %v7555, 0
        %v7737 = vsel %vm1331, %v2333, 0
        %v7740 = vsel %vm1331, %v1374, 0
        %7742 = vmatprep.subr.bf16.mxu0 0
        %7743 = vmatpush1.bf16.msra.mxu0 %v7688
        %7744 = vmatprep.subr.bf16.mxu0 0
        %7745 = vmatpush1.bf16.msra.mxu0 %v7689
        %7746 = vmatprep.subr.bf16.mxu0 0
        %7747 = vmatpush1.bf16.msra.mxu0 %v7690
        %7748 = vmatprep.subr.bf16.mxu0 0
        %7749 = vmatpush1.bf16.msra.mxu0 %v7691
        %7750 = vmatprep.subr.bf16.mxu0 0
        %7751 = vmatpush1.bf16.msra.mxu0 %v7692
        %7752 = vmatprep.subr.bf16.mxu0 0
        %7753 = vmatpush1.bf16.msra.mxu0 %v7693
        %7754 = vmatprep.subr.bf16.mxu0 0
        %7755 = vmatpush1.bf16.msra.mxu0 %v7694
        %7756 = vmatprep.subr.bf16.mxu0 0
        %7757 = vmatpush1.bf16.msra.mxu0 %v7695
        %7758 = vmatprep.subr.bf16.mxu0 0
        %7759 = vmatpush1.bf16.msra.mxu0 %v7696
        %7760 = vmatprep.subr.bf16.mxu0 0
        %7761 = vmatpush1.bf16.msra.mxu0 %v7697
        %7762 = vmatprep.subr.bf16.mxu0 0
        %7763 = vmatpush1.bf16.msra.mxu0 %v7698
        %7764 = vmatprep.subr.bf16.mxu0 0
        %7765 = vmatpush1.bf16.msra.mxu0 %v7699
        %7766 = vmatprep.subr.bf16.mxu0 0
        %7767 = vmatpush1.bf16.msra.mxu0 0
        %7768 = vmatprep.subr.bf16.mxu0 0
        %7769 = vmatpush1.bf16.msra.mxu0 0
        %7770 = vmatprep.subr.bf16.mxu0 0
        %7771 = vmatpush1.bf16.msra.mxu0 0
        %7772 = vmatprep.subr.bf16.mxu0 0
        %7773 = vmatpush1.bf16.msra.mxu0 0
        %7774 = vmatprep.mubr.bf16.mxu0 %v7713
        %7775 = vmatmul.mubr.bf16.gmra.mrb[0].mxu0 %v7560
        %v7776 = vpop.f32.mrb[0].mxu0
        %v7777 = vadd.f32 0.0, %v7776
        %v7778 = vpop.f32.mrb[0].mxu0
        %v7779 = vpop.f32.mrb[0].mxu0
        %v7780 = vpop.f32.mrb[0].mxu0
        %7781 = vmatprep.mubr.bf16.mxu0 %v7716
        %7782 = vmatmul.mubr.bf16.gmra.mrb[0].mxu0 %v7563
        %v7783 = vpop.f32.mrb[0].mxu0
        %v7784 = vadd.f32 0.0, %v7783
        %v7785 = vpop.f32.mrb[0].mxu0
        %v7786 = vpop.f32.mrb[0].mxu0
        %v7787 = vpop.f32.mrb[0].mxu0
        %7788 = vmatprep.mubr.bf16.mxu0 %v7719
        %7789 = vmatmul.mubr.bf16.gmra.mrb[0].mxu0 %v7566
        %v7790 = vpop.f32.mrb[0].mxu0
        %v7791 = vadd.f32 0.0, %v7790
        %v7792 = vpop.f32.mrb[0].mxu0
        %v7793 = vpop.f32.mrb[0].mxu0
        %v7794 = vpop.f32.mrb[0].mxu0
        %7795 = vmatprep.mubr.bf16.mxu0 %v7722
        %7796 = vmatmul.mubr.bf16.gmra.mrb[0].mxu0 %v7569
        %v7797 = vpop.f32.mrb[0].mxu0
        %v7798 = vadd.f32 0.0, %v7797
        %v7799 = vpop.f32.mrb[0].mxu0
        %v7800 = vpop.f32.mrb[0].mxu0
        %v7801 = vpop.f32.mrb[0].mxu0
        %7802 = vmatprep.mubr.bf16.mxu0 %v7725
        %7803 = vmatmul.mubr.bf16.gmra.mrb[0].mxu0 %v7572
        %v7804 = vpop.f32.mrb[0].mxu0
        %v7805 = vadd.f32 0.0, %v7804
        %v7806 = vpop.f32.mrb[0].mxu0
        %v7807 = vpop.f32.mrb[0].mxu0
        %v7808 = vpop.f32.mrb[0].mxu0
        %7809 = vmatprep.mubr.bf16.mxu0 %v7728
        %7810 = vmatmul.mubr.bf16.gmra.mrb[0].mxu0 %v7575
        %v7811 = vpop.f32.mrb[0].mxu0
        %v7812 = vadd.f32 0.0, %v7811
        %v7813 = vpop.f32.mrb[0].mxu0
        %v7814 = vpop.f32.mrb[0].mxu0
        %v7815 = vpop.f32.mrb[0].mxu0
        %7816 = vmatprep.mubr.bf16.mxu0 %v7731
        %7817 = vmatmul.mubr.bf16.gmra.mrb[0].mxu0 %v7578
        %v7818 = vpop.f32.mrb[0].mxu0
        %v7819 = vadd.f32 0.0, %v7818
        %v7820 = vpop.f32.mrb[0].mxu0
        %v7821 = vpop.f32.mrb[0].mxu0
        %v7822 = vpop.f32.mrb[0].mxu0
        %7823 = vmatprep.mubr.bf16.mxu0 %v7734
        %7824 = vmatmul.mubr.bf16.gmra.mrb[0].mxu0 %v7581
        %v7825 = vpop.f32.mrb[0].mxu0
        %v7826 = vadd.f32 0.0, %v7825
        %v7827 = vpop.f32.mrb[0].mxu0
        %v7828 = vpop.f32.mrb[0].mxu0
        %v7829 = vpop.f32.mrb[0].mxu0
        %7830 = vmatprep.mubr.bf16.mxu0 %v7737
        %7831 = vmatmul.mubr.bf16.gmra.mrb[0].mxu0 %v7584
        %v7832 = vpop.f32.mrb[0].mxu0
        %v7833 = vpop.f32.mrb[0].mxu0
        %v7834 = vpop.f32.mrb[0].mxu0
        %v7835 = vpop.f32.mrb[0].mxu0
        %7836 = vmatprep.mubr.bf16.mxu0 %v7740
        %7837 = vmatmul.mubr.bf16.gmra.mrb[0].mxu0 %v7613
        %v7838 = vpop.f32.mrb[0].mxu0
        %v7839 = vpop.f32.mrb[0].mxu0
        %v7840 = vpop.f32.mrb[0].mxu0
        %v7841 = vpop.f32.mrb[0].mxu0
        %7842 = vdwg.mxu0
        %v7867 = vunpack.c.l.b16 %v7586
        %v7868 = vunpack.c.l.b16 %v7587
        %v7869 = vunpack.c.l.b16 %v7588
        %v7870 = vunpack.c.l.b16 %v7589
        %v7871 = vunpack.c.l.b16 %v7590
        %v7872 = vunpack.c.l.b16 %v7591
        %v7873 = vunpack.c.l.b16 %v7592
        %v7874 = vunpack.c.l.b16 %v7593
        %v7875 = vunpack.c.l.b16 %v7594
        %v7876 = vunpack.c.l.b16 %v7595
        %v7877 = vunpack.c.l.b16 %v7596
        %v7878 = vunpack.c.l.b16 %v7597
        %v7879 = vunpack.c.l.b16 %v7598
        %v7880 = vunpack.c.l.b16 %v7599
        %v7881 = vunpack.c.l.b16 %v7600
        %v7882 = vunpack.c.l.b16 %v7601
        %v7883 = vunpack.c.l.b16 %v7602
        %v7884 = vunpack.c.l.b16 %v7603
        %v7885 = vunpack.c.l.b16 %v7604
        %v7886 = vunpack.c.l.b16 %v7605
        %v7887 = vunpack.c.l.b16 %v7606
        %v7888 = vunpack.c.l.b16 %v7607
        %v7889 = vunpack.c.l.b16 %v7608
        %v7890 = vunpack.c.l.b16 %v7609
        %v7891 = vpack.c.b16 %v7868, %v7867
        %v7892 = vpack.c.b16 %v7870, %v7869
        %v7893 = vpack.c.b16 %v7872, %v7871
        %v7894 = vpack.c.b16 %v7874, %v7873
        %v7895 = vpack.c.b16 %v7876, %v7875
        %v7896 = vpack.c.b16 %v7878, %v7877
        %v7897 = vpack.c.b16 %v7880, %v7879
        %v7898 = vpack.c.b16 %v7882, %v7881
        %v7899 = vpack.c.b16 %v7884, %v7883
        %v7900 = vpack.c.b16 %v7886, %v7885
        %v7901 = vpack.c.b16 %v7888, %v7887
        %v7902 = vpack.c.b16 %v7890, %v7889
        %v7916 = vsel %vm1331, %v7540, 0
        %7918 = vmatprep.subr.bf16.mxu0 0
        %7919 = vmatpush1.bf16.msra.mxu0 %v7891
        %7920 = vmatprep.subr.bf16.mxu0 0
        %7921 = vmatpush1.bf16.msra.mxu0 %v7892
        %7922 = vmatprep.subr.bf16.mxu0 0
        %7923 = vmatpush1.bf16.msra.mxu0 %v7893
        %7924 = vmatprep.subr.bf16.mxu0 0
        %7925 = vmatpush1.bf16.msra.mxu0 %v7894
        %7926 = vmatprep.subr.bf16.mxu0 0
        %7927 = vmatpush1.bf16.msra.mxu0 %v7895
        %7928 = vmatprep.subr.bf16.mxu0 0
        %7929 = vmatpush1.bf16.msra.mxu0 %v7896
        %7930 = vmatprep.subr.bf16.mxu0 0
        %7931 = vmatpush1.bf16.msra.mxu0 %v7897
        %7932 = vmatprep.subr.bf16.mxu0 0
        %7933 = vmatpush1.bf16.msra.mxu0 %v7898
        %7934 = vmatprep.subr.bf16.mxu0 0
        %7935 = vmatpush1.bf16.msra.mxu0 %v7899
        %7936 = vmatprep.subr.bf16.mxu0 0
        %7937 = vmatpush1.bf16.msra.mxu0 %v7900
        %7938 = vmatprep.subr.bf16.mxu0 0
        %7939 = vmatpush1.bf16.msra.mxu0 %v7901
        %7940 = vmatprep.subr.bf16.mxu0 0
        %7941 = vmatpush1.bf16.msra.mxu0 %v7902
        %7942 = vmatprep.subr.bf16.mxu0 0
        %7943 = vmatpush1.bf16.msra.mxu0 0
        %7944 = vmatprep.subr.bf16.mxu0 0
        %7945 = vmatpush1.bf16.msra.mxu0 0
        %7946 = vmatprep.subr.bf16.mxu0 0
        %7947 = vmatpush1.bf16.msra.mxu0 0
        %7948 = vmatprep.subr.bf16.mxu0 0
        %7949 = vmatpush1.bf16.msra.mxu0 0
        %7950 = vmatprep.mubr.bf16.mxu0 %v7916
        %7951 = vmatmul.mubr.bf16.gmra.mrb[0].mxu0 %v7557
        %v7952 = vpop.f32.mrb[0].mxu0
        %v7953 = vadd.f32 %v7777, %v7952
        %v7954 = vpop.f32.mrb[0].mxu0
        %v7955 = vpop.f32.mrb[0].mxu0
        %v7956 = vpop.f32.mrb[0].mxu0
        %7957 = vmatprep.mubr.bf16.mxu0 %v7713
        %7958 = vmatmul.mubr.bf16.gmra.mrb[0].mxu0 %v7560
        %v7959 = vpop.f32.mrb[0].mxu0
        %v7960 = vadd.f32 %v7784, %v7959
        %v7961 = vpop.f32.mrb[0].mxu0
        %v7962 = vpop.f32.mrb[0].mxu0
        %v7963 = vpop.f32.mrb[0].mxu0
        %7964 = vmatprep.mubr.bf16.mxu0 %v7716
        %7965 = vmatmul.mubr.bf16.gmra.mrb[0].mxu0 %v7563
        %v7966 = vpop.f32.mrb[0].mxu0
        %v7967 = vadd.f32 %v7791, %v7966
        %v7968 = vpop.f32.mrb[0].mxu0
        %v7969 = vpop.f32.mrb[0].mxu0
        %v7970 = vpop.f32.mrb[0].mxu0
        %7971 = vmatprep.mubr.bf16.mxu0 %v7719
        %7972 = vmatmul.mubr.bf16.gmra.mrb[0].mxu0 %v7566
        %v7973 = vpop.f32.mrb[0].mxu0
        %v7974 = vadd.f32 %v7798, %v7973
        %v7975 = vpop.f32.mrb[0].mxu0
        %v7976 = vpop.f32.mrb[0].mxu0
        %v7977 = vpop.f32.mrb[0].mxu0
        %7978 = vmatprep.mubr.bf16.mxu0 %v7722
        %7979 = vmatmul.mubr.bf16.gmra.mrb[0].mxu0 %v7569
        %v7980 = vpop.f32.mrb[0].mxu0
        %v7981 = vadd.f32 %v7805, %v7980
        %v7982 = vpop.f32.mrb[0].mxu0
        %v7983 = vpop.f32.mrb[0].mxu0
        %v7984 = vpop.f32.mrb[0].mxu0
        %7985 = vmatprep.mubr.bf16.mxu0 %v7725
        %7986 = vmatmul.mubr.bf16.gmra.mrb[0].mxu0 %v7572
        %v7987 = vpop.f32.mrb[0].mxu0
        %v7988 = vadd.f32 %v7812, %v7987
        %v7989 = vpop.f32.mrb[0].mxu0
        %v7990 = vpop.f32.mrb[0].mxu0
        %v7991 = vpop.f32.mrb[0].mxu0
        %7992 = vmatprep.mubr.bf16.mxu0 %v7728
        %7993 = vmatmul.mubr.bf16.gmra.mrb[0].mxu0 %v7575
        %v7994 = vpop.f32.mrb[0].mxu0
        %v7995 = vadd.f32 %v7819, %v7994
        %v7996 = vpop.f32.mrb[0].mxu0
        %v7997 = vpop.f32.mrb[0].mxu0
        %v7998 = vpop.f32.mrb[0].mxu0
        %7999 = vmatprep.mubr.bf16.mxu0 %v7731
        %8000 = vmatmul.mubr.bf16.gmra.mrb[0].mxu0 %v7578
        %v8001 = vpop.f32.mrb[0].mxu0
        %v8002 = vadd.f32 %v7826, %v8001
        %v8003 = vpop.f32.mrb[0].mxu0
        %v8004 = vpop.f32.mrb[0].mxu0
        %v8005 = vpop.f32.mrb[0].mxu0
        %8006 = vmatprep.mubr.bf16.mxu0 %v7734
        %8007 = vmatmul.mubr.bf16.gmra.mrb[0].mxu0 %v7581
        %v8008 = vpop.f32.mrb[0].mxu0
        %v8009 = vpop.f32.mrb[0].mxu0
        %v8010 = vpop.f32.mrb[0].mxu0
        %v8011 = vpop.f32.mrb[0].mxu0
        %8012 = vmatprep.mubr.bf16.mxu0 %v7737
        %8013 = vmatmul.mubr.bf16.gmra.mrb[0].mxu0 %v7584
        %v8014 = vpop.f32.mrb[0].mxu0
        %v8015 = vpop.f32.mrb[0].mxu0
        %v8016 = vpop.f32.mrb[0].mxu0
        %v8017 = vpop.f32.mrb[0].mxu0
        %8018 = vdwg.mxu0
        %s8019 = scalar_lea.vmem %s15, 192
        %v8020 = vld [vmem:[%s8019] sm:$0xf]
        %v8021 = vld [vmem:[%s8019 + $0x4] sm:$0xf]
        %v8022 = vld [vmem:[%s8019 + $0x8] sm:$0xf]
        %v8023 = vld [vmem:[%s8019 + $0xc] sm:$0xf]
        %v8024 = vld [vmem:[%s8019 + $0x10] sm:$0xf]
        %v8025 = vld [vmem:[%s8019 + $0x14] sm:$0xf]
        %v8026 = vld [vmem:[%s8019 + $0x18] sm:$0xf]
        %v8027 = vld [vmem:[%s8019 + $0x1c] sm:$0xf]
        %v8028 = vld [vmem:[%s8019 + $0x20] sm:$0xf]
        %v8029 = vld [vmem:[%s8019 + $0x24] sm:$0xf]
        %v8030 = vld [vmem:[%s8019 + $0x28] sm:$0xf]
        %v8031 = vld [vmem:[%s8019 + $0x2c] sm:$0xf]
        %v8032 = vld [vmem:[%s8019 + $0x30] sm:$0xf]
        %v8033 = vld [vmem:[%s8019 + $0x34] sm:$0xf]
        %v8034 = vld [vmem:[%s8019 + $0x38] sm:$0xf]
        %v8035 = vld [vmem:[%s8019 + $0x3c] sm:$0xf]
        %v8036 = vld [vmem:[%s8019 + $0x40] sm:$0xf]
        %v8037 = vld [vmem:[%s8019 + $0x44] sm:$0xf]
        %v8038 = vld [vmem:[%s8019 + $0x48] sm:$0xf]
        %v8039 = vld [vmem:[%s8019 + $0x4c] sm:$0xf]
        %v8040 = vld [vmem:[%s8019 + $0x50] sm:$0xf]
        %v8041 = vld [vmem:[%s8019 + $0x54] sm:$0xf]
        %v8042 = vld [vmem:[%s8019 + $0x58] sm:$0xf]
        %v8043 = vld [vmem:[%s8019 + $0x5c] sm:$0xf]
        %v8068 = vunpack.c.l.b16 %v8020
        %v8069 = vunpack.c.l.b16 %v8021
        %v8070 = vunpack.c.l.b16 %v8022
        %v8071 = vunpack.c.l.b16 %v8023
        %v8072 = vunpack.c.l.b16 %v8024
        %v8073 = vunpack.c.l.b16 %v8025
        %v8074 = vunpack.c.l.b16 %v8026
        %v8075 = vunpack.c.l.b16 %v8027
        %v8076 = vunpack.c.l.b16 %v8028
        %v8077 = vunpack.c.l.b16 %v8029
        %v8078 = vunpack.c.l.b16 %v8030
        %v8079 = vunpack.c.l.b16 %v8031
        %v8080 = vunpack.c.l.b16 %v8032
        %v8081 = vunpack.c.l.b16 %v8033
        %v8082 = vunpack.c.l.b16 %v8034
        %v8083 = vunpack.c.l.b16 %v8035
        %v8084 = vunpack.c.l.b16 %v8036
        %v8085 = vunpack.c.l.b16 %v8037
        %v8086 = vunpack.c.l.b16 %v8038
        %v8087 = vunpack.c.l.b16 %v8039
        %v8088 = vunpack.c.l.b16 %v8040
        %v8089 = vunpack.c.l.b16 %v8041
        %v8090 = vunpack.c.l.b16 %v8042
        %v8091 = vunpack.c.l.b16 %v8043
        %v8092 = vpack.c.b16 %v8069, %v8068
        %v8093 = vpack.c.b16 %v8071, %v8070
        %v8094 = vpack.c.b16 %v8073, %v8072
        %v8095 = vpack.c.b16 %v8075, %v8074
        %v8096 = vpack.c.b16 %v8077, %v8076
        %v8097 = vpack.c.b16 %v8079, %v8078
        %v8098 = vpack.c.b16 %v8081, %v8080
        %v8099 = vpack.c.b16 %v8083, %v8082
        %v8100 = vpack.c.b16 %v8085, %v8084
        %v8101 = vpack.c.b16 %v8087, %v8086
        %v8102 = vpack.c.b16 %v8089, %v8088
        %v8103 = vpack.c.b16 %v8091, %v8090
        %8116 = vmatprep.subr.bf16.mxu0 0
        %8117 = vmatpush1.bf16.msra.mxu0 %v8092
        %8118 = vmatprep.subr.bf16.mxu0 0
        %8119 = vmatpush1.bf16.msra.mxu0 %v8093
        %8120 = vmatprep.subr.bf16.mxu0 0
        %8121 = vmatpush1.bf16.msra.mxu0 %v8094
        %8122 = vmatprep.subr.bf16.mxu0 0
        %8123 = vmatpush1.bf16.msra.mxu0 %v8095
        %8124 = vmatprep.subr.bf16.mxu0 0
        %8125 = vmatpush1.bf16.msra.mxu0 %v8096
        %8126 = vmatprep.subr.bf16.mxu0 0
        %8127 = vmatpush1.bf16.msra.mxu0 %v8097
        %8128 = vmatprep.subr.bf16.mxu0 0
        %8129 = vmatpush1.bf16.msra.mxu0 %v8098
        %8130 = vmatprep.subr.bf16.mxu0 0
        %8131 = vmatpush1.bf16.msra.mxu0 %v8099
        %8132 = vmatprep.subr.bf16.mxu0 0
        %8133 = vmatpush1.bf16.msra.mxu0 %v8100
        %8134 = vmatprep.subr.bf16.mxu0 0
        %8135 = vmatpush1.bf16.msra.mxu0 %v8101
        %8136 = vmatprep.subr.bf16.mxu0 0
        %8137 = vmatpush1.bf16.msra.mxu0 %v8102
        %8138 = vmatprep.subr.bf16.mxu0 0
        %8139 = vmatpush1.bf16.msra.mxu0 %v8103
        %8140 = vmatprep.subr.bf16.mxu0 0
        %8141 = vmatpush1.bf16.msra.mxu0 0
        %8142 = vmatprep.subr.bf16.mxu0 0
        %8143 = vmatpush1.bf16.msra.mxu0 0
        %8144 = vmatprep.subr.bf16.mxu0 0
        %8145 = vmatpush1.bf16.msra.mxu0 0
        %8146 = vmatprep.subr.bf16.mxu0 0
        %8147 = vmatpush1.bf16.msra.mxu0 0
        %8148 = vmatprep.mubr.bf16.mxu0 %v7716
        %8149 = vmatmul.mubr.bf16.gmra.mrb[0].mxu0 %v7563
        %v8150 = vpop.f32.mrb[0].mxu0
        %v8151 = vadd.f32 0.0, %v8150
        %v8152 = vpop.f32.mrb[0].mxu0
        %v8153 = vpop.f32.mrb[0].mxu0
        %v8154 = vpop.f32.mrb[0].mxu0
        %8155 = vmatprep.mubr.bf16.mxu0 %v7719
        %8156 = vmatmul.mubr.bf16.gmra.mrb[0].mxu0 %v7566
        %v8157 = vpop.f32.mrb[0].mxu0
        %v8158 = vadd.f32 0.0, %v8157
        %v8159 = vpop.f32.mrb[0].mxu0
        %v8160 = vpop.f32.mrb[0].mxu0
        %v8161 = vpop.f32.mrb[0].mxu0
        %8162 = vmatprep.mubr.bf16.mxu0 %v7722
        %8163 = vmatmul.mubr.bf16.gmra.mrb[0].mxu0 %v7569
        %v8164 = vpop.f32.mrb[0].mxu0
        %v8165 = vadd.f32 0.0, %v8164
        %v8166 = vpop.f32.mrb[0].mxu0
        %v8167 = vpop.f32.mrb[0].mxu0
        %v8168 = vpop.f32.mrb[0].mxu0
        %8169 = vmatprep.mubr.bf16.mxu0 %v7725
        %8170 = vmatmul.mubr.bf16.gmra.mrb[0].mxu0 %v7572
        %v8171 = vpop.f32.mrb[0].mxu0
        %v8172 = vadd.f32 0.0, %v8171
        %v8173 = vpop.f32.mrb[0].mxu0
        %v8174 = vpop.f32.mrb[0].mxu0
        %v8175 = vpop.f32.mrb[0].mxu0
        %8176 = vmatprep.mubr.bf16.mxu0 %v7728
        %8177 = vmatmul.mubr.bf16.gmra.mrb[0].mxu0 %v7575
        %v8178 = vpop.f32.mrb[0].mxu0
        %v8179 = vadd.f32 0.0, %v8178
        %v8180 = vpop.f32.mrb[0].mxu0
        %v8181 = vpop.f32.mrb[0].mxu0
        %v8182 = vpop.f32.mrb[0].mxu0
        %8183 = vmatprep.mubr.bf16.mxu0 %v7731
        %8184 = vmatmul.mubr.bf16.gmra.mrb[0].mxu0 %v7578
        %v8185 = vpop.f32.mrb[0].mxu0
        %v8186 = vadd.f32 0.0, %v8185
        %v8187 = vpop.f32.mrb[0].mxu0
        %v8188 = vpop.f32.mrb[0].mxu0
        %v8189 = vpop.f32.mrb[0].mxu0
        %8190 = vmatprep.mubr.bf16.mxu0 %v7734
        %8191 = vmatmul.mubr.bf16.gmra.mrb[0].mxu0 %v7581
        %v8192 = vpop.f32.mrb[0].mxu0
        %v8193 = vadd.f32 0.0, %v8192
        %v8194 = vpop.f32.mrb[0].mxu0
        %v8195 = vpop.f32.mrb[0].mxu0
        %v8196 = vpop.f32.mrb[0].mxu0
        %8197 = vmatprep.mubr.bf16.mxu0 %v7737
        %8198 = vmatmul.mubr.bf16.gmra.mrb[0].mxu0 %v7584
        %v8199 = vpop.f32.mrb[0].mxu0
        %v8200 = vadd.f32 0.0, %v8199
        %v8201 = vpop.f32.mrb[0].mxu0
        %v8202 = vpop.f32.mrb[0].mxu0
        %v8203 = vpop.f32.mrb[0].mxu0
        %8204 = vmatprep.mubr.bf16.mxu0 %v7740
        %8205 = vmatmul.mubr.bf16.gmra.mrb[0].mxu0 %v7613
        %v8206 = vpop.f32.mrb[0].mxu0
        %v8207 = vpop.f32.mrb[0].mxu0
        %v8208 = vpop.f32.mrb[0].mxu0
        %v8209 = vpop.f32.mrb[0].mxu0
        %8210 = vmatprep.mubr.bf16.mxu0 %v7740
        %8211 = vmatmul.mubr.bf16.gmra.mrb[0].mxu0 %v7613
        %v8212 = vpop.f32.mrb[0].mxu0
        %v8213 = vpop.f32.mrb[0].mxu0
        %v8214 = vpop.f32.mrb[0].mxu0
        %v8215 = vpop.f32.mrb[0].mxu0
        %8216 = vdwg.mxu0
        %v8217 = vadd.f32 %v7953, %v8151
        %v8218 = vadd.f32 %v7960, %v8158
        %v8219 = vadd.f32 %v7967, %v8165
        %v8220 = vadd.f32 %v7974, %v8172
        %v8221 = vadd.f32 %v7981, %v8179
        %v8222 = vadd.f32 %v7988, %v8186
        %v8223 = vadd.f32 %v7995, %v8193
        %v8224 = vadd.f32 %v8002, %v8200
        %v8225 = vld [vmem:[%s16] sm:$0x1]
        %v8227 = vlaneseq
        %v8228 = vshrl.u32 %v8227, 7
        %v8229 = vsub.s32 0, %v8228
        %v8230 = vrot.slane %v8225, %v8229
        %v8232 = vadd.f32 %v8217, %v8230
        %v8233 = vadd.f32 %v8218, %v8230
        %v8234 = vadd.f32 %v8219, %v8230
        %v8235 = vadd.f32 %v8220, %v8230
        %v8236 = vadd.f32 %v8221, %v8230
        %v8237 = vadd.f32 %v8222, %v8230
        %v8238 = vadd.f32 %v8223, %v8230
        %v8239 = vadd.f32 %v8224, %v8230
        %vm8240 = vcmp.gt.f32.partialorder %v8232, 0.0
        %vm8241 = vcmp.gt.f32.partialorder %v8233, 0.0
        %vm8242 = vcmp.gt.f32.partialorder %v8234, 0.0
        %vm8243 = vcmp.gt.f32.partialorder %v8235, 0.0
        %vm8244 = vcmp.gt.f32.partialorder %v8236, 0.0
        %vm8245 = vcmp.gt.f32.partialorder %v8237, 0.0
        %vm8246 = vcmp.gt.f32.partialorder %v8238, 0.0
        %vm8247 = vcmp.gt.f32.partialorder %v8239, 0.0
        %v8248 = vmin.f32 %v8232, 0.0
        %v8249 = vmin.f32 %v8233, 0.0
        %v8250 = vmin.f32 %v8234, 0.0
        %v8251 = vmin.f32 %v8235, 0.0
        %v8252 = vmin.f32 %v8236, 0.0
        %v8253 = vmin.f32 %v8237, 0.0
        %v8254 = vmin.f32 %v8238, 0.0
        %v8255 = vmin.f32 %v8239, 0.0
        %v8256 = vmul.f32 %v8248, 1.442695
        %v8257 = vpow.pop %v8256
        %v8258 = vmul.f32 %v8249, 1.442695
        %v8259 = vpow.pop %v8258
        %v8260 = vmul.f32 %v8250, 1.442695
        %v8261 = vpow.pop %v8260
        %v8262 = vmul.f32 %v8251, 1.442695
        %v8263 = vpow.pop %v8262
        %v8264 = vmul.f32 %v8252, 1.442695
        %v8265 = vpow.pop %v8264
        %v8266 = vmul.f32 %v8253, 1.442695
        %v8267 = vpow.pop %v8266
        %v8268 = vmul.f32 %v8254, 1.442695
        %v8269 = vpow.pop %v8268
        %v8270 = vmul.f32 %v8255, 1.442695
        %v8271 = vpow.pop %v8270
        %v8272 = vsub.f32 %v8257, 1.0
        %v8273 = vsub.f32 %v8259, 1.0
        %v8274 = vsub.f32 %v8261, 1.0
        %v8275 = vsub.f32 %v8263, 1.0
        %v8276 = vsub.f32 %v8265, 1.0
        %v8277 = vsub.f32 %v8267, 1.0
        %v8278 = vsub.f32 %v8269, 1.0
        %v8279 = vsub.f32 %v8271, 1.0
        %v8280 = vsel %vm8240, %v8232, %v8272
        %v8281 = vsel %vm8241, %v8233, %v8273
        %v8282 = vsel %vm8242, %v8234, %v8274
        %v8283 = vsel %vm8243, %v8235, %v8275
        %v8284 = vsel %vm8244, %v8236, %v8276
        %v8285 = vsel %vm8245, %v8237, %v8277
        %v8286 = vsel %vm8246, %v8238, %v8278
        %v8287 = vsel %vm8247, %v8239, %v8279
        %v8296 = vrot.slane %v8280, 7
        %v8297 = vrot.slane %v8281, 7
        %v8298 = vrot.slane %v8282, 7
        %v8299 = vrot.slane %v8283, 7
        %v8300 = vrot.slane %v8284, 7
        %v8301 = vrot.slane %v8285, 7
        %v8302 = vrot.slane %v8286, 7
        %v8303 = vrot.slane %v8287, 7
        %v8312 = vsel %vm2104, 0.0, %v8296
        %v8313 = vsel %vm2104, 0.0, %v8297
        %v8314 = vsel %vm2104, 0.0, %v8298
        %v8315 = vsel %vm2104, 0.0, %v8299
        %v8316 = vsel %vm2104, 0.0, %v8300
        %v8317 = vsel %vm2104, 0.0, %v8301
        %v8318 = vsel %vm2104, 0.0, %v8302
        %v8319 = vsel %vm2104, 0.0, %v8303
        %v8320 = vsel %vm2104, %v8296, 0.0
        %v8321 = vsel %vm2104, %v8297, 0.0
        %v8322 = vsel %vm2104, %v8298, 0.0
        %v8323 = vsel %vm2104, %v8299, 0.0
        %v8324 = vsel %vm2104, %v8300, 0.0
        %v8325 = vsel %vm2104, %v8301, 0.0
        %v8326 = vsel %vm2104, %v8302, 0.0
        %v8327 = vsel %vm2104, %v8303, 0.0
        %v8328 = vpack.c.bf16 %v8320, %v8312
        %v8329 = vpack.c.bf16 %v8321, %v8313
        %v8330 = vpack.c.bf16 %v8322, %v8314
        %v8331 = vpack.c.bf16 %v8323, %v8315
        %v8332 = vpack.c.bf16 %v8324, %v8316
        %v8333 = vpack.c.bf16 %v8325, %v8317
        %v8334 = vpack.c.bf16 %v8326, %v8318
        %v8335 = vpack.c.bf16 %v8327, %v8319
        %v8337 = vshll.u32 %v8328, 16
        %v8339 = vrot.slane %v8337, 1
        %v8340 = vsel %vm1118, %v2193, %v8339
        %v8341 = vshrl.u32 %v8328, 16
        %v8343 = vor.u32 %v8341, %v8339
        %v8345 = vshll.u32 %v8329, 16
        %v8347 = vrot.slane %v8345, 1
        %v8348 = vsel %vm1118, %v8343, %v8347
        %v8349 = vshrl.u32 %v8329, 16
        %v8351 = vor.u32 %v8349, %v8347
        %v8353 = vshll.u32 %v8330, 16
        %v8355 = vrot.slane %v8353, 1
        %v8356 = vsel %vm1118, %v8351, %v8355
        %v8357 = vshrl.u32 %v8330, 16
        %v8359 = vor.u32 %v8357, %v8355
        %v8361 = vshll.u32 %v8331, 16
        %v8363 = vrot.slane %v8361, 1
        %v8364 = vsel %vm1118, %v8359, %v8363
        %v8365 = vshrl.u32 %v8331, 16
        %v8367 = vor.u32 %v8365, %v8363
        %v8369 = vshll.u32 %v8332, 16
        %v8371 = vrot.slane %v8369, 1
        %v8372 = vsel %vm1118, %v8367, %v8371
        %v8373 = vshrl.u32 %v8332, 16
        %v8375 = vor.u32 %v8373, %v8371
        %v8377 = vshll.u32 %v8333, 16
        %v8379 = vrot.slane %v8377, 1
        %v8380 = vsel %vm1118, %v8375, %v8379
        %v8381 = vshrl.u32 %v8333, 16
        %v8383 = vor.u32 %v8381, %v8379
        %v8385 = vshll.u32 %v8334, 16
        %v8387 = vrot.slane %v8385, 1
        %v8388 = vsel %vm1118, %v8383, %v8387
        %v8389 = vshrl.u32 %v8334, 16
        %v8391 = vor.u32 %v8389, %v8387
        %v8393 = vshll.u32 %v8335, 16
        %v8395 = vrot.slane %v8393, 1
        %v8396 = vsel %vm1118, %v8391, %v8395
        %v8397 = vshrl.u32 %v8335, 16
        %v8399 = vor.u32 %v8397, %v8395
        %v8400 = vsel %vm1118, %v8399, %v2192
        %8401 = vrot.lane.b32.xlu0 %v8340, 96
        %v8402 = vpop.permute.xlu0 %8401
        %8403 = vrot.lane.b32.xlu0 %v8348, 96
        %v8404 = vpop.permute.xlu0 %8403
        %8405 = vrot.lane.b32.xlu0 %v8356, 96
        %v8406 = vpop.permute.xlu0 %8405
        %8407 = vrot.lane.b32.xlu0 %v8364, 96
        %v8408 = vpop.permute.xlu0 %8407
        %8409 = vrot.lane.b32.xlu0 %v8372, 96
        %v8410 = vpop.permute.xlu0 %8409
        %8411 = vrot.lane.b32.xlu0 %v8380, 96
        %v8412 = vpop.permute.xlu0 %8411
        %8413 = vrot.lane.b32.xlu0 %v8388, 96
        %v8414 = vpop.permute.xlu0 %8413
        %8415 = vrot.lane.b32.xlu0 %v8396, 96
        %v8416 = vpop.permute.xlu0 %8415
        %8417 = vrot.lane.b32.xlu0 %v8400, 96
        %v8418 = vpop.permute.xlu0 %8417
        %8419 = vrot.lane.b32.xlu0 %v2275, 96
        %v8420 = vpop.permute.xlu0 %8419
        %v8429 = vrot.slane %v8328, 1
        %v8430 = vsel %vm1256, %v2311, %v8429
        %v8431 = vrot.slane %v8329, 1
        %v8432 = vsel %vm1256, %v8429, %v8431
        %v8433 = vrot.slane %v8330, 1
        %v8434 = vsel %vm1256, %v8431, %v8433
        %v8435 = vrot.slane %v8331, 1
        %v8436 = vsel %vm1256, %v8433, %v8435
        %v8437 = vrot.slane %v8332, 1
        %v8438 = vsel %vm1256, %v8435, %v8437
        %v8439 = vrot.slane %v8333, 1
        %v8440 = vsel %vm1256, %v8437, %v8439
        %v8441 = vrot.slane %v8334, 1
        %v8442 = vsel %vm1256, %v8439, %v8441
        %v8443 = vrot.slane %v8335, 1
        %v8444 = vsel %vm1256, %v8441, %v8443
        %v8445 = vsel %vm1256, %v8443, %v2311
        %8446 = vrot.lane.b32.xlu0 %v8430, 64
        %v8447 = vpop.permute.xlu0 %8446
        %8448 = vrot.lane.b32.xlu0 %v8432, 64
        %v8449 = vpop.permute.xlu0 %8448
        %8450 = vrot.lane.b32.xlu0 %v8434, 64
        %v8451 = vpop.permute.xlu0 %8450
        %8452 = vrot.lane.b32.xlu0 %v8436, 64
        %v8453 = vpop.permute.xlu0 %8452
        %8454 = vrot.lane.b32.xlu0 %v8438, 64
        %v8455 = vpop.permute.xlu0 %8454
        %8456 = vrot.lane.b32.xlu0 %v8440, 64
        %v8457 = vpop.permute.xlu0 %8456
        %8458 = vrot.lane.b32.xlu0 %v8442, 64
        %v8459 = vpop.permute.xlu0 %8458
        %8460 = vrot.lane.b32.xlu0 %v8444, 64
        %v8461 = vpop.permute.xlu0 %8460
        %8462 = vrot.lane.b32.xlu0 %v8445, 64
        %v8463 = vpop.permute.xlu0 %8462
        %v8465 = vsel %vm1430, %v2176, %v8402
        %v8468 = vsel %vm1430, %v8328, %v8404
        %v8471 = vsel %vm1430, %v8329, %v8406
        %v8474 = vsel %vm1430, %v8330, %v8408
        %v8477 = vsel %vm1430, %v8331, %v8410
        %v8480 = vsel %vm1430, %v8332, %v8412
        %v8483 = vsel %vm1430, %v8333, %v8414
        %v8486 = vsel %vm1430, %v8334, %v8416
        %v8489 = vsel %vm1430, %v8335, %v8418
        %v8492 = vsel %vm1430, %v2176, %v8420
        %v8495 = vsel %vm1331, %v8402, %v8447
        %v8498 = vsel %vm1331, %v8404, %v8449
        %v8501 = vsel %vm1331, %v8406, %v8451
        %v8504 = vsel %vm1331, %v8408, %v8453
        %v8507 = vsel %vm1331, %v8410, %v8455
        %v8510 = vsel %vm1331, %v8412, %v8457
        %v8513 = vsel %vm1331, %v8414, %v8459
        %v8516 = vsel %vm1331, %v8416, %v8461
        %v8519 = vsel %vm1331, %v8418, %v8463
        %v8521 = vsel %vm1331, %v8420, %v2357
        %v8523 = vld [vmem:[%s17] sm:$0xf]
        %v8524 = vld [vmem:[%s17 + $0x4] sm:$0xf]
        %v8525 = vld [vmem:[%s17 + $0x8] sm:$0xf]
        %v8526 = vld [vmem:[%s17 + $0xc] sm:$0xf]
        %v8527 = vld [vmem:[%s17 + $0x10] sm:$0xf]
        %v8528 = vld [vmem:[%s17 + $0x14] sm:$0xf]
        %v8529 = vld [vmem:[%s17 + $0x18] sm:$0xf]
        %v8530 = vld [vmem:[%s17 + $0x1c] sm:$0xf]
        %v8531 = vld [vmem:[%s17 + $0x20] sm:$0xf]
        %v8532 = vld [vmem:[%s17 + $0x24] sm:$0xf]
        %v8533 = vld [vmem:[%s17 + $0x28] sm:$0xf]
        %v8534 = vld [vmem:[%s17 + $0x2c] sm:$0xf]
        %v8535 = vld [vmem:[%s17 + $0x30] sm:$0xf]
        %v8536 = vld [vmem:[%s17 + $0x34] sm:$0xf]
        %v8537 = vld [vmem:[%s17 + $0x38] sm:$0xf]
        %v8538 = vld [vmem:[%s17 + $0x3c] sm:$0xf]
        %v8539 = vld [vmem:[%s17 + $0x40] sm:$0xf]
        %v8540 = vld [vmem:[%s17 + $0x44] sm:$0xf]
        %v8541 = vld [vmem:[%s17 + $0x48] sm:$0xf]
        %v8542 = vld [vmem:[%s17 + $0x4c] sm:$0xf]
        %v8543 = vld [vmem:[%s17 + $0x50] sm:$0xf]
        %v8544 = vld [vmem:[%s17 + $0x54] sm:$0xf]
        %v8545 = vld [vmem:[%s17 + $0x58] sm:$0xf]
        %v8546 = vld [vmem:[%s17 + $0x5c] sm:$0xf]
        %v8547 = vld [vmem:[%s17 + $0x60] sm:$0xf]
        %v8548 = vld [vmem:[%s17 + $0x64] sm:$0xf]
        %v8549 = vld [vmem:[%s17 + $0x68] sm:$0xf]
        %v8550 = vld [vmem:[%s17 + $0x6c] sm:$0xf]
        %v8551 = vld [vmem:[%s17 + $0x70] sm:$0xf]
        %v8552 = vld [vmem:[%s17 + $0x74] sm:$0xf]
        %v8553 = vld [vmem:[%s17 + $0x78] sm:$0xf]
        %v8554 = vld [vmem:[%s17 + $0x7c] sm:$0xf]
        %v8555 = vld [vmem:[%s17 + $0x80] sm:$0xf]
        %v8556 = vld [vmem:[%s17 + $0x84] sm:$0xf]
        %v8557 = vld [vmem:[%s17 + $0x88] sm:$0xf]
        %v8558 = vld [vmem:[%s17 + $0x8c] sm:$0xf]
        %8559 = vrot.lane.b32.xlu0 %v1371, 96
        %v8560 = vpop.permute.xlu0 %8559
        %v8562 = vsel %vm1430, 0, %v8560
        %v8564 = vsel %vm1331, %v8560, %v1376
        %s8566 = scalar_lea.vmem %s17, 144
        %v8567 = vld [vmem:[%s8566] sm:$0xf]
        %v8568 = vld [vmem:[%s8566 + $0x4] sm:$0xf]
        %v8569 = vld [vmem:[%s8566 + $0x8] sm:$0xf]
        %v8570 = vld [vmem:[%s8566 + $0xc] sm:$0xf]
        %v8571 = vld [vmem:[%s8566 + $0x10] sm:$0xf]
        %v8572 = vld [vmem:[%s8566 + $0x14] sm:$0xf]
        %v8573 = vld [vmem:[%s8566 + $0x18] sm:$0xf]
        %v8574 = vld [vmem:[%s8566 + $0x1c] sm:$0xf]
        %v8575 = vld [vmem:[%s8566 + $0x20] sm:$0xf]
        %v8576 = vld [vmem:[%s8566 + $0x24] sm:$0xf]
        %v8577 = vld [vmem:[%s8566 + $0x28] sm:$0xf]
        %v8578 = vld [vmem:[%s8566 + $0x2c] sm:$0xf]
        %v8579 = vld [vmem:[%s8566 + $0x30] sm:$0xf]
        %v8580 = vld [vmem:[%s8566 + $0x34] sm:$0xf]
        %v8581 = vld [vmem:[%s8566 + $0x38] sm:$0xf]
        %v8582 = vld [vmem:[%s8566 + $0x3c] sm:$0xf]
        %v8583 = vld [vmem:[%s8566 + $0x40] sm:$0xf]
        %v8584 = vld [vmem:[%s8566 + $0x44] sm:$0xf]
        %v8585 = vld [vmem:[%s8566 + $0x48] sm:$0xf]
        %v8586 = vld [vmem:[%s8566 + $0x4c] sm:$0xf]
        %v8587 = vld [vmem:[%s8566 + $0x50] sm:$0xf]
        %v8588 = vld [vmem:[%s8566 + $0x54] sm:$0xf]
        %v8589 = vld [vmem:[%s8566 + $0x58] sm:$0xf]
        %v8590 = vld [vmem:[%s8566 + $0x5c] sm:$0xf]
        %v8591 = vld [vmem:[%s8566 + $0x60] sm:$0xf]
        %v8592 = vld [vmem:[%s8566 + $0x64] sm:$0xf]
        %v8593 = vld [vmem:[%s8566 + $0x68] sm:$0xf]
        %v8594 = vld [vmem:[%s8566 + $0x6c] sm:$0xf]
        %v8595 = vld [vmem:[%s8566 + $0x70] sm:$0xf]
        %v8596 = vld [vmem:[%s8566 + $0x74] sm:$0xf]
        %v8597 = vld [vmem:[%s8566 + $0x78] sm:$0xf]
        %v8598 = vld [vmem:[%s8566 + $0x7c] sm:$0xf]
        %v8599 = vld [vmem:[%s8566 + $0x80] sm:$0xf]
        %v8600 = vld [vmem:[%s8566 + $0x84] sm:$0xf]
        %v8601 = vld [vmem:[%s8566 + $0x88] sm:$0xf]
        %v8602 = vld [vmem:[%s8566 + $0x8c] sm:$0xf]
        %v8639 = vunpack.c.l.b16 %v8567
        %v8640 = vunpack.c.l.b16 %v8568
        %v8641 = vunpack.c.l.b16 %v8569
        %v8642 = vunpack.c.l.b16 %v8570
        %v8643 = vunpack.c.l.b16 %v8571
        %v8644 = vunpack.c.l.b16 %v8572
        %v8645 = vunpack.c.l.b16 %v8573
        %v8646 = vunpack.c.l.b16 %v8574
        %v8647 = vunpack.c.l.b16 %v8575
        %v8648 = vunpack.c.l.b16 %v8576
        %v8649 = vunpack.c.l.b16 %v8577
        %v8650 = vunpack.c.l.b16 %v8578
        %v8651 = vunpack.c.l.b16 %v8579
        %v8652 = vunpack.c.l.b16 %v8580
        %v8653 = vunpack.c.l.b16 %v8581
        %v8654 = vunpack.c.l.b16 %v8582
        %v8655 = vunpack.c.l.b16 %v8583
        %v8656 = vunpack.c.l.b16 %v8584
        %v8657 = vunpack.c.l.b16 %v8585
        %v8658 = vunpack.c.l.b16 %v8586
        %v8659 = vunpack.c.l.b16 %v8587
        %v8660 = vunpack.c.l.b16 %v8588
        %v8661 = vunpack.c.l.b16 %v8589
        %v8662 = vunpack.c.l.b16 %v8590
        %v8663 = vunpack.c.l.b16 %v8591
        %v8664 = vunpack.c.l.b16 %v8592
        %v8665 = vunpack.c.l.b16 %v8593
        %v8666 = vunpack.c.l.b16 %v8594
        %v8667 = vunpack.c.l.b16 %v8595
        %v8668 = vunpack.c.l.b16 %v8596
        %v8669 = vunpack.c.l.b16 %v8597
        %v8670 = vunpack.c.l.b16 %v8598
        %v8671 = vunpack.c.l.b16 %v8599
        %v8672 = vunpack.c.l.b16 %v8600
        %v8673 = vunpack.c.l.b16 %v8601
        %v8674 = vunpack.c.l.b16 %v8602
        %v8675 = vpack.c.b16 %v8640, %v8639
        %v8676 = vpack.c.b16 %v8642, %v8641
        %v8677 = vpack.c.b16 %v8644, %v8643
        %v8678 = vpack.c.b16 %v8646, %v8645
        %v8679 = vpack.c.b16 %v8648, %v8647
        %v8680 = vpack.c.b16 %v8650, %v8649
        %v8681 = vpack.c.b16 %v8652, %v8651
        %v8682 = vpack.c.b16 %v8654, %v8653
        %v8683 = vpack.c.b16 %v8656, %v8655
        %v8684 = vpack.c.b16 %v8658, %v8657
        %v8685 = vpack.c.b16 %v8660, %v8659
        %v8686 = vpack.c.b16 %v8662, %v8661
        %v8687 = vpack.c.b16 %v8664, %v8663
        %v8688 = vpack.c.b16 %v8666, %v8665
        %v8689 = vpack.c.b16 %v8668, %v8667
        %v8690 = vpack.c.b16 %v8670, %v8669
        %v8691 = vpack.c.b16 %v8672, %v8671
        %v8692 = vpack.c.b16 %v8674, %v8673
        %v8711 = vsel %vm1306, %v8449, 0
        %v8713 = vsel %vm1306, %v8451, 0
        %v8715 = vsel %vm1306, %v8453, 0
        %v8717 = vsel %vm1306, %v8455, 0
        %v8719 = vsel %vm1306, %v8457, 0
        %v8721 = vsel %vm1306, %v8459, 0
        %v8723 = vsel %vm1306, %v8461, 0
        %v8725 = vsel %vm1306, %v8463, 0
        %v8727 = vsel %vm1306, %v2357, 0
        %v8729 = vsel %vm1306, %v1376, 0
        %8731 = vmatprep.subr.bf16.mxu0 0
        %8732 = vmatpush1.bf16.msra.mxu0 %v8675
        %8733 = vmatprep.subr.bf16.mxu0 0
        %8734 = vmatpush1.bf16.msra.mxu0 %v8676
        %8735 = vmatprep.subr.bf16.mxu0 0
        %8736 = vmatpush1.bf16.msra.mxu0 %v8677
        %8737 = vmatprep.subr.bf16.mxu0 0
        %8738 = vmatpush1.bf16.msra.mxu0 %v8678
        %8739 = vmatprep.subr.bf16.mxu0 0
        %8740 = vmatpush1.bf16.msra.mxu0 %v8679
        %8741 = vmatprep.subr.bf16.mxu0 0
        %8742 = vmatpush1.bf16.msra.mxu0 %v8680
        %8743 = vmatprep.subr.bf16.mxu0 0
        %8744 = vmatpush1.bf16.msra.mxu0 %v8681
        %8745 = vmatprep.subr.bf16.mxu0 0
        %8746 = vmatpush1.bf16.msra.mxu0 %v8682
        %8747 = vmatprep.subr.bf16.mxu0 0
        %8748 = vmatpush1.bf16.msra.mxu0 %v8683
        %8749 = vmatprep.subr.bf16.mxu0 0
        %8750 = vmatpush1.bf16.msra.mxu0 %v8684
        %8751 = vmatprep.subr.bf16.mxu0 0
        %8752 = vmatpush1.bf16.msra.mxu0 %v8685
        %8753 = vmatprep.subr.bf16.mxu0 0
        %8754 = vmatpush1.bf16.msra.mxu0 %v8686
        %8755 = vmatprep.subr.bf16.mxu0 0
        %8756 = vmatpush1.bf16.msra.mxu0 %v8687
        %8757 = vmatprep.subr.bf16.mxu0 0
        %8758 = vmatpush1.bf16.msra.mxu0 %v8688
        %8759 = vmatprep.subr.bf16.mxu0 0
        %8760 = vmatpush1.bf16.msra.mxu0 %v8689
        %8761 = vmatprep.subr.bf16.mxu0 0
        %8762 = vmatpush1.bf16.msra.mxu0 %v8690
        %8763 = vmatprep.mubr.bf16.mxu0 %v8498
        %8764 = vmatmul.mubr.bf16.gmra.mrb[0].mxu0 %v8468
        %v8765 = vpop.f32.mrb[0].mxu0
        %v8766 = vadd.f32 0.0, %v8765
        %v8767 = vpop.f32.mrb[0].mxu0
        %v8768 = vpop.f32.mrb[0].mxu0
        %v8769 = vpop.f32.mrb[0].mxu0
        %8770 = vmatprep.mubr.bf16.mxu0 %v8501
        %8771 = vmatmul.mubr.bf16.gmra.mrb[0].mxu0 %v8471
        %v8772 = vpop.f32.mrb[0].mxu0
        %v8773 = vadd.f32 0.0, %v8772
        %v8774 = vpop.f32.mrb[0].mxu0
        %v8775 = vpop.f32.mrb[0].mxu0
        %v8776 = vpop.f32.mrb[0].mxu0
        %8777 = vmatprep.mubr.bf16.mxu0 %v8504
        %8778 = vmatmul.mubr.bf16.gmra.mrb[0].mxu0 %v8474
        %v8779 = vpop.f32.mrb[0].mxu0
        %v8780 = vadd.f32 0.0, %v8779
        %v8781 = vpop.f32.mrb[0].mxu0
        %v8782 = vpop.f32.mrb[0].mxu0
        %v8783 = vpop.f32.mrb[0].mxu0
        %8784 = vmatprep.mubr.bf16.mxu0 %v8507
        %8785 = vmatmul.mubr.bf16.gmra.mrb[0].mxu0 %v8477
        %v8786 = vpop.f32.mrb[0].mxu0
        %v8787 = vadd.f32 0.0, %v8786
        %v8788 = vpop.f32.mrb[0].mxu0
        %v8789 = vpop.f32.mrb[0].mxu0
        %v8790 = vpop.f32.mrb[0].mxu0
        %8791 = vmatprep.mubr.bf16.mxu0 %v8510
        %8792 = vmatmul.mubr.bf16.gmra.mrb[0].mxu0 %v8480
        %v8793 = vpop.f32.mrb[0].mxu0
        %v8794 = vadd.f32 0.0, %v8793
        %v8795 = vpop.f32.mrb[0].mxu0
        %v8796 = vpop.f32.mrb[0].mxu0
        %v8797 = vpop.f32.mrb[0].mxu0
        %8798 = vmatprep.mubr.bf16.mxu0 %v8513
        %8799 = vmatmul.mubr.bf16.gmra.mrb[0].mxu0 %v8483
        %v8800 = vpop.f32.mrb[0].mxu0
        %v8801 = vadd.f32 0.0, %v8800
        %v8802 = vpop.f32.mrb[0].mxu0
        %v8803 = vpop.f32.mrb[0].mxu0
        %v8804 = vpop.f32.mrb[0].mxu0
        %8805 = vmatprep.mubr.bf16.mxu0 %v8516
        %8806 = vmatmul.mubr.bf16.gmra.mrb[0].mxu0 %v8486
        %v8807 = vpop.f32.mrb[0].mxu0
        %v8808 = vadd.f32 0.0, %v8807
        %v8809 = vpop.f32.mrb[0].mxu0
        %v8810 = vpop.f32.mrb[0].mxu0
        %v8811 = vpop.f32.mrb[0].mxu0
        %8812 = vmatprep.mubr.bf16.mxu0 %v8519
        %8813 = vmatmul.mubr.bf16.gmra.mrb[0].mxu0 %v8489
        %v8814 = vpop.f32.mrb[0].mxu0
        %v8815 = vadd.f32 0.0, %v8814
        %v8816 = vpop.f32.mrb[0].mxu0
        %v8817 = vpop.f32.mrb[0].mxu0
        %v8818 = vpop.f32.mrb[0].mxu0
        %8819 = vmatprep.mubr.bf16.mxu0 %v8521
        %8820 = vmatmul.mubr.bf16.gmra.mrb[0].mxu0 %v8492
        %v8821 = vpop.f32.mrb[0].mxu0
        %v8822 = vpop.f32.mrb[0].mxu0
        %v8823 = vpop.f32.mrb[0].mxu0
        %v8824 = vpop.f32.mrb[0].mxu0
        %8825 = vmatprep.mubr.bf16.mxu0 %v8564
        %8826 = vmatmul.mubr.bf16.gmra.mrb[0].mxu0 %v8562
        %v8827 = vpop.f32.mrb[0].mxu0
        %v8828 = vpop.f32.mrb[0].mxu0
        %v8829 = vpop.f32.mrb[0].mxu0
        %v8830 = vpop.f32.mrb[0].mxu0
        %8831 = vdwg.mxu0
        %8832 = vmatprep.subr.bf16.mxu0 0
        %8833 = vmatpush1.bf16.msra.mxu0 %v8691
        %8834 = vmatprep.subr.bf16.mxu0 0
        %8835 = vmatpush1.bf16.msra.mxu0 %v8692
        %8836 = vmatprep.subr.bf16.mxu0 0
        %8837 = vmatpush1.bf16.msra.mxu0 0
        %8838 = vmatprep.subr.bf16.mxu0 0
        %8839 = vmatpush1.bf16.msra.mxu0 0
        %8840 = vmatprep.subr.bf16.mxu0 0
        %8841 = vmatpush1.bf16.msra.mxu0 0
        %8842 = vmatprep.subr.bf16.mxu0 0
        %8843 = vmatpush1.bf16.msra.mxu0 0
        %8844 = vmatprep.subr.bf16.mxu0 0
        %8845 = vmatpush1.bf16.msra.mxu0 0
        %8846 = vmatprep.subr.bf16.mxu0 0
        %8847 = vmatpush1.bf16.msra.mxu0 0
        %8848 = vmatprep.subr.bf16.mxu0 0
        %8849 = vmatpush1.bf16.msra.mxu0 0
        %8850 = vmatprep.subr.bf16.mxu0 0
        %8851 = vmatpush1.bf16.msra.mxu0 0
        %8852 = vmatprep.subr.bf16.mxu0 0
        %8853 = vmatpush1.bf16.msra.mxu0 0
        %8854 = vmatprep.subr.bf16.mxu0 0
        %8855 = vmatpush1.bf16.msra.mxu0 0
        %8856 = vmatprep.subr.bf16.mxu0 0
        %8857 = vmatpush1.bf16.msra.mxu0 0
        %8858 = vmatprep.subr.bf16.mxu0 0
        %8859 = vmatpush1.bf16.msra.mxu0 0
        %8860 = vmatprep.subr.bf16.mxu0 0
        %8861 = vmatpush1.bf16.msra.mxu0 0
        %8862 = vmatprep.subr.bf16.mxu0 0
        %8863 = vmatpush1.bf16.msra.mxu0 0
        %8864 = vmatprep.mubr.bf16.mxu0 0
        %8865 = vmatmul.mubr.bf16.gmra.mrb[0].mxu0 %v8711
        %v8866 = vpop.f32.mrb[0].mxu0
        %v8867 = vadd.f32 %v8766, %v8866
        %v8868 = vpop.f32.mrb[0].mxu0
        %v8869 = vpop.f32.mrb[0].mxu0
        %v8870 = vpop.f32.mrb[0].mxu0
        %8871 = vmatprep.mubr.bf16.mxu0 0
        %8872 = vmatmul.mubr.bf16.gmra.mrb[0].mxu0 %v8713
        %v8873 = vpop.f32.mrb[0].mxu0
        %v8874 = vadd.f32 %v8773, %v8873
        %v8875 = vpop.f32.mrb[0].mxu0
        %v8876 = vpop.f32.mrb[0].mxu0
        %v8877 = vpop.f32.mrb[0].mxu0
        %8878 = vmatprep.mubr.bf16.mxu0 0
        %8879 = vmatmul.mubr.bf16.gmra.mrb[0].mxu0 %v8715
        %v8880 = vpop.f32.mrb[0].mxu0
        %v8881 = vadd.f32 %v8780, %v8880
        %v8882 = vpop.f32.mrb[0].mxu0
        %v8883 = vpop.f32.mrb[0].mxu0
        %v8884 = vpop.f32.mrb[0].mxu0
        %8885 = vmatprep.mubr.bf16.mxu0 0
        %8886 = vmatmul.mubr.bf16.gmra.mrb[0].mxu0 %v8717
        %v8887 = vpop.f32.mrb[0].mxu0
        %v8888 = vadd.f32 %v8787, %v8887
        %v8889 = vpop.f32.mrb[0].mxu0
        %v8890 = vpop.f32.mrb[0].mxu0
        %v8891 = vpop.f32.mrb[0].mxu0
        %8892 = vmatprep.mubr.bf16.mxu0 0
        %8893 = vmatmul.mubr.bf16.gmra.mrb[0].mxu0 %v8719
        %v8894 = vpop.f32.mrb[0].mxu0
        %v8895 = vadd.f32 %v8794, %v8894
        %v8896 = vpop.f32.mrb[0].mxu0
        %v8897 = vpop.f32.mrb[0].mxu0
        %v8898 = vpop.f32.mrb[0].mxu0
        %8899 = vmatprep.mubr.bf16.mxu0 0
        %8900 = vmatmul.mubr.bf16.gmra.mrb[0].mxu0 %v8721
        %v8901 = vpop.f32.mrb[0].mxu0
        %v8902 = vadd.f32 %v8801, %v8901
        %v8903 = vpop.f32.mrb[0].mxu0
        %v8904 = vpop.f32.mrb[0].mxu0
        %v8905 = vpop.f32.mrb[0].mxu0
        %8906 = vmatprep.mubr.bf16.mxu0 0
        %8907 = vmatmul.mubr.bf16.gmra.mrb[0].mxu0 %v8723
        %v8908 = vpop.f32.mrb[0].mxu0
        %v8909 = vadd.f32 %v8808, %v8908
        %v8910 = vpop.f32.mrb[0].mxu0
        %v8911 = vpop.f32.mrb[0].mxu0
        %v8912 = vpop.f32.mrb[0].mxu0
        %8913 = vmatprep.mubr.bf16.mxu0 0
        %8914 = vmatmul.mubr.bf16.gmra.mrb[0].mxu0 %v8725
        %v8915 = vpop.f32.mrb[0].mxu0
        %v8916 = vadd.f32 %v8815, %v8915
        %v8917 = vpop.f32.mrb[0].mxu0
        %v8918 = vpop.f32.mrb[0].mxu0
        %v8919 = vpop.f32.mrb[0].mxu0
        %8920 = vmatprep.mubr.bf16.mxu0 0
        %8921 = vmatmul.mubr.bf16.gmra.mrb[0].mxu0 %v8727
        %v8922 = vpop.f32.mrb[0].mxu0
        %v8923 = vpop.f32.mrb[0].mxu0
        %v8924 = vpop.f32.mrb[0].mxu0
        %v8925 = vpop.f32.mrb[0].mxu0
        %8926 = vmatprep.mubr.bf16.mxu0 0
        %8927 = vmatmul.mubr.bf16.gmra.mrb[0].mxu0 %v8729
        %v8928 = vpop.f32.mrb[0].mxu0
        %v8929 = vpop.f32.mrb[0].mxu0
        %v8930 = vpop.f32.mrb[0].mxu0
        %v8931 = vpop.f32.mrb[0].mxu0
        %8932 = vdwg.mxu0
        %v8969 = vunpack.c.l.b16 %v8523
        %v8970 = vunpack.c.l.b16 %v8524
        %v8971 = vunpack.c.l.b16 %v8525
        %v8972 = vunpack.c.l.b16 %v8526
        %v8973 = vunpack.c.l.b16 %v8527
        %v8974 = vunpack.c.l.b16 %v8528
        %v8975 = vunpack.c.l.b16 %v8529
        %v8976 = vunpack.c.l.b16 %v8530
        %v8977 = vunpack.c.l.b16 %v8531
        %v8978 = vunpack.c.l.b16 %v8532
        %v8979 = vunpack.c.l.b16 %v8533
        %v8980 = vunpack.c.l.b16 %v8534
        %v8981 = vunpack.c.l.b16 %v8535
        %v8982 = vunpack.c.l.b16 %v8536
        %v8983 = vunpack.c.l.b16 %v8537
        %v8984 = vunpack.c.l.b16 %v8538
        %v8985 = vunpack.c.l.b16 %v8539
        %v8986 = vunpack.c.l.b16 %v8540
        %v8987 = vunpack.c.l.b16 %v8541
        %v8988 = vunpack.c.l.b16 %v8542
        %v8989 = vunpack.c.l.b16 %v8543
        %v8990 = vunpack.c.l.b16 %v8544
        %v8991 = vunpack.c.l.b16 %v8545
        %v8992 = vunpack.c.l.b16 %v8546
        %v8993 = vunpack.c.l.b16 %v8547
        %v8994 = vunpack.c.l.b16 %v8548
        %v8995 = vunpack.c.l.b16 %v8549
        %v8996 = vunpack.c.l.b16 %v8550
        %v8997 = vunpack.c.l.b16 %v8551
        %v8998 = vunpack.c.l.b16 %v8552
        %v8999 = vunpack.c.l.b16 %v8553
        %v9000 = vunpack.c.l.b16 %v8554
        %v9001 = vunpack.c.l.b16 %v8555
        %v9002 = vunpack.c.l.b16 %v8556
        %v9003 = vunpack.c.l.b16 %v8557
        %v9004 = vunpack.c.l.b16 %v8558
        %v9005 = vpack.c.b16 %v8970, %v8969
        %v9006 = vpack.c.b16 %v8972, %v8971
        %v9007 = vpack.c.b16 %v8974, %v8973
        %v9008 = vpack.c.b16 %v8976, %v8975
        %v9009 = vpack.c.b16 %v8978, %v8977
        %v9010 = vpack.c.b16 %v8980, %v8979
        %v9011 = vpack.c.b16 %v8982, %v8981
        %v9012 = vpack.c.b16 %v8984, %v8983
        %v9013 = vpack.c.b16 %v8986, %v8985
        %v9014 = vpack.c.b16 %v8988, %v8987
        %v9015 = vpack.c.b16 %v8990, %v8989
        %v9016 = vpack.c.b16 %v8992, %v8991
        %v9017 = vpack.c.b16 %v8994, %v8993
        %v9018 = vpack.c.b16 %v8996, %v8995
        %v9019 = vpack.c.b16 %v8998, %v8997
        %v9020 = vpack.c.b16 %v9000, %v8999
        %v9021 = vpack.c.b16 %v9002, %v9001
        %v9022 = vpack.c.b16 %v9004, %v9003
        %v9041 = vsel %vm1306, %v8447, 0
        %9043 = vmatprep.subr.bf16.mxu0 0
        %9044 = vmatpush1.bf16.msra.mxu0 %v9005
        %9045 = vmatprep.subr.bf16.mxu0 0
        %9046 = vmatpush1.bf16.msra.mxu0 %v9006
        %9047 = vmatprep.subr.bf16.mxu0 0
        %9048 = vmatpush1.bf16.msra.mxu0 %v9007
        %9049 = vmatprep.subr.bf16.mxu0 0
        %9050 = vmatpush1.bf16.msra.mxu0 %v9008
        %9051 = vmatprep.subr.bf16.mxu0 0
        %9052 = vmatpush1.bf16.msra.mxu0 %v9009
        %9053 = vmatprep.subr.bf16.mxu0 0
        %9054 = vmatpush1.bf16.msra.mxu0 %v9010
        %9055 = vmatprep.subr.bf16.mxu0 0
        %9056 = vmatpush1.bf16.msra.mxu0 %v9011
        %9057 = vmatprep.subr.bf16.mxu0 0
        %9058 = vmatpush1.bf16.msra.mxu0 %v9012
        %9059 = vmatprep.subr.bf16.mxu0 0
        %9060 = vmatpush1.bf16.msra.mxu0 %v9013
        %9061 = vmatprep.subr.bf16.mxu0 0
        %9062 = vmatpush1.bf16.msra.mxu0 %v9014
        %9063 = vmatprep.subr.bf16.mxu0 0
        %9064 = vmatpush1.bf16.msra.mxu0 %v9015
        %9065 = vmatprep.subr.bf16.mxu0 0
        %9066 = vmatpush1.bf16.msra.mxu0 %v9016
        %9067 = vmatprep.subr.bf16.mxu0 0
        %9068 = vmatpush1.bf16.msra.mxu0 %v9017
        %9069 = vmatprep.subr.bf16.mxu0 0
        %9070 = vmatpush1.bf16.msra.mxu0 %v9018
        %9071 = vmatprep.subr.bf16.mxu0 0
        %9072 = vmatpush1.bf16.msra.mxu0 %v9019
        %9073 = vmatprep.subr.bf16.mxu0 0
        %9074 = vmatpush1.bf16.msra.mxu0 %v9020
        %9075 = vmatprep.mubr.bf16.mxu0 %v8495
        %9076 = vmatmul.mubr.bf16.gmra.mrb[0].mxu0 %v8465
        %v9077 = vpop.f32.mrb[0].mxu0
        %v9078 = vadd.f32 %v8867, %v9077
        %v9079 = vpop.f32.mrb[0].mxu0
        %v9080 = vpop.f32.mrb[0].mxu0
        %v9081 = vpop.f32.mrb[0].mxu0
        %9082 = vmatprep.mubr.bf16.mxu0 %v8498
        %9083 = vmatmul.mubr.bf16.gmra.mrb[0].mxu0 %v8468
        %v9084 = vpop.f32.mrb[0].mxu0
        %v9085 = vadd.f32 %v8874, %v9084
        %v9086 = vpop.f32.mrb[0].mxu0
        %v9087 = vpop.f32.mrb[0].mxu0
        %v9088 = vpop.f32.mrb[0].mxu0
        %9089 = vmatprep.mubr.bf16.mxu0 %v8501
        %9090 = vmatmul.mubr.bf16.gmra.mrb[0].mxu0 %v8471
        %v9091 = vpop.f32.mrb[0].mxu0
        %v9092 = vadd.f32 %v8881, %v9091
        %v9093 = vpop.f32.mrb[0].mxu0
        %v9094 = vpop.f32.mrb[0].mxu0
        %v9095 = vpop.f32.mrb[0].mxu0
        %9096 = vmatprep.mubr.bf16.mxu0 %v8504
        %9097 = vmatmul.mubr.bf16.gmra.mrb[0].mxu0 %v8474
        %v9098 = vpop.f32.mrb[0].mxu0
        %v9099 = vadd.f32 %v8888, %v9098
        %v9100 = vpop.f32.mrb[0].mxu0
        %v9101 = vpop.f32.mrb[0].mxu0
        %v9102 = vpop.f32.mrb[0].mxu0
        %9103 = vmatprep.mubr.bf16.mxu0 %v8507
        %9104 = vmatmul.mubr.bf16.gmra.mrb[0].mxu0 %v8477
        %v9105 = vpop.f32.mrb[0].mxu0
        %v9106 = vadd.f32 %v8895, %v9105
        %v9107 = vpop.f32.mrb[0].mxu0
        %v9108 = vpop.f32.mrb[0].mxu0
        %v9109 = vpop.f32.mrb[0].mxu0
        %9110 = vmatprep.mubr.bf16.mxu0 %v8510
        %9111 = vmatmul.mubr.bf16.gmra.mrb[0].mxu0 %v8480
        %v9112 = vpop.f32.mrb[0].mxu0
        %v9113 = vadd.f32 %v8902, %v9112
        %v9114 = vpop.f32.mrb[0].mxu0
        %v9115 = vpop.f32.mrb[0].mxu0
        %v9116 = vpop.f32.mrb[0].mxu0
        %9117 = vmatprep.mubr.bf16.mxu0 %v8513
        %9118 = vmatmul.mubr.bf16.gmra.mrb[0].mxu0 %v8483
        %v9119 = vpop.f32.mrb[0].mxu0
        %v9120 = vadd.f32 %v8909, %v9119
        %v9121 = vpop.f32.mrb[0].mxu0
        %v9122 = vpop.f32.mrb[0].mxu0
        %v9123 = vpop.f32.mrb[0].mxu0
        %9124 = vmatprep.mubr.bf16.mxu0 %v8516
        %9125 = vmatmul.mubr.bf16.gmra.mrb[0].mxu0 %v8486
        %v9126 = vpop.f32.mrb[0].mxu0
        %v9127 = vadd.f32 %v8916, %v9126
        %v9128 = vpop.f32.mrb[0].mxu0
        %v9129 = vpop.f32.mrb[0].mxu0
        %v9130 = vpop.f32.mrb[0].mxu0
        %9131 = vmatprep.mubr.bf16.mxu0 %v8519
        %9132 = vmatmul.mubr.bf16.gmra.mrb[0].mxu0 %v8489
        %v9133 = vpop.f32.mrb[0].mxu0
        %v9134 = vpop.f32.mrb[0].mxu0
        %v9135 = vpop.f32.mrb[0].mxu0
        %v9136 = vpop.f32.mrb[0].mxu0
        %9137 = vmatprep.mubr.bf16.mxu0 %v8521
        %9138 = vmatmul.mubr.bf16.gmra.mrb[0].mxu0 %v8492
        %v9139 = vpop.f32.mrb[0].mxu0
        %v9140 = vpop.f32.mrb[0].mxu0
        %v9141 = vpop.f32.mrb[0].mxu0
        %v9142 = vpop.f32.mrb[0].mxu0
        %9143 = vdwg.mxu0
        %9144 = vmatprep.subr.bf16.mxu0 0
        %9145 = vmatpush1.bf16.msra.mxu0 %v9021
        %9146 = vmatprep.subr.bf16.mxu0 0
        %9147 = vmatpush1.bf16.msra.mxu0 %v9022
        %9148 = vmatprep.subr.bf16.mxu0 0
        %9149 = vmatpush1.bf16.msra.mxu0 0
        %9150 = vmatprep.subr.bf16.mxu0 0
        %9151 = vmatpush1.bf16.msra.mxu0 0
        %9152 = vmatprep.subr.bf16.mxu0 0
        %9153 = vmatpush1.bf16.msra.mxu0 0
        %9154 = vmatprep.subr.bf16.mxu0 0
        %9155 = vmatpush1.bf16.msra.mxu0 0
        %9156 = vmatprep.subr.bf16.mxu0 0
        %9157 = vmatpush1.bf16.msra.mxu0 0
        %9158 = vmatprep.subr.bf16.mxu0 0
        %9159 = vmatpush1.bf16.msra.mxu0 0
        %9160 = vmatprep.subr.bf16.mxu0 0
        %9161 = vmatpush1.bf16.msra.mxu0 0
        %9162 = vmatprep.subr.bf16.mxu0 0
        %9163 = vmatpush1.bf16.msra.mxu0 0
        %9164 = vmatprep.subr.bf16.mxu0 0
        %9165 = vmatpush1.bf16.msra.mxu0 0
        %9166 = vmatprep.subr.bf16.mxu0 0
        %9167 = vmatpush1.bf16.msra.mxu0 0
        %9168 = vmatprep.subr.bf16.mxu0 0
        %9169 = vmatpush1.bf16.msra.mxu0 0
        %9170 = vmatprep.subr.bf16.mxu0 0
        %9171 = vmatpush1.bf16.msra.mxu0 0
        %9172 = vmatprep.subr.bf16.mxu0 0
        %9173 = vmatpush1.bf16.msra.mxu0 0
        %9174 = vmatprep.subr.bf16.mxu0 0
        %9175 = vmatpush1.bf16.msra.mxu0 0
        %9176 = vmatprep.mubr.bf16.mxu0 0
        %9177 = vmatmul.mubr.bf16.gmra.mrb[0].mxu0 %v9041
        %v9178 = vpop.f32.mrb[0].mxu0
        %v9179 = vadd.f32 %v9078, %v9178
        %v9180 = vpop.f32.mrb[0].mxu0
        %v9181 = vpop.f32.mrb[0].mxu0
        %v9182 = vpop.f32.mrb[0].mxu0
        %9183 = vmatprep.mubr.bf16.mxu0 0
        %9184 = vmatmul.mubr.bf16.gmra.mrb[0].mxu0 %v8711
        %v9185 = vpop.f32.mrb[0].mxu0
        %v9186 = vadd.f32 %v9085, %v9185
        %v9187 = vpop.f32.mrb[0].mxu0
        %v9188 = vpop.f32.mrb[0].mxu0
        %v9189 = vpop.f32.mrb[0].mxu0
        %9190 = vmatprep.mubr.bf16.mxu0 0
        %9191 = vmatmul.mubr.bf16.gmra.mrb[0].mxu0 %v8713
        %v9192 = vpop.f32.mrb[0].mxu0
        %v9193 = vadd.f32 %v9092, %v9192
        %v9194 = vpop.f32.mrb[0].mxu0
        %v9195 = vpop.f32.mrb[0].mxu0
        %v9196 = vpop.f32.mrb[0].mxu0
        %9197 = vmatprep.mubr.bf16.mxu0 0
        %9198 = vmatmul.mubr.bf16.gmra.mrb[0].mxu0 %v8715
        %v9199 = vpop.f32.mrb[0].mxu0
        %v9200 = vadd.f32 %v9099, %v9199
        %v9201 = vpop.f32.mrb[0].mxu0
        %v9202 = vpop.f32.mrb[0].mxu0
        %v9203 = vpop.f32.mrb[0].mxu0
        %9204 = vmatprep.mubr.bf16.mxu0 0
        %9205 = vmatmul.mubr.bf16.gmra.mrb[0].mxu0 %v8717
        %v9206 = vpop.f32.mrb[0].mxu0
        %v9207 = vadd.f32 %v9106, %v9206
        %v9208 = vpop.f32.mrb[0].mxu0
        %v9209 = vpop.f32.mrb[0].mxu0
        %v9210 = vpop.f32.mrb[0].mxu0
        %9211 = vmatprep.mubr.bf16.mxu0 0
        %9212 = vmatmul.mubr.bf16.gmra.mrb[0].mxu0 %v8719
        %v9213 = vpop.f32.mrb[0].mxu0
        %v9214 = vadd.f32 %v9113, %v9213
        %v9215 = vpop.f32.mrb[0].mxu0
        %v9216 = vpop.f32.mrb[0].mxu0
        %v9217 = vpop.f32.mrb[0].mxu0
        %9218 = vmatprep.mubr.bf16.mxu0 0
        %9219 = vmatmul.mubr.bf16.gmra.mrb[0].mxu0 %v8721
        %v9220 = vpop.f32.mrb[0].mxu0
        %v9221 = vadd.f32 %v9120, %v9220
        %v9222 = vpop.f32.mrb[0].mxu0
        %v9223 = vpop.f32.mrb[0].mxu0
        %v9224 = vpop.f32.mrb[0].mxu0
        %9225 = vmatprep.mubr.bf16.mxu0 0
        %9226 = vmatmul.mubr.bf16.gmra.mrb[0].mxu0 %v8723
        %v9227 = vpop.f32.mrb[0].mxu0
        %v9228 = vadd.f32 %v9127, %v9227
        %v9229 = vpop.f32.mrb[0].mxu0
        %v9230 = vpop.f32.mrb[0].mxu0
        %v9231 = vpop.f32.mrb[0].mxu0
        %9232 = vmatprep.mubr.bf16.mxu0 0
        %9233 = vmatmul.mubr.bf16.gmra.mrb[0].mxu0 %v8725
        %v9234 = vpop.f32.mrb[0].mxu0
        %v9235 = vpop.f32.mrb[0].mxu0
        %v9236 = vpop.f32.mrb[0].mxu0
        %v9237 = vpop.f32.mrb[0].mxu0
        %9238 = vmatprep.mubr.bf16.mxu0 0
        %9239 = vmatmul.mubr.bf16.gmra.mrb[0].mxu0 %v8727
        %v9240 = vpop.f32.mrb[0].mxu0
        %v9241 = vpop.f32.mrb[0].mxu0
        %v9242 = vpop.f32.mrb[0].mxu0
        %v9243 = vpop.f32.mrb[0].mxu0
        %9244 = vdwg.mxu0
        %s9245 = scalar_lea.vmem %s17, 288
        %v9246 = vld [vmem:[%s9245] sm:$0xf]
        %v9247 = vld [vmem:[%s9245 + $0x4] sm:$0xf]
        %v9248 = vld [vmem:[%s9245 + $0x8] sm:$0xf]
        %v9249 = vld [vmem:[%s9245 + $0xc] sm:$0xf]
        %v9250 = vld [vmem:[%s9245 + $0x10] sm:$0xf]
        %v9251 = vld [vmem:[%s9245 + $0x14] sm:$0xf]
        %v9252 = vld [vmem:[%s9245 + $0x18] sm:$0xf]
        %v9253 = vld [vmem:[%s9245 + $0x1c] sm:$0xf]
        %v9254 = vld [vmem:[%s9245 + $0x20] sm:$0xf]
        %v9255 = vld [vmem:[%s9245 + $0x24] sm:$0xf]
        %v9256 = vld [vmem:[%s9245 + $0x28] sm:$0xf]
        %v9257 = vld [vmem:[%s9245 + $0x2c] sm:$0xf]
        %v9258 = vld [vmem:[%s9245 + $0x30] sm:$0xf]
        %v9259 = vld [vmem:[%s9245 + $0x34] sm:$0xf]
        %v9260 = vld [vmem:[%s9245 + $0x38] sm:$0xf]
        %v9261 = vld [vmem:[%s9245 + $0x3c] sm:$0xf]
        %v9262 = vld [vmem:[%s9245 + $0x40] sm:$0xf]
        %v9263 = vld [vmem:[%s9245 + $0x44] sm:$0xf]
        %v9264 = vld [vmem:[%s9245 + $0x48] sm:$0xf]
        %v9265 = vld [vmem:[%s9245 + $0x4c] sm:$0xf]
        %v9266 = vld [vmem:[%s9245 + $0x50] sm:$0xf]
        %v9267 = vld [vmem:[%s9245 + $0x54] sm:$0xf]
        %v9268 = vld [vmem:[%s9245 + $0x58] sm:$0xf]
        %v9269 = vld [vmem:[%s9245 + $0x5c] sm:$0xf]
        %v9270 = vld [vmem:[%s9245 + $0x60] sm:$0xf]
        %v9271 = vld [vmem:[%s9245 + $0x64] sm:$0xf]
        %v9272 = vld [vmem:[%s9245 + $0x68] sm:$0xf]
        %v9273 = vld [vmem:[%s9245 + $0x6c] sm:$0xf]
        %v9274 = vld [vmem:[%s9245 + $0x70] sm:$0xf]
        %v9275 = vld [vmem:[%s9245 + $0x74] sm:$0xf]
        %v9276 = vld [vmem:[%s9245 + $0x78] sm:$0xf]
        %v9277 = vld [vmem:[%s9245 + $0x7c] sm:$0xf]
        %v9278 = vld [vmem:[%s9245 + $0x80] sm:$0xf]
        %v9279 = vld [vmem:[%s9245 + $0x84] sm:$0xf]
        %v9280 = vld [vmem:[%s9245 + $0x88] sm:$0xf]
        %v9281 = vld [vmem:[%s9245 + $0x8c] sm:$0xf]
        %v9318 = vunpack.c.l.b16 %v9246
        %v9319 = vunpack.c.l.b16 %v9247
        %v9320 = vunpack.c.l.b16 %v9248
        %v9321 = vunpack.c.l.b16 %v9249
        %v9322 = vunpack.c.l.b16 %v9250
        %v9323 = vunpack.c.l.b16 %v9251
        %v9324 = vunpack.c.l.b16 %v9252
        %v9325 = vunpack.c.l.b16 %v9253
        %v9326 = vunpack.c.l.b16 %v9254
        %v9327 = vunpack.c.l.b16 %v9255
        %v9328 = vunpack.c.l.b16 %v9256
        %v9329 = vunpack.c.l.b16 %v9257
        %v9330 = vunpack.c.l.b16 %v9258
        %v9331 = vunpack.c.l.b16 %v9259
        %v9332 = vunpack.c.l.b16 %v9260
        %v9333 = vunpack.c.l.b16 %v9261
        %v9334 = vunpack.c.l.b16 %v9262
        %v9335 = vunpack.c.l.b16 %v9263
        %v9336 = vunpack.c.l.b16 %v9264
        %v9337 = vunpack.c.l.b16 %v9265
        %v9338 = vunpack.c.l.b16 %v9266
        %v9339 = vunpack.c.l.b16 %v9267
        %v9340 = vunpack.c.l.b16 %v9268
        %v9341 = vunpack.c.l.b16 %v9269
        %v9342 = vunpack.c.l.b16 %v9270
        %v9343 = vunpack.c.l.b16 %v9271
        %v9344 = vunpack.c.l.b16 %v9272
        %v9345 = vunpack.c.l.b16 %v9273
        %v9346 = vunpack.c.l.b16 %v9274
        %v9347 = vunpack.c.l.b16 %v9275
        %v9348 = vunpack.c.l.b16 %v9276
        %v9349 = vunpack.c.l.b16 %v9277
        %v9350 = vunpack.c.l.b16 %v9278
        %v9351 = vunpack.c.l.b16 %v9279
        %v9352 = vunpack.c.l.b16 %v9280
        %v9353 = vunpack.c.l.b16 %v9281
        %v9354 = vpack.c.b16 %v9319, %v9318
        %v9355 = vpack.c.b16 %v9321, %v9320
        %v9356 = vpack.c.b16 %v9323, %v9322
        %v9357 = vpack.c.b16 %v9325, %v9324
        %v9358 = vpack.c.b16 %v9327, %v9326
        %v9359 = vpack.c.b16 %v9329, %v9328
        %v9360 = vpack.c.b16 %v9331, %v9330
        %v9361 = vpack.c.b16 %v9333, %v9332
        %v9362 = vpack.c.b16 %v9335, %v9334
        %v9363 = vpack.c.b16 %v9337, %v9336
        %v9364 = vpack.c.b16 %v9339, %v9338
        %v9365 = vpack.c.b16 %v9341, %v9340
        %v9366 = vpack.c.b16 %v9343, %v9342
        %v9367 = vpack.c.b16 %v9345, %v9344
        %v9368 = vpack.c.b16 %v9347, %v9346
        %v9369 = vpack.c.b16 %v9349, %v9348
        %v9370 = vpack.c.b16 %v9351, %v9350
        %v9371 = vpack.c.b16 %v9353, %v9352
        %9390 = vmatprep.subr.bf16.mxu0 0
        %9391 = vmatpush1.bf16.msra.mxu0 %v9354
        %9392 = vmatprep.subr.bf16.mxu0 0
        %9393 = vmatpush1.bf16.msra.mxu0 %v9355
        %9394 = vmatprep.subr.bf16.mxu0 0
        %9395 = vmatpush1.bf16.msra.mxu0 %v9356
        %9396 = vmatprep.subr.bf16.mxu0 0
        %9397 = vmatpush1.bf16.msra.mxu0 %v9357
        %9398 = vmatprep.subr.bf16.mxu0 0
        %9399 = vmatpush1.bf16.msra.mxu0 %v9358
        %9400 = vmatprep.subr.bf16.mxu0 0
        %9401 = vmatpush1.bf16.msra.mxu0 %v9359
        %9402 = vmatprep.subr.bf16.mxu0 0
        %9403 = vmatpush1.bf16.msra.mxu0 %v9360
        %9404 = vmatprep.subr.bf16.mxu0 0
        %9405 = vmatpush1.bf16.msra.mxu0 %v9361
        %9406 = vmatprep.subr.bf16.mxu0 0
        %9407 = vmatpush1.bf16.msra.mxu0 %v9362
        %9408 = vmatprep.subr.bf16.mxu0 0
        %9409 = vmatpush1.bf16.msra.mxu0 %v9363
        %9410 = vmatprep.subr.bf16.mxu0 0
        %9411 = vmatpush1.bf16.msra.mxu0 %v9364
        %9412 = vmatprep.subr.bf16.mxu0 0
        %9413 = vmatpush1.bf16.msra.mxu0 %v9365
        %9414 = vmatprep.subr.bf16.mxu0 0
        %9415 = vmatpush1.bf16.msra.mxu0 %v9366
        %9416 = vmatprep.subr.bf16.mxu0 0
        %9417 = vmatpush1.bf16.msra.mxu0 %v9367
        %9418 = vmatprep.subr.bf16.mxu0 0
        %9419 = vmatpush1.bf16.msra.mxu0 %v9368
        %9420 = vmatprep.subr.bf16.mxu0 0
        %9421 = vmatpush1.bf16.msra.mxu0 %v9369
        %9422 = vmatprep.mubr.bf16.mxu0 %v8501
        %9423 = vmatmul.mubr.bf16.gmra.mrb[0].mxu0 %v8471
        %v9424 = vpop.f32.mrb[0].mxu0
        %v9425 = vadd.f32 0.0, %v9424
        %v9426 = vpop.f32.mrb[0].mxu0
        %v9427 = vpop.f32.mrb[0].mxu0
        %v9428 = vpop.f32.mrb[0].mxu0
        %9429 = vmatprep.mubr.bf16.mxu0 %v8504
        %9430 = vmatmul.mubr.bf16.gmra.mrb[0].mxu0 %v8474
        %v9431 = vpop.f32.mrb[0].mxu0
        %v9432 = vadd.f32 0.0, %v9431
        %v9433 = vpop.f32.mrb[0].mxu0
        %v9434 = vpop.f32.mrb[0].mxu0
        %v9435 = vpop.f32.mrb[0].mxu0
        %9436 = vmatprep.mubr.bf16.mxu0 %v8507
        %9437 = vmatmul.mubr.bf16.gmra.mrb[0].mxu0 %v8477
        %v9438 = vpop.f32.mrb[0].mxu0
        %v9439 = vadd.f32 0.0, %v9438
        %v9440 = vpop.f32.mrb[0].mxu0
        %v9441 = vpop.f32.mrb[0].mxu0
        %v9442 = vpop.f32.mrb[0].mxu0
        %9443 = vmatprep.mubr.bf16.mxu0 %v8510
        %9444 = vmatmul.mubr.bf16.gmra.mrb[0].mxu0 %v8480
        %v9445 = vpop.f32.mrb[0].mxu0
        %v9446 = vadd.f32 0.0, %v9445
        %v9447 = vpop.f32.mrb[0].mxu0
        %v9448 = vpop.f32.mrb[0].mxu0
        %v9449 = vpop.f32.mrb[0].mxu0
        %9450 = vmatprep.mubr.bf16.mxu0 %v8513
        %9451 = vmatmul.mubr.bf16.gmra.mrb[0].mxu0 %v8483
        %v9452 = vpop.f32.mrb[0].mxu0
        %v9453 = vadd.f32 0.0, %v9452
        %v9454 = vpop.f32.mrb[0].mxu0
        %v9455 = vpop.f32.mrb[0].mxu0
        %v9456 = vpop.f32.mrb[0].mxu0
        %9457 = vmatprep.mubr.bf16.mxu0 %v8516
        %9458 = vmatmul.mubr.bf16.gmra.mrb[0].mxu0 %v8486
        %v9459 = vpop.f32.mrb[0].mxu0
        %v9460 = vadd.f32 0.0, %v9459
        %v9461 = vpop.f32.mrb[0].mxu0
        %v9462 = vpop.f32.mrb[0].mxu0
        %v9463 = vpop.f32.mrb[0].mxu0
        %9464 = vmatprep.mubr.bf16.mxu0 %v8519
        %9465 = vmatmul.mubr.bf16.gmra.mrb[0].mxu0 %v8489
        %v9466 = vpop.f32.mrb[0].mxu0
        %v9467 = vadd.f32 0.0, %v9466
        %v9468 = vpop.f32.mrb[0].mxu0
        %v9469 = vpop.f32.mrb[0].mxu0
        %v9470 = vpop.f32.mrb[0].mxu0
        %9471 = vmatprep.mubr.bf16.mxu0 %v8521
        %9472 = vmatmul.mubr.bf16.gmra.mrb[0].mxu0 %v8492
        %v9473 = vpop.f32.mrb[0].mxu0
        %v9474 = vadd.f32 0.0, %v9473
        %v9475 = vpop.f32.mrb[0].mxu0
        %v9476 = vpop.f32.mrb[0].mxu0
        %v9477 = vpop.f32.mrb[0].mxu0
        %9478 = vmatprep.mubr.bf16.mxu0 %v8564
        %9479 = vmatmul.mubr.bf16.gmra.mrb[0].mxu0 %v8562
        %v9480 = vpop.f32.mrb[0].mxu0
        %v9481 = vpop.f32.mrb[0].mxu0
        %v9482 = vpop.f32.mrb[0].mxu0
        %v9483 = vpop.f32.mrb[0].mxu0
        %9484 = vmatprep.mubr.bf16.mxu0 %v8564
        %9485 = vmatmul.mubr.bf16.gmra.mrb[0].mxu0 %v8562
        %v9486 = vpop.f32.mrb[0].mxu0
        %v9487 = vpop.f32.mrb[0].mxu0
        %v9488 = vpop.f32.mrb[0].mxu0
        %v9489 = vpop.f32.mrb[0].mxu0
        %9490 = vdwg.mxu0
        %9491 = vmatprep.subr.bf16.mxu0 0
        %9492 = vmatpush1.bf16.msra.mxu0 %v9370
        %9493 = vmatprep.subr.bf16.mxu0 0
        %9494 = vmatpush1.bf16.msra.mxu0 %v9371
        %9495 = vmatprep.subr.bf16.mxu0 0
        %9496 = vmatpush1.bf16.msra.mxu0 0
        %9497 = vmatprep.subr.bf16.mxu0 0
        %9498 = vmatpush1.bf16.msra.mxu0 0
        %9499 = vmatprep.subr.bf16.mxu0 0
        %9500 = vmatpush1.bf16.msra.mxu0 0
        %9501 = vmatprep.subr.bf16.mxu0 0
        %9502 = vmatpush1.bf16.msra.mxu0 0
        %9503 = vmatprep.subr.bf16.mxu0 0
        %9504 = vmatpush1.bf16.msra.mxu0 0
        %9505 = vmatprep.subr.bf16.mxu0 0
        %9506 = vmatpush1.bf16.msra.mxu0 0
        %9507 = vmatprep.subr.bf16.mxu0 0
        %9508 = vmatpush1.bf16.msra.mxu0 0
        %9509 = vmatprep.subr.bf16.mxu0 0
        %9510 = vmatpush1.bf16.msra.mxu0 0
        %9511 = vmatprep.subr.bf16.mxu0 0
        %9512 = vmatpush1.bf16.msra.mxu0 0
        %9513 = vmatprep.subr.bf16.mxu0 0
        %9514 = vmatpush1.bf16.msra.mxu0 0
        %9515 = vmatprep.subr.bf16.mxu0 0
        %9516 = vmatpush1.bf16.msra.mxu0 0
        %9517 = vmatprep.subr.bf16.mxu0 0
        %9518 = vmatpush1.bf16.msra.mxu0 0
        %9519 = vmatprep.subr.bf16.mxu0 0
        %9520 = vmatpush1.bf16.msra.mxu0 0
        %9521 = vmatprep.subr.bf16.mxu0 0
        %9522 = vmatpush1.bf16.msra.mxu0 0
        %9523 = vmatprep.mubr.bf16.mxu0 0
        %9524 = vmatmul.mubr.bf16.gmra.mrb[0].mxu0 %v8713
        %v9525 = vpop.f32.mrb[0].mxu0
        %v9526 = vadd.f32 %v9425, %v9525
        %v9527 = vpop.f32.mrb[0].mxu0
        %v9528 = vpop.f32.mrb[0].mxu0
        %v9529 = vpop.f32.mrb[0].mxu0
        %9530 = vmatprep.mubr.bf16.mxu0 0
        %9531 = vmatmul.mubr.bf16.gmra.mrb[0].mxu0 %v8715
        %v9532 = vpop.f32.mrb[0].mxu0
        %v9533 = vadd.f32 %v9432, %v9532
        %v9534 = vpop.f32.mrb[0].mxu0
        %v9535 = vpop.f32.mrb[0].mxu0
        %v9536 = vpop.f32.mrb[0].mxu0
        %9537 = vmatprep.mubr.bf16.mxu0 0
        %9538 = vmatmul.mubr.bf16.gmra.mrb[0].mxu0 %v8717
        %v9539 = vpop.f32.mrb[0].mxu0
        %v9540 = vadd.f32 %v9439, %v9539
        %v9541 = vpop.f32.mrb[0].mxu0
        %v9542 = vpop.f32.mrb[0].mxu0
        %v9543 = vpop.f32.mrb[0].mxu0
        %9544 = vmatprep.mubr.bf16.mxu0 0
        %9545 = vmatmul.mubr.bf16.gmra.mrb[0].mxu0 %v8719
        %v9546 = vpop.f32.mrb[0].mxu0
        %v9547 = vadd.f32 %v9446, %v9546
        %v9548 = vpop.f32.mrb[0].mxu0
        %v9549 = vpop.f32.mrb[0].mxu0
        %v9550 = vpop.f32.mrb[0].mxu0
        %9551 = vmatprep.mubr.bf16.mxu0 0
        %9552 = vmatmul.mubr.bf16.gmra.mrb[0].mxu0 %v8721
        %v9553 = vpop.f32.mrb[0].mxu0
        %v9554 = vadd.f32 %v9453, %v9553
        %v9555 = vpop.f32.mrb[0].mxu0
        %v9556 = vpop.f32.mrb[0].mxu0
        %v9557 = vpop.f32.mrb[0].mxu0
        %9558 = vmatprep.mubr.bf16.mxu0 0
        %9559 = vmatmul.mubr.bf16.gmra.mrb[0].mxu0 %v8723
        %v9560 = vpop.f32.mrb[0].mxu0
        %v9561 = vadd.f32 %v9460, %v9560
        %v9562 = vpop.f32.mrb[0].mxu0
        %v9563 = vpop.f32.mrb[0].mxu0
        %v9564 = vpop.f32.mrb[0].mxu0
        %9565 = vmatprep.mubr.bf16.mxu0 0
        %9566 = vmatmul.mubr.bf16.gmra.mrb[0].mxu0 %v8725
        %v9567 = vpop.f32.mrb[0].mxu0
        %v9568 = vadd.f32 %v9467, %v9567
        %v9569 = vpop.f32.mrb[0].mxu0
        %v9570 = vpop.f32.mrb[0].mxu0
        %v9571 = vpop.f32.mrb[0].mxu0
        %9572 = vmatprep.mubr.bf16.mxu0 0
        %9573 = vmatmul.mubr.bf16.gmra.mrb[0].mxu0 %v8727
        %v9574 = vpop.f32.mrb[0].mxu0
        %v9575 = vadd.f32 %v9474, %v9574
        %v9576 = vpop.f32.mrb[0].mxu0
        %v9577 = vpop.f32.mrb[0].mxu0
        %v9578 = vpop.f32.mrb[0].mxu0
        %9579 = vmatprep.mubr.bf16.mxu0 0
        %9580 = vmatmul.mubr.bf16.gmra.mrb[0].mxu0 %v8729
        %v9581 = vpop.f32.mrb[0].mxu0
        %v9582 = vpop.f32.mrb[0].mxu0
        %v9583 = vpop.f32.mrb[0].mxu0
        %v9584 = vpop.f32.mrb[0].mxu0
        %9585 = vmatprep.mubr.bf16.mxu0 0
        %9586 = vmatmul.mubr.bf16.gmra.mrb[0].mxu0 %v8729
        %v9587 = vpop.f32.mrb[0].mxu0
        %v9588 = vpop.f32.mrb[0].mxu0
        %v9589 = vpop.f32.mrb[0].mxu0
        %v9590 = vpop.f32.mrb[0].mxu0
        %9591 = vdwg.mxu0
        %v9592 = vadd.f32 %v9179, %v9526
        %v9593 = vadd.f32 %v9186, %v9533
        %v9594 = vadd.f32 %v9193, %v9540
        %v9595 = vadd.f32 %v9200, %v9547
        %v9596 = vadd.f32 %v9207, %v9554
        %v9597 = vadd.f32 %v9214, %v9561
        %v9598 = vadd.f32 %v9221, %v9568
        %v9599 = vadd.f32 %v9228, %v9575
        %v9600 = vld [vmem:[%s18] sm:$0x1]
        %v9602 = vlaneseq
        %v9603 = vshrl.u32 %v9602, 7
        %v9604 = vsub.s32 0, %v9603
        %v9605 = vrot.slane %v9600, %v9604
        %v9607 = vadd.f32 %v9592, %v9605
        %v9608 = vadd.f32 %v9593, %v9605
        %v9609 = vadd.f32 %v9594, %v9605
        %v9610 = vadd.f32 %v9595, %v9605
        %v9611 = vadd.f32 %v9596, %v9605
        %v9612 = vadd.f32 %v9597, %v9605
        %v9613 = vadd.f32 %v9598, %v9605
        %v9614 = vadd.f32 %v9599, %v9605
        %vm9615 = vcmp.gt.f32.partialorder %v9607, 0.0
        %vm9616 = vcmp.gt.f32.partialorder %v9608, 0.0
        %vm9617 = vcmp.gt.f32.partialorder %v9609, 0.0
        %vm9618 = vcmp.gt.f32.partialorder %v9610, 0.0
        %vm9619 = vcmp.gt.f32.partialorder %v9611, 0.0
        %vm9620 = vcmp.gt.f32.partialorder %v9612, 0.0
        %vm9621 = vcmp.gt.f32.partialorder %v9613, 0.0
        %vm9622 = vcmp.gt.f32.partialorder %v9614, 0.0
        %v9623 = vmin.f32 %v9607, 0.0
        %v9624 = vmin.f32 %v9608, 0.0
        %v9625 = vmin.f32 %v9609, 0.0
        %v9626 = vmin.f32 %v9610, 0.0
        %v9627 = vmin.f32 %v9611, 0.0
        %v9628 = vmin.f32 %v9612, 0.0
        %v9629 = vmin.f32 %v9613, 0.0
        %v9630 = vmin.f32 %v9614, 0.0
        %v9631 = vmul.f32 %v9623, 1.442695
        %v9632 = vpow.pop %v9631
        %v9633 = vmul.f32 %v9624, 1.442695
        %v9634 = vpow.pop %v9633
        %v9635 = vmul.f32 %v9625, 1.442695
        %v9636 = vpow.pop %v9635
        %v9637 = vmul.f32 %v9626, 1.442695
        %v9638 = vpow.pop %v9637
        %v9639 = vmul.f32 %v9627, 1.442695
        %v9640 = vpow.pop %v9639
        %v9641 = vmul.f32 %v9628, 1.442695
        %v9642 = vpow.pop %v9641
        %v9643 = vmul.f32 %v9629, 1.442695
        %v9644 = vpow.pop %v9643
        %v9645 = vmul.f32 %v9630, 1.442695
        %v9646 = vpow.pop %v9645
        %v9647 = vsub.f32 %v9632, 1.0
        %v9648 = vsub.f32 %v9634, 1.0
        %v9649 = vsub.f32 %v9636, 1.0
        %v9650 = vsub.f32 %v9638, 1.0
        %v9651 = vsub.f32 %v9640, 1.0
        %v9652 = vsub.f32 %v9642, 1.0
        %v9653 = vsub.f32 %v9644, 1.0
        %v9654 = vsub.f32 %v9646, 1.0
        %v9655 = vsel %vm9615, %v9607, %v9647
        %v9656 = vsel %vm9616, %v9608, %v9648
        %v9657 = vsel %vm9617, %v9609, %v9649
        %v9658 = vsel %vm9618, %v9610, %v9650
        %v9659 = vsel %vm9619, %v9611, %v9651
        %v9660 = vsel %vm9620, %v9612, %v9652
        %v9661 = vsel %vm9621, %v9613, %v9653
        %v9662 = vsel %vm9622, %v9614, %v9654
        %v9679 = vrot.slane %v5160, 7
        %v9680 = vrot.slane %v5161, 7
        %v9681 = vrot.slane %v5164, 7
        %v9682 = vrot.slane %v5165, 7
        %v9683 = vrot.slane %v5168, 7
        %v9684 = vrot.slane %v5169, 7
        %v9685 = vrot.slane %v5172, 7
        %v9686 = vrot.slane %v5173, 7
        %v9687 = vrot.slane %v5176, 7
        %v9688 = vrot.slane %v5177, 7
        %v9689 = vrot.slane %v5180, 7
        %v9690 = vrot.slane %v5181, 7
        %v9691 = vrot.slane %v5184, 7
        %v9692 = vrot.slane %v5185, 7
        %v9693 = vrot.slane %v5188, 7
        %v9694 = vrot.slane %v5189, 7
        %v9711 = vsel %vm2104, 0.0, %v9679
        %v9712 = vsel %vm2104, 0.0, %v9680
        %v9713 = vsel %vm2104, 0.0, %v9681
        %v9714 = vsel %vm2104, 0.0, %v9682
        %v9715 = vsel %vm2104, 0.0, %v9683
        %v9716 = vsel %vm2104, 0.0, %v9684
        %v9717 = vsel %vm2104, 0.0, %v9685
        %v9718 = vsel %vm2104, 0.0, %v9686
        %v9719 = vsel %vm2104, 0.0, %v9687
        %v9720 = vsel %vm2104, 0.0, %v9688
        %v9721 = vsel %vm2104, 0.0, %v9689
        %v9722 = vsel %vm2104, 0.0, %v9690
        %v9723 = vsel %vm2104, 0.0, %v9691
        %v9724 = vsel %vm2104, 0.0, %v9692
        %v9725 = vsel %vm2104, 0.0, %v9693
        %v9726 = vsel %vm2104, 0.0, %v9694
        %v9727 = vsel %vm2104, %v9679, 0.0
        %v9728 = vsel %vm2104, %v9680, 0.0
        %v9729 = vsel %vm2104, %v9681, 0.0
        %v9730 = vsel %vm2104, %v9682, 0.0
        %v9731 = vsel %vm2104, %v9683, 0.0
        %v9732 = vsel %vm2104, %v9684, 0.0
        %v9733 = vsel %vm2104, %v9685, 0.0
        %v9734 = vsel %vm2104, %v9686, 0.0
        %v9735 = vsel %vm2104, %v9687, 0.0
        %v9736 = vsel %vm2104, %v9688, 0.0
        %v9737 = vsel %vm2104, %v9689, 0.0
        %v9738 = vsel %vm2104, %v9690, 0.0
        %v9739 = vsel %vm2104, %v9691, 0.0
        %v9740 = vsel %vm2104, %v9692, 0.0
        %v9741 = vsel %vm2104, %v9693, 0.0
        %v9742 = vsel %vm2104, %v9694, 0.0
        %vm9776 = vcmask 1046528
        %v9777 = vrot.slane 0.0, 1
        %v9778 = vsel %vm9776, %v9777, %v9777
        %v9779 = vrot.slane %v9711, 1
        %v9780 = vsel %vm9776, %v9777, %v9779
        %v9781 = vrot.slane %v9712, 1
        %v9782 = vsel %vm9776, %v9777, %v9781
        %v9783 = vrot.slane %v9727, 1
        %v9784 = vsel %vm9776, %v9779, %v9783
        %v9785 = vrot.slane %v9728, 1
        %v9786 = vsel %vm9776, %v9781, %v9785
        %v9787 = vrot.slane %v9713, 1
        %v9788 = vsel %vm9776, %v9783, %v9787
        %v9789 = vrot.slane %v9714, 1
        %v9790 = vsel %vm9776, %v9785, %v9789
        %v9791 = vrot.slane %v9729, 1
        %v9792 = vsel %vm9776, %v9787, %v9791
        %v9793 = vrot.slane %v9730, 1
        %v9794 = vsel %vm9776, %v9789, %v9793
        %v9795 = vrot.slane %v9715, 1
        %v9796 = vsel %vm9776, %v9791, %v9795
        %v9797 = vrot.slane %v9716, 1
        %v9798 = vsel %vm9776, %v9793, %v9797
        %v9799 = vrot.slane %v9731, 1
        %v9800 = vsel %vm9776, %v9795, %v9799
        %v9801 = vrot.slane %v9732, 1
        %v9802 = vsel %vm9776, %v9797, %v9801
        %v9803 = vrot.slane %v9717, 1
        %v9804 = vsel %vm9776, %v9799, %v9803
        %v9805 = vrot.slane %v9718, 1
        %v9806 = vsel %vm9776, %v9801, %v9805
        %v9807 = vrot.slane %v9733, 1
        %v9808 = vsel %vm9776, %v9803, %v9807
        %v9809 = vrot.slane %v9734, 1
        %v9810 = vsel %vm9776, %v9805, %v9809
        %v9811 = vrot.slane %v9719, 1
        %v9812 = vsel %vm9776, %v9807, %v9811
        %v9813 = vrot.slane %v9720, 1
        %v9814 = vsel %vm9776, %v9809, %v9813
        %v9815 = vrot.slane %v9735, 1
        %v9816 = vsel %vm9776, %v9811, %v9815
        %v9817 = vrot.slane %v9736, 1
        %v9818 = vsel %vm9776, %v9813, %v9817
        %v9819 = vrot.slane %v9721, 1
        %v9820 = vsel %vm9776, %v9815, %v9819
        %v9821 = vrot.slane %v9722, 1
        %v9822 = vsel %vm9776, %v9817, %v9821
        %v9823 = vrot.slane %v9737, 1
        %v9824 = vsel %vm9776, %v9819, %v9823
        %v9825 = vrot.slane %v9738, 1
        %v9826 = vsel %vm9776, %v9821, %v9825
        %v9827 = vrot.slane %v9723, 1
        %v9828 = vsel %vm9776, %v9823, %v9827
        %v9829 = vrot.slane %v9724, 1
        %v9830 = vsel %vm9776, %v9825, %v9829
        %v9831 = vrot.slane %v9739, 1
        %v9832 = vsel %vm9776, %v9827, %v9831
        %v9833 = vrot.slane %v9740, 1
        %v9834 = vsel %vm9776, %v9829, %v9833
        %v9835 = vrot.slane %v9725, 1
        %v9836 = vsel %vm9776, %v9831, %v9835
        %v9837 = vrot.slane %v9726, 1
        %v9838 = vsel %vm9776, %v9833, %v9837
        %v9839 = vrot.slane %v9741, 1
        %v9840 = vsel %vm9776, %v9835, %v9839
        %v9841 = vrot.slane %v9742, 1
        %v9842 = vsel %vm9776, %v9837, %v9841
        %v9843 = vsel %vm9776, %v9839, %v9777
        %v9844 = vsel %vm9776, %v9841, %v9777
        %v9880 = vadd.f32 %v9778, 0.0
        %v9881 = vadd.f32 %v9780, 0.0
        %v9882 = vadd.f32 %v9782, 0.0
        %v9883 = vadd.f32 %v9711, %v9784
        %v9884 = vadd.f32 %v9712, %v9786
        %v9885 = vadd.f32 %v9727, %v9788
        %v9886 = vadd.f32 %v9728, %v9790
        %v9887 = vadd.f32 %v9713, %v9792
        %v9888 = vadd.f32 %v9714, %v9794
        %v9889 = vadd.f32 %v9729, %v9796
        %v9890 = vadd.f32 %v9730, %v9798
        %v9891 = vadd.f32 %v9715, %v9800
        %v9892 = vadd.f32 %v9716, %v9802
        %v9893 = vadd.f32 %v9731, %v9804
        %v9894 = vadd.f32 %v9732, %v9806
        %v9895 = vadd.f32 %v9717, %v9808
        %v9896 = vadd.f32 %v9718, %v9810
        %v9897 = vadd.f32 %v9733, %v9812
        %v9898 = vadd.f32 %v9734, %v9814
        %v9899 = vadd.f32 %v9719, %v9816
        %v9900 = vadd.f32 %v9720, %v9818
        %v9901 = vadd.f32 %v9735, %v9820
        %v9902 = vadd.f32 %v9736, %v9822
        %v9903 = vadd.f32 %v9721, %v9824
        %v9904 = vadd.f32 %v9722, %v9826
        %v9905 = vadd.f32 %v9737, %v9828
        %v9906 = vadd.f32 %v9738, %v9830
        %v9907 = vadd.f32 %v9723, %v9832
        %v9908 = vadd.f32 %v9724, %v9834
        %v9909 = vadd.f32 %v9739, %v9836
        %v9910 = vadd.f32 %v9740, %v9838
        %v9911 = vadd.f32 %v9725, %v9840
        %v9912 = vadd.f32 %v9726, %v9842
        %v9913 = vadd.f32 %v9741, %v9843
        %v9914 = vadd.f32 %v9742, %v9844
        %v9915 = vrot.slane 0.0, 2
        %v9916 = vsel %vm827, %v9915, %v9915
        %v9917 = vrot.slane %v9711, 2
        %v9918 = vsel %vm827, %v9915, %v9917
        %v9919 = vrot.slane %v9712, 2
        %v9920 = vsel %vm827, %v9915, %v9919
        %v9921 = vrot.slane %v9727, 2
        %v9922 = vsel %vm827, %v9917, %v9921
        %v9923 = vrot.slane %v9728, 2
        %v9924 = vsel %vm827, %v9919, %v9923
        %v9925 = vrot.slane %v9713, 2
        %v9926 = vsel %vm827, %v9921, %v9925
        %v9927 = vrot.slane %v9714, 2
        %v9928 = vsel %vm827, %v9923, %v9927
        %v9929 = vrot.slane %v9729, 2
        %v9930 = vsel %vm827, %v9925, %v9929
        %v9931 = vrot.slane %v9730, 2
        %v9932 = vsel %vm827, %v9927, %v9931
        %v9933 = vrot.slane %v9715, 2
        %v9934 = vsel %vm827, %v9929, %v9933
        %v9935 = vrot.slane %v9716, 2
        %v9936 = vsel %vm827, %v9931, %v9935
        %v9937 = vrot.slane %v9731, 2
        %v9938 = vsel %vm827, %v9933, %v9937
        %v9939 = vrot.slane %v9732, 2
        %v9940 = vsel %vm827, %v9935, %v9939
        %v9941 = vrot.slane %v9717, 2
        %v9942 = vsel %vm827, %v9937, %v9941
        %v9943 = vrot.slane %v9718, 2
        %v9944 = vsel %vm827, %v9939, %v9943
        %v9945 = vrot.slane %v9733, 2
        %v9946 = vsel %vm827, %v9941, %v9945
        %v9947 = vrot.slane %v9734, 2
        %v9948 = vsel %vm827, %v9943, %v9947
        %v9949 = vrot.slane %v9719, 2
        %v9950 = vsel %vm827, %v9945, %v9949
        %v9951 = vrot.slane %v9720, 2
        %v9952 = vsel %vm827, %v9947, %v9951
        %v9953 = vrot.slane %v9735, 2
        %v9954 = vsel %vm827, %v9949, %v9953
        %v9955 = vrot.slane %v9736, 2
        %v9956 = vsel %vm827, %v9951, %v9955
        %v9957 = vrot.slane %v9721, 2
        %v9958 = vsel %vm827, %v9953, %v9957
        %v9959 = vrot.slane %v9722, 2
        %v9960 = vsel %vm827, %v9955, %v9959
        %v9961 = vrot.slane %v9737, 2
        %v9962 = vsel %vm827, %v9957, %v9961
        %v9963 = vrot.slane %v9738, 2
        %v9964 = vsel %vm827, %v9959, %v9963
        %v9965 = vrot.slane %v9723, 2
        %v9966 = vsel %vm827, %v9961, %v9965
        %v9967 = vrot.slane %v9724, 2
        %v9968 = vsel %vm827, %v9963, %v9967
        %v9969 = vrot.slane %v9739, 2
        %v9970 = vsel %vm827, %v9965, %v9969
        %v9971 = vrot.slane %v9740, 2
        %v9972 = vsel %vm827, %v9967, %v9971
        %v9973 = vrot.slane %v9725, 2
        %v9974 = vsel %vm827, %v9969, %v9973
        %v9975 = vrot.slane %v9726, 2
        %v9976 = vsel %vm827, %v9971, %v9975
        %v9977 = vrot.slane %v9741, 2
        %v9978 = vsel %vm827, %v9973, %v9977
        %v9979 = vrot.slane %v9742, 2
        %v9980 = vsel %vm827, %v9975, %v9979
        %v9981 = vsel %vm827, %v9977, %v9915
        %v9982 = vsel %vm827, %v9979, %v9915
        %v10018 = vadd.f32 %v9880, %v9916
        %v10019 = vadd.f32 %v9881, %v9918
        %v10020 = vadd.f32 %v9882, %v9920
        %v10021 = vadd.f32 %v9883, %v9922
        %v10022 = vadd.f32 %v9884, %v9924
        %v10023 = vadd.f32 %v9885, %v9926
        %v10024 = vadd.f32 %v9886, %v9928
        %v10025 = vadd.f32 %v9887, %v9930
        %v10026 = vadd.f32 %v9888, %v9932
        %v10027 = vadd.f32 %v9889, %v9934
        %v10028 = vadd.f32 %v9890, %v9936
        %v10029 = vadd.f32 %v9891, %v9938
        %v10030 = vadd.f32 %v9892, %v9940
        %v10031 = vadd.f32 %v9893, %v9942
        %v10032 = vadd.f32 %v9894, %v9944
        %v10033 = vadd.f32 %v9895, %v9946
        %v10034 = vadd.f32 %v9896, %v9948
        %v10035 = vadd.f32 %v9897, %v9950
        %v10036 = vadd.f32 %v9898, %v9952
        %v10037 = vadd.f32 %v9899, %v9954
        %v10038 = vadd.f32 %v9900, %v9956
        %v10039 = vadd.f32 %v9901, %v9958
        %v10040 = vadd.f32 %v9902, %v9960
        %v10041 = vadd.f32 %v9903, %v9962
        %v10042 = vadd.f32 %v9904, %v9964
        %v10043 = vadd.f32 %v9905, %v9966
        %v10044 = vadd.f32 %v9906, %v9968
        %v10045 = vadd.f32 %v9907, %v9970
        %v10046 = vadd.f32 %v9908, %v9972
        %v10047 = vadd.f32 %v9909, %v9974
        %v10048 = vadd.f32 %v9910, %v9976
        %v10049 = vadd.f32 %v9911, %v9978
        %v10050 = vadd.f32 %v9912, %v9980
        %v10051 = vadd.f32 %v9913, %v9981
        %v10052 = vadd.f32 %v9914, %v9982
        %v10053 = vadd.f32 %v10018, %v9711
        %v10054 = vadd.f32 %v10018, %v9712
        %v10055 = vadd.f32 %v10019, %v9727
        %v10056 = vadd.f32 %v10020, %v9728
        %v10057 = vadd.f32 %v10021, %v9713
        %v10058 = vadd.f32 %v10022, %v9714
        %v10059 = vadd.f32 %v10023, %v9729
        %v10060 = vadd.f32 %v10024, %v9730
        %v10061 = vadd.f32 %v10025, %v9715
        %v10062 = vadd.f32 %v10026, %v9716
        %v10063 = vadd.f32 %v10027, %v9731
        %v10064 = vadd.f32 %v10028, %v9732
        %v10065 = vadd.f32 %v10029, %v9717
        %v10066 = vadd.f32 %v10030, %v9718
        %v10067 = vadd.f32 %v10031, %v9733
        %v10068 = vadd.f32 %v10032, %v9734
        %v10069 = vadd.f32 %v10033, %v9719
        %v10070 = vadd.f32 %v10034, %v9720
        %v10071 = vadd.f32 %v10035, %v9735
        %v10072 = vadd.f32 %v10036, %v9736
        %v10073 = vadd.f32 %v10037, %v9721
        %v10074 = vadd.f32 %v10038, %v9722
        %v10075 = vadd.f32 %v10039, %v9737
        %v10076 = vadd.f32 %v10040, %v9738
        %v10077 = vadd.f32 %v10041, %v9723
        %v10078 = vadd.f32 %v10042, %v9724
        %v10079 = vadd.f32 %v10043, %v9739
        %v10080 = vadd.f32 %v10044, %v9740
        %v10081 = vadd.f32 %v10045, %v9725
        %v10082 = vadd.f32 %v10046, %v9726
        %v10083 = vadd.f32 %v10047, %v9741
        %v10084 = vadd.f32 %v10048, %v9742
        %v10085 = vadd.f32 %v10049, 0.0
        %v10086 = vadd.f32 %v10050, 0.0
        %v10087 = vadd.f32 %v10051, 0.0
        %v10088 = vadd.f32 %v10052, 0.0
        %v10089 = vadd.f32 %v10018, 0.0
        %v10090 = vadd.f32 %v10053, %v9784
        %v10091 = vadd.f32 %v10054, %v9786
        %v10092 = vadd.f32 %v10055, %v9788
        %v10093 = vadd.f32 %v10056, %v9790
        %v10094 = vadd.f32 %v10057, %v9792
        %v10095 = vadd.f32 %v10058, %v9794
        %v10096 = vadd.f32 %v10059, %v9796
        %v10097 = vadd.f32 %v10060, %v9798
        %v10098 = vadd.f32 %v10061, %v9800
        %v10099 = vadd.f32 %v10062, %v9802
        %v10100 = vadd.f32 %v10063, %v9804
        %v10101 = vadd.f32 %v10064, %v9806
        %v10102 = vadd.f32 %v10065, %v9808
        %v10103 = vadd.f32 %v10066, %v9810
        %v10104 = vadd.f32 %v10067, %v9812
        %v10105 = vadd.f32 %v10068, %v9814
        %v10106 = vadd.f32 %v10069, %v9816
        %v10107 = vadd.f32 %v10070, %v9818
        %v10108 = vadd.f32 %v10071, %v9820
        %v10109 = vadd.f32 %v10072, %v9822
        %v10110 = vadd.f32 %v10073, %v9824
        %v10111 = vadd.f32 %v10074, %v9826
        %v10112 = vadd.f32 %v10075, %v9828
        %v10113 = vadd.f32 %v10076, %v9830
        %v10114 = vadd.f32 %v10077, %v9832
        %v10115 = vadd.f32 %v10078, %v9834
        %v10116 = vadd.f32 %v10079, %v9836
        %v10117 = vadd.f32 %v10080, %v9838
        %v10118 = vadd.f32 %v10081, %v9840
        %v10119 = vadd.f32 %v10082, %v9842
        %v10120 = vadd.f32 %v10083, %v9843
        %v10121 = vadd.f32 %v10084, %v9844
        %v10122 = vadd.f32 %v10085, %v9778
        %v10123 = vadd.f32 %v10086, %v9778
        %v10124 = vadd.f32 %v10087, %v9778
        %v10125 = vadd.f32 %v10088, %v9778
        %v10126 = vadd.f32 %v10089, %v9778
        %v10127 = vadd.f32 %v10090, %v9922
        %v10128 = vadd.f32 %v10091, %v9924
        %v10129 = vadd.f32 %v10092, %v9926
        %v10130 = vadd.f32 %v10093, %v9928
        %v10131 = vadd.f32 %v10094, %v9930
        %v10132 = vadd.f32 %v10095, %v9932
        %v10133 = vadd.f32 %v10096, %v9934
        %v10134 = vadd.f32 %v10097, %v9936
        %v10135 = vadd.f32 %v10098, %v9938
        %v10136 = vadd.f32 %v10099, %v9940
        %v10137 = vadd.f32 %v10100, %v9942
        %v10138 = vadd.f32 %v10101, %v9944
        %v10139 = vadd.f32 %v10102, %v9946
        %v10140 = vadd.f32 %v10103, %v9948
        %v10141 = vadd.f32 %v10104, %v9950
        %v10142 = vadd.f32 %v10105, %v9952
        %v10143 = vadd.f32 %v10106, %v9954
        %v10144 = vadd.f32 %v10107, %v9956
        %v10145 = vadd.f32 %v10108, %v9958
        %v10146 = vadd.f32 %v10109, %v9960
        %v10147 = vadd.f32 %v10110, %v9962
        %v10148 = vadd.f32 %v10111, %v9964
        %v10149 = vadd.f32 %v10112, %v9966
        %v10150 = vadd.f32 %v10113, %v9968
        %v10151 = vadd.f32 %v10114, %v9970
        %v10152 = vadd.f32 %v10115, %v9972
        %v10153 = vadd.f32 %v10116, %v9974
        %v10154 = vadd.f32 %v10117, %v9976
        %v10155 = vadd.f32 %v10118, %v9978
        %v10156 = vadd.f32 %v10119, %v9980
        %v10157 = vadd.f32 %v10120, %v9981
        %v10158 = vadd.f32 %v10121, %v9982
        %v10159 = vadd.f32 %v10122, %v9916
        %v10160 = vadd.f32 %v10123, %v9916
        %v10161 = vadd.f32 %v10124, %v9916
        %v10162 = vadd.f32 %v10125, %v9916
        %v10163 = vadd.f32 %v10126, %v9916
        %v10164 = vadd.f32 %v10127, %v9713
        %v10165 = vadd.f32 %v10128, %v9714
        %v10166 = vadd.f32 %v10129, %v9729
        %v10167 = vadd.f32 %v10130, %v9730
        %v10168 = vadd.f32 %v10131, %v9715
        %v10169 = vadd.f32 %v10132, %v9716
        %v10170 = vadd.f32 %v10133, %v9731
        %v10171 = vadd.f32 %v10134, %v9732
        %v10172 = vadd.f32 %v10135, %v9717
        %v10173 = vadd.f32 %v10136, %v9718
        %v10174 = vadd.f32 %v10137, %v9733
        %v10175 = vadd.f32 %v10138, %v9734
        %v10176 = vadd.f32 %v10139, %v9719
        %v10177 = vadd.f32 %v10140, %v9720
        %v10178 = vadd.f32 %v10141, %v9735
        %v10179 = vadd.f32 %v10142, %v9736
        %v10180 = vadd.f32 %v10143, %v9721
        %v10181 = vadd.f32 %v10144, %v9722
        %v10182 = vadd.f32 %v10145, %v9737
        %v10183 = vadd.f32 %v10146, %v9738
        %v10184 = vadd.f32 %v10147, %v9723
        %v10185 = vadd.f32 %v10148, %v9724
        %v10186 = vadd.f32 %v10149, %v9739
        %v10187 = vadd.f32 %v10150, %v9740
        %v10188 = vadd.f32 %v10151, %v9725
        %v10189 = vadd.f32 %v10152, %v9726
        %v10190 = vadd.f32 %v10153, %v9741
        %v10191 = vadd.f32 %v10154, %v9742
        %v10192 = vadd.f32 %v10155, 0.0
        %v10193 = vadd.f32 %v10156, 0.0
        %v10194 = vadd.f32 %v10157, 0.0
        %v10195 = vadd.f32 %v10158, 0.0
        %v10196 = vadd.f32 %v10159, 0.0
        %v10197 = vadd.f32 %v10160, 0.0
        %v10198 = vadd.f32 %v10161, 0.0
        %v10199 = vadd.f32 %v10162, 0.0
        %v10200 = vadd.f32 %v10163, 0.0
        %v10201 = vadd.f32 %v10164, %v9792
        %v10202 = vadd.f32 %v10165, %v9794
        %v10203 = vadd.f32 %v10166, %v9796
        %v10204 = vadd.f32 %v10167, %v9798
        %v10205 = vadd.f32 %v10168, %v9800
        %v10206 = vadd.f32 %v10169, %v9802
        %v10207 = vadd.f32 %v10170, %v9804
        %v10208 = vadd.f32 %v10171, %v9806
        %v10209 = vadd.f32 %v10172, %v9808
        %v10210 = vadd.f32 %v10173, %v9810
        %v10211 = vadd.f32 %v10174, %v9812
        %v10212 = vadd.f32 %v10175, %v9814
        %v10213 = vadd.f32 %v10176, %v9816
        %v10214 = vadd.f32 %v10177, %v9818
        %v10215 = vadd.f32 %v10178, %v9820
        %v10216 = vadd.f32 %v10179, %v9822
        %v10217 = vadd.f32 %v10180, %v9824
        %v10218 = vadd.f32 %v10181, %v9826
        %v10219 = vadd.f32 %v10182, %v9828
        %v10220 = vadd.f32 %v10183, %v9830
        %v10221 = vadd.f32 %v10184, %v9832
        %v10222 = vadd.f32 %v10185, %v9834
        %v10223 = vadd.f32 %v10186, %v9836
        %v10224 = vadd.f32 %v10187, %v9838
        %v10225 = vadd.f32 %v10188, %v9840
        %v10226 = vadd.f32 %v10189, %v9842
        %v10227 = vadd.f32 %v10190, %v9843
        %v10228 = vadd.f32 %v10191, %v9844
        %v10229 = vadd.f32 %v10192, %v9778
        %v10230 = vadd.f32 %v10193, %v9778
        %v10231 = vadd.f32 %v10194, %v9778
        %v10232 = vadd.f32 %v10195, %v9778
        %v10233 = vadd.f32 %v10196, %v9778
        %v10234 = vadd.f32 %v10197, %v9778
        %v10235 = vadd.f32 %v10198, %v9778
        %v10236 = vadd.f32 %v10199, %v9778
        %v10237 = vadd.f32 %v10200, %v9778
        %v10238 = vadd.f32 %v10201, %v9930
        %v10239 = vadd.f32 %v10202, %v9932
        %v10240 = vadd.f32 %v10203, %v9934
        %v10241 = vadd.f32 %v10204, %v9936
        %v10242 = vadd.f32 %v10205, %v9938
        %v10243 = vadd.f32 %v10206, %v9940
        %v10244 = vadd.f32 %v10207, %v9942
        %v10245 = vadd.f32 %v10208, %v9944
        %v10246 = vadd.f32 %v10209, %v9946
        %v10247 = vadd.f32 %v10210, %v9948
        %v10248 = vadd.f32 %v10211, %v9950
        %v10249 = vadd.f32 %v10212, %v9952
        %v10250 = vadd.f32 %v10213, %v9954
        %v10251 = vadd.f32 %v10214, %v9956
        %v10252 = vadd.f32 %v10215, %v9958
        %v10253 = vadd.f32 %v10216, %v9960
        %v10254 = vadd.f32 %v10217, %v9962
        %v10255 = vadd.f32 %v10218, %v9964
        %v10256 = vadd.f32 %v10219, %v9966
        %v10257 = vadd.f32 %v10220, %v9968
        %v10258 = vadd.f32 %v10221, %v9970
        %v10259 = vadd.f32 %v10222, %v9972
        %v10260 = vadd.f32 %v10223, %v9974
        %v10261 = vadd.f32 %v10224, %v9976
        %v10262 = vadd.f32 %v10225, %v9978
        %v10263 = vadd.f32 %v10226, %v9980
        %v10264 = vadd.f32 %v10227, %v9981
        %v10265 = vadd.f32 %v10228, %v9982
        %v10266 = vadd.f32 %v10229, %v9916
        %v10267 = vadd.f32 %v10230, %v9916
        %v10268 = vadd.f32 %v10231, %v9916
        %v10269 = vadd.f32 %v10232, %v9916
        %v10270 = vadd.f32 %v10233, %v9916
        %v10271 = vadd.f32 %v10234, %v9916
        %v10272 = vadd.f32 %v10235, %v9916
        %v10273 = vadd.f32 %v10236, %v9916
        %v10274 = vadd.f32 %v10237, %v9916
        %v10275 = vpack.c.bf16 %v10240, %v10238
        %v10276 = vpack.c.bf16 %v10241, %v10239
        %v10277 = vpack.c.bf16 %v10244, %v10242
        %v10278 = vpack.c.bf16 %v10245, %v10243
        %v10279 = vpack.c.bf16 %v10248, %v10246
        %v10280 = vpack.c.bf16 %v10249, %v10247
        %v10281 = vpack.c.bf16 %v10252, %v10250
        %v10282 = vpack.c.bf16 %v10253, %v10251
        %v10283 = vpack.c.bf16 %v10256, %v10254
        %v10284 = vpack.c.bf16 %v10257, %v10255
        %v10285 = vpack.c.bf16 %v10260, %v10258
        %v10286 = vpack.c.bf16 %v10261, %v10259
        %v10287 = vpack.c.bf16 %v10264, %v10262
        %v10288 = vpack.c.bf16 %v10265, %v10263
        %v10289 = vpack.c.bf16 %v10268, %v10266
        %v10290 = vpack.c.bf16 %v10269, %v10267
        %v10291 = vpack.c.bf16 %v10272, %v10270
        %v10292 = vpack.c.bf16 %v10273, %v10271
        %v10293 = vpack.c.bf16 %v10274, %v10274
        %v10294 = vld [vmem:[%s19] sm:$0xf]
        %v10295 = vld [vmem:[%s19 + $0x4] sm:$0xf]
        %v10296 = vld [vmem:[%s19 + $0x8] sm:$0xf]
        %v10297 = vld [vmem:[%s19 + $0xc] sm:$0xf]
        %v10298 = vld [vmem:[%s19 + $0x10] sm:$0xf]
        %v10299 = vld [vmem:[%s19 + $0x14] sm:$0xf]
        %v10300 = vld [vmem:[%s19 + $0x18] sm:$0xf]
        %v10301 = vld [vmem:[%s19 + $0x1c] sm:$0xf]
        %v10302 = vld [vmem:[%s19 + $0x20] sm:$0xf]
        %v10303 = vld [vmem:[%s19 + $0x24] sm:$0xf]
        %v10304 = vld [vmem:[%s19 + $0x28] sm:$0xf]
        %v10305 = vld [vmem:[%s19 + $0x2c] sm:$0xf]
        %v10306 = vld [vmem:[%s19 + $0x30] sm:$0xf]
        %v10307 = vld [vmem:[%s19 + $0x34] sm:$0xf]
        %v10308 = vld [vmem:[%s19 + $0x38] sm:$0xf]
        %v10309 = vld [vmem:[%s19 + $0x3c] sm:$0xf]
        %v10310 = vld [vmem:[%s19 + $0x40] sm:$0xf]
        %v10311 = vld [vmem:[%s19 + $0x44] sm:$0xf]
        %v10312 = vld [vmem:[%s19 + $0x48] sm:$0xf]
        %v10313 = vld [vmem:[%s19 + $0x4c] sm:$0xf]
        %v10314 = vld [vmem:[%s19 + $0x50] sm:$0xf]
        %v10315 = vld [vmem:[%s19 + $0x54] sm:$0xf]
        %v10316 = vld [vmem:[%s19 + $0x58] sm:$0xf]
        %v10317 = vld [vmem:[%s19 + $0x5c] sm:$0xf]
        %v10342 = vunpack.c.l.b16 %v10294
        %v10343 = vunpack.c.l.b16 %v10295
        %v10344 = vunpack.c.l.b16 %v10296
        %v10345 = vunpack.c.l.b16 %v10297
        %v10346 = vunpack.c.l.b16 %v10298
        %v10347 = vunpack.c.l.b16 %v10299
        %v10348 = vunpack.c.l.b16 %v10300
        %v10349 = vunpack.c.l.b16 %v10301
        %v10350 = vunpack.c.l.b16 %v10302
        %v10351 = vunpack.c.l.b16 %v10303
        %v10352 = vunpack.c.l.b16 %v10304
        %v10353 = vunpack.c.l.b16 %v10305
        %v10354 = vunpack.c.l.b16 %v10306
        %v10355 = vunpack.c.l.b16 %v10307
        %v10356 = vunpack.c.l.b16 %v10308
        %v10357 = vunpack.c.l.b16 %v10309
        %v10358 = vunpack.c.l.b16 %v10310
        %v10359 = vunpack.c.l.b16 %v10311
        %v10360 = vunpack.c.l.b16 %v10312
        %v10361 = vunpack.c.l.b16 %v10313
        %v10362 = vunpack.c.l.b16 %v10314
        %v10363 = vunpack.c.l.b16 %v10315
        %v10364 = vunpack.c.l.b16 %v10316
        %v10365 = vunpack.c.l.b16 %v10317
        %v10366 = vpack.c.b16 %v10343, %v10342
        %v10367 = vpack.c.b16 %v10345, %v10344
        %v10368 = vpack.c.b16 %v10347, %v10346
        %v10369 = vpack.c.b16 %v10349, %v10348
        %v10370 = vpack.c.b16 %v10351, %v10350
        %v10371 = vpack.c.b16 %v10353, %v10352
        %v10372 = vpack.c.b16 %v10355, %v10354
        %v10373 = vpack.c.b16 %v10357, %v10356
        %v10374 = vpack.c.b16 %v10359, %v10358
        %v10375 = vpack.c.b16 %v10361, %v10360
        %v10376 = vpack.c.b16 %v10363, %v10362
        %v10377 = vpack.c.b16 %v10365, %v10364
        %v10391 = vsel %vm1331, %v10276, 0
        %v10394 = vsel %vm1331, %v10278, 0
        %v10397 = vsel %vm1331, %v10280, 0
        %v10400 = vsel %vm1331, %v10282, 0
        %v10403 = vsel %vm1331, %v10284, 0
        %v10406 = vsel %vm1331, %v10286, 0
        %v10409 = vsel %vm1331, %v10288, 0
        %v10412 = vsel %vm1331, %v10290, 0
        %v10415 = vsel %vm1331, %v10292, 0
        %v10418 = vsel %vm1331, %v10293, 0
        %10420 = vmatprep.subr.bf16.mxu0 0
        %10421 = vmatpush1.bf16.msra.mxu0 %v10366
        %10422 = vmatprep.subr.bf16.mxu0 0
        %10423 = vmatpush1.bf16.msra.mxu0 %v10367
        %10424 = vmatprep.subr.bf16.mxu0 0
        %10425 = vmatpush1.bf16.msra.mxu0 %v10368
        %10426 = vmatprep.subr.bf16.mxu0 0
        %10427 = vmatpush1.bf16.msra.mxu0 %v10369
        %10428 = vmatprep.subr.bf16.mxu0 0
        %10429 = vmatpush1.bf16.msra.mxu0 %v10370
        %10430 = vmatprep.subr.bf16.mxu0 0
        %10431 = vmatpush1.bf16.msra.mxu0 %v10371
        %10432 = vmatprep.subr.bf16.mxu0 0
        %10433 = vmatpush1.bf16.msra.mxu0 %v10372
        %10434 = vmatprep.subr.bf16.mxu0 0
        %10435 = vmatpush1.bf16.msra.mxu0 %v10373
        %10436 = vmatprep.subr.bf16.mxu0 0
        %10437 = vmatpush1.bf16.msra.mxu0 %v10374
        %10438 = vmatprep.subr.bf16.mxu0 0
        %10439 = vmatpush1.bf16.msra.mxu0 %v10375
        %10440 = vmatprep.subr.bf16.mxu0 0
        %10441 = vmatpush1.bf16.msra.mxu0 %v10376
        %10442 = vmatprep.subr.bf16.mxu0 0
        %10443 = vmatpush1.bf16.msra.mxu0 %v10377
        %10444 = vmatprep.subr.bf16.mxu0 0
        %10445 = vmatpush1.bf16.msra.mxu0 0
        %10446 = vmatprep.subr.bf16.mxu0 0
        %10447 = vmatpush1.bf16.msra.mxu0 0
        %10448 = vmatprep.subr.bf16.mxu0 0
        %10449 = vmatpush1.bf16.msra.mxu0 0
        %10450 = vmatprep.subr.bf16.mxu0 0
        %10451 = vmatpush1.bf16.msra.mxu0 0
        %10452 = vmatprep.mubr.bf16.mxu0 %v10391
        %10453 = vmatmul.mubr.bf16.gmra.mrb[0].mxu0 %v10275
        %v10454 = vpop.f32.mrb[0].mxu0
        %v10455 = vadd.f32 0.0, %v10454
        %v10456 = vpop.f32.mrb[0].mxu0
        %v10457 = vpop.f32.mrb[0].mxu0
        %v10458 = vpop.f32.mrb[0].mxu0
        %10459 = vmatprep.mubr.bf16.mxu0 %v10394
        %10460 = vmatmul.mubr.bf16.gmra.mrb[0].mxu0 %v10277
        %v10461 = vpop.f32.mrb[0].mxu0
        %v10462 = vadd.f32 0.0, %v10461
        %v10463 = vpop.f32.mrb[0].mxu0
        %v10464 = vpop.f32.mrb[0].mxu0
        %v10465 = vpop.f32.mrb[0].mxu0
        %10466 = vmatprep.mubr.bf16.mxu0 %v10397
        %10467 = vmatmul.mubr.bf16.gmra.mrb[0].mxu0 %v10279
        %v10468 = vpop.f32.mrb[0].mxu0
        %v10469 = vadd.f32 0.0, %v10468
        %v10470 = vpop.f32.mrb[0].mxu0
        %v10471 = vpop.f32.mrb[0].mxu0
        %v10472 = vpop.f32.mrb[0].mxu0
        %10473 = vmatprep.mubr.bf16.mxu0 %v10400
        %10474 = vmatmul.mubr.bf16.gmra.mrb[0].mxu0 %v10281
        %v10475 = vpop.f32.mrb[0].mxu0
        %v10476 = vadd.f32 0.0, %v10475
        %v10477 = vpop.f32.mrb[0].mxu0
        %v10478 = vpop.f32.mrb[0].mxu0
        %v10479 = vpop.f32.mrb[0].mxu0
        %10480 = vmatprep.mubr.bf16.mxu0 %v10403
        %10481 = vmatmul.mubr.bf16.gmra.mrb[0].mxu0 %v10283
        %v10482 = vpop.f32.mrb[0].mxu0
        %v10483 = vadd.f32 0.0, %v10482
        %v10484 = vpop.f32.mrb[0].mxu0
        %v10485 = vpop.f32.mrb[0].mxu0
        %v10486 = vpop.f32.mrb[0].mxu0
        %10487 = vmatprep.mubr.bf16.mxu0 %v10406
        %10488 = vmatmul.mubr.bf16.gmra.mrb[0].mxu0 %v10285
        %v10489 = vpop.f32.mrb[0].mxu0
        %v10490 = vadd.f32 0.0, %v10489
        %v10491 = vpop.f32.mrb[0].mxu0
        %v10492 = vpop.f32.mrb[0].mxu0
        %v10493 = vpop.f32.mrb[0].mxu0
        %10494 = vmatprep.mubr.bf16.mxu0 %v10409
        %10495 = vmatmul.mubr.bf16.gmra.mrb[0].mxu0 %v10287
        %v10496 = vpop.f32.mrb[0].mxu0
        %v10497 = vadd.f32 0.0, %v10496
        %v10498 = vpop.f32.mrb[0].mxu0
        %v10499 = vpop.f32.mrb[0].mxu0
        %v10500 = vpop.f32.mrb[0].mxu0
        %10501 = vmatprep.mubr.bf16.mxu0 %v10412
        %10502 = vmatmul.mubr.bf16.gmra.mrb[0].mxu0 %v10289
        %v10503 = vpop.f32.mrb[0].mxu0
        %v10504 = vadd.f32 0.0, %v10503
        %v10505 = vpop.f32.mrb[0].mxu0
        %v10506 = vpop.f32.mrb[0].mxu0
        %v10507 = vpop.f32.mrb[0].mxu0
        %10508 = vmatprep.mubr.bf16.mxu0 %v10415
        %10509 = vmatmul.mubr.bf16.gmra.mrb[0].mxu0 %v10291
        %v10510 = vpop.f32.mrb[0].mxu0
        %v10511 = vpop.f32.mrb[0].mxu0
        %v10512 = vpop.f32.mrb[0].mxu0
        %v10513 = vpop.f32.mrb[0].mxu0
        %10514 = vmatprep.mubr.bf16.mxu0 %v10418
        %10515 = vmatmul.mubr.bf16.gmra.mrb[0].mxu0 %v10293
        %v10516 = vpop.f32.mrb[0].mxu0
        %v10517 = vpop.f32.mrb[0].mxu0
        %v10518 = vpop.f32.mrb[0].mxu0
        %v10519 = vpop.f32.mrb[0].mxu0
        %10520 = vdwg.mxu0
        %v10521 = vld [vmem:[%s21] sm:$0xff]
        %v10522 = vld [vmem:[%s21 + $0x8] sm:$0xff]
        %v10523 = vld [vmem:[%s21 + $0x10] sm:$0xff]
        %v10524 = vld [vmem:[%s21 + $0x18] sm:$0xff]
        %v10525 = vld [vmem:[%s21 + $0x20] sm:$0xff]
        %v10526 = vld [vmem:[%s21 + $0x28] sm:$0xff]
        %v10527 = vld [vmem:[%s21 + $0x30] sm:$0xff]
        %v10528 = vld [vmem:[%s21 + $0x38] sm:$0xff]
        %v10529 = vmul.f32 %v10455, %v10521
        %v10530 = vmul.f32 %v10462, %v10522
        %v10531 = vmul.f32 %v10469, %v10523
        %v10532 = vmul.f32 %v10476, %v10524
        %v10533 = vmul.f32 %v10483, %v10525
        %v10534 = vmul.f32 %v10490, %v10526
        %v10535 = vmul.f32 %v10497, %v10527
        %v10536 = vmul.f32 %v10504, %v10528
        %v10537 = vld [vmem:[%s20] sm:$0x1]
        %v10539 = vlaneseq
        %v10540 = vshrl.u32 %v10539, 7
        %v10541 = vsub.s32 0, %v10540
        %v10542 = vrot.slane %v10537, %v10541
        %v10544 = vadd.f32 %v10529, %v10542
        %v10545 = vadd.f32 %v10530, %v10542
        %v10546 = vadd.f32 %v10531, %v10542
        %v10547 = vadd.f32 %v10532, %v10542
        %v10548 = vadd.f32 %v10533, %v10542
        %v10549 = vadd.f32 %v10534, %v10542
        %v10550 = vadd.f32 %v10535, %v10542
        %v10551 = vadd.f32 %v10536, %v10542
        %vm10552 = vcmp.gt.f32.partialorder %v10544, 0.0
        %vm10553 = vcmp.gt.f32.partialorder %v10545, 0.0
        %vm10554 = vcmp.gt.f32.partialorder %v10546, 0.0
        %vm10555 = vcmp.gt.f32.partialorder %v10547, 0.0
        %vm10556 = vcmp.gt.f32.partialorder %v10548, 0.0
        %vm10557 = vcmp.gt.f32.partialorder %v10549, 0.0
        %vm10558 = vcmp.gt.f32.partialorder %v10550, 0.0
        %vm10559 = vcmp.gt.f32.partialorder %v10551, 0.0
        %v10560 = vmin.f32 %v10544, 0.0
        %v10561 = vmin.f32 %v10545, 0.0
        %v10562 = vmin.f32 %v10546, 0.0
        %v10563 = vmin.f32 %v10547, 0.0
        %v10564 = vmin.f32 %v10548, 0.0
        %v10565 = vmin.f32 %v10549, 0.0
        %v10566 = vmin.f32 %v10550, 0.0
        %v10567 = vmin.f32 %v10551, 0.0
        %v10568 = vmul.f32 %v10560, 1.442695
        %v10569 = vpow.pop %v10568
        %v10570 = vmul.f32 %v10561, 1.442695
        %v10571 = vpow.pop %v10570
        %v10572 = vmul.f32 %v10562, 1.442695
        %v10573 = vpow.pop %v10572
        %v10574 = vmul.f32 %v10563, 1.442695
        %v10575 = vpow.pop %v10574
        %v10576 = vmul.f32 %v10564, 1.442695
        %v10577 = vpow.pop %v10576
        %v10578 = vmul.f32 %v10565, 1.442695
        %v10579 = vpow.pop %v10578
        %v10580 = vmul.f32 %v10566, 1.442695
        %v10581 = vpow.pop %v10580
        %v10582 = vmul.f32 %v10567, 1.442695
        %v10583 = vpow.pop %v10582
        %v10584 = vsub.f32 %v10569, 1.0
        %v10585 = vsub.f32 %v10571, 1.0
        %v10586 = vsub.f32 %v10573, 1.0
        %v10587 = vsub.f32 %v10575, 1.0
        %v10588 = vsub.f32 %v10577, 1.0
        %v10589 = vsub.f32 %v10579, 1.0
        %v10590 = vsub.f32 %v10581, 1.0
        %v10591 = vsub.f32 %v10583, 1.0
        %v10592 = vsel %vm10552, %v10544, %v10584
        %v10593 = vsel %vm10553, %v10545, %v10585
        %v10594 = vsel %vm10554, %v10546, %v10586
        %v10595 = vsel %vm10555, %v10547, %v10587
        %v10596 = vsel %vm10556, %v10548, %v10588
        %v10597 = vsel %vm10557, %v10549, %v10589
        %v10598 = vsel %vm10558, %v10550, %v10590
        %v10599 = vsel %vm10559, %v10551, %v10591
        %10608 = vrot.lane.b32.xlu0 %v7382, 96
        %v10609 = vpop.permute.xlu0 %10608
        %10610 = vrot.lane.b32.xlu0 %v7383, 96
        %v10611 = vpop.permute.xlu0 %10610
        %10612 = vrot.lane.b32.xlu0 %v7384, 96
        %v10613 = vpop.permute.xlu0 %10612
        %10614 = vrot.lane.b32.xlu0 %v7385, 96
        %v10615 = vpop.permute.xlu0 %10614
        %10616 = vrot.lane.b32.xlu0 %v7386, 96
        %v10617 = vpop.permute.xlu0 %10616
        %10618 = vrot.lane.b32.xlu0 %v7387, 96
        %v10619 = vpop.permute.xlu0 %10618
        %10620 = vrot.lane.b32.xlu0 %v7388, 96
        %v10621 = vpop.permute.xlu0 %10620
        %10622 = vrot.lane.b32.xlu0 %v7389, 96
        %v10623 = vpop.permute.xlu0 %10622
        %10640 = vrot.lane.b32.xlu0 %v9655, 32
        %v10641 = vpop.permute.xlu0 %10640
        %10642 = vrot.lane.b32.xlu0 %v9656, 32
        %v10643 = vpop.permute.xlu0 %10642
        %10644 = vrot.lane.b32.xlu0 %v9657, 32
        %v10645 = vpop.permute.xlu0 %10644
        %10646 = vrot.lane.b32.xlu0 %v9658, 32
        %v10647 = vpop.permute.xlu0 %10646
        %10648 = vrot.lane.b32.xlu0 %v9659, 32
        %v10649 = vpop.permute.xlu0 %10648
        %10650 = vrot.lane.b32.xlu0 %v9660, 32
        %v10651 = vpop.permute.xlu0 %10650
        %10652 = vrot.lane.b32.xlu0 %v9661, 32
        %v10653 = vpop.permute.xlu0 %10652
        %10654 = vrot.lane.b32.xlu0 %v9662, 32
        %v10655 = vpop.permute.xlu0 %10654
        %v10664 = vsel %vm1430, %v5625, %v10609
        %v10665 = vsel %vm1430, %v5627, %v10611
        %v10666 = vsel %vm1430, %v5629, %v10613
        %v10667 = vsel %vm1430, %v5631, %v10615
        %v10668 = vsel %vm1430, %v5633, %v10617
        %v10669 = vsel %vm1430, %v5635, %v10619
        %v10670 = vsel %vm1430, %v5637, %v10621
        %v10671 = vsel %vm1430, %v5639, %v10623
        %v10672 = vsel %vm1306, %v10609, %v10641
        %v10673 = vsel %vm1306, %v10611, %v10643
        %v10674 = vsel %vm1306, %v10613, %v10645
        %v10675 = vsel %vm1306, %v10615, %v10647
        %v10676 = vsel %vm1306, %v10617, %v10649
        %v10677 = vsel %vm1306, %v10619, %v10651
        %v10678 = vsel %vm1306, %v10621, %v10653
        %v10679 = vsel %vm1306, %v10623, %v10655
        %10680 = vst [vmem:[%s676] sm:$0xff] %v10664
        %10681 = vst [vmem:[%s676 + $0x8] sm:$0xff] %v10672
        %10682 = vst.msk [vmem:[%s676 + $0x10] sm:$0xff] %vm1331, %v10592
        %10683 = vst [vmem:[%s676 + $0x18] sm:$0xff] %v10665
        %10684 = vst [vmem:[%s676 + $0x20] sm:$0xff] %v10673
        %10685 = vst.msk [vmem:[%s676 + $0x28] sm:$0xff] %vm1331, %v10593
        %10686 = vst [vmem:[%s676 + $0x30] sm:$0xff] %v10666
        %10687 = vst [vmem:[%s676 + $0x38] sm:$0xff] %v10674
        %10688 = vst.msk [vmem:[%s676 + $0x40] sm:$0xff] %vm1331, %v10594
        %10689 = vst [vmem:[%s676 + $0x48] sm:$0xff] %v10667
        %10690 = vst [vmem:[%s676 + $0x50] sm:$0xff] %v10675
        %10691 = vst.msk [vmem:[%s676 + $0x58] sm:$0xff] %vm1331, %v10595
        %10692 = vst [vmem:[%s676 + $0x60] sm:$0xff] %v10668
        %10693 = vst [vmem:[%s676 + $0x68] sm:$0xff] %v10676
        %10694 = vst.msk [vmem:[%s676 + $0x70] sm:$0xff] %vm1331, %v10596
        %10695 = vst [vmem:[%s676 + $0x78] sm:$0xff] %v10669
        %10696 = vst [vmem:[%s676 + $0x80] sm:$0xff] %v10677
        %10697 = vst.msk [vmem:[%s676 + $0x88] sm:$0xff] %vm1331, %v10597
        %10698 = vst [vmem:[%s676 + $0x90] sm:$0xff] %v10670
        %10699 = vst [vmem:[%s676 + $0x98] sm:$0xff] %v10678
        %10700 = vst.msk [vmem:[%s676 + $0xa0] sm:$0xff] %vm1331, %v10598
        %10701 = vst [vmem:[%s676 + $0xa8] sm:$0xff] %v10671
        %10702 = vst [vmem:[%s676 + $0xb0] sm:$0xff] %v10679
        %10703 = vst.msk [vmem:[%s676 + $0xb8] sm:$0xff] %vm1331, %v10599
        %s10704 = sand.u32 %s511, 1
        %s10705 = scalar_lea.sflag [#allocation3], %s10704
        %s10706 = sand.u32 %s511, 1
        %s10707 = smul.addr %s10706, 192
        %s10708 = scalar_lea.vmem [#allocation2], %s10707
        // Predicated region
        $region109: #{irnet_forward.1} parent=107 // pred_check
          %p10709 = pneg %p521
        $region110: #{irnet_forward.1} parent=107 // pred_check_branch
          %10711 = sbr.rel (%p10709) target = $region112
        $region111: #{irnet_forward.1} parent=107 // pred_region
          %s10713 = ssub.s32 3072, 3072
          %10714 = vsyncadd %s10705, %s10713
          %s10715 = smul.addr %s36, 24
          %s10716 = smul.addr %s10715, 128
          %s10717 = scalar_lea.hbm %s22, %s10716
          %s10718 = sshll.u32 %s10708, 4
          %s10719 = int_to_ptr.vmem [resolvable:$true] %s10718
          %10724 = dma.vmem_to_hbm [thread:$0]  %s10719, 3072, %s10717, %s10705, 384, 384, 24
        $region112: #{irnet_forward.1} parent=107 // pred_fallthru
          _
      $region108: #{irnet_forward.1} parent=5 // pred_fallthru
        _
      %p10725 = scmp.le.s32.totalorder 2, %s31
      // Predicated region
      $region113: #{irnet_forward.1} parent=5 // pred_check
        %p10726 = pneg %p10725
      $region114: #{irnet_forward.1} parent=5 // pred_check_branch
        %10728 = sbr.rel (%p10726) target = $region116
      $region115: #{irnet_forward.1} parent=5 // pred_region
        %s10729 = ssub.s32 %s31, 2
        // Predicated region
        $region117: #{irnet_forward.1} parent=115 // pred_check
          %p10730 = pneg %p527
        $region118: #{irnet_forward.1} parent=115 // pred_check_branch
          %10732 = sbr.rel (%p10730) target = $region120
        $region119: #{irnet_forward.1} parent=115 // pred_region
          %s10733 = sand.u32 %s512, 1
          %s10734 = scalar_lea.sflag [#allocation3], %s10733
          %s10735 = sand.u32 %s512, 1
          %s10736 = smul.addr %s10735, 192
          %s10737 = scalar_lea.vmem [#allocation2], %s10736
          %10738 = dma.done %s10734, 3072
        $region120: #{irnet_forward.1} parent=115 // pred_fallthru
          _
      $region116: #{irnet_forward.1} parent=5 // pred_fallthru
        _
    $region6: #{irnet_forward.1} parent=1 // loop_footer
      %s35 = sadd.s32 1, %s31
    $region7: #{irnet_forward.1} parent=1 // loop_footer_branch
      %30 = sbr.rel target = $region3
    $region8: #{irnet_forward.1} parent=1 // loop_exit
      _
    %10739 = vsyncpa [#allocation3], 1
    %s10740 = scalar_lea.sflag [#allocation3], 1
    %10741 = vsyncpa %s10740, 1

</llo_original>
